<compile_context>
chip_gen: v7x
topology: tpu7x:2x2x1
jax: 0.10.0
libtpu: 0.0.40
codegen_flags: <defaults>
</compile_context>

<pallas_src>
import functools
import math

import jax
import jax.numpy as jnp
from jax import lax
from jax.experimental import pallas as pl
from jax.experimental.pallas import tpu as pltpu

_EPS = 1e-5        # nn.InstanceNorm2d default eps
_NEG_BIG = -1e30   # padding value for masked softmax lanes


# ---------------------------------------------------------------------------
# In-kernel helpers (operate on values held in vregs / VMEM)
# ---------------------------------------------------------------------------
def _reflect_pad1(x):
    """ReflectionPad2d(1) on an (H, W, C) block, built from slice concats."""
    H, W, _ = x.shape
    x = jnp.concatenate([x[1:2], x, x[H - 2:H - 1]], axis=0)        # rows
    x = jnp.concatenate([x[:, 1:2], x, x[:, W - 2:W - 1]], axis=1)  # cols
    return x


def _instance_norm(acc, gb_ref):
    """Per-channel InstanceNorm over rows of (HW, C) + affine (one-pass stats)."""
    mean = jnp.mean(acc, axis=0, keepdims=True)
    var = jnp.mean(acc * acc, axis=0, keepdims=True) - mean * mean
    var = jnp.maximum(var, 0.0)
    y = (acc - mean) * lax.rsqrt(var + _EPS)
    return y * gb_ref[0:1, :] + gb_ref[1:2, :]


def _conv3x3_in_relu(x, w_ref, gb_ref):
    """(H, W, Cin) -> (H, W, Cout): pad + im2col + single MXU matmul + IN + ReLU."""
    H, W, Cin = x.shape
    Cout = w_ref.shape[-1]
    xp = _reflect_pad1(x)
    cols = [xp[dy:dy + H, dx:dx + W, :].reshape(H * W, Cin)
            for dy in range(3) for dx in range(3)]
    patches = jnp.concatenate(cols, axis=-1).astype(jnp.bfloat16)    # (HW, 9*Cin)
    acc = jnp.dot(patches, w_ref[...], preferred_element_type=jnp.float32)
    y = jnp.maximum(_instance_norm(acc, gb_ref), 0.0)
    return y.reshape(H, W, Cout)


# ---------------------------------------------------------------------------
# Fused whole-network kernel (one sample per grid step)
# ---------------------------------------------------------------------------
def _spixel_fused_kernel(x_ref,
                         w1_ref, gb1_ref, w2_ref, gb2_ref,
                         w3_ref, gb3_ref, w4_ref, gb4_ref,
                         wh_ref, gbh_ref,
                         prob_ref, recon_ref,
                         *, sw, sh):
    H, W, _ = x_ref.shape
    HW = H * W

    # ---- feature trunk: 4x (pad + conv3x3 + IN + ReLU), resident in VMEM ----
    feat = x_ref[...]
    for w_ref, gb_ref in ((w1_ref, gb1_ref), (w2_ref, gb2_ref),
                          (w3_ref, gb3_ref), (w4_ref, gb4_ref)):
        feat = _conv3x3_in_relu(feat, w_ref, gb_ref)

    # ---- fused 1x1 heads: columns = [recon(3) | spixel_x(sw) | spixel_y(sh)]
    Cf = feat.shape[-1]
    heads = jnp.dot(feat.reshape(HW, Cf).astype(jnp.bfloat16), wh_ref[...],
                    preferred_element_type=jnp.float32)
    heads = _instance_norm(heads, gbh_ref)
    recon = heads[:, 0:3]
    s_x = heads[:, 3:3 + sw]
    s_y = heads[:, 3 + sw:3 + sw + sh]

    # ---- get_spixel_prob + softmax over the joint (y*Sw + x) channel -------
    # TODO(synk): get_spixel_prob is not defined in the provided source; per
    # the class docstring it is the einsum outer product
    # prob[:, y*Sw + x, h, w] = spixel_y[:, y, h, w] * spixel_x[:, x, h, w].
    S = sh * sw
    SP = prob_ref.shape[-1]                      # lane-dense padded width (128)
    pieces = [s_y[:, y:y + 1] * s_x for y in range(sh)]
    if SP > S:
        pieces.append(jnp.full((HW, SP - S), _NEG_BIG, jnp.float32))
    logits = jnp.concatenate(pieces, axis=-1)    # (HW, SP)
    m = jnp.max(logits, axis=-1, keepdims=True)
    e = jnp.exp(logits - m)                      # padded lanes -> exactly 0
    p = e * pl.reciprocal(jnp.sum(e, axis=-1, keepdims=True), approx=True)

    prob_ref[...] = p.reshape(H, W, SP).astype(prob_ref.dtype)
    recon_ref[...] = recon.reshape(H, W, 3).astype(recon_ref.dtype)


# ---------------------------------------------------------------------------
# Wrapper: parameter repacking + pallas_call plumbing
# ---------------------------------------------------------------------------
def spixel_cnn_forward(params, x_nchw):
    # torch.cat([x[:, :3], x[:, -2:]], 1), then NCHW -> NHWC for the kernel.
    x_in = jnp.concatenate([x_nchw[:, :3], x_nchw[:, -2:]], axis=1)
    x = jnp.transpose(x_in, (0, 2, 3, 1)).astype(jnp.float32)
    N, H, W, Cin = x.shape

    args = []
    in_specs = [pl.BlockSpec((pl.Squeezed(), H, W, Cin),
                             lambda n: (n, 0, 0, 0))]

    # Conv trunk: flatten each (3,3,Ci,Co) weight to im2col form (9*Ci, Co),
    # cast to bf16 (MXU-native on all generations), stack gamma/beta (2, Co).
    for layer in params["feat"]:
        w = layer["w"]
        k0, k1, ci, co = w.shape
        w2 = w.reshape(k0 * k1 * ci, co).astype(jnp.bfloat16)
        gb = jnp.stack([layer["gamma"], layer["beta"]], axis=0)
        args += [w2, gb]
        in_specs += [pl.BlockSpec(w2.shape, lambda n: (0, 0)),
                     pl.BlockSpec(gb.shape, lambda n: (0, 0))]

    # Fused 1x1 heads: [recon | spixel_x | spixel_y].
    wr, wx, wy = (params["recon"]["w"], params["spixel_x"]["w"],
                  params["spixel_y"]["w"])
    sw, sh = wx.shape[-1], wy.shape[-1]
    wh = jnp.concatenate([wr, wx, wy], axis=-1).astype(jnp.bfloat16)
    gh = jnp.concatenate([params[k]["gamma"]
                          for k in ("recon", "spixel_x", "spixel_y")])
    bh = jnp.concatenate([params[k]["beta"]
                          for k in ("recon", "spixel_x", "spixel_y")])
    gbh = jnp.stack([gh, bh], axis=0)
    args += [wh, gbh]
    in_specs += [pl.BlockSpec(wh.shape, lambda n: (0, 0)),
                 pl.BlockSpec(gbh.shape, lambda n: (0, 0))]

    S = sh * sw
    SP = max(128, ((S + 127) // 128) * 128)   # lane-dense prob store width

    prob_padded, recon = pl.pallas_call(
        functools.partial(_spixel_fused_kernel, sw=sw, sh=sh),
        out_shape=(jax.ShapeDtypeStruct((N, H, W, SP), jnp.float32),
                   jax.ShapeDtypeStruct((N, H, W, 3), jnp.float32)),
        grid=(N,),
        in_specs=in_specs,
        out_specs=(pl.BlockSpec((pl.Squeezed(), H, W, SP),
                                lambda n: (n, 0, 0, 0)),
                   pl.BlockSpec((pl.Squeezed(), H, W, 3),
                                lambda n: (n, 0, 0, 0))),
        compiler_params=pltpu.CompilerParams(
            dimension_semantics=("parallel",)),   # v7x: shard batch over 2 TCs
    )(x, *args)

    prob = prob_padded[..., :S]
    # Back to PyTorch NCHW output convention.
    return (jnp.transpose(prob, (0, 3, 1, 2)),
            jnp.transpose(recon, (0, 3, 1, 2)))


# ---------------------------------------------------------------------------
# Parameter init (deterministic; mirrors SpixelCNN.__init__ / weight_init)
# ---------------------------------------------------------------------------
def init_spixel_cnn_params(key, img_shape, num_spixels=100, in_c=5,
                           num_feat=8, num_layers=4):
    params = {"feat": []}
    c = in_c
    for idx in range(num_layers):
        out_c = num_feat << idx
        key, kw = jax.random.split(key)
        # kaiming_normal_: std = sqrt(2 / fan_in), fan_in = Cin * 3 * 3
        w = jax.random.normal(kw, (3, 3, c, out_c), jnp.float32) * math.sqrt(
            2.0 / (c * 9))
        params["feat"].append(dict(w=w,
                                   gamma=jnp.ones((out_c,), jnp.float32),
                                   beta=jnp.zeros((out_c,), jnp.float32)))
        c = out_c
    H, W = img_shape
    n_sw = int(math.sqrt(num_spixels * W / H))
    n_sh = int(math.sqrt(num_spixels * H / W))

    def head(k, cin, cout):
        w = jax.random.normal(k, (cin, cout), jnp.float32) * math.sqrt(2.0 / cin)
        return dict(w=w, gamma=jnp.ones((cout,), jnp.float32),
                    beta=jnp.zeros((cout,), jnp.float32))

    key, k1, k2, k3 = jax.random.split(key, 4)
    params["recon"] = head(k1, c, 3)
    params["spixel_x"] = head(k2, c, n_sw)
    params["spixel_y"] = head(k3, c, n_sh)
    return params


if __name__ == "__main__":
    key = jax.random.PRNGKey(0)
    key, kx = jax.random.split(key)
    H = W = 16
    # NCHW input: 3 image channels + 2 coordinate channels (forward uses
    # x[:, :3] and x[:, -2:], i.e. 5 input channels to feat_conv).
    x = jax.random.normal(kx, (2, 5, H, W), jnp.float32)
    params = init_spixel_cnn_params(key, (H, W), num_spixels=100,
                                    in_c=5, num_feat=8, num_layers=4)
    prob, recon = jax.jit(spixel_cnn_forward)(params, x)
    jax.block_until_ready((prob, recon))
    assert prob.shape == (2, 100, H, W), prob.shape
    assert recon.shape == (2, 3, H, W), recon.shape
    assert bool(jnp.all(jnp.isfinite(prob))) and bool(jnp.all(jnp.isfinite(recon)))
    print("KERNEL_OK")
</pallas_src>

<mosaic_0001>
module attributes {stable_mosaic.version = 11 : i64} {
  func.func @_spixel_fused_kernel(%arg0: i32, %arg1: memref<1x16x16x5xf32, #tpu.memory_space<vmem>>, %arg2: memref<45x8xbf16, #tpu.memory_space<vmem>>, %arg3: memref<2x8xf32, #tpu.memory_space<vmem>>, %arg4: memref<72x16xbf16, #tpu.memory_space<vmem>>, %arg5: memref<2x16xf32, #tpu.memory_space<vmem>>, %arg6: memref<144x32xbf16, #tpu.memory_space<vmem>>, %arg7: memref<2x32xf32, #tpu.memory_space<vmem>>, %arg8: memref<288x64xbf16, #tpu.memory_space<vmem>>, %arg9: memref<2x64xf32, #tpu.memory_space<vmem>>, %arg10: memref<64x23xbf16, #tpu.memory_space<vmem>>, %arg11: memref<2x23xf32, #tpu.memory_space<vmem>>, %arg12: memref<1x16x16x128xf32, #tpu.memory_space<vmem>>, %arg13: memref<1x16x16x3xf32, #tpu.memory_space<vmem>>) attributes {dimension_semantics = [#tpu.dimension_semantics<parallel>], iteration_bounds = array<i64: 2>, scalar_prefetch = 0 : i64, scratch_operands = 0 : i64, tpu.core_type = #tpu.core_type<tc>, window_params = [{transform_indices = @transform_0, window_bounds = array<i64: 1, 16, 16, 5>}, {pipeline_mode = #tpu.pipeline_mode<synchronous>, transform_indices = @transform_1, window_bounds = array<i64: 45, 8>}, {pipeline_mode = #tpu.pipeline_mode<synchronous>, transform_indices = @transform_2, window_bounds = array<i64: 2, 8>}, {pipeline_mode = #tpu.pipeline_mode<synchronous>, transform_indices = @transform_3, window_bounds = array<i64: 72, 16>}, {pipeline_mode = #tpu.pipeline_mode<synchronous>, transform_indices = @transform_4, window_bounds = array<i64: 2, 16>}, {pipeline_mode = #tpu.pipeline_mode<synchronous>, transform_indices = @transform_5, window_bounds = array<i64: 144, 32>}, {pipeline_mode = #tpu.pipeline_mode<synchronous>, transform_indices = @transform_6, window_bounds = array<i64: 2, 32>}, {pipeline_mode = #tpu.pipeline_mode<synchronous>, transform_indices = @transform_7, window_bounds = array<i64: 288, 64>}, {pipeline_mode = #tpu.pipeline_mode<synchronous>, transform_indices = @transform_8, window_bounds = array<i64: 2, 64>}, {pipeline_mode = #tpu.pipeline_mode<synchronous>, transform_indices = @transform_9, window_bounds = array<i64: 64, 23>}, {pipeline_mode = #tpu.pipeline_mode<synchronous>, transform_indices = @transform_10, window_bounds = array<i64: 2, 23>}, {transform_indices = @transform_11, window_bounds = array<i64: 1, 16, 16, 128>}, {transform_indices = @transform_12, window_bounds = array<i64: 1, 16, 16, 3>}]} {
    %c0 = arith.constant 0 : index
    %c0_0 = arith.constant 0 : index
    %c0_1 = arith.constant 0 : index
    %c0_2 = arith.constant 0 : index
    %0 = vector.load %arg1[%c0, %c0_0, %c0_1, %c0_2] : memref<1x16x16x5xf32, #tpu.memory_space<vmem>>, vector<1x16x16x5xf32>
    %1 = vector.shape_cast %0 : vector<1x16x16x5xf32> to vector<16x16x5xf32>
    %2 = vector.extract_strided_slice %1 {offsets = [1, 0, 0], sizes = [1, 16, 5], strides = [1, 1, 1]} : vector<16x16x5xf32> to vector<1x16x5xf32>
    %3 = vector.extract_strided_slice %1 {offsets = [14, 0, 0], sizes = [1, 16, 5], strides = [1, 1, 1]} : vector<16x16x5xf32> to vector<1x16x5xf32>
    %4 = tpu.concatenate %2, %1, %3 in 0 : vector<1x16x5xf32>, vector<16x16x5xf32>, vector<1x16x5xf32> -> vector<18x16x5xf32>
    %5 = vector.extract_strided_slice %4 {offsets = [0, 1, 0], sizes = [18, 1, 5], strides = [1, 1, 1]} : vector<18x16x5xf32> to vector<18x1x5xf32>
    %6 = vector.extract_strided_slice %4 {offsets = [0, 14, 0], sizes = [18, 1, 5], strides = [1, 1, 1]} : vector<18x16x5xf32> to vector<18x1x5xf32>
    %7 = tpu.concatenate %5, %4, %6 in 1 : vector<18x1x5xf32>, vector<18x16x5xf32>, vector<18x1x5xf32> -> vector<18x18x5xf32>
    %8 = vector.extract_strided_slice %7 {offsets = [0, 0, 0], sizes = [16, 16, 5], strides = [1, 1, 1]} : vector<18x18x5xf32> to vector<16x16x5xf32>
    %9 = vector.shape_cast %8 : vector<16x16x5xf32> to vector<256x5xf32>
    %10 = vector.extract_strided_slice %7 {offsets = [0, 1, 0], sizes = [16, 16, 5], strides = [1, 1, 1]} : vector<18x18x5xf32> to vector<16x16x5xf32>
    %11 = vector.shape_cast %10 : vector<16x16x5xf32> to vector<256x5xf32>
    %12 = vector.extract_strided_slice %7 {offsets = [0, 2, 0], sizes = [16, 16, 5], strides = [1, 1, 1]} : vector<18x18x5xf32> to vector<16x16x5xf32>
    %13 = vector.shape_cast %12 : vector<16x16x5xf32> to vector<256x5xf32>
    %14 = vector.extract_strided_slice %7 {offsets = [1, 0, 0], sizes = [16, 16, 5], strides = [1, 1, 1]} : vector<18x18x5xf32> to vector<16x16x5xf32>
    %15 = vector.shape_cast %14 : vector<16x16x5xf32> to vector<256x5xf32>
    %16 = vector.extract_strided_slice %7 {offsets = [1, 1, 0], sizes = [16, 16, 5], strides = [1, 1, 1]} : vector<18x18x5xf32> to vector<16x16x5xf32>
    %17 = vector.shape_cast %16 : vector<16x16x5xf32> to vector<256x5xf32>
    %18 = vector.extract_strided_slice %7 {offsets = [1, 2, 0], sizes = [16, 16, 5], strides = [1, 1, 1]} : vector<18x18x5xf32> to vector<16x16x5xf32>
    %19 = vector.shape_cast %18 : vector<16x16x5xf32> to vector<256x5xf32>
    %20 = vector.extract_strided_slice %7 {offsets = [2, 0, 0], sizes = [16, 16, 5], strides = [1, 1, 1]} : vector<18x18x5xf32> to vector<16x16x5xf32>
    %21 = vector.shape_cast %20 : vector<16x16x5xf32> to vector<256x5xf32>
    %22 = vector.extract_strided_slice %7 {offsets = [2, 1, 0], sizes = [16, 16, 5], strides = [1, 1, 1]} : vector<18x18x5xf32> to vector<16x16x5xf32>
    %23 = vector.shape_cast %22 : vector<16x16x5xf32> to vector<256x5xf32>
    %24 = vector.extract_strided_slice %7 {offsets = [2, 2, 0], sizes = [16, 16, 5], strides = [1, 1, 1]} : vector<18x18x5xf32> to vector<16x16x5xf32>
    %25 = vector.shape_cast %24 : vector<16x16x5xf32> to vector<256x5xf32>
    %26 = tpu.concatenate %9, %11, %13, %15, %17, %19, %21, %23, %25 in 1 : vector<256x5xf32>, vector<256x5xf32>, vector<256x5xf32>, vector<256x5xf32>, vector<256x5xf32>, vector<256x5xf32>, vector<256x5xf32>, vector<256x5xf32>, vector<256x5xf32> -> vector<256x45xf32>
    %27 = arith.truncf %26 : vector<256x45xf32> to vector<256x45xbf16>
    %c0_3 = arith.constant 0 : index
    %c0_4 = arith.constant 0 : index
    %28 = vector.load %arg2[%c0_3, %c0_4] : memref<45x8xbf16, #tpu.memory_space<vmem>>, vector<45x8xbf16>
    %cst = arith.constant dense<0.000000e+00> : vector<256x8xf32>
    %29 = tpu.matmul %27, %28, %cst {dimension_numbers = #tpu.dot_dimension_numbers<[1], [0], [0], [1], [0, 0, 1, 1], [], []>} : vector<256x45xbf16>, vector<45x8xbf16>, vector<256x8xf32> -> vector<256x8xf32>
    %cst_5 = arith.constant dense<0.000000e+00> : vector<8xf32>
    %30 = vector.multi_reduction <add>, %29, %cst_5 [0] : vector<256x8xf32> to vector<8xf32>
    %31 = vector.shape_cast %30 : vector<8xf32> to vector<1x8xf32>
    %cst_6 = arith.constant 2.560000e+02 : f32
    %32 = vector.broadcast %cst_6 : f32 to vector<1x8xf32>
    %33 = arith.divf %31, %32 : vector<1x8xf32>
    %34 = arith.mulf %29, %29 : vector<256x8xf32>
    %cst_7 = arith.constant dense<0.000000e+00> : vector<8xf32>
    %35 = vector.multi_reduction <add>, %34, %cst_7 [0] : vector<256x8xf32> to vector<8xf32>
    %36 = vector.shape_cast %35 : vector<8xf32> to vector<1x8xf32>
    %cst_8 = arith.constant 2.560000e+02 : f32
    %37 = vector.broadcast %cst_8 : f32 to vector<1x8xf32>
    %38 = arith.divf %36, %37 : vector<1x8xf32>
    %39 = arith.mulf %33, %33 : vector<1x8xf32>
    %40 = arith.subf %38, %39 : vector<1x8xf32>
    %cst_9 = arith.constant 0.000000e+00 : f32
    %41 = vector.broadcast %cst_9 : f32 to vector<1x8xf32>
    %42 = arith.maximumf %40, %41 : vector<1x8xf32>
    %43 = vector.broadcast %33 : vector<1x8xf32> to vector<256x8xf32>
    %44 = arith.subf %29, %43 : vector<256x8xf32>
    %cst_10 = arith.constant 9.99999974E-6 : f32
    %45 = vector.broadcast %cst_10 : f32 to vector<1x8xf32>
    %46 = arith.addf %42, %45 : vector<1x8xf32>
    %47 = math.rsqrt %46 : vector<1x8xf32>
    %48 = vector.broadcast %47 : vector<1x8xf32> to vector<256x8xf32>
    %49 = arith.mulf %44, %48 : vector<256x8xf32>
    %c0_11 = arith.constant 0 : index
    %c0_12 = arith.constant 0 : index
    %50 = vector.load %arg3[%c0_11, %c0_12] : memref<2x8xf32, #tpu.memory_space<vmem>>, vector<1x8xf32>
    %51 = vector.broadcast %50 : vector<1x8xf32> to vector<256x8xf32>
    %52 = arith.mulf %49, %51 : vector<256x8xf32>
    %c1 = arith.constant 1 : index
    %c0_13 = arith.constant 0 : index
    %53 = vector.load %arg3[%c1, %c0_13] : memref<2x8xf32, #tpu.memory_space<vmem>>, vector<1x8xf32>
    %54 = vector.broadcast %53 : vector<1x8xf32> to vector<256x8xf32>
    %55 = arith.addf %52, %54 : vector<256x8xf32>
    %cst_14 = arith.constant 0.000000e+00 : f32
    %56 = vector.broadcast %cst_14 : f32 to vector<256x8xf32>
    %57 = arith.maximumf %55, %56 : vector<256x8xf32>
    %58 = vector.shape_cast %57 : vector<256x8xf32> to vector<16x16x8xf32>
    %59 = vector.extract_strided_slice %58 {offsets = [1, 0, 0], sizes = [1, 16, 8], strides = [1, 1, 1]} : vector<16x16x8xf32> to vector<1x16x8xf32>
    %60 = vector.extract_strided_slice %58 {offsets = [14, 0, 0], sizes = [1, 16, 8], strides = [1, 1, 1]} : vector<16x16x8xf32> to vector<1x16x8xf32>
    %61 = tpu.concatenate %59, %58, %60 in 0 : vector<1x16x8xf32>, vector<16x16x8xf32>, vector<1x16x8xf32> -> vector<18x16x8xf32>
    %62 = vector.extract_strided_slice %61 {offsets = [0, 1, 0], sizes = [18, 1, 8], strides = [1, 1, 1]} : vector<18x16x8xf32> to vector<18x1x8xf32>
    %63 = vector.extract_strided_slice %61 {offsets = [0, 14, 0], sizes = [18, 1, 8], strides = [1, 1, 1]} : vector<18x16x8xf32> to vector<18x1x8xf32>
    %64 = tpu.concatenate %62, %61, %63 in 1 : vector<18x1x8xf32>, vector<18x16x8xf32>, vector<18x1x8xf32> -> vector<18x18x8xf32>
    %65 = vector.extract_strided_slice %64 {offsets = [0, 0, 0], sizes = [16, 16, 8], strides = [1, 1, 1]} : vector<18x18x8xf32> to vector<16x16x8xf32>
    %66 = vector.shape_cast %65 : vector<16x16x8xf32> to vector<256x8xf32>
    %67 = vector.extract_strided_slice %64 {offsets = [0, 1, 0], sizes = [16, 16, 8], strides = [1, 1, 1]} : vector<18x18x8xf32> to vector<16x16x8xf32>
    %68 = vector.shape_cast %67 : vector<16x16x8xf32> to vector<256x8xf32>
    %69 = vector.extract_strided_slice %64 {offsets = [0, 2, 0], sizes = [16, 16, 8], strides = [1, 1, 1]} : vector<18x18x8xf32> to vector<16x16x8xf32>
    %70 = vector.shape_cast %69 : vector<16x16x8xf32> to vector<256x8xf32>
    %71 = vector.extract_strided_slice %64 {offsets = [1, 0, 0], sizes = [16, 16, 8], strides = [1, 1, 1]} : vector<18x18x8xf32> to vector<16x16x8xf32>
    %72 = vector.shape_cast %71 : vector<16x16x8xf32> to vector<256x8xf32>
    %73 = vector.extract_strided_slice %64 {offsets = [1, 1, 0], sizes = [16, 16, 8], strides = [1, 1, 1]} : vector<18x18x8xf32> to vector<16x16x8xf32>
    %74 = vector.shape_cast %73 : vector<16x16x8xf32> to vector<256x8xf32>
    %75 = vector.extract_strided_slice %64 {offsets = [1, 2, 0], sizes = [16, 16, 8], strides = [1, 1, 1]} : vector<18x18x8xf32> to vector<16x16x8xf32>
    %76 = vector.shape_cast %75 : vector<16x16x8xf32> to vector<256x8xf32>
    %77 = vector.extract_strided_slice %64 {offsets = [2, 0, 0], sizes = [16, 16, 8], strides = [1, 1, 1]} : vector<18x18x8xf32> to vector<16x16x8xf32>
    %78 = vector.shape_cast %77 : vector<16x16x8xf32> to vector<256x8xf32>
    %79 = vector.extract_strided_slice %64 {offsets = [2, 1, 0], sizes = [16, 16, 8], strides = [1, 1, 1]} : vector<18x18x8xf32> to vector<16x16x8xf32>
    %80 = vector.shape_cast %79 : vector<16x16x8xf32> to vector<256x8xf32>
    %81 = vector.extract_strided_slice %64 {offsets = [2, 2, 0], sizes = [16, 16, 8], strides = [1, 1, 1]} : vector<18x18x8xf32> to vector<16x16x8xf32>
    %82 = vector.shape_cast %81 : vector<16x16x8xf32> to vector<256x8xf32>
    %83 = tpu.concatenate %66, %68, %70, %72, %74, %76, %78, %80, %82 in 1 : vector<256x8xf32>, vector<256x8xf32>, vector<256x8xf32>, vector<256x8xf32>, vector<256x8xf32>, vector<256x8xf32>, vector<256x8xf32>, vector<256x8xf32>, vector<256x8xf32> -> vector<256x72xf32>
    %84 = arith.truncf %83 : vector<256x72xf32> to vector<256x72xbf16>
    %c0_15 = arith.constant 0 : index
    %c0_16 = arith.constant 0 : index
    %85 = vector.load %arg4[%c0_15, %c0_16] : memref<72x16xbf16, #tpu.memory_space<vmem>>, vector<72x16xbf16>
    %cst_17 = arith.constant dense<0.000000e+00> : vector<256x16xf32>
    %86 = tpu.matmul %84, %85, %cst_17 {dimension_numbers = #tpu.dot_dimension_numbers<[1], [0], [0], [1], [0, 0, 1, 1], [], []>} : vector<256x72xbf16>, vector<72x16xbf16>, vector<256x16xf32> -> vector<256x16xf32>
    %cst_18 = arith.constant dense<0.000000e+00> : vector<16xf32>
    %87 = vector.multi_reduction <add>, %86, %cst_18 [0] : vector<256x16xf32> to vector<16xf32>
    %88 = vector.shape_cast %87 : vector<16xf32> to vector<1x16xf32>
    %cst_19 = arith.constant 2.560000e+02 : f32
    %89 = vector.broadcast %cst_19 : f32 to vector<1x16xf32>
    %90 = arith.divf %88, %89 : vector<1x16xf32>
    %91 = arith.mulf %86, %86 : vector<256x16xf32>
    %cst_20 = arith.constant dense<0.000000e+00> : vector<16xf32>
    %92 = vector.multi_reduction <add>, %91, %cst_20 [0] : vector<256x16xf32> to vector<16xf32>
    %93 = vector.shape_cast %92 : vector<16xf32> to vector<1x16xf32>
    %cst_21 = arith.constant 2.560000e+02 : f32
    %94 = vector.broadcast %cst_21 : f32 to vector<1x16xf32>
    %95 = arith.divf %93, %94 : vector<1x16xf32>
    %96 = arith.mulf %90, %90 : vector<1x16xf32>
    %97 = arith.subf %95, %96 : vector<1x16xf32>
    %cst_22 = arith.constant 0.000000e+00 : f32
    %98 = vector.broadcast %cst_22 : f32 to vector<1x16xf32>
    %99 = arith.maximumf %97, %98 : vector<1x16xf32>
    %100 = vector.broadcast %90 : vector<1x16xf32> to vector<256x16xf32>
    %101 = arith.subf %86, %100 : vector<256x16xf32>
    %cst_23 = arith.constant 9.99999974E-6 : f32
    %102 = vector.broadcast %cst_23 : f32 to vector<1x16xf32>
    %103 = arith.addf %99, %102 : vector<1x16xf32>
    %104 = math.rsqrt %103 : vector<1x16xf32>
    %105 = vector.broadcast %104 : vector<1x16xf32> to vector<256x16xf32>
    %106 = arith.mulf %101, %105 : vector<256x16xf32>
    %c0_24 = arith.constant 0 : index
    %c0_25 = arith.constant 0 : index
    %107 = vector.load %arg5[%c0_24, %c0_25] : memref<2x16xf32, #tpu.memory_space<vmem>>, vector<1x16xf32>
    %108 = vector.broadcast %107 : vector<1x16xf32> to vector<256x16xf32>
    %109 = arith.mulf %106, %108 : vector<256x16xf32>
    %c1_26 = arith.constant 1 : index
    %c0_27 = arith.constant 0 : index
    %110 = vector.load %arg5[%c1_26, %c0_27] : memref<2x16xf32, #tpu.memory_space<vmem>>, vector<1x16xf32>
    %111 = vector.broadcast %110 : vector<1x16xf32> to vector<256x16xf32>
    %112 = arith.addf %109, %111 : vector<256x16xf32>
    %cst_28 = arith.constant 0.000000e+00 : f32
    %113 = vector.broadcast %cst_28 : f32 to vector<256x16xf32>
    %114 = arith.maximumf %112, %113 : vector<256x16xf32>
    %115 = vector.shape_cast %114 : vector<256x16xf32> to vector<16x16x16xf32>
    %116 = vector.extract_strided_slice %115 {offsets = [1, 0, 0], sizes = [1, 16, 16], strides = [1, 1, 1]} : vector<16x16x16xf32> to vector<1x16x16xf32>
    %117 = vector.extract_strided_slice %115 {offsets = [14, 0, 0], sizes = [1, 16, 16], strides = [1, 1, 1]} : vector<16x16x16xf32> to vector<1x16x16xf32>
    %118 = tpu.concatenate %116, %115, %117 in 0 : vector<1x16x16xf32>, vector<16x16x16xf32>, vector<1x16x16xf32> -> vector<18x16x16xf32>
    %119 = vector.extract_strided_slice %118 {offsets = [0, 1, 0], sizes = [18, 1, 16], strides = [1, 1, 1]} : vector<18x16x16xf32> to vector<18x1x16xf32>
    %120 = vector.extract_strided_slice %118 {offsets = [0, 14, 0], sizes = [18, 1, 16], strides = [1, 1, 1]} : vector<18x16x16xf32> to vector<18x1x16xf32>
    %121 = tpu.concatenate %119, %118, %120 in 1 : vector<18x1x16xf32>, vector<18x16x16xf32>, vector<18x1x16xf32> -> vector<18x18x16xf32>
    %122 = vector.extract_strided_slice %121 {offsets = [0, 0, 0], sizes = [16, 16, 16], strides = [1, 1, 1]} : vector<18x18x16xf32> to vector<16x16x16xf32>
    %123 = vector.shape_cast %122 : vector<16x16x16xf32> to vector<256x16xf32>
    %124 = vector.extract_strided_slice %121 {offsets = [0, 1, 0], sizes = [16, 16, 16], strides = [1, 1, 1]} : vector<18x18x16xf32> to vector<16x16x16xf32>
    %125 = vector.shape_cast %124 : vector<16x16x16xf32> to vector<256x16xf32>
    %126 = vector.extract_strided_slice %121 {offsets = [0, 2, 0], sizes = [16, 16, 16], strides = [1, 1, 1]} : vector<18x18x16xf32> to vector<16x16x16xf32>
    %127 = vector.shape_cast %126 : vector<16x16x16xf32> to vector<256x16xf32>
    %128 = vector.extract_strided_slice %121 {offsets = [1, 0, 0], sizes = [16, 16, 16], strides = [1, 1, 1]} : vector<18x18x16xf32> to vector<16x16x16xf32>
    %129 = vector.shape_cast %128 : vector<16x16x16xf32> to vector<256x16xf32>
    %130 = vector.extract_strided_slice %121 {offsets = [1, 1, 0], sizes = [16, 16, 16], strides = [1, 1, 1]} : vector<18x18x16xf32> to vector<16x16x16xf32>
    %131 = vector.shape_cast %130 : vector<16x16x16xf32> to vector<256x16xf32>
    %132 = vector.extract_strided_slice %121 {offsets = [1, 2, 0], sizes = [16, 16, 16], strides = [1, 1, 1]} : vector<18x18x16xf32> to vector<16x16x16xf32>
    %133 = vector.shape_cast %132 : vector<16x16x16xf32> to vector<256x16xf32>
    %134 = vector.extract_strided_slice %121 {offsets = [2, 0, 0], sizes = [16, 16, 16], strides = [1, 1, 1]} : vector<18x18x16xf32> to vector<16x16x16xf32>
    %135 = vector.shape_cast %134 : vector<16x16x16xf32> to vector<256x16xf32>
    %136 = vector.extract_strided_slice %121 {offsets = [2, 1, 0], sizes = [16, 16, 16], strides = [1, 1, 1]} : vector<18x18x16xf32> to vector<16x16x16xf32>
    %137 = vector.shape_cast %136 : vector<16x16x16xf32> to vector<256x16xf32>
    %138 = vector.extract_strided_slice %121 {offsets = [2, 2, 0], sizes = [16, 16, 16], strides = [1, 1, 1]} : vector<18x18x16xf32> to vector<16x16x16xf32>
    %139 = vector.shape_cast %138 : vector<16x16x16xf32> to vector<256x16xf32>
    %140 = tpu.concatenate %123, %125, %127, %129, %131, %133, %135, %137, %139 in 1 : vector<256x16xf32>, vector<256x16xf32>, vector<256x16xf32>, vector<256x16xf32>, vector<256x16xf32>, vector<256x16xf32>, vector<256x16xf32>, vector<256x16xf32>, vector<256x16xf32> -> vector<256x144xf32>
    %141 = arith.truncf %140 : vector<256x144xf32> to vector<256x144xbf16>
    %c0_29 = arith.constant 0 : index
    %c0_30 = arith.constant 0 : index
    %142 = vector.load %arg6[%c0_29, %c0_30] : memref<144x32xbf16, #tpu.memory_space<vmem>>, vector<144x32xbf16>
    %cst_31 = arith.constant dense<0.000000e+00> : vector<256x32xf32>
    %143 = tpu.matmul %141, %142, %cst_31 {dimension_numbers = #tpu.dot_dimension_numbers<[1], [0], [0], [1], [0, 0, 1, 1], [], []>} : vector<256x144xbf16>, vector<144x32xbf16>, vector<256x32xf32> -> vector<256x32xf32>
    %cst_32 = arith.constant dense<0.000000e+00> : vector<32xf32>
    %144 = vector.multi_reduction <add>, %143, %cst_32 [0] : vector<256x32xf32> to vector<32xf32>
    %145 = vector.shape_cast %144 : vector<32xf32> to vector<1x32xf32>
    %cst_33 = arith.constant 2.560000e+02 : f32
    %146 = vector.broadcast %cst_33 : f32 to vector<1x32xf32>
    %147 = arith.divf %145, %146 : vector<1x32xf32>
    %148 = arith.mulf %143, %143 : vector<256x32xf32>
    %cst_34 = arith.constant dense<0.000000e+00> : vector<32xf32>
    %149 = vector.multi_reduction <add>, %148, %cst_34 [0] : vector<256x32xf32> to vector<32xf32>
    %150 = vector.shape_cast %149 : vector<32xf32> to vector<1x32xf32>
    %cst_35 = arith.constant 2.560000e+02 : f32
    %151 = vector.broadcast %cst_35 : f32 to vector<1x32xf32>
    %152 = arith.divf %150, %151 : vector<1x32xf32>
    %153 = arith.mulf %147, %147 : vector<1x32xf32>
    %154 = arith.subf %152, %153 : vector<1x32xf32>
    %cst_36 = arith.constant 0.000000e+00 : f32
    %155 = vector.broadcast %cst_36 : f32 to vector<1x32xf32>
    %156 = arith.maximumf %154, %155 : vector<1x32xf32>
    %157 = vector.broadcast %147 : vector<1x32xf32> to vector<256x32xf32>
    %158 = arith.subf %143, %157 : vector<256x32xf32>
    %cst_37 = arith.constant 9.99999974E-6 : f32
    %159 = vector.broadcast %cst_37 : f32 to vector<1x32xf32>
    %160 = arith.addf %156, %159 : vector<1x32xf32>
    %161 = math.rsqrt %160 : vector<1x32xf32>
    %162 = vector.broadcast %161 : vector<1x32xf32> to vector<256x32xf32>
    %163 = arith.mulf %158, %162 : vector<256x32xf32>
    %c0_38 = arith.constant 0 : index
    %c0_39 = arith.constant 0 : index
    %164 = vector.load %arg7[%c0_38, %c0_39] : memref<2x32xf32, #tpu.memory_space<vmem>>, vector<1x32xf32>
    %165 = vector.broadcast %164 : vector<1x32xf32> to vector<256x32xf32>
    %166 = arith.mulf %163, %165 : vector<256x32xf32>
    %c1_40 = arith.constant 1 : index
    %c0_41 = arith.constant 0 : index
    %167 = vector.load %arg7[%c1_40, %c0_41] : memref<2x32xf32, #tpu.memory_space<vmem>>, vector<1x32xf32>
    %168 = vector.broadcast %167 : vector<1x32xf32> to vector<256x32xf32>
    %169 = arith.addf %166, %168 : vector<256x32xf32>
    %cst_42 = arith.constant 0.000000e+00 : f32
    %170 = vector.broadcast %cst_42 : f32 to vector<256x32xf32>
    %171 = arith.maximumf %169, %170 : vector<256x32xf32>
    %172 = vector.shape_cast %171 : vector<256x32xf32> to vector<16x16x32xf32>
    %173 = vector.extract_strided_slice %172 {offsets = [1, 0, 0], sizes = [1, 16, 32], strides = [1, 1, 1]} : vector<16x16x32xf32> to vector<1x16x32xf32>
    %174 = vector.extract_strided_slice %172 {offsets = [14, 0, 0], sizes = [1, 16, 32], strides = [1, 1, 1]} : vector<16x16x32xf32> to vector<1x16x32xf32>
    %175 = tpu.concatenate %173, %172, %174 in 0 : vector<1x16x32xf32>, vector<16x16x32xf32>, vector<1x16x32xf32> -> vector<18x16x32xf32>
    %176 = vector.extract_strided_slice %175 {offsets = [0, 1, 0], sizes = [18, 1, 32], strides = [1, 1, 1]} : vector<18x16x32xf32> to vector<18x1x32xf32>
    %177 = vector.extract_strided_slice %175 {offsets = [0, 14, 0], sizes = [18, 1, 32], strides = [1, 1, 1]} : vector<18x16x32xf32> to vector<18x1x32xf32>
    %178 = tpu.concatenate %176, %175, %177 in 1 : vector<18x1x32xf32>, vector<18x16x32xf32>, vector<18x1x32xf32> -> vector<18x18x32xf32>
    %179 = vector.extract_strided_slice %178 {offsets = [0, 0, 0], sizes = [16, 16, 32], strides = [1, 1, 1]} : vector<18x18x32xf32> to vector<16x16x32xf32>
    %180 = vector.shape_cast %179 : vector<16x16x32xf32> to vector<256x32xf32>
    %181 = vector.extract_strided_slice %178 {offsets = [0, 1, 0], sizes = [16, 16, 32], strides = [1, 1, 1]} : vector<18x18x32xf32> to vector<16x16x32xf32>
    %182 = vector.shape_cast %181 : vector<16x16x32xf32> to vector<256x32xf32>
    %183 = vector.extract_strided_slice %178 {offsets = [0, 2, 0], sizes = [16, 16, 32], strides = [1, 1, 1]} : vector<18x18x32xf32> to vector<16x16x32xf32>
    %184 = vector.shape_cast %183 : vector<16x16x32xf32> to vector<256x32xf32>
    %185 = vector.extract_strided_slice %178 {offsets = [1, 0, 0], sizes = [16, 16, 32], strides = [1, 1, 1]} : vector<18x18x32xf32> to vector<16x16x32xf32>
    %186 = vector.shape_cast %185 : vector<16x16x32xf32> to vector<256x32xf32>
    %187 = vector.extract_strided_slice %178 {offsets = [1, 1, 0], sizes = [16, 16, 32], strides = [1, 1, 1]} : vector<18x18x32xf32> to vector<16x16x32xf32>
    %188 = vector.shape_cast %187 : vector<16x16x32xf32> to vector<256x32xf32>
    %189 = vector.extract_strided_slice %178 {offsets = [1, 2, 0], sizes = [16, 16, 32], strides = [1, 1, 1]} : vector<18x18x32xf32> to vector<16x16x32xf32>
    %190 = vector.shape_cast %189 : vector<16x16x32xf32> to vector<256x32xf32>
    %191 = vector.extract_strided_slice %178 {offsets = [2, 0, 0], sizes = [16, 16, 32], strides = [1, 1, 1]} : vector<18x18x32xf32> to vector<16x16x32xf32>
    %192 = vector.shape_cast %191 : vector<16x16x32xf32> to vector<256x32xf32>
    %193 = vector.extract_strided_slice %178 {offsets = [2, 1, 0], sizes = [16, 16, 32], strides = [1, 1, 1]} : vector<18x18x32xf32> to vector<16x16x32xf32>
    %194 = vector.shape_cast %193 : vector<16x16x32xf32> to vector<256x32xf32>
    %195 = vector.extract_strided_slice %178 {offsets = [2, 2, 0], sizes = [16, 16, 32], strides = [1, 1, 1]} : vector<18x18x32xf32> to vector<16x16x32xf32>
    %196 = vector.shape_cast %195 : vector<16x16x32xf32> to vector<256x32xf32>
    %197 = tpu.concatenate %180, %182, %184, %186, %188, %190, %192, %194, %196 in 1 : vector<256x32xf32>, vector<256x32xf32>, vector<256x32xf32>, vector<256x32xf32>, vector<256x32xf32>, vector<256x32xf32>, vector<256x32xf32>, vector<256x32xf32>, vector<256x32xf32> -> vector<256x288xf32>
    %198 = arith.truncf %197 : vector<256x288xf32> to vector<256x288xbf16>
    %c0_43 = arith.constant 0 : index
    %c0_44 = arith.constant 0 : index
    %199 = vector.load %arg8[%c0_43, %c0_44] : memref<288x64xbf16, #tpu.memory_space<vmem>>, vector<288x64xbf16>
    %cst_45 = arith.constant dense<0.000000e+00> : vector<256x64xf32>
    %200 = tpu.matmul %198, %199, %cst_45 {dimension_numbers = #tpu.dot_dimension_numbers<[1], [0], [0], [1], [0, 0, 1, 1], [], []>} : vector<256x288xbf16>, vector<288x64xbf16>, vector<256x64xf32> -> vector<256x64xf32>
    %cst_46 = arith.constant dense<0.000000e+00> : vector<64xf32>
    %201 = vector.multi_reduction <add>, %200, %cst_46 [0] : vector<256x64xf32> to vector<64xf32>
    %202 = vector.shape_cast %201 : vector<64xf32> to vector<1x64xf32>
    %cst_47 = arith.constant 2.560000e+02 : f32
    %203 = vector.broadcast %cst_47 : f32 to vector<1x64xf32>
    %204 = arith.divf %202, %203 : vector<1x64xf32>
    %205 = arith.mulf %200, %200 : vector<256x64xf32>
    %cst_48 = arith.constant dense<0.000000e+00> : vector<64xf32>
    %206 = vector.multi_reduction <add>, %205, %cst_48 [0] : vector<256x64xf32> to vector<64xf32>
    %207 = vector.shape_cast %206 : vector<64xf32> to vector<1x64xf32>
    %cst_49 = arith.constant 2.560000e+02 : f32
    %208 = vector.broadcast %cst_49 : f32 to vector<1x64xf32>
    %209 = arith.divf %207, %208 : vector<1x64xf32>
    %210 = arith.mulf %204, %204 : vector<1x64xf32>
    %211 = arith.subf %209, %210 : vector<1x64xf32>
    %cst_50 = arith.constant 0.000000e+00 : f32
    %212 = vector.broadcast %cst_50 : f32 to vector<1x64xf32>
    %213 = arith.maximumf %211, %212 : vector<1x64xf32>
    %214 = vector.broadcast %204 : vector<1x64xf32> to vector<256x64xf32>
    %215 = arith.subf %200, %214 : vector<256x64xf32>
    %cst_51 = arith.constant 9.99999974E-6 : f32
    %216 = vector.broadcast %cst_51 : f32 to vector<1x64xf32>
    %217 = arith.addf %213, %216 : vector<1x64xf32>
    %218 = math.rsqrt %217 : vector<1x64xf32>
    %219 = vector.broadcast %218 : vector<1x64xf32> to vector<256x64xf32>
    %220 = arith.mulf %215, %219 : vector<256x64xf32>
    %c0_52 = arith.constant 0 : index
    %c0_53 = arith.constant 0 : index
    %221 = vector.load %arg9[%c0_52, %c0_53] : memref<2x64xf32, #tpu.memory_space<vmem>>, vector<1x64xf32>
    %222 = vector.broadcast %221 : vector<1x64xf32> to vector<256x64xf32>
    %223 = arith.mulf %220, %222 : vector<256x64xf32>
    %c1_54 = arith.constant 1 : index
    %c0_55 = arith.constant 0 : index
    %224 = vector.load %arg9[%c1_54, %c0_55] : memref<2x64xf32, #tpu.memory_space<vmem>>, vector<1x64xf32>
    %225 = vector.broadcast %224 : vector<1x64xf32> to vector<256x64xf32>
    %226 = arith.addf %223, %225 : vector<256x64xf32>
    %cst_56 = arith.constant 0.000000e+00 : f32
    %227 = vector.broadcast %cst_56 : f32 to vector<256x64xf32>
    %228 = arith.maximumf %226, %227 : vector<256x64xf32>
    %229 = vector.shape_cast %228 : vector<256x64xf32> to vector<16x16x64xf32>
    %230 = vector.shape_cast %229 : vector<16x16x64xf32> to vector<256x64xf32>
    %231 = arith.truncf %230 : vector<256x64xf32> to vector<256x64xbf16>
    %c0_57 = arith.constant 0 : index
    %c0_58 = arith.constant 0 : index
    %232 = vector.load %arg10[%c0_57, %c0_58] : memref<64x23xbf16, #tpu.memory_space<vmem>>, vector<64x23xbf16>
    %cst_59 = arith.constant dense<0.000000e+00> : vector<256x23xf32>
    %233 = tpu.matmul %231, %232, %cst_59 {dimension_numbers = #tpu.dot_dimension_numbers<[1], [0], [0], [1], [0, 0, 1, 1], [], []>} : vector<256x64xbf16>, vector<64x23xbf16>, vector<256x23xf32> -> vector<256x23xf32>
    %cst_60 = arith.constant dense<0.000000e+00> : vector<23xf32>
    %234 = vector.multi_reduction <add>, %233, %cst_60 [0] : vector<256x23xf32> to vector<23xf32>
    %235 = vector.shape_cast %234 : vector<23xf32> to vector<1x23xf32>
    %cst_61 = arith.constant 2.560000e+02 : f32
    %236 = vector.broadcast %cst_61 : f32 to vector<1x23xf32>
    %237 = arith.divf %235, %236 : vector<1x23xf32>
    %238 = arith.mulf %233, %233 : vector<256x23xf32>
    %cst_62 = arith.constant dense<0.000000e+00> : vector<23xf32>
    %239 = vector.multi_reduction <add>, %238, %cst_62 [0] : vector<256x23xf32> to vector<23xf32>
    %240 = vector.shape_cast %239 : vector<23xf32> to vector<1x23xf32>
    %cst_63 = arith.constant 2.560000e+02 : f32
    %241 = vector.broadcast %cst_63 : f32 to vector<1x23xf32>
    %242 = arith.divf %240, %241 : vector<1x23xf32>
    %243 = arith.mulf %237, %237 : vector<1x23xf32>
    %244 = arith.subf %242, %243 : vector<1x23xf32>
    %cst_64 = arith.constant 0.000000e+00 : f32
    %245 = vector.broadcast %cst_64 : f32 to vector<1x23xf32>
    %246 = arith.maximumf %244, %245 : vector<1x23xf32>
    %247 = vector.broadcast %237 : vector<1x23xf32> to vector<256x23xf32>
    %248 = arith.subf %233, %247 : vector<256x23xf32>
    %cst_65 = arith.constant 9.99999974E-6 : f32
    %249 = vector.broadcast %cst_65 : f32 to vector<1x23xf32>
    %250 = arith.addf %246, %249 : vector<1x23xf32>
    %251 = math.rsqrt %250 : vector<1x23xf32>
    %252 = vector.broadcast %251 : vector<1x23xf32> to vector<256x23xf32>
    %253 = arith.mulf %248, %252 : vector<256x23xf32>
    %c0_66 = arith.constant 0 : index
    %c0_67 = arith.constant 0 : index
    %254 = vector.load %arg11[%c0_66, %c0_67] : memref<2x23xf32, #tpu.memory_space<vmem>>, vector<1x23xf32>
    %255 = vector.broadcast %254 : vector<1x23xf32> to vector<256x23xf32>
    %256 = arith.mulf %253, %255 : vector<256x23xf32>
    %c1_68 = arith.constant 1 : index
    %c0_69 = arith.constant 0 : index
    %257 = vector.load %arg11[%c1_68, %c0_69] : memref<2x23xf32, #tpu.memory_space<vmem>>, vector<1x23xf32>
    %258 = vector.broadcast %257 : vector<1x23xf32> to vector<256x23xf32>
    %259 = arith.addf %256, %258 : vector<256x23xf32>
    %260 = vector.extract_strided_slice %259 {offsets = [0, 0], sizes = [256, 3], strides = [1, 1]} : vector<256x23xf32> to vector<256x3xf32>
    %261 = vector.extract_strided_slice %259 {offsets = [0, 3], sizes = [256, 10], strides = [1, 1]} : vector<256x23xf32> to vector<256x10xf32>
    %262 = vector.extract_strided_slice %259 {offsets = [0, 13], sizes = [256, 10], strides = [1, 1]} : vector<256x23xf32> to vector<256x10xf32>
    %263 = vector.extract_strided_slice %262 {offsets = [0, 0], sizes = [256, 1], strides = [1, 1]} : vector<256x10xf32> to vector<256x1xf32>
    %264 = vector.broadcast %263 : vector<256x1xf32> to vector<256x10xf32>
    %265 = arith.mulf %264, %261 : vector<256x10xf32>
    %266 = vector.extract_strided_slice %262 {offsets = [0, 1], sizes = [256, 1], strides = [1, 1]} : vector<256x10xf32> to vector<256x1xf32>
    %267 = vector.broadcast %266 : vector<256x1xf32> to vector<256x10xf32>
    %268 = arith.mulf %267, %261 : vector<256x10xf32>
    %269 = vector.extract_strided_slice %262 {offsets = [0, 2], sizes = [256, 1], strides = [1, 1]} : vector<256x10xf32> to vector<256x1xf32>
    %270 = vector.broadcast %269 : vector<256x1xf32> to vector<256x10xf32>
    %271 = arith.mulf %270, %261 : vector<256x10xf32>
    %272 = vector.extract_strided_slice %262 {offsets = [0, 3], sizes = [256, 1], strides = [1, 1]} : vector<256x10xf32> to vector<256x1xf32>
    %273 = vector.broadcast %272 : vector<256x1xf32> to vector<256x10xf32>
    %274 = arith.mulf %273, %261 : vector<256x10xf32>
    %275 = vector.extract_strided_slice %262 {offsets = [0, 4], sizes = [256, 1], strides = [1, 1]} : vector<256x10xf32> to vector<256x1xf32>
    %276 = vector.broadcast %275 : vector<256x1xf32> to vector<256x10xf32>
    %277 = arith.mulf %276, %261 : vector<256x10xf32>
    %278 = vector.extract_strided_slice %262 {offsets = [0, 5], sizes = [256, 1], strides = [1, 1]} : vector<256x10xf32> to vector<256x1xf32>
    %279 = vector.broadcast %278 : vector<256x1xf32> to vector<256x10xf32>
    %280 = arith.mulf %279, %261 : vector<256x10xf32>
    %281 = vector.extract_strided_slice %262 {offsets = [0, 6], sizes = [256, 1], strides = [1, 1]} : vector<256x10xf32> to vector<256x1xf32>
    %282 = vector.broadcast %281 : vector<256x1xf32> to vector<256x10xf32>
    %283 = arith.mulf %282, %261 : vector<256x10xf32>
    %284 = vector.extract_strided_slice %262 {offsets = [0, 7], sizes = [256, 1], strides = [1, 1]} : vector<256x10xf32> to vector<256x1xf32>
    %285 = vector.broadcast %284 : vector<256x1xf32> to vector<256x10xf32>
    %286 = arith.mulf %285, %261 : vector<256x10xf32>
    %287 = vector.extract_strided_slice %262 {offsets = [0, 8], sizes = [256, 1], strides = [1, 1]} : vector<256x10xf32> to vector<256x1xf32>
    %288 = vector.broadcast %287 : vector<256x1xf32> to vector<256x10xf32>
    %289 = arith.mulf %288, %261 : vector<256x10xf32>
    %290 = vector.extract_strided_slice %262 {offsets = [0, 9], sizes = [256, 1], strides = [1, 1]} : vector<256x10xf32> to vector<256x1xf32>
    %291 = vector.broadcast %290 : vector<256x1xf32> to vector<256x10xf32>
    %292 = arith.mulf %291, %261 : vector<256x10xf32>
    %cst_70 = arith.constant -1.000000e+30 : f32
    %293 = vector.broadcast %cst_70 : f32 to vector<256x28xf32>
    %294 = tpu.concatenate %265, %268, %271, %274, %277, %280, %283, %286, %289, %292, %293 in 1 : vector<256x10xf32>, vector<256x10xf32>, vector<256x10xf32>, vector<256x10xf32>, vector<256x10xf32>, vector<256x10xf32>, vector<256x10xf32>, vector<256x10xf32>, vector<256x10xf32>, vector<256x10xf32>, vector<256x28xf32> -> vector<256x128xf32>
    %cst_71 = arith.constant dense<0xFF800000> : vector<256xf32>
    %295 = vector.multi_reduction <maximumf>, %294, %cst_71 [1] : vector<256x128xf32> to vector<256xf32>
    %296 = vector.shape_cast %295 : vector<256xf32> to vector<256x1xf32>
    %297 = vector.broadcast %296 : vector<256x1xf32> to vector<256x128xf32>
    %298 = arith.subf %294, %297 : vector<256x128xf32>
    %299 = math.exp %298 : vector<256x128xf32>
    %cst_72 = arith.constant dense<0.000000e+00> : vector<256xf32>
    %300 = vector.multi_reduction <add>, %299, %cst_72 [1] : vector<256x128xf32> to vector<256xf32>
    %301 = vector.shape_cast %300 : vector<256xf32> to vector<256x1xf32>
    %302 = tpu.reciprocal %301 {approx = true} : vector<256x1xf32> -> vector<256x1xf32>
    %303 = vector.broadcast %302 : vector<256x1xf32> to vector<256x128xf32>
    %304 = arith.mulf %299, %303 : vector<256x128xf32>
    %305 = vector.shape_cast %304 : vector<256x128xf32> to vector<16x16x128xf32>
    %c0_73 = arith.constant 0 : index
    %c0_74 = arith.constant 0 : index
    %c0_75 = arith.constant 0 : index
    %c0_76 = arith.constant 0 : index
    %306 = vector.load %arg12[%c0_73, %c0_74, %c0_75, %c0_76] : memref<1x16x16x128xf32, #tpu.memory_space<vmem>>, vector<1x16x16x128xf32>
    %307 = vector.shape_cast %306 : vector<1x16x16x128xf32> to vector<16x16x128xf32>
    %308 = vector.shape_cast %305 : vector<16x16x128xf32> to vector<1x16x16x128xf32>
    tpu.vector_store %arg12[%c0_73, %c0_74, %c0_75, %c0_76], %308 {strides = array<i32>} : memref<1x16x16x128xf32, #tpu.memory_space<vmem>>, vector<1x16x16x128xf32>,
    %309 = vector.shape_cast %260 : vector<256x3xf32> to vector<16x16x3xf32>
    %c0_77 = arith.constant 0 : index
    %c0_78 = arith.constant 0 : index
    %c0_79 = arith.constant 0 : index
    %c0_80 = arith.constant 0 : index
    %310 = vector.load %arg13[%c0_77, %c0_78, %c0_79, %c0_80] : memref<1x16x16x3xf32, #tpu.memory_space<vmem>>, vector<1x16x16x3xf32>
    %311 = vector.shape_cast %310 : vector<1x16x16x3xf32> to vector<16x16x3xf32>
    %312 = vector.shape_cast %309 : vector<16x16x3xf32> to vector<1x16x16x3xf32>
    tpu.vector_store %arg13[%c0_77, %c0_78, %c0_79, %c0_80], %312 {strides = array<i32>} : memref<1x16x16x3xf32, #tpu.memory_space<vmem>>, vector<1x16x16x3xf32>,
    return
  }
  func.func @transform_0(%arg0: i32) -> (i32, i32, i32, i32) {
    %c0_i32 = arith.constant 0 : i32
    %c0_i32_0 = arith.constant 0 : i32
    %c0_i32_1 = arith.constant 0 : i32
    %c0_i32_2 = arith.constant 0 : i32
    return %arg0, %c0_i32, %c0_i32_0, %c0_i32_1 : i32, i32, i32, i32
  }
  func.func @transform_1(%arg0: i32) -> (i32, i32) {
    %c0_i32 = arith.constant 0 : i32
    %c0_i32_0 = arith.constant 0 : i32
    %c0_i32_1 = arith.constant 0 : i32
    return %c0_i32, %c0_i32_0 : i32, i32
  }
  func.func @transform_2(%arg0: i32) -> (i32, i32) {
    %c0_i32 = arith.constant 0 : i32
    %c0_i32_0 = arith.constant 0 : i32
    %c0_i32_1 = arith.constant 0 : i32
    return %c0_i32, %c0_i32_0 : i32, i32
  }
  func.func @transform_3(%arg0: i32) -> (i32, i32) {
    %c0_i32 = arith.constant 0 : i32
    %c0_i32_0 = arith.constant 0 : i32
    %c0_i32_1 = arith.constant 0 : i32
    return %c0_i32, %c0_i32_0 : i32, i32
  }
  func.func @transform_4(%arg0: i32) -> (i32, i32) {
    %c0_i32 = arith.constant 0 : i32
    %c0_i32_0 = arith.constant 0 : i32
    %c0_i32_1 = arith.constant 0 : i32
    return %c0_i32, %c0_i32_0 : i32, i32
  }
  func.func @transform_5(%arg0: i32) -> (i32, i32) {
    %c0_i32 = arith.constant 0 : i32
    %c0_i32_0 = arith.constant 0 : i32
    %c0_i32_1 = arith.constant 0 : i32
    return %c0_i32, %c0_i32_0 : i32, i32
  }
  func.func @transform_6(%arg0: i32) -> (i32, i32) {
    %c0_i32 = arith.constant 0 : i32
    %c0_i32_0 = arith.constant 0 : i32
    %c0_i32_1 = arith.constant 0 : i32
    return %c0_i32, %c0_i32_0 : i32, i32
  }
  func.func @transform_7(%arg0: i32) -> (i32, i32) {
    %c0_i32 = arith.constant 0 : i32
    %c0_i32_0 = arith.constant 0 : i32
    %c0_i32_1 = arith.constant 0 : i32
    return %c0_i32, %c0_i32_0 : i32, i32
  }
  func.func @transform_8(%arg0: i32) -> (i32, i32) {
    %c0_i32 = arith.constant 0 : i32
    %c0_i32_0 = arith.constant 0 : i32
    %c0_i32_1 = arith.constant 0 : i32
    return %c0_i32, %c0_i32_0 : i32, i32
  }
  func.func @transform_9(%arg0: i32) -> (i32, i32) {
    %c0_i32 = arith.constant 0 : i32
    %c0_i32_0 = arith.constant 0 : i32
    %c0_i32_1 = arith.constant 0 : i32
    return %c0_i32, %c0_i32_0 : i32, i32
  }
  func.func @transform_10(%arg0: i32) -> (i32, i32) {
    %c0_i32 = arith.constant 0 : i32
    %c0_i32_0 = arith.constant 0 : i32
    %c0_i32_1 = arith.constant 0 : i32
    return %c0_i32, %c0_i32_0 : i32, i32
  }
  func.func @transform_11(%arg0: i32) -> (i32, i32, i32, i32) {
    %c0_i32 = arith.constant 0 : i32
    %c0_i32_0 = arith.constant 0 : i32
    %c0_i32_1 = arith.constant 0 : i32
    %c0_i32_2 = arith.constant 0 : i32
    return %arg0, %c0_i32, %c0_i32_0, %c0_i32_1 : i32, i32, i32, i32
  }
  func.func @transform_12(%arg0: i32) -> (i32, i32, i32, i32) {
    %c0_i32 = arith.constant 0 : i32
    %c0_i32_0 = arith.constant 0 : i32
    %c0_i32_1 = arith.constant 0 : i32
    %c0_i32_2 = arith.constant 0 : i32
    return %arg0, %c0_i32, %c0_i32_0, %c0_i32_1 : i32, i32, i32, i32
  }
}

</mosaic_0001>

<llo_original>
// kernel: spixel_cnn_forward.1
$region0: #{spixel_cnn_forward.1}
  #allocation0 [shape = 'u32[]', space=smem, size = 0x4, offset = 0x4, fixed_abs, tag = 'smem constant byte address 0x4 - core index']
  #allocation1 [shape = 'u32[144,128]{1,0:T(1,128)}', space=vmem, size = 0x12000, scoped, tag = 'internal scratch']
  %s0 = inlined_call_operand.vmem [shape: f32[2,16,16,5], index: 0, kind: input, shape index: {}]
  %s1 = inlined_call_operand.vmem [shape: bf16[45,8], index: 1, kind: input, shape index: {}]
  %s2 = inlined_call_operand.vmem [shape: f32[2,8], index: 2, kind: input, shape index: {}]
  %s3 = inlined_call_operand.vmem [shape: bf16[72,16], index: 3, kind: input, shape index: {}]
  %s4 = inlined_call_operand.vmem [shape: f32[2,16], index: 4, kind: input, shape index: {}]
  %s5 = inlined_call_operand.vmem [shape: bf16[144,32], index: 5, kind: input, shape index: {}]
  %s6 = inlined_call_operand.vmem [shape: f32[2,32], index: 6, kind: input, shape index: {}]
  %s7 = inlined_call_operand.vmem [shape: bf16[288,64], index: 7, kind: input, shape index: {}]
  %s8 = inlined_call_operand.vmem [shape: f32[2,64], index: 8, kind: input, shape index: {}]
  %s9 = inlined_call_operand.vmem [shape: bf16[64,23], index: 9, kind: input, shape index: {}]
  %s10 = inlined_call_operand.vmem [shape: f32[2,23], index: 10, kind: input, shape index: {}]
  %s11 = inlined_call_operand.vmem [shape: f32[2,16,16,128], index: 11, kind: output, shape index: {0}]
  %s12 = inlined_call_operand.vmem [shape: f32[2,16,16,3], index: 12, kind: output, shape index: {1}]
  %13 = xla_tuple %s11, %s12
  %s14 = sld [smem:[#allocation0]]
  $region85: #{spixel_cnn_forward.1} parent=0
    _
  %s16 = ssub.s32 1, %s14
  %s17 = scalar_select 0, %s16, %s14
  loop: start=0, step=1, limit=4
  $region2: #{spixel_cnn_forward.1} parent=0 // loop_pre_header
    _
  $region3: #{spixel_cnn_forward.1} parent=0 // loop_header
    %s19 = sphi 0, %s23
    %p20 = scmp.ge.s32.totalorder %s19, 4
    %s29 = sphi 0, %s31
    %s32 = sphi 0, %s29
    %s33 = sphi 0, %s32
    %s49 = sphi 0, %s33
    %s53 = sphi 0, %s53
    %s55 = sphi 0, %s53
    %s56 = sphi 0, %s55
    %s70 = sphi 0, %s56
    %s74 = sphi 0, %s74
    %s76 = sphi 0, %s74
    %s77 = sphi 0, %s76
    %s91 = sphi 0, %s77
    %s95 = sphi 0, %s95
    %s97 = sphi 0, %s95
    %s98 = sphi 0, %s97
    %s112 = sphi 0, %s98
    %s116 = sphi 0, %s116
    %s118 = sphi 0, %s116
    %s119 = sphi 0, %s118
    %s133 = sphi 0, %s119
    %s137 = sphi 0, %s137
    %s139 = sphi 0, %s137
    %s140 = sphi 0, %s139
    %s154 = sphi 0, %s140
    %s158 = sphi 0, %s158
    %s160 = sphi 0, %s158
    %s161 = sphi 0, %s160
    %s175 = sphi 0, %s161
    %s179 = sphi 0, %s179
    %s181 = sphi 0, %s179
    %s182 = sphi 0, %s181
    %s196 = sphi 0, %s182
    %s200 = sphi 0, %s200
    %s202 = sphi 0, %s200
    %s203 = sphi 0, %s202
    %s217 = sphi 0, %s203
    %s221 = sphi 0, %s221
    %s223 = sphi 0, %s221
    %s224 = sphi 0, %s223
    %s238 = sphi 0, %s224
    %s242 = sphi 0, %s242
    %s244 = sphi 0, %s242
    %s245 = sphi 0, %s244
    %s259 = sphi 0, %s245
    %s265 = sphi 0, %s267
    %s268 = sphi 0, %s265
    %s269 = sphi 0, %s268
    %s285 = sphi 0, %s269
    %s291 = sphi 0, %s293
    %s294 = sphi 0, %s291
    %s295 = sphi 0, %s294
    %s311 = sphi 0, %s295
  $region4: #{spixel_cnn_forward.1} parent=0 // loop_header_branch
    %22 = sbr.rel (%p20) target = $region8
  $region5: #{spixel_cnn_forward.1} parent=0 // loop_body
    %s24 = ssub.s32 %s19, 1
    %s25 = ssub.s32 %s19, 2
    %s26 = sadd.s32 %s19, 1
    %s27 = ssub.s32 %s19, %s26
    %p28 = scmp.eq.s32.totalorder %s27, 0
    %s30 = sadd.s32 %s29, 1
    %s31 = scalar_select %p28, %s29, %s30
    %p34 = pneg %p28
    %p35 = scmp.eq.s32.totalorder %s19, 1
    %p36 = por %p34, %p35
    %p37 = scmp.ne.s32.totalorder %s29, %s32
    %p38 = scmp.eq.s32.totalorder %s19, 0
    %p39 = por %p37, %p38
    %p40 = scmp.ne.s32.totalorder %s29, %s32
    %p41 = scmp.eq.s32.totalorder %s24, 1
    %p42 = por %p40, %p41
    %p43 = scmp.ne.s32.totalorder %s32, %s33
    %p44 = scmp.eq.s32.totalorder %s24, 0
    %p45 = por %p43, %p44
    %p46 = scmp.ne.s32.totalorder %s32, %s33
    %p47 = scmp.eq.s32.totalorder %s25, 1
    %p48 = por %p46, %p47
    %p50 = scmp.ne.s32.totalorder %s33, %s49
    %p51 = scmp.eq.s32.totalorder %s25, 0
    %p52 = por %p50, %p51
    %s54 = sadd.s32 %s53, 1
    %p57 = scmp.eq.s32.totalorder %s19, 1
    %p58 = scmp.ne.s32.totalorder %s53, %s55
    %p59 = scmp.eq.s32.totalorder %s19, 0
    %p60 = por %p58, %p59
    %p61 = scmp.ne.s32.totalorder %s53, %s55
    %p62 = scmp.eq.s32.totalorder %s24, 1
    %p63 = por %p61, %p62
    %p64 = scmp.ne.s32.totalorder %s55, %s56
    %p65 = scmp.eq.s32.totalorder %s24, 0
    %p66 = por %p64, %p65
    %p67 = scmp.ne.s32.totalorder %s55, %s56
    %p68 = scmp.eq.s32.totalorder %s25, 1
    %p69 = por %p67, %p68
    %p71 = scmp.ne.s32.totalorder %s56, %s70
    %p72 = scmp.eq.s32.totalorder %s25, 0
    %p73 = por %p71, %p72
    %s75 = sadd.s32 %s74, 1
    %p78 = scmp.eq.s32.totalorder %s19, 1
    %p79 = scmp.ne.s32.totalorder %s74, %s76
    %p80 = scmp.eq.s32.totalorder %s19, 0
    %p81 = por %p79, %p80
    %p82 = scmp.ne.s32.totalorder %s74, %s76
    %p83 = scmp.eq.s32.totalorder %s24, 1
    %p84 = por %p82, %p83
    %p85 = scmp.ne.s32.totalorder %s76, %s77
    %p86 = scmp.eq.s32.totalorder %s24, 0
    %p87 = por %p85, %p86
    %p88 = scmp.ne.s32.totalorder %s76, %s77
    %p89 = scmp.eq.s32.totalorder %s25, 1
    %p90 = por %p88, %p89
    %p92 = scmp.ne.s32.totalorder %s77, %s91
    %p93 = scmp.eq.s32.totalorder %s25, 0
    %p94 = por %p92, %p93
    %s96 = sadd.s32 %s95, 1
    %p99 = scmp.eq.s32.totalorder %s19, 1
    %p100 = scmp.ne.s32.totalorder %s95, %s97
    %p101 = scmp.eq.s32.totalorder %s19, 0
    %p102 = por %p100, %p101
    %p103 = scmp.ne.s32.totalorder %s95, %s97
    %p104 = scmp.eq.s32.totalorder %s24, 1
    %p105 = por %p103, %p104
    %p106 = scmp.ne.s32.totalorder %s97, %s98
    %p107 = scmp.eq.s32.totalorder %s24, 0
    %p108 = por %p106, %p107
    %p109 = scmp.ne.s32.totalorder %s97, %s98
    %p110 = scmp.eq.s32.totalorder %s25, 1
    %p111 = por %p109, %p110
    %p113 = scmp.ne.s32.totalorder %s98, %s112
    %p114 = scmp.eq.s32.totalorder %s25, 0
    %p115 = por %p113, %p114
    %s117 = sadd.s32 %s116, 1
    %p120 = scmp.eq.s32.totalorder %s19, 1
    %p121 = scmp.ne.s32.totalorder %s116, %s118
    %p122 = scmp.eq.s32.totalorder %s19, 0
    %p123 = por %p121, %p122
    %p124 = scmp.ne.s32.totalorder %s116, %s118
    %p125 = scmp.eq.s32.totalorder %s24, 1
    %p126 = por %p124, %p125
    %p127 = scmp.ne.s32.totalorder %s118, %s119
    %p128 = scmp.eq.s32.totalorder %s24, 0
    %p129 = por %p127, %p128
    %p130 = scmp.ne.s32.totalorder %s118, %s119
    %p131 = scmp.eq.s32.totalorder %s25, 1
    %p132 = por %p130, %p131
    %p134 = scmp.ne.s32.totalorder %s119, %s133
    %p135 = scmp.eq.s32.totalorder %s25, 0
    %p136 = por %p134, %p135
    %s138 = sadd.s32 %s137, 1
    %p141 = scmp.eq.s32.totalorder %s19, 1
    %p142 = scmp.ne.s32.totalorder %s137, %s139
    %p143 = scmp.eq.s32.totalorder %s19, 0
    %p144 = por %p142, %p143
    %p145 = scmp.ne.s32.totalorder %s137, %s139
    %p146 = scmp.eq.s32.totalorder %s24, 1
    %p147 = por %p145, %p146
    %p148 = scmp.ne.s32.totalorder %s139, %s140
    %p149 = scmp.eq.s32.totalorder %s24, 0
    %p150 = por %p148, %p149
    %p151 = scmp.ne.s32.totalorder %s139, %s140
    %p152 = scmp.eq.s32.totalorder %s25, 1
    %p153 = por %p151, %p152
    %p155 = scmp.ne.s32.totalorder %s140, %s154
    %p156 = scmp.eq.s32.totalorder %s25, 0
    %p157 = por %p155, %p156
    %s159 = sadd.s32 %s158, 1
    %p162 = scmp.eq.s32.totalorder %s19, 1
    %p163 = scmp.ne.s32.totalorder %s158, %s160
    %p164 = scmp.eq.s32.totalorder %s19, 0
    %p165 = por %p163, %p164
    %p166 = scmp.ne.s32.totalorder %s158, %s160
    %p167 = scmp.eq.s32.totalorder %s24, 1
    %p168 = por %p166, %p167
    %p169 = scmp.ne.s32.totalorder %s160, %s161
    %p170 = scmp.eq.s32.totalorder %s24, 0
    %p171 = por %p169, %p170
    %p172 = scmp.ne.s32.totalorder %s160, %s161
    %p173 = scmp.eq.s32.totalorder %s25, 1
    %p174 = por %p172, %p173
    %p176 = scmp.ne.s32.totalorder %s161, %s175
    %p177 = scmp.eq.s32.totalorder %s25, 0
    %p178 = por %p176, %p177
    %s180 = sadd.s32 %s179, 1
    %p183 = scmp.eq.s32.totalorder %s19, 1
    %p184 = scmp.ne.s32.totalorder %s179, %s181
    %p185 = scmp.eq.s32.totalorder %s19, 0
    %p186 = por %p184, %p185
    %p187 = scmp.ne.s32.totalorder %s179, %s181
    %p188 = scmp.eq.s32.totalorder %s24, 1
    %p189 = por %p187, %p188
    %p190 = scmp.ne.s32.totalorder %s181, %s182
    %p191 = scmp.eq.s32.totalorder %s24, 0
    %p192 = por %p190, %p191
    %p193 = scmp.ne.s32.totalorder %s181, %s182
    %p194 = scmp.eq.s32.totalorder %s25, 1
    %p195 = por %p193, %p194
    %p197 = scmp.ne.s32.totalorder %s182, %s196
    %p198 = scmp.eq.s32.totalorder %s25, 0
    %p199 = por %p197, %p198
    %s201 = sadd.s32 %s200, 1
    %p204 = scmp.eq.s32.totalorder %s19, 1
    %p205 = scmp.ne.s32.totalorder %s200, %s202
    %p206 = scmp.eq.s32.totalorder %s19, 0
    %p207 = por %p205, %p206
    %p208 = scmp.ne.s32.totalorder %s200, %s202
    %p209 = scmp.eq.s32.totalorder %s24, 1
    %p210 = por %p208, %p209
    %p211 = scmp.ne.s32.totalorder %s202, %s203
    %p212 = scmp.eq.s32.totalorder %s24, 0
    %p213 = por %p211, %p212
    %p214 = scmp.ne.s32.totalorder %s202, %s203
    %p215 = scmp.eq.s32.totalorder %s25, 1
    %p216 = por %p214, %p215
    %p218 = scmp.ne.s32.totalorder %s203, %s217
    %p219 = scmp.eq.s32.totalorder %s25, 0
    %p220 = por %p218, %p219
    %s222 = sadd.s32 %s221, 1
    %p225 = scmp.eq.s32.totalorder %s19, 1
    %p226 = scmp.ne.s32.totalorder %s221, %s223
    %p227 = scmp.eq.s32.totalorder %s19, 0
    %p228 = por %p226, %p227
    %p229 = scmp.ne.s32.totalorder %s221, %s223
    %p230 = scmp.eq.s32.totalorder %s24, 1
    %p231 = por %p229, %p230
    %p232 = scmp.ne.s32.totalorder %s223, %s224
    %p233 = scmp.eq.s32.totalorder %s24, 0
    %p234 = por %p232, %p233
    %p235 = scmp.ne.s32.totalorder %s223, %s224
    %p236 = scmp.eq.s32.totalorder %s25, 1
    %p237 = por %p235, %p236
    %p239 = scmp.ne.s32.totalorder %s224, %s238
    %p240 = scmp.eq.s32.totalorder %s25, 0
    %p241 = por %p239, %p240
    %s243 = sadd.s32 %s242, 1
    %p246 = scmp.eq.s32.totalorder %s19, 1
    %p247 = scmp.ne.s32.totalorder %s242, %s244
    %p248 = scmp.eq.s32.totalorder %s19, 0
    %p249 = por %p247, %p248
    %p250 = scmp.ne.s32.totalorder %s242, %s244
    %p251 = scmp.eq.s32.totalorder %s24, 1
    %p252 = por %p250, %p251
    %p253 = scmp.ne.s32.totalorder %s244, %s245
    %p254 = scmp.eq.s32.totalorder %s24, 0
    %p255 = por %p253, %p254
    %p256 = scmp.ne.s32.totalorder %s244, %s245
    %p257 = scmp.eq.s32.totalorder %s25, 1
    %p258 = por %p256, %p257
    %p260 = scmp.ne.s32.totalorder %s245, %s259
    %p261 = scmp.eq.s32.totalorder %s25, 0
    %p262 = por %p260, %p261
    %s263 = ssub.s32 %s19, %s26
    %p264 = scmp.eq.s32.totalorder %s263, 0
    %s266 = sadd.s32 %s265, 1
    %s267 = scalar_select %p264, %s265, %s266
    %p270 = pneg %p264
    %p271 = scmp.eq.s32.totalorder %s19, 1
    %p272 = por %p270, %p271
    %p273 = scmp.ne.s32.totalorder %s265, %s268
    %p274 = scmp.eq.s32.totalorder %s19, 0
    %p275 = por %p273, %p274
    %p276 = scmp.ne.s32.totalorder %s265, %s268
    %p277 = scmp.eq.s32.totalorder %s24, 1
    %p278 = por %p276, %p277
    %p279 = scmp.ne.s32.totalorder %s268, %s269
    %p280 = scmp.eq.s32.totalorder %s24, 0
    %p281 = por %p279, %p280
    %p282 = scmp.ne.s32.totalorder %s268, %s269
    %p283 = scmp.eq.s32.totalorder %s25, 1
    %p284 = por %p282, %p283
    %p286 = scmp.ne.s32.totalorder %s269, %s285
    %p287 = scmp.eq.s32.totalorder %s25, 0
    %p288 = por %p286, %p287
    %s289 = ssub.s32 %s19, %s26
    %p290 = scmp.eq.s32.totalorder %s289, 0
    %s292 = sadd.s32 %s291, 1
    %s293 = scalar_select %p290, %s291, %s292
    %p296 = pneg %p290
    %p297 = scmp.eq.s32.totalorder %s19, 1
    %p298 = por %p296, %p297
    %p299 = scmp.ne.s32.totalorder %s291, %s294
    %p300 = scmp.eq.s32.totalorder %s19, 0
    %p301 = por %p299, %p300
    %p302 = scmp.ne.s32.totalorder %s291, %s294
    %p303 = scmp.eq.s32.totalorder %s24, 1
    %p304 = por %p302, %p303
    %p305 = scmp.ne.s32.totalorder %s294, %s295
    %p306 = scmp.eq.s32.totalorder %s24, 0
    %p307 = por %p305, %p306
    %p308 = scmp.ne.s32.totalorder %s294, %s295
    %p309 = scmp.eq.s32.totalorder %s25, 1
    %p310 = por %p308, %p309
    %p312 = scmp.ne.s32.totalorder %s295, %s311
    %p313 = scmp.eq.s32.totalorder %s25, 0
    %p314 = por %p312, %p313
    %p315 = scmp.le.s32.totalorder 1, %s19
    %p316 = scmp.lt.s32.totalorder %s19, 3
    %p317 = pnand %p315, %p316
    %p318 = pneg %p317
    // Predicated region
    $region9: #{spixel_cnn_forward.1} parent=5 // pred_check
      _
    $region10: #{spixel_cnn_forward.1} parent=5 // pred_check_branch
      %320 = sbr.rel (%p317) target = $region12
    $region11: #{spixel_cnn_forward.1} parent=5 // pred_region
      %s321 = ssub.s32 %s19, 1
      // Predicated region
      $region13: #{spixel_cnn_forward.1} parent=11 // pred_check
        %p322 = pneg %p66
      $region14: #{spixel_cnn_forward.1} parent=11 // pred_check_branch
        %324 = sbr.rel (%p322) target = $region16
      $region15: #{spixel_cnn_forward.1} parent=11 // pred_region
        _
      $region16: #{spixel_cnn_forward.1} parent=11 // pred_fallthru
        _
      // Predicated region
      $region17: #{spixel_cnn_forward.1} parent=11 // pred_check
        %p325 = pneg %p87
      $region18: #{spixel_cnn_forward.1} parent=11 // pred_check_branch
        %327 = sbr.rel (%p325) target = $region20
      $region19: #{spixel_cnn_forward.1} parent=11 // pred_region
        _
      $region20: #{spixel_cnn_forward.1} parent=11 // pred_fallthru
        _
      // Predicated region
      $region21: #{spixel_cnn_forward.1} parent=11 // pred_check
        %p328 = pneg %p108
      $region22: #{spixel_cnn_forward.1} parent=11 // pred_check_branch
        %330 = sbr.rel (%p328) target = $region24
      $region23: #{spixel_cnn_forward.1} parent=11 // pred_region
        _
      $region24: #{spixel_cnn_forward.1} parent=11 // pred_fallthru
        _
      // Predicated region
      $region25: #{spixel_cnn_forward.1} parent=11 // pred_check
        %p331 = pneg %p129
      $region26: #{spixel_cnn_forward.1} parent=11 // pred_check_branch
        %333 = sbr.rel (%p331) target = $region28
      $region27: #{spixel_cnn_forward.1} parent=11 // pred_region
        _
      $region28: #{spixel_cnn_forward.1} parent=11 // pred_fallthru
        _
      // Predicated region
      $region29: #{spixel_cnn_forward.1} parent=11 // pred_check
        %p334 = pneg %p150
      $region30: #{spixel_cnn_forward.1} parent=11 // pred_check_branch
        %336 = sbr.rel (%p334) target = $region32
      $region31: #{spixel_cnn_forward.1} parent=11 // pred_region
        _
      $region32: #{spixel_cnn_forward.1} parent=11 // pred_fallthru
        _
      // Predicated region
      $region33: #{spixel_cnn_forward.1} parent=11 // pred_check
        %p337 = pneg %p171
      $region34: #{spixel_cnn_forward.1} parent=11 // pred_check_branch
        %339 = sbr.rel (%p337) target = $region36
      $region35: #{spixel_cnn_forward.1} parent=11 // pred_region
        _
      $region36: #{spixel_cnn_forward.1} parent=11 // pred_fallthru
        _
      // Predicated region
      $region37: #{spixel_cnn_forward.1} parent=11 // pred_check
        %p340 = pneg %p192
      $region38: #{spixel_cnn_forward.1} parent=11 // pred_check_branch
        %342 = sbr.rel (%p340) target = $region40
      $region39: #{spixel_cnn_forward.1} parent=11 // pred_region
        _
      $region40: #{spixel_cnn_forward.1} parent=11 // pred_fallthru
        _
      // Predicated region
      $region41: #{spixel_cnn_forward.1} parent=11 // pred_check
        %p343 = pneg %p213
      $region42: #{spixel_cnn_forward.1} parent=11 // pred_check_branch
        %345 = sbr.rel (%p343) target = $region44
      $region43: #{spixel_cnn_forward.1} parent=11 // pred_region
        _
      $region44: #{spixel_cnn_forward.1} parent=11 // pred_fallthru
        _
      // Predicated region
      $region45: #{spixel_cnn_forward.1} parent=11 // pred_check
        %p346 = pneg %p234
      $region46: #{spixel_cnn_forward.1} parent=11 // pred_check_branch
        %348 = sbr.rel (%p346) target = $region48
      $region47: #{spixel_cnn_forward.1} parent=11 // pred_region
        _
      $region48: #{spixel_cnn_forward.1} parent=11 // pred_fallthru
        _
      // Predicated region
      $region49: #{spixel_cnn_forward.1} parent=11 // pred_check
        %p349 = pneg %p255
      $region50: #{spixel_cnn_forward.1} parent=11 // pred_check_branch
        %351 = sbr.rel (%p349) target = $region52
      $region51: #{spixel_cnn_forward.1} parent=11 // pred_region
        _
      $region52: #{spixel_cnn_forward.1} parent=11 // pred_fallthru
        _
    $region12: #{spixel_cnn_forward.1} parent=5 // pred_fallthru
      _
    %p352 = scmp.lt.s32.totalorder %s19, 2
    // Predicated region
    $region53: #{spixel_cnn_forward.1} parent=5 // pred_check
      %p353 = pneg %p352
    $region54: #{spixel_cnn_forward.1} parent=5 // pred_check_branch
      %355 = sbr.rel (%p353) target = $region56
    $region55: #{spixel_cnn_forward.1} parent=5 // pred_region
      // Predicated region
      $region57: #{spixel_cnn_forward.1} parent=55 // pred_check
        %p356 = pneg %p39
      $region58: #{spixel_cnn_forward.1} parent=55 // pred_check_branch
        %358 = sbr.rel (%p356) target = $region60
      $region59: #{spixel_cnn_forward.1} parent=55 // pred_region
        %p359 = scmp.lt.s32.totalorder %s19, 1
        %s360 = scalar_select %p359, %s19, 1
        %s361 = smul.addr %s360, 32
        %s362 = smul.addr %s361, 8
        %s363 = scalar_lea.vmem %s0, %s362
      $region60: #{spixel_cnn_forward.1} parent=55 // pred_fallthru
        _
    $region56: #{spixel_cnn_forward.1} parent=5 // pred_fallthru
      _
    %p364 = scmp.le.s32.totalorder 1, %s19
    %p365 = scmp.lt.s32.totalorder %s19, 3
    %p366 = pnand %p364, %p365
    %p367 = pneg %p366
    // Predicated region
    $region61: #{spixel_cnn_forward.1} parent=5 // pred_check
      _
    $region62: #{spixel_cnn_forward.1} parent=5 // pred_check_branch
      %369 = sbr.rel (%p366) target = $region64
    $region63: #{spixel_cnn_forward.1} parent=5 // pred_region
      %s370 = ssub.s32 %s19, 1
      %p371 = scmp.lt.s32.totalorder %s24, 1
      %s372 = scalar_select %p371, %s24, 1
      %s373 = smul.addr %s372, 32
      %s374 = smul.addr %s373, 8
      %s375 = scalar_lea.vmem %s0, %s374
      %p376 = pneg %p45
      %p377 = pneg %p42
      %p378 = pneg %p66
      %p379 = pneg %p63
      %p380 = pneg %p87
      %p381 = pneg %p84
      %p382 = pneg %p108
      %p383 = pneg %p105
      %p384 = pneg %p129
      %p385 = pneg %p126
      %p386 = pneg %p150
      %p387 = pneg %p147
      %p388 = pneg %p171
      %p389 = pneg %p168
      %p390 = pneg %p192
      %p391 = pneg %p189
      %p392 = pneg %p213
      %p393 = pneg %p210
      %p394 = pneg %p234
      %p395 = pneg %p231
      %p396 = pneg %p255
      %p397 = pneg %p252
      %p398 = pneg %p281
      %p399 = pneg %p278
      %p400 = scmp.lt.s32.totalorder %s24, 1
      %s401 = scalar_select %p400, %s24, 1
      %s402 = smul.addr %s401, 32
      %s403 = smul.addr %s402, 8
      %s404 = scalar_lea.vmem %s11, %s403
      %p405 = pneg %p307
      %p406 = pneg %p304
      %p407 = scmp.lt.s32.totalorder %s24, 1
      %s408 = scalar_select %p407, %s24, 1
      %s409 = smul.addr %s408, 32
      %s410 = smul.addr %s409, 8
      %s411 = scalar_lea.vmem %s12, %s410
      %p412 = scmp.lt.s32.totalorder %s24, 1
      %s413 = scalar_select %p412, %s24, 1
      %s414 = smul.addr %s413, 32
      %s415 = smul.addr %s414, 8
      %s416 = scalar_lea.vmem %s0, %s415
      %p417 = scmp.lt.s32.totalorder %s24, 1
      %s418 = scalar_select %p417, %s24, 1
      %s419 = smul.addr %s418, 32
      %s420 = smul.addr %s419, 8
      %s421 = scalar_lea.vmem %s11, %s420
      %p422 = scmp.lt.s32.totalorder %s24, 1
      %s423 = scalar_select %p422, %s24, 1
      %s424 = smul.addr %s423, 32
      %s425 = smul.addr %s424, 8
      %s426 = scalar_lea.vmem %s12, %s425
      %v428 = vld [vmem:[%s416] sm:$0xff]
      %v429 = vld [vmem:[%s416 + $0x8] sm:$0xff]
      %v430 = vld [vmem:[%s416 + $0x10] sm:$0xff]
      %v431 = vld [vmem:[%s416 + $0x18] sm:$0xff]
      %v432 = vld [vmem:[%s416 + $0x20] sm:$0xff]
      %v433 = vld [vmem:[%s416 + $0x28] sm:$0xff]
      %v434 = vld [vmem:[%s416 + $0x30] sm:$0xff]
      %v435 = vld [vmem:[%s416 + $0x38] sm:$0xff]
      %v436 = vld [vmem:[%s416 + $0x40] sm:$0xff]
      %v437 = vld [vmem:[%s416 + $0x48] sm:$0xff]
      %v438 = vld [vmem:[%s416 + $0x50] sm:$0xff]
      %v439 = vld [vmem:[%s416 + $0x58] sm:$0xff]
      %v440 = vld [vmem:[%s416 + $0x60] sm:$0xff]
      %v441 = vld [vmem:[%s416 + $0x68] sm:$0xff]
      %v442 = vld [vmem:[%s416 + $0x70] sm:$0xff]
      %v443 = vld [vmem:[%s416 + $0x78] sm:$0xff]
      %v444 = vld [vmem:[%s416 + $0x80] sm:$0xff]
      %v445 = vld [vmem:[%s416 + $0x88] sm:$0xff]
      %v446 = vld [vmem:[%s416 + $0x90] sm:$0xff]
      %v447 = vld [vmem:[%s416 + $0x98] sm:$0xff]
      %v448 = vld [vmem:[%s416 + $0xa0] sm:$0xff]
      %v449 = vld [vmem:[%s416 + $0xa8] sm:$0xff]
      %v450 = vld [vmem:[%s416 + $0xb0] sm:$0xff]
      %v451 = vld [vmem:[%s416 + $0xb8] sm:$0xff]
      %v452 = vld [vmem:[%s416 + $0xc0] sm:$0xff]
      %v453 = vld [vmem:[%s416 + $0xc8] sm:$0xff]
      %v454 = vld [vmem:[%s416 + $0xd0] sm:$0xff]
      %v455 = vld [vmem:[%s416 + $0xd8] sm:$0xff]
      %v456 = vld [vmem:[%s416 + $0xe0] sm:$0xff]
      %v457 = vld [vmem:[%s416 + $0xe8] sm:$0xff]
      %v458 = vld [vmem:[%s416 + $0xf0] sm:$0xff]
      %v459 = vld [vmem:[%s416 + $0xf8] sm:$0xff]
      %v476 = vrot.slane %v430, 1
      %v477 = vrot.slane %v428, 1
      %v478 = vrot.slane %v432, 1
      %v479 = vrot.slane %v434, 1
      %v480 = vrot.slane %v436, 1
      %v481 = vrot.slane %v438, 1
      %v482 = vrot.slane %v440, 1
      %v483 = vrot.slane %v442, 1
      %v484 = vrot.slane %v444, 1
      %v485 = vrot.slane %v446, 1
      %v486 = vrot.slane %v448, 1
      %v487 = vrot.slane %v450, 1
      %v488 = vrot.slane %v452, 1
      %v489 = vrot.slane %v454, 1
      %v490 = vrot.slane %v456, 1
      %v491 = vrot.slane %v458, 1
      %vm524 = vcmask 1040384
      %v525 = vrot.slane %v430, 7
      %v526 = vrot.slane %v431, 7
      %v527 = vsel %vm524, %v525, %v526
      %v528 = vrot.slane %v428, 7
      %v529 = vrot.slane %v429, 7
      %v530 = vsel %vm524, %v528, %v529
      %v531 = vrot.slane %v432, 7
      %v532 = vrot.slane %v433, 7
      %v533 = vsel %vm524, %v531, %v532
      %v534 = vrot.slane %v434, 7
      %v535 = vrot.slane %v435, 7
      %v536 = vsel %vm524, %v534, %v535
      %v537 = vrot.slane %v436, 7
      %v538 = vrot.slane %v437, 7
      %v539 = vsel %vm524, %v537, %v538
      %v540 = vrot.slane %v438, 7
      %v541 = vrot.slane %v439, 7
      %v542 = vsel %vm524, %v540, %v541
      %v543 = vrot.slane %v440, 7
      %v544 = vrot.slane %v441, 7
      %v545 = vsel %vm524, %v543, %v544
      %v546 = vrot.slane %v442, 7
      %v547 = vrot.slane %v443, 7
      %v548 = vsel %vm524, %v546, %v547
      %v549 = vrot.slane %v444, 7
      %v550 = vrot.slane %v445, 7
      %v551 = vsel %vm524, %v549, %v550
      %v552 = vrot.slane %v446, 7
      %v553 = vrot.slane %v447, 7
      %v554 = vsel %vm524, %v552, %v553
      %v555 = vrot.slane %v448, 7
      %v556 = vrot.slane %v449, 7
      %v557 = vsel %vm524, %v555, %v556
      %v558 = vrot.slane %v450, 7
      %v559 = vrot.slane %v451, 7
      %v560 = vsel %vm524, %v558, %v559
      %v561 = vrot.slane %v452, 7
      %v562 = vrot.slane %v453, 7
      %v563 = vsel %vm524, %v561, %v562
      %v564 = vrot.slane %v454, 7
      %v565 = vrot.slane %v455, 7
      %v566 = vsel %vm524, %v564, %v565
      %v567 = vrot.slane %v456, 7
      %v568 = vrot.slane %v457, 7
      %v569 = vsel %vm524, %v567, %v568
      %v570 = vrot.slane %v458, 7
      %v571 = vrot.slane %v459, 7
      %v572 = vsel %vm524, %v570, %v571
      %v620 = vrot.slane %v431, 5
      %v621 = vrot.slane %v429, 5
      %v622 = vrot.slane %v433, 5
      %v623 = vrot.slane %v435, 5
      %v624 = vrot.slane %v437, 5
      %v625 = vrot.slane %v439, 5
      %v626 = vrot.slane %v441, 5
      %v627 = vrot.slane %v443, 5
      %v628 = vrot.slane %v445, 5
      %v629 = vrot.slane %v447, 5
      %v630 = vrot.slane %v449, 5
      %v631 = vrot.slane %v451, 5
      %v632 = vrot.slane %v453, 5
      %v633 = vrot.slane %v455, 5
      %v634 = vrot.slane %v457, 5
      %v635 = vrot.slane %v459, 5
      %v652 = vsel %vm524, %v476, %v525
      %v653 = vsel %vm524, %v477, %v528
      %v654 = vsel %vm524, %v478, %v531
      %v655 = vsel %vm524, %v479, %v534
      %v656 = vsel %vm524, %v480, %v537
      %v657 = vsel %vm524, %v481, %v540
      %v658 = vsel %vm524, %v482, %v543
      %v659 = vsel %vm524, %v483, %v546
      %v660 = vsel %vm524, %v484, %v549
      %v661 = vsel %vm524, %v485, %v552
      %v662 = vsel %vm524, %v486, %v555
      %v663 = vsel %vm524, %v487, %v558
      %v664 = vsel %vm524, %v488, %v561
      %v665 = vsel %vm524, %v489, %v564
      %v666 = vsel %vm524, %v490, %v567
      %v667 = vsel %vm524, %v491, %v570
      %v668 = vsel %vm524, %v526, %v620
      %v669 = vsel %vm524, %v529, %v621
      %v670 = vsel %vm524, %v532, %v622
      %v671 = vsel %vm524, %v535, %v623
      %v672 = vsel %vm524, %v538, %v624
      %v673 = vsel %vm524, %v541, %v625
      %v674 = vsel %vm524, %v544, %v626
      %v675 = vsel %vm524, %v547, %v627
      %v676 = vsel %vm524, %v550, %v628
      %v677 = vsel %vm524, %v553, %v629
      %v678 = vsel %vm524, %v556, %v630
      %v679 = vsel %vm524, %v559, %v631
      %v680 = vsel %vm524, %v562, %v632
      %v681 = vsel %vm524, %v565, %v633
      %v682 = vsel %vm524, %v568, %v634
      %v683 = vsel %vm524, %v571, %v635
      %vm714 = vcmask 1046528
      %v715 = vrot.slane %v652, 1
      %v716 = vrot.slane %v527, 1
      %v717 = vsel %vm714, %v715, %v716
      %v718 = vrot.slane %v668, 1
      %v719 = vsel %vm714, %v716, %v718
      %v720 = vrot.slane %v653, 1
      %v721 = vrot.slane %v530, 1
      %v722 = vsel %vm714, %v720, %v721
      %v723 = vrot.slane %v669, 1
      %v724 = vsel %vm714, %v721, %v723
      %v725 = vrot.slane %v654, 1
      %v726 = vrot.slane %v533, 1
      %v727 = vsel %vm714, %v725, %v726
      %v728 = vrot.slane %v670, 1
      %v729 = vsel %vm714, %v726, %v728
      %v730 = vrot.slane %v655, 1
      %v731 = vrot.slane %v536, 1
      %v732 = vsel %vm714, %v730, %v731
      %v733 = vrot.slane %v671, 1
      %v734 = vsel %vm714, %v731, %v733
      %v735 = vrot.slane %v656, 1
      %v736 = vrot.slane %v539, 1
      %v737 = vsel %vm714, %v735, %v736
      %v738 = vrot.slane %v672, 1
      %v739 = vsel %vm714, %v736, %v738
      %v740 = vrot.slane %v657, 1
      %v741 = vrot.slane %v542, 1
      %v742 = vsel %vm714, %v740, %v741
      %v743 = vrot.slane %v673, 1
      %v744 = vsel %vm714, %v741, %v743
      %v745 = vrot.slane %v658, 1
      %v746 = vrot.slane %v545, 1
      %v747 = vsel %vm714, %v745, %v746
      %v748 = vrot.slane %v674, 1
      %v749 = vsel %vm714, %v746, %v748
      %v750 = vrot.slane %v659, 1
      %v751 = vrot.slane %v548, 1
      %v752 = vsel %vm714, %v750, %v751
      %v753 = vrot.slane %v675, 1
      %v754 = vsel %vm714, %v751, %v753
      %v755 = vrot.slane %v660, 1
      %v756 = vrot.slane %v551, 1
      %v757 = vsel %vm714, %v755, %v756
      %v758 = vrot.slane %v676, 1
      %v759 = vsel %vm714, %v756, %v758
      %v760 = vrot.slane %v661, 1
      %v761 = vrot.slane %v554, 1
      %v762 = vsel %vm714, %v760, %v761
      %v763 = vrot.slane %v677, 1
      %v764 = vsel %vm714, %v761, %v763
      %v765 = vrot.slane %v662, 1
      %v766 = vrot.slane %v557, 1
      %v767 = vsel %vm714, %v765, %v766
      %v768 = vrot.slane %v678, 1
      %v769 = vsel %vm714, %v766, %v768
      %v770 = vrot.slane %v663, 1
      %v771 = vrot.slane %v560, 1
      %v772 = vsel %vm714, %v770, %v771
      %v773 = vrot.slane %v679, 1
      %v774 = vsel %vm714, %v771, %v773
      %v775 = vrot.slane %v664, 1
      %v776 = vrot.slane %v563, 1
      %v777 = vsel %vm714, %v775, %v776
      %v778 = vrot.slane %v680, 1
      %v779 = vsel %vm714, %v776, %v778
      %v780 = vrot.slane %v665, 1
      %v781 = vrot.slane %v566, 1
      %v782 = vsel %vm714, %v780, %v781
      %v783 = vrot.slane %v681, 1
      %v784 = vsel %vm714, %v781, %v783
      %v785 = vrot.slane %v666, 1
      %v786 = vrot.slane %v569, 1
      %v787 = vsel %vm714, %v785, %v786
      %v788 = vrot.slane %v682, 1
      %v789 = vsel %vm714, %v786, %v788
      %vm790 = vcmask 1045504
      %v791 = vrot.slane %v652, 2
      %v792 = vrot.slane %v527, 2
      %v793 = vsel %vm790, %v791, %v792
      %v794 = vrot.slane %v668, 2
      %v795 = vsel %vm790, %v792, %v794
      %v796 = vrot.slane %v653, 2
      %v797 = vrot.slane %v530, 2
      %v798 = vsel %vm790, %v796, %v797
      %v799 = vrot.slane %v669, 2
      %v800 = vsel %vm790, %v797, %v799
      %v801 = vrot.slane %v654, 2
      %v802 = vrot.slane %v533, 2
      %v803 = vsel %vm790, %v801, %v802
      %v804 = vrot.slane %v670, 2
      %v805 = vsel %vm790, %v802, %v804
      %v806 = vrot.slane %v655, 2
      %v807 = vrot.slane %v536, 2
      %v808 = vsel %vm790, %v806, %v807
      %v809 = vrot.slane %v671, 2
      %v810 = vsel %vm790, %v807, %v809
      %v811 = vrot.slane %v656, 2
      %v812 = vrot.slane %v539, 2
      %v813 = vsel %vm790, %v811, %v812
      %v814 = vrot.slane %v672, 2
      %v815 = vsel %vm790, %v812, %v814
      %v816 = vrot.slane %v657, 2
      %v817 = vrot.slane %v542, 2
      %v818 = vsel %vm790, %v816, %v817
      %v819 = vrot.slane %v673, 2
      %v820 = vsel %vm790, %v817, %v819
      %v821 = vrot.slane %v658, 2
      %v822 = vrot.slane %v545, 2
      %v823 = vsel %vm790, %v821, %v822
      %v824 = vrot.slane %v674, 2
      %v825 = vsel %vm790, %v822, %v824
      %v826 = vrot.slane %v659, 2
      %v827 = vrot.slane %v548, 2
      %v828 = vsel %vm790, %v826, %v827
      %v829 = vrot.slane %v675, 2
      %v830 = vsel %vm790, %v827, %v829
      %v831 = vrot.slane %v660, 2
      %v832 = vrot.slane %v551, 2
      %v833 = vsel %vm790, %v831, %v832
      %v834 = vrot.slane %v676, 2
      %v835 = vsel %vm790, %v832, %v834
      %v836 = vrot.slane %v661, 2
      %v837 = vrot.slane %v554, 2
      %v838 = vsel %vm790, %v836, %v837
      %v839 = vrot.slane %v677, 2
      %v840 = vsel %vm790, %v837, %v839
      %v841 = vrot.slane %v662, 2
      %v842 = vrot.slane %v557, 2
      %v843 = vsel %vm790, %v841, %v842
      %v844 = vrot.slane %v678, 2
      %v845 = vsel %vm790, %v842, %v844
      %v846 = vrot.slane %v663, 2
      %v847 = vrot.slane %v560, 2
      %v848 = vsel %vm790, %v846, %v847
      %v849 = vrot.slane %v679, 2
      %v850 = vsel %vm790, %v847, %v849
      %v851 = vrot.slane %v664, 2
      %v852 = vrot.slane %v563, 2
      %v853 = vsel %vm790, %v851, %v852
      %v854 = vrot.slane %v680, 2
      %v855 = vsel %vm790, %v852, %v854
      %v856 = vrot.slane %v665, 2
      %v857 = vrot.slane %v566, 2
      %v858 = vsel %vm790, %v856, %v857
      %v859 = vrot.slane %v681, 2
      %v860 = vsel %vm790, %v857, %v859
      %v861 = vrot.slane %v666, 2
      %v862 = vrot.slane %v569, 2
      %v863 = vsel %vm790, %v861, %v862
      %v864 = vrot.slane %v682, 2
      %v865 = vsel %vm790, %v862, %v864
      %v868 = vrot.slane %v667, 1
      %v869 = vrot.slane %v572, 1
      %v870 = vsel %vm714, %v868, %v869
      %v871 = vrot.slane %v683, 1
      %v872 = vsel %vm714, %v869, %v871
      %v873 = vrot.slane %v667, 2
      %v874 = vrot.slane %v572, 2
      %v875 = vsel %vm790, %v873, %v874
      %v876 = vrot.slane %v683, 2
      %v877 = vsel %vm790, %v874, %v876
      %878 = vrot.lane.b32.xlu0 %v717, 5
      %v879 = vpop.permute.xlu0 %878
      %880 = vrot.lane.b32.xlu0 %v719, 5
      %v881 = vpop.permute.xlu0 %880
      %882 = vrot.lane.b32.xlu0 %v722, 5
      %v883 = vpop.permute.xlu0 %882
      %884 = vrot.lane.b32.xlu0 %v724, 5
      %v885 = vpop.permute.xlu0 %884
      %886 = vrot.lane.b32.xlu0 %v727, 5
      %v887 = vpop.permute.xlu0 %886
      %888 = vrot.lane.b32.xlu0 %v729, 5
      %v889 = vpop.permute.xlu0 %888
      %890 = vrot.lane.b32.xlu0 %v732, 5
      %v891 = vpop.permute.xlu0 %890
      %892 = vrot.lane.b32.xlu0 %v734, 5
      %v893 = vpop.permute.xlu0 %892
      %894 = vrot.lane.b32.xlu0 %v737, 5
      %v895 = vpop.permute.xlu0 %894
      %896 = vrot.lane.b32.xlu0 %v739, 5
      %v897 = vpop.permute.xlu0 %896
      %898 = vrot.lane.b32.xlu0 %v742, 5
      %v899 = vpop.permute.xlu0 %898
      %900 = vrot.lane.b32.xlu0 %v744, 5
      %v901 = vpop.permute.xlu0 %900
      %902 = vrot.lane.b32.xlu0 %v747, 5
      %v903 = vpop.permute.xlu0 %902
      %904 = vrot.lane.b32.xlu0 %v749, 5
      %v905 = vpop.permute.xlu0 %904
      %906 = vrot.lane.b32.xlu0 %v752, 5
      %v907 = vpop.permute.xlu0 %906
      %908 = vrot.lane.b32.xlu0 %v754, 5
      %v909 = vpop.permute.xlu0 %908
      %910 = vrot.lane.b32.xlu0 %v757, 5
      %v911 = vpop.permute.xlu0 %910
      %912 = vrot.lane.b32.xlu0 %v759, 5
      %v913 = vpop.permute.xlu0 %912
      %914 = vrot.lane.b32.xlu0 %v762, 5
      %v915 = vpop.permute.xlu0 %914
      %916 = vrot.lane.b32.xlu0 %v764, 5
      %v917 = vpop.permute.xlu0 %916
      %918 = vrot.lane.b32.xlu0 %v767, 5
      %v919 = vpop.permute.xlu0 %918
      %920 = vrot.lane.b32.xlu0 %v769, 5
      %v921 = vpop.permute.xlu0 %920
      %922 = vrot.lane.b32.xlu0 %v772, 5
      %v923 = vpop.permute.xlu0 %922
      %924 = vrot.lane.b32.xlu0 %v774, 5
      %v925 = vpop.permute.xlu0 %924
      %926 = vrot.lane.b32.xlu0 %v777, 5
      %v927 = vpop.permute.xlu0 %926
      %928 = vrot.lane.b32.xlu0 %v779, 5
      %v929 = vpop.permute.xlu0 %928
      %930 = vrot.lane.b32.xlu0 %v782, 5
      %v931 = vpop.permute.xlu0 %930
      %932 = vrot.lane.b32.xlu0 %v784, 5
      %v933 = vpop.permute.xlu0 %932
      %934 = vrot.lane.b32.xlu0 %v787, 5
      %v935 = vpop.permute.xlu0 %934
      %936 = vrot.lane.b32.xlu0 %v789, 5
      %v937 = vpop.permute.xlu0 %936
      %968 = vrot.lane.b32.xlu0 %v793, 10
      %v969 = vpop.permute.xlu0 %968
      %970 = vrot.lane.b32.xlu0 %v795, 10
      %v971 = vpop.permute.xlu0 %970
      %972 = vrot.lane.b32.xlu0 %v798, 10
      %v973 = vpop.permute.xlu0 %972
      %974 = vrot.lane.b32.xlu0 %v800, 10
      %v975 = vpop.permute.xlu0 %974
      %976 = vrot.lane.b32.xlu0 %v803, 10
      %v977 = vpop.permute.xlu0 %976
      %978 = vrot.lane.b32.xlu0 %v805, 10
      %v979 = vpop.permute.xlu0 %978
      %980 = vrot.lane.b32.xlu0 %v808, 10
      %v981 = vpop.permute.xlu0 %980
      %982 = vrot.lane.b32.xlu0 %v810, 10
      %v983 = vpop.permute.xlu0 %982
      %984 = vrot.lane.b32.xlu0 %v813, 10
      %v985 = vpop.permute.xlu0 %984
      %986 = vrot.lane.b32.xlu0 %v815, 10
      %v987 = vpop.permute.xlu0 %986
      %988 = vrot.lane.b32.xlu0 %v818, 10
      %v989 = vpop.permute.xlu0 %988
      %990 = vrot.lane.b32.xlu0 %v820, 10
      %v991 = vpop.permute.xlu0 %990
      %992 = vrot.lane.b32.xlu0 %v823, 10
      %v993 = vpop.permute.xlu0 %992
      %994 = vrot.lane.b32.xlu0 %v825, 10
      %v995 = vpop.permute.xlu0 %994
      %996 = vrot.lane.b32.xlu0 %v828, 10
      %v997 = vpop.permute.xlu0 %996
      %998 = vrot.lane.b32.xlu0 %v830, 10
      %v999 = vpop.permute.xlu0 %998
      %1000 = vrot.lane.b32.xlu0 %v833, 10
      %v1001 = vpop.permute.xlu0 %1000
      %1002 = vrot.lane.b32.xlu0 %v835, 10
      %v1003 = vpop.permute.xlu0 %1002
      %1004 = vrot.lane.b32.xlu0 %v838, 10
      %v1005 = vpop.permute.xlu0 %1004
      %1006 = vrot.lane.b32.xlu0 %v840, 10
      %v1007 = vpop.permute.xlu0 %1006
      %1008 = vrot.lane.b32.xlu0 %v843, 10
      %v1009 = vpop.permute.xlu0 %1008
      %1010 = vrot.lane.b32.xlu0 %v845, 10
      %v1011 = vpop.permute.xlu0 %1010
      %1012 = vrot.lane.b32.xlu0 %v848, 10
      %v1013 = vpop.permute.xlu0 %1012
      %1014 = vrot.lane.b32.xlu0 %v850, 10
      %v1015 = vpop.permute.xlu0 %1014
      %1016 = vrot.lane.b32.xlu0 %v853, 10
      %v1017 = vpop.permute.xlu0 %1016
      %1018 = vrot.lane.b32.xlu0 %v855, 10
      %v1019 = vpop.permute.xlu0 %1018
      %1020 = vrot.lane.b32.xlu0 %v858, 10
      %v1021 = vpop.permute.xlu0 %1020
      %1022 = vrot.lane.b32.xlu0 %v860, 10
      %v1023 = vpop.permute.xlu0 %1022
      %1024 = vrot.lane.b32.xlu0 %v863, 10
      %v1025 = vpop.permute.xlu0 %1024
      %1026 = vrot.lane.b32.xlu0 %v865, 10
      %v1027 = vpop.permute.xlu0 %1026
      %1058 = vrot.lane.b32.xlu0 %v653, 15
      %v1059 = vpop.permute.xlu0 %1058
      %1060 = vrot.lane.b32.xlu0 %v530, 15
      %v1061 = vpop.permute.xlu0 %1060
      %1062 = vrot.lane.b32.xlu0 %v652, 15
      %v1063 = vpop.permute.xlu0 %1062
      %1064 = vrot.lane.b32.xlu0 %v527, 15
      %v1065 = vpop.permute.xlu0 %1064
      %1066 = vrot.lane.b32.xlu0 %v654, 15
      %v1067 = vpop.permute.xlu0 %1066
      %1068 = vrot.lane.b32.xlu0 %v533, 15
      %v1069 = vpop.permute.xlu0 %1068
      %1070 = vrot.lane.b32.xlu0 %v655, 15
      %v1071 = vpop.permute.xlu0 %1070
      %1072 = vrot.lane.b32.xlu0 %v536, 15
      %v1073 = vpop.permute.xlu0 %1072
      %1074 = vrot.lane.b32.xlu0 %v656, 15
      %v1075 = vpop.permute.xlu0 %1074
      %1076 = vrot.lane.b32.xlu0 %v539, 15
      %v1077 = vpop.permute.xlu0 %1076
      %1078 = vrot.lane.b32.xlu0 %v657, 15
      %v1079 = vpop.permute.xlu0 %1078
      %1080 = vrot.lane.b32.xlu0 %v542, 15
      %v1081 = vpop.permute.xlu0 %1080
      %1082 = vrot.lane.b32.xlu0 %v658, 15
      %v1083 = vpop.permute.xlu0 %1082
      %1084 = vrot.lane.b32.xlu0 %v545, 15
      %v1085 = vpop.permute.xlu0 %1084
      %1086 = vrot.lane.b32.xlu0 %v659, 15
      %v1087 = vpop.permute.xlu0 %1086
      %1088 = vrot.lane.b32.xlu0 %v548, 15
      %v1089 = vpop.permute.xlu0 %1088
      %1090 = vrot.lane.b32.xlu0 %v660, 15
      %v1091 = vpop.permute.xlu0 %1090
      %1092 = vrot.lane.b32.xlu0 %v551, 15
      %v1093 = vpop.permute.xlu0 %1092
      %1094 = vrot.lane.b32.xlu0 %v661, 15
      %v1095 = vpop.permute.xlu0 %1094
      %1096 = vrot.lane.b32.xlu0 %v554, 15
      %v1097 = vpop.permute.xlu0 %1096
      %1098 = vrot.lane.b32.xlu0 %v662, 15
      %v1099 = vpop.permute.xlu0 %1098
      %1100 = vrot.lane.b32.xlu0 %v557, 15
      %v1101 = vpop.permute.xlu0 %1100
      %1102 = vrot.lane.b32.xlu0 %v663, 15
      %v1103 = vpop.permute.xlu0 %1102
      %1104 = vrot.lane.b32.xlu0 %v560, 15
      %v1105 = vpop.permute.xlu0 %1104
      %1106 = vrot.lane.b32.xlu0 %v664, 15
      %v1107 = vpop.permute.xlu0 %1106
      %1108 = vrot.lane.b32.xlu0 %v563, 15
      %v1109 = vpop.permute.xlu0 %1108
      %1110 = vrot.lane.b32.xlu0 %v665, 15
      %v1111 = vpop.permute.xlu0 %1110
      %1112 = vrot.lane.b32.xlu0 %v566, 15
      %v1113 = vpop.permute.xlu0 %1112
      %1114 = vrot.lane.b32.xlu0 %v666, 15
      %v1115 = vpop.permute.xlu0 %1114
      %1116 = vrot.lane.b32.xlu0 %v569, 15
      %v1117 = vpop.permute.xlu0 %1116
      %1118 = vrot.lane.b32.xlu0 %v667, 15
      %v1119 = vpop.permute.xlu0 %1118
      %1120 = vrot.lane.b32.xlu0 %v572, 15
      %v1121 = vpop.permute.xlu0 %1120
      %1154 = vrot.lane.b32.xlu0 %v722, 20
      %v1155 = vpop.permute.xlu0 %1154
      %1156 = vrot.lane.b32.xlu0 %v724, 20
      %v1157 = vpop.permute.xlu0 %1156
      %1158 = vrot.lane.b32.xlu0 %v717, 20
      %v1159 = vpop.permute.xlu0 %1158
      %1160 = vrot.lane.b32.xlu0 %v719, 20
      %v1161 = vpop.permute.xlu0 %1160
      %1162 = vrot.lane.b32.xlu0 %v727, 20
      %v1163 = vpop.permute.xlu0 %1162
      %1164 = vrot.lane.b32.xlu0 %v729, 20
      %v1165 = vpop.permute.xlu0 %1164
      %1166 = vrot.lane.b32.xlu0 %v732, 20
      %v1167 = vpop.permute.xlu0 %1166
      %1168 = vrot.lane.b32.xlu0 %v734, 20
      %v1169 = vpop.permute.xlu0 %1168
      %1170 = vrot.lane.b32.xlu0 %v737, 20
      %v1171 = vpop.permute.xlu0 %1170
      %1172 = vrot.lane.b32.xlu0 %v739, 20
      %v1173 = vpop.permute.xlu0 %1172
      %1174 = vrot.lane.b32.xlu0 %v742, 20
      %v1175 = vpop.permute.xlu0 %1174
      %1176 = vrot.lane.b32.xlu0 %v744, 20
      %v1177 = vpop.permute.xlu0 %1176
      %1178 = vrot.lane.b32.xlu0 %v747, 20
      %v1179 = vpop.permute.xlu0 %1178
      %1180 = vrot.lane.b32.xlu0 %v749, 20
      %v1181 = vpop.permute.xlu0 %1180
      %1182 = vrot.lane.b32.xlu0 %v752, 20
      %v1183 = vpop.permute.xlu0 %1182
      %1184 = vrot.lane.b32.xlu0 %v754, 20
      %v1185 = vpop.permute.xlu0 %1184
      %1186 = vrot.lane.b32.xlu0 %v757, 20
      %v1187 = vpop.permute.xlu0 %1186
      %1188 = vrot.lane.b32.xlu0 %v759, 20
      %v1189 = vpop.permute.xlu0 %1188
      %1190 = vrot.lane.b32.xlu0 %v762, 20
      %v1191 = vpop.permute.xlu0 %1190
      %1192 = vrot.lane.b32.xlu0 %v764, 20
      %v1193 = vpop.permute.xlu0 %1192
      %1194 = vrot.lane.b32.xlu0 %v767, 20
      %v1195 = vpop.permute.xlu0 %1194
      %1196 = vrot.lane.b32.xlu0 %v769, 20
      %v1197 = vpop.permute.xlu0 %1196
      %1198 = vrot.lane.b32.xlu0 %v772, 20
      %v1199 = vpop.permute.xlu0 %1198
      %1200 = vrot.lane.b32.xlu0 %v774, 20
      %v1201 = vpop.permute.xlu0 %1200
      %1202 = vrot.lane.b32.xlu0 %v777, 20
      %v1203 = vpop.permute.xlu0 %1202
      %1204 = vrot.lane.b32.xlu0 %v779, 20
      %v1205 = vpop.permute.xlu0 %1204
      %1206 = vrot.lane.b32.xlu0 %v782, 20
      %v1207 = vpop.permute.xlu0 %1206
      %1208 = vrot.lane.b32.xlu0 %v784, 20
      %v1209 = vpop.permute.xlu0 %1208
      %1210 = vrot.lane.b32.xlu0 %v787, 20
      %v1211 = vpop.permute.xlu0 %1210
      %1212 = vrot.lane.b32.xlu0 %v789, 20
      %v1213 = vpop.permute.xlu0 %1212
      %1214 = vrot.lane.b32.xlu0 %v870, 20
      %v1215 = vpop.permute.xlu0 %1214
      %1216 = vrot.lane.b32.xlu0 %v872, 20
      %v1217 = vpop.permute.xlu0 %1216
      %1250 = vrot.lane.b32.xlu0 %v798, 25
      %v1251 = vpop.permute.xlu0 %1250
      %1252 = vrot.lane.b32.xlu0 %v800, 25
      %v1253 = vpop.permute.xlu0 %1252
      %1254 = vrot.lane.b32.xlu0 %v793, 25
      %v1255 = vpop.permute.xlu0 %1254
      %1256 = vrot.lane.b32.xlu0 %v795, 25
      %v1257 = vpop.permute.xlu0 %1256
      %1258 = vrot.lane.b32.xlu0 %v803, 25
      %v1259 = vpop.permute.xlu0 %1258
      %1260 = vrot.lane.b32.xlu0 %v805, 25
      %v1261 = vpop.permute.xlu0 %1260
      %1262 = vrot.lane.b32.xlu0 %v808, 25
      %v1263 = vpop.permute.xlu0 %1262
      %1264 = vrot.lane.b32.xlu0 %v810, 25
      %v1265 = vpop.permute.xlu0 %1264
      %1266 = vrot.lane.b32.xlu0 %v813, 25
      %v1267 = vpop.permute.xlu0 %1266
      %1268 = vrot.lane.b32.xlu0 %v815, 25
      %v1269 = vpop.permute.xlu0 %1268
      %1270 = vrot.lane.b32.xlu0 %v818, 25
      %v1271 = vpop.permute.xlu0 %1270
      %1272 = vrot.lane.b32.xlu0 %v820, 25
      %v1273 = vpop.permute.xlu0 %1272
      %1274 = vrot.lane.b32.xlu0 %v823, 25
      %v1275 = vpop.permute.xlu0 %1274
      %1276 = vrot.lane.b32.xlu0 %v825, 25
      %v1277 = vpop.permute.xlu0 %1276
      %1278 = vrot.lane.b32.xlu0 %v828, 25
      %v1279 = vpop.permute.xlu0 %1278
      %1280 = vrot.lane.b32.xlu0 %v830, 25
      %v1281 = vpop.permute.xlu0 %1280
      %1282 = vrot.lane.b32.xlu0 %v833, 25
      %v1283 = vpop.permute.xlu0 %1282
      %1284 = vrot.lane.b32.xlu0 %v835, 25
      %v1285 = vpop.permute.xlu0 %1284
      %1286 = vrot.lane.b32.xlu0 %v838, 25
      %v1287 = vpop.permute.xlu0 %1286
      %1288 = vrot.lane.b32.xlu0 %v840, 25
      %v1289 = vpop.permute.xlu0 %1288
      %1290 = vrot.lane.b32.xlu0 %v843, 25
      %v1291 = vpop.permute.xlu0 %1290
      %1292 = vrot.lane.b32.xlu0 %v845, 25
      %v1293 = vpop.permute.xlu0 %1292
      %1294 = vrot.lane.b32.xlu0 %v848, 25
      %v1295 = vpop.permute.xlu0 %1294
      %1296 = vrot.lane.b32.xlu0 %v850, 25
      %v1297 = vpop.permute.xlu0 %1296
      %1298 = vrot.lane.b32.xlu0 %v853, 25
      %v1299 = vpop.permute.xlu0 %1298
      %1300 = vrot.lane.b32.xlu0 %v855, 25
      %v1301 = vpop.permute.xlu0 %1300
      %1302 = vrot.lane.b32.xlu0 %v858, 25
      %v1303 = vpop.permute.xlu0 %1302
      %1304 = vrot.lane.b32.xlu0 %v860, 25
      %v1305 = vpop.permute.xlu0 %1304
      %1306 = vrot.lane.b32.xlu0 %v863, 25
      %v1307 = vpop.permute.xlu0 %1306
      %1308 = vrot.lane.b32.xlu0 %v865, 25
      %v1309 = vpop.permute.xlu0 %1308
      %1310 = vrot.lane.b32.xlu0 %v875, 25
      %v1311 = vpop.permute.xlu0 %1310
      %1312 = vrot.lane.b32.xlu0 %v877, 25
      %v1313 = vpop.permute.xlu0 %1312
      %1346 = vrot.lane.b32.xlu0 %v652, 30
      %v1347 = vpop.permute.xlu0 %1346
      %1348 = vrot.lane.b32.xlu0 %v527, 30
      %v1349 = vpop.permute.xlu0 %1348
      %1350 = vrot.lane.b32.xlu0 %v654, 30
      %v1351 = vpop.permute.xlu0 %1350
      %1352 = vrot.lane.b32.xlu0 %v533, 30
      %v1353 = vpop.permute.xlu0 %1352
      %1354 = vrot.lane.b32.xlu0 %v655, 30
      %v1355 = vpop.permute.xlu0 %1354
      %1356 = vrot.lane.b32.xlu0 %v536, 30
      %v1357 = vpop.permute.xlu0 %1356
      %1358 = vrot.lane.b32.xlu0 %v656, 30
      %v1359 = vpop.permute.xlu0 %1358
      %1360 = vrot.lane.b32.xlu0 %v539, 30
      %v1361 = vpop.permute.xlu0 %1360
      %1362 = vrot.lane.b32.xlu0 %v657, 30
      %v1363 = vpop.permute.xlu0 %1362
      %1364 = vrot.lane.b32.xlu0 %v542, 30
      %v1365 = vpop.permute.xlu0 %1364
      %1366 = vrot.lane.b32.xlu0 %v658, 30
      %v1367 = vpop.permute.xlu0 %1366
      %1368 = vrot.lane.b32.xlu0 %v545, 30
      %v1369 = vpop.permute.xlu0 %1368
      %1370 = vrot.lane.b32.xlu0 %v659, 30
      %v1371 = vpop.permute.xlu0 %1370
      %1372 = vrot.lane.b32.xlu0 %v548, 30
      %v1373 = vpop.permute.xlu0 %1372
      %1374 = vrot.lane.b32.xlu0 %v660, 30
      %v1375 = vpop.permute.xlu0 %1374
      %1376 = vrot.lane.b32.xlu0 %v551, 30
      %v1377 = vpop.permute.xlu0 %1376
      %1378 = vrot.lane.b32.xlu0 %v661, 30
      %v1379 = vpop.permute.xlu0 %1378
      %1380 = vrot.lane.b32.xlu0 %v554, 30
      %v1381 = vpop.permute.xlu0 %1380
      %1382 = vrot.lane.b32.xlu0 %v662, 30
      %v1383 = vpop.permute.xlu0 %1382
      %1384 = vrot.lane.b32.xlu0 %v557, 30
      %v1385 = vpop.permute.xlu0 %1384
      %1386 = vrot.lane.b32.xlu0 %v663, 30
      %v1387 = vpop.permute.xlu0 %1386
      %1388 = vrot.lane.b32.xlu0 %v560, 30
      %v1389 = vpop.permute.xlu0 %1388
      %1390 = vrot.lane.b32.xlu0 %v664, 30
      %v1391 = vpop.permute.xlu0 %1390
      %1392 = vrot.lane.b32.xlu0 %v563, 30
      %v1393 = vpop.permute.xlu0 %1392
      %1394 = vrot.lane.b32.xlu0 %v665, 30
      %v1395 = vpop.permute.xlu0 %1394
      %1396 = vrot.lane.b32.xlu0 %v566, 30
      %v1397 = vpop.permute.xlu0 %1396
      %1398 = vrot.lane.b32.xlu0 %v666, 30
      %v1399 = vpop.permute.xlu0 %1398
      %1400 = vrot.lane.b32.xlu0 %v569, 30
      %v1401 = vpop.permute.xlu0 %1400
      %1402 = vrot.lane.b32.xlu0 %v667, 30
      %v1403 = vpop.permute.xlu0 %1402
      %1404 = vrot.lane.b32.xlu0 %v572, 30
      %v1405 = vpop.permute.xlu0 %1404
      %1436 = vrot.lane.b32.xlu0 %v717, 35
      %v1437 = vpop.permute.xlu0 %1436
      %1438 = vrot.lane.b32.xlu0 %v719, 35
      %v1439 = vpop.permute.xlu0 %1438
      %1440 = vrot.lane.b32.xlu0 %v727, 35
      %v1441 = vpop.permute.xlu0 %1440
      %1442 = vrot.lane.b32.xlu0 %v729, 35
      %v1443 = vpop.permute.xlu0 %1442
      %1444 = vrot.lane.b32.xlu0 %v732, 35
      %v1445 = vpop.permute.xlu0 %1444
      %1446 = vrot.lane.b32.xlu0 %v734, 35
      %v1447 = vpop.permute.xlu0 %1446
      %1448 = vrot.lane.b32.xlu0 %v737, 35
      %v1449 = vpop.permute.xlu0 %1448
      %1450 = vrot.lane.b32.xlu0 %v739, 35
      %v1451 = vpop.permute.xlu0 %1450
      %1452 = vrot.lane.b32.xlu0 %v742, 35
      %v1453 = vpop.permute.xlu0 %1452
      %1454 = vrot.lane.b32.xlu0 %v744, 35
      %v1455 = vpop.permute.xlu0 %1454
      %1456 = vrot.lane.b32.xlu0 %v747, 35
      %v1457 = vpop.permute.xlu0 %1456
      %1458 = vrot.lane.b32.xlu0 %v749, 35
      %v1459 = vpop.permute.xlu0 %1458
      %1460 = vrot.lane.b32.xlu0 %v752, 35
      %v1461 = vpop.permute.xlu0 %1460
      %1462 = vrot.lane.b32.xlu0 %v754, 35
      %v1463 = vpop.permute.xlu0 %1462
      %1464 = vrot.lane.b32.xlu0 %v757, 35
      %v1465 = vpop.permute.xlu0 %1464
      %1466 = vrot.lane.b32.xlu0 %v759, 35
      %v1467 = vpop.permute.xlu0 %1466
      %1468 = vrot.lane.b32.xlu0 %v762, 35
      %v1469 = vpop.permute.xlu0 %1468
      %1470 = vrot.lane.b32.xlu0 %v764, 35
      %v1471 = vpop.permute.xlu0 %1470
      %1472 = vrot.lane.b32.xlu0 %v767, 35
      %v1473 = vpop.permute.xlu0 %1472
      %1474 = vrot.lane.b32.xlu0 %v769, 35
      %v1475 = vpop.permute.xlu0 %1474
      %1476 = vrot.lane.b32.xlu0 %v772, 35
      %v1477 = vpop.permute.xlu0 %1476
      %1478 = vrot.lane.b32.xlu0 %v774, 35
      %v1479 = vpop.permute.xlu0 %1478
      %1480 = vrot.lane.b32.xlu0 %v777, 35
      %v1481 = vpop.permute.xlu0 %1480
      %1482 = vrot.lane.b32.xlu0 %v779, 35
      %v1483 = vpop.permute.xlu0 %1482
      %1484 = vrot.lane.b32.xlu0 %v782, 35
      %v1485 = vpop.permute.xlu0 %1484
      %1486 = vrot.lane.b32.xlu0 %v784, 35
      %v1487 = vpop.permute.xlu0 %1486
      %1488 = vrot.lane.b32.xlu0 %v787, 35
      %v1489 = vpop.permute.xlu0 %1488
      %1490 = vrot.lane.b32.xlu0 %v789, 35
      %v1491 = vpop.permute.xlu0 %1490
      %1492 = vrot.lane.b32.xlu0 %v870, 35
      %v1493 = vpop.permute.xlu0 %1492
      %1494 = vrot.lane.b32.xlu0 %v872, 35
      %v1495 = vpop.permute.xlu0 %1494
      %1526 = vrot.lane.b32.xlu0 %v793, 40
      %v1527 = vpop.permute.xlu0 %1526
      %1528 = vrot.lane.b32.xlu0 %v795, 40
      %v1529 = vpop.permute.xlu0 %1528
      %1530 = vrot.lane.b32.xlu0 %v803, 40
      %v1531 = vpop.permute.xlu0 %1530
      %1532 = vrot.lane.b32.xlu0 %v805, 40
      %v1533 = vpop.permute.xlu0 %1532
      %1534 = vrot.lane.b32.xlu0 %v808, 40
      %v1535 = vpop.permute.xlu0 %1534
      %1536 = vrot.lane.b32.xlu0 %v810, 40
      %v1537 = vpop.permute.xlu0 %1536
      %1538 = vrot.lane.b32.xlu0 %v813, 40
      %v1539 = vpop.permute.xlu0 %1538
      %1540 = vrot.lane.b32.xlu0 %v815, 40
      %v1541 = vpop.permute.xlu0 %1540
      %1542 = vrot.lane.b32.xlu0 %v818, 40
      %v1543 = vpop.permute.xlu0 %1542
      %1544 = vrot.lane.b32.xlu0 %v820, 40
      %v1545 = vpop.permute.xlu0 %1544
      %1546 = vrot.lane.b32.xlu0 %v823, 40
      %v1547 = vpop.permute.xlu0 %1546
      %1548 = vrot.lane.b32.xlu0 %v825, 40
      %v1549 = vpop.permute.xlu0 %1548
      %1550 = vrot.lane.b32.xlu0 %v828, 40
      %v1551 = vpop.permute.xlu0 %1550
      %1552 = vrot.lane.b32.xlu0 %v830, 40
      %v1553 = vpop.permute.xlu0 %1552
      %1554 = vrot.lane.b32.xlu0 %v833, 40
      %v1555 = vpop.permute.xlu0 %1554
      %1556 = vrot.lane.b32.xlu0 %v835, 40
      %v1557 = vpop.permute.xlu0 %1556
      %1558 = vrot.lane.b32.xlu0 %v838, 40
      %v1559 = vpop.permute.xlu0 %1558
      %1560 = vrot.lane.b32.xlu0 %v840, 40
      %v1561 = vpop.permute.xlu0 %1560
      %1562 = vrot.lane.b32.xlu0 %v843, 40
      %v1563 = vpop.permute.xlu0 %1562
      %1564 = vrot.lane.b32.xlu0 %v845, 40
      %v1565 = vpop.permute.xlu0 %1564
      %1566 = vrot.lane.b32.xlu0 %v848, 40
      %v1567 = vpop.permute.xlu0 %1566
      %1568 = vrot.lane.b32.xlu0 %v850, 40
      %v1569 = vpop.permute.xlu0 %1568
      %1570 = vrot.lane.b32.xlu0 %v853, 40
      %v1571 = vpop.permute.xlu0 %1570
      %1572 = vrot.lane.b32.xlu0 %v855, 40
      %v1573 = vpop.permute.xlu0 %1572
      %1574 = vrot.lane.b32.xlu0 %v858, 40
      %v1575 = vpop.permute.xlu0 %1574
      %1576 = vrot.lane.b32.xlu0 %v860, 40
      %v1577 = vpop.permute.xlu0 %1576
      %1578 = vrot.lane.b32.xlu0 %v863, 40
      %v1579 = vpop.permute.xlu0 %1578
      %1580 = vrot.lane.b32.xlu0 %v865, 40
      %v1581 = vpop.permute.xlu0 %1580
      %1582 = vrot.lane.b32.xlu0 %v875, 40
      %v1583 = vpop.permute.xlu0 %1582
      %1584 = vrot.lane.b32.xlu0 %v877, 40
      %v1585 = vpop.permute.xlu0 %1584
      %vm1616 = vcmask 39936
      %v1617 = vsel %vm1616, %v652, %v879
      %v1618 = vsel %vm1616, %v527, %v881
      %v1619 = vsel %vm1616, %v653, %v883
      %v1620 = vsel %vm1616, %v530, %v885
      %v1621 = vsel %vm1616, %v654, %v887
      %v1622 = vsel %vm1616, %v533, %v889
      %v1623 = vsel %vm1616, %v655, %v891
      %v1624 = vsel %vm1616, %v536, %v893
      %v1625 = vsel %vm1616, %v656, %v895
      %v1626 = vsel %vm1616, %v539, %v897
      %v1627 = vsel %vm1616, %v657, %v899
      %v1628 = vsel %vm1616, %v542, %v901
      %v1629 = vsel %vm1616, %v658, %v903
      %v1630 = vsel %vm1616, %v545, %v905
      %v1631 = vsel %vm1616, %v659, %v907
      %v1632 = vsel %vm1616, %v548, %v909
      %v1633 = vsel %vm1616, %v660, %v911
      %v1634 = vsel %vm1616, %v551, %v913
      %v1635 = vsel %vm1616, %v661, %v915
      %v1636 = vsel %vm1616, %v554, %v917
      %v1637 = vsel %vm1616, %v662, %v919
      %v1638 = vsel %vm1616, %v557, %v921
      %v1639 = vsel %vm1616, %v663, %v923
      %v1640 = vsel %vm1616, %v560, %v925
      %v1641 = vsel %vm1616, %v664, %v927
      %v1642 = vsel %vm1616, %v563, %v929
      %v1643 = vsel %vm1616, %v665, %v931
      %v1644 = vsel %vm1616, %v566, %v933
      %v1645 = vsel %vm1616, %v666, %v935
      %v1646 = vsel %vm1616, %v569, %v937
      %vm1647 = vcmask 80896
      %v1648 = vsel %vm1647, %v1617, %v969
      %v1649 = vsel %vm1647, %v1618, %v971
      %v1650 = vsel %vm1647, %v1619, %v973
      %v1651 = vsel %vm1647, %v1620, %v975
      %v1652 = vsel %vm1647, %v1621, %v977
      %v1653 = vsel %vm1647, %v1622, %v979
      %v1654 = vsel %vm1647, %v1623, %v981
      %v1655 = vsel %vm1647, %v1624, %v983
      %v1656 = vsel %vm1647, %v1625, %v985
      %v1657 = vsel %vm1647, %v1626, %v987
      %v1658 = vsel %vm1647, %v1627, %v989
      %v1659 = vsel %vm1647, %v1628, %v991
      %v1660 = vsel %vm1647, %v1629, %v993
      %v1661 = vsel %vm1647, %v1630, %v995
      %v1662 = vsel %vm1647, %v1631, %v997
      %v1663 = vsel %vm1647, %v1632, %v999
      %v1664 = vsel %vm1647, %v1633, %v1001
      %v1665 = vsel %vm1647, %v1634, %v1003
      %v1666 = vsel %vm1647, %v1635, %v1005
      %v1667 = vsel %vm1647, %v1636, %v1007
      %v1668 = vsel %vm1647, %v1637, %v1009
      %v1669 = vsel %vm1647, %v1638, %v1011
      %v1670 = vsel %vm1647, %v1639, %v1013
      %v1671 = vsel %vm1647, %v1640, %v1015
      %v1672 = vsel %vm1647, %v1641, %v1017
      %v1673 = vsel %vm1647, %v1642, %v1019
      %v1674 = vsel %vm1647, %v1643, %v1021
      %v1675 = vsel %vm1647, %v1644, %v1023
      %v1676 = vsel %vm1647, %v1645, %v1025
      %v1677 = vsel %vm1647, %v1646, %v1027
      %vm1678 = vcmask 121856
      %v1679 = vsel %vm1678, %v1648, %v1059
      %v1680 = vsel %vm1678, %v1649, %v1061
      %v1681 = vsel %vm1678, %v1650, %v1063
      %v1682 = vsel %vm1678, %v1651, %v1065
      %v1683 = vsel %vm1678, %v1648, %v1067
      %v1684 = vsel %vm1678, %v1649, %v1069
      %v1685 = vsel %vm1678, %v1652, %v1071
      %v1686 = vsel %vm1678, %v1653, %v1073
      %v1687 = vsel %vm1678, %v1654, %v1075
      %v1688 = vsel %vm1678, %v1655, %v1077
      %v1689 = vsel %vm1678, %v1656, %v1079
      %v1690 = vsel %vm1678, %v1657, %v1081
      %v1691 = vsel %vm1678, %v1658, %v1083
      %v1692 = vsel %vm1678, %v1659, %v1085
      %v1693 = vsel %vm1678, %v1660, %v1087
      %v1694 = vsel %vm1678, %v1661, %v1089
      %v1695 = vsel %vm1678, %v1662, %v1091
      %v1696 = vsel %vm1678, %v1663, %v1093
      %v1697 = vsel %vm1678, %v1664, %v1095
      %v1698 = vsel %vm1678, %v1665, %v1097
      %v1699 = vsel %vm1678, %v1666, %v1099
      %v1700 = vsel %vm1678, %v1667, %v1101
      %v1701 = vsel %vm1678, %v1668, %v1103
      %v1702 = vsel %vm1678, %v1669, %v1105
      %v1703 = vsel %vm1678, %v1670, %v1107
      %v1704 = vsel %vm1678, %v1671, %v1109
      %v1705 = vsel %vm1678, %v1672, %v1111
      %v1706 = vsel %vm1678, %v1673, %v1113
      %v1707 = vsel %vm1678, %v1674, %v1115
      %v1708 = vsel %vm1678, %v1675, %v1117
      %v1709 = vsel %vm1678, %v1676, %v1119
      %v1710 = vsel %vm1678, %v1677, %v1121
      %vm1711 = vcmask 162816
      %v1712 = vsel %vm1711, %v1679, %v1155
      %v1713 = vsel %vm1711, %v1680, %v1157
      %v1714 = vsel %vm1711, %v1681, %v1159
      %v1715 = vsel %vm1711, %v1682, %v1161
      %v1716 = vsel %vm1711, %v1683, %v1163
      %v1717 = vsel %vm1711, %v1684, %v1165
      %v1718 = vsel %vm1711, %v1685, %v1167
      %v1719 = vsel %vm1711, %v1686, %v1169
      %v1720 = vsel %vm1711, %v1687, %v1171
      %v1721 = vsel %vm1711, %v1688, %v1173
      %v1722 = vsel %vm1711, %v1689, %v1175
      %v1723 = vsel %vm1711, %v1690, %v1177
      %v1724 = vsel %vm1711, %v1691, %v1179
      %v1725 = vsel %vm1711, %v1692, %v1181
      %v1726 = vsel %vm1711, %v1693, %v1183
      %v1727 = vsel %vm1711, %v1694, %v1185
      %v1728 = vsel %vm1711, %v1695, %v1187
      %v1729 = vsel %vm1711, %v1696, %v1189
      %v1730 = vsel %vm1711, %v1697, %v1191
      %v1731 = vsel %vm1711, %v1698, %v1193
      %v1732 = vsel %vm1711, %v1699, %v1195
      %v1733 = vsel %vm1711, %v1700, %v1197
      %v1734 = vsel %vm1711, %v1701, %v1199
      %v1735 = vsel %vm1711, %v1702, %v1201
      %v1736 = vsel %vm1711, %v1703, %v1203
      %v1737 = vsel %vm1711, %v1704, %v1205
      %v1738 = vsel %vm1711, %v1705, %v1207
      %v1739 = vsel %vm1711, %v1706, %v1209
      %v1740 = vsel %vm1711, %v1707, %v1211
      %v1741 = vsel %vm1711, %v1708, %v1213
      %v1742 = vsel %vm1711, %v1709, %v1215
      %v1743 = vsel %vm1711, %v1710, %v1217
      %vm1744 = vcmask 203776
      %v1745 = vsel %vm1744, %v1712, %v1251
      %v1746 = vsel %vm1744, %v1713, %v1253
      %v1747 = vsel %vm1744, %v1714, %v1255
      %v1748 = vsel %vm1744, %v1715, %v1257
      %v1749 = vsel %vm1744, %v1716, %v1259
      %v1750 = vsel %vm1744, %v1717, %v1261
      %v1751 = vsel %vm1744, %v1718, %v1263
      %v1752 = vsel %vm1744, %v1719, %v1265
      %v1753 = vsel %vm1744, %v1720, %v1267
      %v1754 = vsel %vm1744, %v1721, %v1269
      %v1755 = vsel %vm1744, %v1722, %v1271
      %v1756 = vsel %vm1744, %v1723, %v1273
      %v1757 = vsel %vm1744, %v1724, %v1275
      %v1758 = vsel %vm1744, %v1725, %v1277
      %v1759 = vsel %vm1744, %v1726, %v1279
      %v1760 = vsel %vm1744, %v1727, %v1281
      %v1761 = vsel %vm1744, %v1728, %v1283
      %v1762 = vsel %vm1744, %v1729, %v1285
      %v1763 = vsel %vm1744, %v1730, %v1287
      %v1764 = vsel %vm1744, %v1731, %v1289
      %v1765 = vsel %vm1744, %v1732, %v1291
      %v1766 = vsel %vm1744, %v1733, %v1293
      %v1767 = vsel %vm1744, %v1734, %v1295
      %v1768 = vsel %vm1744, %v1735, %v1297
      %v1769 = vsel %vm1744, %v1736, %v1299
      %v1770 = vsel %vm1744, %v1737, %v1301
      %v1771 = vsel %vm1744, %v1738, %v1303
      %v1772 = vsel %vm1744, %v1739, %v1305
      %v1773 = vsel %vm1744, %v1740, %v1307
      %v1774 = vsel %vm1744, %v1741, %v1309
      %v1775 = vsel %vm1744, %v1742, %v1311
      %v1776 = vsel %vm1744, %v1743, %v1313
      %vm1777 = vcmask 244736
      %v1778 = vsel %vm1777, %v1745, %v1347
      %v1779 = vsel %vm1777, %v1746, %v1349
      %v1780 = vsel %vm1777, %v1747, %v1351
      %v1781 = vsel %vm1777, %v1748, %v1353
      %v1782 = vsel %vm1777, %v1749, %v1355
      %v1783 = vsel %vm1777, %v1750, %v1357
      %v1784 = vsel %vm1777, %v1751, %v1359
      %v1785 = vsel %vm1777, %v1752, %v1361
      %v1786 = vsel %vm1777, %v1753, %v1363
      %v1787 = vsel %vm1777, %v1754, %v1365
      %v1788 = vsel %vm1777, %v1755, %v1367
      %v1789 = vsel %vm1777, %v1756, %v1369
      %v1790 = vsel %vm1777, %v1757, %v1371
      %v1791 = vsel %vm1777, %v1758, %v1373
      %v1792 = vsel %vm1777, %v1759, %v1375
      %v1793 = vsel %vm1777, %v1760, %v1377
      %v1794 = vsel %vm1777, %v1761, %v1379
      %v1795 = vsel %vm1777, %v1762, %v1381
      %v1796 = vsel %vm1777, %v1763, %v1383
      %v1797 = vsel %vm1777, %v1764, %v1385
      %v1798 = vsel %vm1777, %v1765, %v1387
      %v1799 = vsel %vm1777, %v1766, %v1389
      %v1800 = vsel %vm1777, %v1767, %v1391
      %v1801 = vsel %vm1777, %v1768, %v1393
      %v1802 = vsel %vm1777, %v1769, %v1395
      %v1803 = vsel %vm1777, %v1770, %v1397
      %v1804 = vsel %vm1777, %v1771, %v1399
      %v1805 = vsel %vm1777, %v1772, %v1401
      %v1806 = vsel %vm1777, %v1773, %v1403
      %v1807 = vsel %vm1777, %v1774, %v1405
      %v1808 = vsel %vm1777, %v1775, %v1399
      %v1809 = vsel %vm1777, %v1776, %v1401
      %vm1810 = vcmask 285696
      %v1811 = vsel %vm1810, %v1778, %v1437
      %v1812 = vsel %vm1810, %v1779, %v1439
      %v1813 = vsel %vm1810, %v1780, %v1441
      %v1814 = vsel %vm1810, %v1781, %v1443
      %v1815 = vsel %vm1810, %v1782, %v1445
      %v1816 = vsel %vm1810, %v1783, %v1447
      %v1817 = vsel %vm1810, %v1784, %v1449
      %v1818 = vsel %vm1810, %v1785, %v1451
      %v1819 = vsel %vm1810, %v1786, %v1453
      %v1820 = vsel %vm1810, %v1787, %v1455
      %v1821 = vsel %vm1810, %v1788, %v1457
      %v1822 = vsel %vm1810, %v1789, %v1459
      %v1823 = vsel %vm1810, %v1790, %v1461
      %v1824 = vsel %vm1810, %v1791, %v1463
      %v1825 = vsel %vm1810, %v1792, %v1465
      %v1826 = vsel %vm1810, %v1793, %v1467
      %v1827 = vsel %vm1810, %v1794, %v1469
      %v1828 = vsel %vm1810, %v1795, %v1471
      %v1829 = vsel %vm1810, %v1796, %v1473
      %v1830 = vsel %vm1810, %v1797, %v1475
      %v1831 = vsel %vm1810, %v1798, %v1477
      %v1832 = vsel %vm1810, %v1799, %v1479
      %v1833 = vsel %vm1810, %v1800, %v1481
      %v1834 = vsel %vm1810, %v1801, %v1483
      %v1835 = vsel %vm1810, %v1802, %v1485
      %v1836 = vsel %vm1810, %v1803, %v1487
      %v1837 = vsel %vm1810, %v1804, %v1489
      %v1838 = vsel %vm1810, %v1805, %v1491
      %v1839 = vsel %vm1810, %v1806, %v1493
      %v1840 = vsel %vm1810, %v1807, %v1495
      %v1841 = vsel %vm1810, %v1808, %v1489
      %v1842 = vsel %vm1810, %v1809, %v1491
      %vm1843 = vcmask 326656
      %v1844 = vsel %vm1843, %v1811, %v1527
      %v1845 = vsel %vm1843, %v1812, %v1529
      %v1846 = vsel %vm1843, %v1813, %v1531
      %v1847 = vsel %vm1843, %v1814, %v1533
      %v1848 = vsel %vm1843, %v1815, %v1535
      %v1849 = vsel %vm1843, %v1816, %v1537
      %v1850 = vsel %vm1843, %v1817, %v1539
      %v1851 = vsel %vm1843, %v1818, %v1541
      %v1852 = vsel %vm1843, %v1819, %v1543
      %v1853 = vsel %vm1843, %v1820, %v1545
      %v1854 = vsel %vm1843, %v1821, %v1547
      %v1855 = vsel %vm1843, %v1822, %v1549
      %v1856 = vsel %vm1843, %v1823, %v1551
      %v1857 = vsel %vm1843, %v1824, %v1553
      %v1858 = vsel %vm1843, %v1825, %v1555
      %v1859 = vsel %vm1843, %v1826, %v1557
      %v1860 = vsel %vm1843, %v1827, %v1559
      %v1861 = vsel %vm1843, %v1828, %v1561
      %v1862 = vsel %vm1843, %v1829, %v1563
      %v1863 = vsel %vm1843, %v1830, %v1565
      %v1864 = vsel %vm1843, %v1831, %v1567
      %v1865 = vsel %vm1843, %v1832, %v1569
      %v1866 = vsel %vm1843, %v1833, %v1571
      %v1867 = vsel %vm1843, %v1834, %v1573
      %v1868 = vsel %vm1843, %v1835, %v1575
      %v1869 = vsel %vm1843, %v1836, %v1577
      %v1870 = vsel %vm1843, %v1837, %v1579
      %v1871 = vsel %vm1843, %v1838, %v1581
      %v1872 = vsel %vm1843, %v1839, %v1583
      %v1873 = vsel %vm1843, %v1840, %v1585
      %v1874 = vsel %vm1843, %v1841, %v1579
      %v1875 = vsel %vm1843, %v1842, %v1581
      %v1876 = vpack.c.bf16 %v1845, %v1844
      %v1877 = vpack.c.bf16 %v1847, %v1846
      %v1878 = vpack.c.bf16 %v1849, %v1848
      %v1879 = vpack.c.bf16 %v1851, %v1850
      %v1880 = vpack.c.bf16 %v1853, %v1852
      %v1881 = vpack.c.bf16 %v1855, %v1854
      %v1882 = vpack.c.bf16 %v1857, %v1856
      %v1883 = vpack.c.bf16 %v1859, %v1858
      %v1884 = vpack.c.bf16 %v1861, %v1860
      %v1885 = vpack.c.bf16 %v1863, %v1862
      %v1886 = vpack.c.bf16 %v1865, %v1864
      %v1887 = vpack.c.bf16 %v1867, %v1866
      %v1888 = vpack.c.bf16 %v1869, %v1868
      %v1889 = vpack.c.bf16 %v1871, %v1870
      %v1890 = vpack.c.bf16 %v1873, %v1872
      %v1891 = vpack.c.bf16 %v1875, %v1874
      %v1892 = vld [vmem:[%s1] sm:$0xf]
      %v1893 = vld [vmem:[%s1 + $0x4] sm:$0xf]
      %v1894 = vld [vmem:[%s1 + $0x8] sm:$0xf]
      %v1895 = vld [vmem:[%s1 + $0xc] sm:$0xf]
      %v1896 = vld [vmem:[%s1 + $0x10] sm:$0xf]
      %v1897 = vld [vmem:[%s1 + $0x14] sm:$0x7]
      %v1904 = vunpack.c.l.b16 %v1892
      %v1905 = vunpack.c.l.b16 %v1893
      %v1906 = vunpack.c.l.b16 %v1894
      %v1907 = vunpack.c.l.b16 %v1895
      %v1908 = vunpack.c.l.b16 %v1896
      %v1909 = vunpack.c.l.b16 %v1897
      %v1910 = vpack.c.b16 %v1905, %v1904
      %v1911 = vpack.c.b16 %v1907, %v1906
      %v1912 = vpack.c.b16 %v1909, %v1908
      %vm1915 = vcmask 367616
      %v1917 = vsel %vm1915, %v1876, 0
      %v1920 = vsel %vm1915, %v1877, 0
      %v1923 = vsel %vm1915, %v1878, 0
      %v1926 = vsel %vm1915, %v1879, 0
      %v1929 = vsel %vm1915, %v1880, 0
      %v1932 = vsel %vm1915, %v1881, 0
      %v1935 = vsel %vm1915, %v1882, 0
      %v1938 = vsel %vm1915, %v1883, 0
      %v1941 = vsel %vm1915, %v1884, 0
      %v1944 = vsel %vm1915, %v1885, 0
      %v1947 = vsel %vm1915, %v1886, 0
      %v1950 = vsel %vm1915, %v1887, 0
      %v1953 = vsel %vm1915, %v1888, 0
      %v1956 = vsel %vm1915, %v1889, 0
      %v1959 = vsel %vm1915, %v1890, 0
      %v1962 = vsel %vm1915, %v1891, 0
      %v1964 = vsel %vm790, 4294967295, 65535
      %v1965 = vsel %vm714, %v1964, 0
      %v1967 = vand.u32 %v1912, %v1965
      %1969 = vmatprep.subr.bf16.mxu0 0
      %1970 = vmatpush1.bf16.msra.mxu0 %v1910
      %1971 = vmatprep.subr.bf16.mxu0 0
      %1972 = vmatpush1.bf16.msra.mxu0 %v1911
      %1973 = vmatprep.subr.bf16.mxu0 0
      %1974 = vmatpush1.bf16.msra.mxu0 %v1967
      %1975 = vmatprep.subr.bf16.mxu0 0
      %1976 = vmatpush1.bf16.msra.mxu0 0
      %1977 = vmatprep.subr.bf16.mxu0 0
      %1978 = vmatpush1.bf16.msra.mxu0 0
      %1979 = vmatprep.subr.bf16.mxu0 0
      %1980 = vmatpush1.bf16.msra.mxu0 0
      %1981 = vmatprep.subr.bf16.mxu0 0
      %1982 = vmatpush1.bf16.msra.mxu0 0
      %1983 = vmatprep.subr.bf16.mxu0 0
      %1984 = vmatpush1.bf16.msra.mxu0 0
      %1985 = vmatprep.subr.bf16.mxu0 0
      %1986 = vmatpush1.bf16.msra.mxu0 0
      %1987 = vmatprep.subr.bf16.mxu0 0
      %1988 = vmatpush1.bf16.msra.mxu0 0
      %1989 = vmatprep.subr.bf16.mxu0 0
      %1990 = vmatpush1.bf16.msra.mxu0 0
      %1991 = vmatprep.subr.bf16.mxu0 0
      %1992 = vmatpush1.bf16.msra.mxu0 0
      %1993 = vmatprep.subr.bf16.mxu0 0
      %1994 = vmatpush1.bf16.msra.mxu0 0
      %1995 = vmatprep.subr.bf16.mxu0 0
      %1996 = vmatpush1.bf16.msra.mxu0 0
      %1997 = vmatprep.subr.bf16.mxu0 0
      %1998 = vmatpush1.bf16.msra.mxu0 0
      %1999 = vmatprep.subr.bf16.mxu0 0
      %2000 = vmatpush1.bf16.msra.mxu0 0
      %2001 = vmatprep.mubr.bf16.mxu0 0
      %2002 = vmatmul.mubr.bf16.gmra.mrb[0].mxu0 %v1917
      %v2003 = vpop.f32.mrb[0].mxu0
      %v2004 = vadd.f32 0.0, %v2003
      %v2005 = vpop.f32.mrb[0].mxu0
      %v2006 = vpop.f32.mrb[0].mxu0
      %v2007 = vadd.f32 0.0, %v2006
      %v2008 = vpop.f32.mrb[0].mxu0
      %2009 = vmatprep.mubr.bf16.mxu0 0
      %2010 = vmatmul.mubr.bf16.gmra.mrb[0].mxu0 %v1920
      %v2011 = vpop.f32.mrb[0].mxu0
      %v2012 = vadd.f32 0.0, %v2011
      %v2013 = vpop.f32.mrb[0].mxu0
      %v2014 = vpop.f32.mrb[0].mxu0
      %v2015 = vadd.f32 0.0, %v2014
      %v2016 = vpop.f32.mrb[0].mxu0
      %2017 = vmatprep.mubr.bf16.mxu0 0
      %2018 = vmatmul.mubr.bf16.gmra.mrb[0].mxu0 %v1923
      %v2019 = vpop.f32.mrb[0].mxu0
      %v2020 = vadd.f32 0.0, %v2019
      %v2021 = vpop.f32.mrb[0].mxu0
      %v2022 = vpop.f32.mrb[0].mxu0
      %v2023 = vadd.f32 0.0, %v2022
      %v2024 = vpop.f32.mrb[0].mxu0
      %2025 = vmatprep.mubr.bf16.mxu0 0
      %2026 = vmatmul.mubr.bf16.gmra.mrb[0].mxu0 %v1926
      %v2027 = vpop.f32.mrb[0].mxu0
      %v2028 = vadd.f32 0.0, %v2027
      %v2029 = vpop.f32.mrb[0].mxu0
      %v2030 = vpop.f32.mrb[0].mxu0
      %v2031 = vadd.f32 0.0, %v2030
      %v2032 = vpop.f32.mrb[0].mxu0
      %2033 = vmatprep.mubr.bf16.mxu0 0
      %2034 = vmatmul.mubr.bf16.gmra.mrb[0].mxu0 %v1929
      %v2035 = vpop.f32.mrb[0].mxu0
      %v2036 = vadd.f32 0.0, %v2035
      %v2037 = vpop.f32.mrb[0].mxu0
      %v2038 = vpop.f32.mrb[0].mxu0
      %v2039 = vadd.f32 0.0, %v2038
      %v2040 = vpop.f32.mrb[0].mxu0
      %2041 = vmatprep.mubr.bf16.mxu0 0
      %2042 = vmatmul.mubr.bf16.gmra.mrb[0].mxu0 %v1932
      %v2043 = vpop.f32.mrb[0].mxu0
      %v2044 = vadd.f32 0.0, %v2043
      %v2045 = vpop.f32.mrb[0].mxu0
      %v2046 = vpop.f32.mrb[0].mxu0
      %v2047 = vadd.f32 0.0, %v2046
      %v2048 = vpop.f32.mrb[0].mxu0
      %2049 = vmatprep.mubr.bf16.mxu0 0
      %2050 = vmatmul.mubr.bf16.gmra.mrb[0].mxu0 %v1935
      %v2051 = vpop.f32.mrb[0].mxu0
      %v2052 = vadd.f32 0.0, %v2051
      %v2053 = vpop.f32.mrb[0].mxu0
      %v2054 = vpop.f32.mrb[0].mxu0
      %v2055 = vadd.f32 0.0, %v2054
      %v2056 = vpop.f32.mrb[0].mxu0
      %2057 = vmatprep.mubr.bf16.mxu0 0
      %2058 = vmatmul.mubr.bf16.gmra.mrb[0].mxu0 %v1938
      %v2059 = vpop.f32.mrb[0].mxu0
      %v2060 = vadd.f32 0.0, %v2059
      %v2061 = vpop.f32.mrb[0].mxu0
      %v2062 = vpop.f32.mrb[0].mxu0
      %v2063 = vadd.f32 0.0, %v2062
      %v2064 = vpop.f32.mrb[0].mxu0
      %2065 = vmatprep.mubr.bf16.mxu0 0
      %2066 = vmatmul.mubr.bf16.gmra.mrb[0].mxu0 %v1941
      %v2067 = vpop.f32.mrb[0].mxu0
      %v2068 = vadd.f32 0.0, %v2067
      %v2069 = vpop.f32.mrb[0].mxu0
      %v2070 = vpop.f32.mrb[0].mxu0
      %v2071 = vadd.f32 0.0, %v2070
      %v2072 = vpop.f32.mrb[0].mxu0
      %2073 = vmatprep.mubr.bf16.mxu0 0
      %2074 = vmatmul.mubr.bf16.gmra.mrb[0].mxu0 %v1944
      %v2075 = vpop.f32.mrb[0].mxu0
      %v2076 = vadd.f32 0.0, %v2075
      %v2077 = vpop.f32.mrb[0].mxu0
      %v2078 = vpop.f32.mrb[0].mxu0
      %v2079 = vadd.f32 0.0, %v2078
      %v2080 = vpop.f32.mrb[0].mxu0
      %2081 = vmatprep.mubr.bf16.mxu0 0
      %2082 = vmatmul.mubr.bf16.gmra.mrb[0].mxu0 %v1947
      %v2083 = vpop.f32.mrb[0].mxu0
      %v2084 = vadd.f32 0.0, %v2083
      %v2085 = vpop.f32.mrb[0].mxu0
      %v2086 = vpop.f32.mrb[0].mxu0
      %v2087 = vadd.f32 0.0, %v2086
      %v2088 = vpop.f32.mrb[0].mxu0
      %2089 = vmatprep.mubr.bf16.mxu0 0
      %2090 = vmatmul.mubr.bf16.gmra.mrb[0].mxu0 %v1950
      %v2091 = vpop.f32.mrb[0].mxu0
      %v2092 = vadd.f32 0.0, %v2091
      %v2093 = vpop.f32.mrb[0].mxu0
      %v2094 = vpop.f32.mrb[0].mxu0
      %v2095 = vadd.f32 0.0, %v2094
      %v2096 = vpop.f32.mrb[0].mxu0
      %2097 = vmatprep.mubr.bf16.mxu0 0
      %2098 = vmatmul.mubr.bf16.gmra.mrb[0].mxu0 %v1953
      %v2099 = vpop.f32.mrb[0].mxu0
      %v2100 = vadd.f32 0.0, %v2099
      %v2101 = vpop.f32.mrb[0].mxu0
      %v2102 = vpop.f32.mrb[0].mxu0
      %v2103 = vadd.f32 0.0, %v2102
      %v2104 = vpop.f32.mrb[0].mxu0
      %2105 = vmatprep.mubr.bf16.mxu0 0
      %2106 = vmatmul.mubr.bf16.gmra.mrb[0].mxu0 %v1956
      %v2107 = vpop.f32.mrb[0].mxu0
      %v2108 = vadd.f32 0.0, %v2107
      %v2109 = vpop.f32.mrb[0].mxu0
      %v2110 = vpop.f32.mrb[0].mxu0
      %v2111 = vadd.f32 0.0, %v2110
      %v2112 = vpop.f32.mrb[0].mxu0
      %2113 = vmatprep.mubr.bf16.mxu0 0
      %2114 = vmatmul.mubr.bf16.gmra.mrb[0].mxu0 %v1959
      %v2115 = vpop.f32.mrb[0].mxu0
      %v2116 = vadd.f32 0.0, %v2115
      %v2117 = vpop.f32.mrb[0].mxu0
      %v2118 = vpop.f32.mrb[0].mxu0
      %v2119 = vadd.f32 0.0, %v2118
      %v2120 = vpop.f32.mrb[0].mxu0
      %2121 = vmatprep.mubr.bf16.mxu0 0
      %2122 = vmatmul.mubr.bf16.gmra.mrb[0].mxu0 %v1962
      %v2123 = vpop.f32.mrb[0].mxu0
      %v2124 = vadd.f32 0.0, %v2123
      %v2125 = vpop.f32.mrb[0].mxu0
      %v2126 = vpop.f32.mrb[0].mxu0
      %v2127 = vadd.f32 0.0, %v2126
      %v2128 = vpop.f32.mrb[0].mxu0
      %2129 = vdwg.mxu0
      %vm2130 = vcmask 64512
      %v2131 = vsel %vm2130, %v2004, 0.0
      %v2132 = vsel %vm2130, %v2007, 0.0
      %v2133 = vadd.f32 %v2131, %v2132
      %v2134 = vsel %vm2130, %v2012, 0.0
      %v2135 = vadd.f32 %v2133, %v2134
      %v2136 = vsel %vm2130, %v2015, 0.0
      %v2137 = vadd.f32 %v2135, %v2136
      %v2138 = vsel %vm2130, %v2020, 0.0
      %v2139 = vadd.f32 %v2137, %v2138
      %v2140 = vsel %vm2130, %v2023, 0.0
      %v2141 = vadd.f32 %v2139, %v2140
      %v2142 = vsel %vm2130, %v2028, 0.0
      %v2143 = vadd.f32 %v2141, %v2142
      %v2144 = vsel %vm2130, %v2031, 0.0
      %v2145 = vadd.f32 %v2143, %v2144
      %v2146 = vsel %vm2130, %v2036, 0.0
      %v2147 = vadd.f32 %v2145, %v2146
      %v2148 = vsel %vm2130, %v2039, 0.0
      %v2149 = vadd.f32 %v2147, %v2148
      %v2150 = vsel %vm2130, %v2044, 0.0
      %v2151 = vadd.f32 %v2149, %v2150
      %v2152 = vsel %vm2130, %v2047, 0.0
      %v2153 = vadd.f32 %v2151, %v2152
      %v2154 = vsel %vm2130, %v2052, 0.0
      %v2155 = vadd.f32 %v2153, %v2154
      %v2156 = vsel %vm2130, %v2055, 0.0
      %v2157 = vadd.f32 %v2155, %v2156
      %v2158 = vsel %vm2130, %v2060, 0.0
      %v2159 = vadd.f32 %v2157, %v2158
      %v2160 = vsel %vm2130, %v2063, 0.0
      %v2161 = vadd.f32 %v2159, %v2160
      %v2162 = vsel %vm2130, %v2068, 0.0
      %v2163 = vadd.f32 %v2161, %v2162
      %v2164 = vsel %vm2130, %v2071, 0.0
      %v2165 = vadd.f32 %v2163, %v2164
      %v2166 = vsel %vm2130, %v2076, 0.0
      %v2167 = vadd.f32 %v2165, %v2166
      %v2168 = vsel %vm2130, %v2079, 0.0
      %v2169 = vadd.f32 %v2167, %v2168
      %v2170 = vsel %vm2130, %v2084, 0.0
      %v2171 = vadd.f32 %v2169, %v2170
      %v2172 = vsel %vm2130, %v2087, 0.0
      %v2173 = vadd.f32 %v2171, %v2172
      %v2174 = vsel %vm2130, %v2092, 0.0
      %v2175 = vadd.f32 %v2173, %v2174
      %v2176 = vsel %vm2130, %v2095, 0.0
      %v2177 = vadd.f32 %v2175, %v2176
      %v2178 = vsel %vm2130, %v2100, 0.0
      %v2179 = vadd.f32 %v2177, %v2178
      %v2180 = vsel %vm2130, %v2103, 0.0
      %v2181 = vadd.f32 %v2179, %v2180
      %v2182 = vsel %vm2130, %v2108, 0.0
      %v2183 = vadd.f32 %v2181, %v2182
      %v2184 = vsel %vm2130, %v2111, 0.0
      %v2185 = vadd.f32 %v2183, %v2184
      %v2186 = vsel %vm2130, %v2116, 0.0
      %v2187 = vadd.f32 %v2185, %v2186
      %v2188 = vsel %vm2130, %v2119, 0.0
      %v2189 = vadd.f32 %v2187, %v2188
      %v2190 = vsel %vm2130, %v2124, 0.0
      %v2191 = vadd.f32 %v2189, %v2190
      %v2192 = vsel %vm2130, %v2127, 0.0
      %v2193 = vadd.f32 %v2191, %v2192
      %v2194 = vrot.slane %v2193, 4
      %v2195 = vadd.f32 %v2193, %v2194
      %v2196 = vrot.slane %v2195, 2
      %v2197 = vadd.f32 %v2195, %v2196
      %v2198 = vrot.slane %v2197, 1
      %v2199 = vadd.f32 %v2197, %v2198
      %v2200 = vrcp.pop 256.0
      %v2201 = vmul.f32 %v2199, %v2200
      %v2202 = vmul.f32 %v2004, %v2004
      %v2203 = vmul.f32 %v2007, %v2007
      %v2204 = vmul.f32 %v2012, %v2012
      %v2205 = vmul.f32 %v2015, %v2015
      %v2206 = vmul.f32 %v2020, %v2020
      %v2207 = vmul.f32 %v2023, %v2023
      %v2208 = vmul.f32 %v2028, %v2028
      %v2209 = vmul.f32 %v2031, %v2031
      %v2210 = vmul.f32 %v2036, %v2036
      %v2211 = vmul.f32 %v2039, %v2039
      %v2212 = vmul.f32 %v2044, %v2044
      %v2213 = vmul.f32 %v2047, %v2047
      %v2214 = vmul.f32 %v2052, %v2052
      %v2215 = vmul.f32 %v2055, %v2055
      %v2216 = vmul.f32 %v2060, %v2060
      %v2217 = vmul.f32 %v2063, %v2063
      %v2218 = vmul.f32 %v2068, %v2068
      %v2219 = vmul.f32 %v2071, %v2071
      %v2220 = vmul.f32 %v2076, %v2076
      %v2221 = vmul.f32 %v2079, %v2079
      %v2222 = vmul.f32 %v2084, %v2084
      %v2223 = vmul.f32 %v2087, %v2087
      %v2224 = vmul.f32 %v2092, %v2092
      %v2225 = vmul.f32 %v2095, %v2095
      %v2226 = vmul.f32 %v2100, %v2100
      %v2227 = vmul.f32 %v2103, %v2103
      %v2228 = vmul.f32 %v2108, %v2108
      %v2229 = vmul.f32 %v2111, %v2111
      %v2230 = vmul.f32 %v2116, %v2116
      %v2231 = vmul.f32 %v2119, %v2119
      %v2232 = vmul.f32 %v2124, %v2124
      %v2233 = vmul.f32 %v2127, %v2127
      %v2234 = vsel %vm2130, %v2202, 0.0
      %v2235 = vsel %vm2130, %v2203, 0.0
      %v2236 = vadd.f32 %v2234, %v2235
      %v2237 = vsel %vm2130, %v2204, 0.0
      %v2238 = vadd.f32 %v2236, %v2237
      %v2239 = vsel %vm2130, %v2205, 0.0
      %v2240 = vadd.f32 %v2238, %v2239
      %v2241 = vsel %vm2130, %v2206, 0.0
      %v2242 = vadd.f32 %v2240, %v2241
      %v2243 = vsel %vm2130, %v2207, 0.0
      %v2244 = vadd.f32 %v2242, %v2243
      %v2245 = vsel %vm2130, %v2208, 0.0
      %v2246 = vadd.f32 %v2244, %v2245
      %v2247 = vsel %vm2130, %v2209, 0.0
      %v2248 = vadd.f32 %v2246, %v2247
      %v2249 = vsel %vm2130, %v2210, 0.0
      %v2250 = vadd.f32 %v2248, %v2249
      %v2251 = vsel %vm2130, %v2211, 0.0
      %v2252 = vadd.f32 %v2250, %v2251
      %v2253 = vsel %vm2130, %v2212, 0.0
      %v2254 = vadd.f32 %v2252, %v2253
      %v2255 = vsel %vm2130, %v2213, 0.0
      %v2256 = vadd.f32 %v2254, %v2255
      %v2257 = vsel %vm2130, %v2214, 0.0
      %v2258 = vadd.f32 %v2256, %v2257
      %v2259 = vsel %vm2130, %v2215, 0.0
      %v2260 = vadd.f32 %v2258, %v2259
      %v2261 = vsel %vm2130, %v2216, 0.0
      %v2262 = vadd.f32 %v2260, %v2261
      %v2263 = vsel %vm2130, %v2217, 0.0
      %v2264 = vadd.f32 %v2262, %v2263
      %v2265 = vsel %vm2130, %v2218, 0.0
      %v2266 = vadd.f32 %v2264, %v2265
      %v2267 = vsel %vm2130, %v2219, 0.0
      %v2268 = vadd.f32 %v2266, %v2267
      %v2269 = vsel %vm2130, %v2220, 0.0
      %v2270 = vadd.f32 %v2268, %v2269
      %v2271 = vsel %vm2130, %v2221, 0.0
      %v2272 = vadd.f32 %v2270, %v2271
      %v2273 = vsel %vm2130, %v2222, 0.0
      %v2274 = vadd.f32 %v2272, %v2273
      %v2275 = vsel %vm2130, %v2223, 0.0
      %v2276 = vadd.f32 %v2274, %v2275
      %v2277 = vsel %vm2130, %v2224, 0.0
      %v2278 = vadd.f32 %v2276, %v2277
      %v2279 = vsel %vm2130, %v2225, 0.0
      %v2280 = vadd.f32 %v2278, %v2279
      %v2281 = vsel %vm2130, %v2226, 0.0
      %v2282 = vadd.f32 %v2280, %v2281
      %v2283 = vsel %vm2130, %v2227, 0.0
      %v2284 = vadd.f32 %v2282, %v2283
      %v2285 = vsel %vm2130, %v2228, 0.0
      %v2286 = vadd.f32 %v2284, %v2285
      %v2287 = vsel %vm2130, %v2229, 0.0
      %v2288 = vadd.f32 %v2286, %v2287
      %v2289 = vsel %vm2130, %v2230, 0.0
      %v2290 = vadd.f32 %v2288, %v2289
      %v2291 = vsel %vm2130, %v2231, 0.0
      %v2292 = vadd.f32 %v2290, %v2291
      %v2293 = vsel %vm2130, %v2232, 0.0
      %v2294 = vadd.f32 %v2292, %v2293
      %v2295 = vsel %vm2130, %v2233, 0.0
      %v2296 = vadd.f32 %v2294, %v2295
      %v2297 = vrot.slane %v2296, 4
      %v2298 = vadd.f32 %v2296, %v2297
      %v2299 = vrot.slane %v2298, 2
      %v2300 = vadd.f32 %v2298, %v2299
      %v2301 = vrot.slane %v2300, 1
      %v2302 = vadd.f32 %v2300, %v2301
      %v2303 = vmul.f32 %v2302, %v2200
      %v2304 = vmul.f32 %v2201, %v2201
      %v2305 = vsub.f32 %v2303, %v2304
      %v2306 = vmax.f32 %v2305, 0.0
      %v2307 = vsub.f32 %v2004, %v2201
      %v2308 = vsub.f32 %v2007, %v2201
      %v2309 = vsub.f32 %v2012, %v2201
      %v2310 = vsub.f32 %v2015, %v2201
      %v2311 = vsub.f32 %v2020, %v2201
      %v2312 = vsub.f32 %v2023, %v2201
      %v2313 = vsub.f32 %v2028, %v2201
      %v2314 = vsub.f32 %v2031, %v2201
      %v2315 = vsub.f32 %v2036, %v2201
      %v2316 = vsub.f32 %v2039, %v2201
      %v2317 = vsub.f32 %v2044, %v2201
      %v2318 = vsub.f32 %v2047, %v2201
      %v2319 = vsub.f32 %v2052, %v2201
      %v2320 = vsub.f32 %v2055, %v2201
      %v2321 = vsub.f32 %v2060, %v2201
      %v2322 = vsub.f32 %v2063, %v2201
      %v2323 = vsub.f32 %v2068, %v2201
      %v2324 = vsub.f32 %v2071, %v2201
      %v2325 = vsub.f32 %v2076, %v2201
      %v2326 = vsub.f32 %v2079, %v2201
      %v2327 = vsub.f32 %v2084, %v2201
      %v2328 = vsub.f32 %v2087, %v2201
      %v2329 = vsub.f32 %v2092, %v2201
      %v2330 = vsub.f32 %v2095, %v2201
      %v2331 = vsub.f32 %v2100, %v2201
      %v2332 = vsub.f32 %v2103, %v2201
      %v2333 = vsub.f32 %v2108, %v2201
      %v2334 = vsub.f32 %v2111, %v2201
      %v2335 = vsub.f32 %v2116, %v2201
      %v2336 = vsub.f32 %v2119, %v2201
      %v2337 = vsub.f32 %v2124, %v2201
      %v2338 = vsub.f32 %v2127, %v2201
      %v2339 = vadd.f32 %v2306, 1e-05
      %v2340 = vrsqrt.pop %v2339
      %v2341 = vmul.f32 %v2307, %v2340
      %v2342 = vmul.f32 %v2308, %v2340
      %v2343 = vmul.f32 %v2309, %v2340
      %v2344 = vmul.f32 %v2310, %v2340
      %v2345 = vmul.f32 %v2311, %v2340
      %v2346 = vmul.f32 %v2312, %v2340
      %v2347 = vmul.f32 %v2313, %v2340
      %v2348 = vmul.f32 %v2314, %v2340
      %v2349 = vmul.f32 %v2315, %v2340
      %v2350 = vmul.f32 %v2316, %v2340
      %v2351 = vmul.f32 %v2317, %v2340
      %v2352 = vmul.f32 %v2318, %v2340
      %v2353 = vmul.f32 %v2319, %v2340
      %v2354 = vmul.f32 %v2320, %v2340
      %v2355 = vmul.f32 %v2321, %v2340
      %v2356 = vmul.f32 %v2322, %v2340
      %v2357 = vmul.f32 %v2323, %v2340
      %v2358 = vmul.f32 %v2324, %v2340
      %v2359 = vmul.f32 %v2325, %v2340
      %v2360 = vmul.f32 %v2326, %v2340
      %v2361 = vmul.f32 %v2327, %v2340
      %v2362 = vmul.f32 %v2328, %v2340
      %v2363 = vmul.f32 %v2329, %v2340
      %v2364 = vmul.f32 %v2330, %v2340
      %v2365 = vmul.f32 %v2331, %v2340
      %v2366 = vmul.f32 %v2332, %v2340
      %v2367 = vmul.f32 %v2333, %v2340
      %v2368 = vmul.f32 %v2334, %v2340
      %v2369 = vmul.f32 %v2335, %v2340
      %v2370 = vmul.f32 %v2336, %v2340
      %v2371 = vmul.f32 %v2337, %v2340
      %v2372 = vmul.f32 %v2338, %v2340
      %v2373 = vld [vmem:[%s2] sm:$0x1]
      %v2374 = vlaneseq
      %v2375 = vshrl.u32 %v2374, 7
      %v2376 = vsub.s32 0, %v2375
      %v2377 = vrot.slane %v2373, %v2376
      %v2378 = vmul.f32 %v2341, %v2377
      %v2379 = vmul.f32 %v2342, %v2377
      %v2380 = vmul.f32 %v2343, %v2377
      %v2381 = vmul.f32 %v2344, %v2377
      %v2382 = vmul.f32 %v2345, %v2377
      %v2383 = vmul.f32 %v2346, %v2377
      %v2384 = vmul.f32 %v2347, %v2377
      %v2385 = vmul.f32 %v2348, %v2377
      %v2386 = vmul.f32 %v2349, %v2377
      %v2387 = vmul.f32 %v2350, %v2377
      %v2388 = vmul.f32 %v2351, %v2377
      %v2389 = vmul.f32 %v2352, %v2377
      %v2390 = vmul.f32 %v2353, %v2377
      %v2391 = vmul.f32 %v2354, %v2377
      %v2392 = vmul.f32 %v2355, %v2377
      %v2393 = vmul.f32 %v2356, %v2377
      %v2394 = vmul.f32 %v2357, %v2377
      %v2395 = vmul.f32 %v2358, %v2377
      %v2396 = vmul.f32 %v2359, %v2377
      %v2397 = vmul.f32 %v2360, %v2377
      %v2398 = vmul.f32 %v2361, %v2377
      %v2399 = vmul.f32 %v2362, %v2377
      %v2400 = vmul.f32 %v2363, %v2377
      %v2401 = vmul.f32 %v2364, %v2377
      %v2402 = vmul.f32 %v2365, %v2377
      %v2403 = vmul.f32 %v2366, %v2377
      %v2404 = vmul.f32 %v2367, %v2377
      %v2405 = vmul.f32 %v2368, %v2377
      %v2406 = vmul.f32 %v2369, %v2377
      %v2407 = vmul.f32 %v2370, %v2377
      %v2408 = vmul.f32 %v2371, %v2377
      %v2409 = vmul.f32 %v2372, %v2377
      %v2410 = vld [vmem:[%s2 + $0x1] sm:$0x1]
      %v2411 = vlaneseq
      %v2412 = vshrl.u32 %v2411, 7
      %v2413 = vsub.s32 0, %v2412
      %v2414 = vrot.slane %v2410, %v2413
      %v2415 = vadd.f32 %v2378, %v2414
      %v2416 = vadd.f32 %v2379, %v2414
      %v2417 = vadd.f32 %v2380, %v2414
      %v2418 = vadd.f32 %v2381, %v2414
      %v2419 = vadd.f32 %v2382, %v2414
      %v2420 = vadd.f32 %v2383, %v2414
      %v2421 = vadd.f32 %v2384, %v2414
      %v2422 = vadd.f32 %v2385, %v2414
      %v2423 = vadd.f32 %v2386, %v2414
      %v2424 = vadd.f32 %v2387, %v2414
      %v2425 = vadd.f32 %v2388, %v2414
      %v2426 = vadd.f32 %v2389, %v2414
      %v2427 = vadd.f32 %v2390, %v2414
      %v2428 = vadd.f32 %v2391, %v2414
      %v2429 = vadd.f32 %v2392, %v2414
      %v2430 = vadd.f32 %v2393, %v2414
      %v2431 = vadd.f32 %v2394, %v2414
      %v2432 = vadd.f32 %v2395, %v2414
      %v2433 = vadd.f32 %v2396, %v2414
      %v2434 = vadd.f32 %v2397, %v2414
      %v2435 = vadd.f32 %v2398, %v2414
      %v2436 = vadd.f32 %v2399, %v2414
      %v2437 = vadd.f32 %v2400, %v2414
      %v2438 = vadd.f32 %v2401, %v2414
      %v2439 = vadd.f32 %v2402, %v2414
      %v2440 = vadd.f32 %v2403, %v2414
      %v2441 = vadd.f32 %v2404, %v2414
      %v2442 = vadd.f32 %v2405, %v2414
      %v2443 = vadd.f32 %v2406, %v2414
      %v2444 = vadd.f32 %v2407, %v2414
      %v2445 = vadd.f32 %v2408, %v2414
      %v2446 = vadd.f32 %v2409, %v2414
      %v2447 = vmax.f32 %v2415, 0.0
      %v2448 = vmax.f32 %v2416, 0.0
      %v2449 = vmax.f32 %v2417, 0.0
      %v2450 = vmax.f32 %v2418, 0.0
      %v2451 = vmax.f32 %v2419, 0.0
      %v2452 = vmax.f32 %v2420, 0.0
      %v2453 = vmax.f32 %v2421, 0.0
      %v2454 = vmax.f32 %v2422, 0.0
      %v2455 = vmax.f32 %v2423, 0.0
      %v2456 = vmax.f32 %v2424, 0.0
      %v2457 = vmax.f32 %v2425, 0.0
      %v2458 = vmax.f32 %v2426, 0.0
      %v2459 = vmax.f32 %v2427, 0.0
      %v2460 = vmax.f32 %v2428, 0.0
      %v2461 = vmax.f32 %v2429, 0.0
      %v2462 = vmax.f32 %v2430, 0.0
      %v2463 = vmax.f32 %v2431, 0.0
      %v2464 = vmax.f32 %v2432, 0.0
      %v2465 = vmax.f32 %v2433, 0.0
      %v2466 = vmax.f32 %v2434, 0.0
      %v2467 = vmax.f32 %v2435, 0.0
      %v2468 = vmax.f32 %v2436, 0.0
      %v2469 = vmax.f32 %v2437, 0.0
      %v2470 = vmax.f32 %v2438, 0.0
      %v2471 = vmax.f32 %v2439, 0.0
      %v2472 = vmax.f32 %v2440, 0.0
      %v2473 = vmax.f32 %v2441, 0.0
      %v2474 = vmax.f32 %v2442, 0.0
      %v2475 = vmax.f32 %v2443, 0.0
      %v2476 = vmax.f32 %v2444, 0.0
      %v2477 = vmax.f32 %v2445, 0.0
      %v2478 = vmax.f32 %v2446, 0.0
      %v2495 = vrot.slane %v2449, 1
      %v2496 = vrot.slane %v2447, 1
      %v2497 = vrot.slane %v2451, 1
      %v2498 = vrot.slane %v2453, 1
      %v2499 = vrot.slane %v2455, 1
      %v2500 = vrot.slane %v2457, 1
      %v2501 = vrot.slane %v2459, 1
      %v2502 = vrot.slane %v2461, 1
      %v2503 = vrot.slane %v2463, 1
      %v2504 = vrot.slane %v2465, 1
      %v2505 = vrot.slane %v2467, 1
      %v2506 = vrot.slane %v2469, 1
      %v2507 = vrot.slane %v2471, 1
      %v2508 = vrot.slane %v2473, 1
      %v2509 = vrot.slane %v2475, 1
      %v2510 = vrot.slane %v2477, 1
      %v2543 = vrot.slane %v2449, 7
      %v2544 = vrot.slane %v2450, 7
      %v2545 = vsel %vm524, %v2543, %v2544
      %v2546 = vrot.slane %v2447, 7
      %v2547 = vrot.slane %v2448, 7
      %v2548 = vsel %vm524, %v2546, %v2547
      %v2549 = vrot.slane %v2451, 7
      %v2550 = vrot.slane %v2452, 7
      %v2551 = vsel %vm524, %v2549, %v2550
      %v2552 = vrot.slane %v2453, 7
      %v2553 = vrot.slane %v2454, 7
      %v2554 = vsel %vm524, %v2552, %v2553
      %v2555 = vrot.slane %v2455, 7
      %v2556 = vrot.slane %v2456, 7
      %v2557 = vsel %vm524, %v2555, %v2556
      %v2558 = vrot.slane %v2457, 7
      %v2559 = vrot.slane %v2458, 7
      %v2560 = vsel %vm524, %v2558, %v2559
      %v2561 = vrot.slane %v2459, 7
      %v2562 = vrot.slane %v2460, 7
      %v2563 = vsel %vm524, %v2561, %v2562
      %v2564 = vrot.slane %v2461, 7
      %v2565 = vrot.slane %v2462, 7
      %v2566 = vsel %vm524, %v2564, %v2565
      %v2567 = vrot.slane %v2463, 7
      %v2568 = vrot.slane %v2464, 7
      %v2569 = vsel %vm524, %v2567, %v2568
      %v2570 = vrot.slane %v2465, 7
      %v2571 = vrot.slane %v2466, 7
      %v2572 = vsel %vm524, %v2570, %v2571
      %v2573 = vrot.slane %v2467, 7
      %v2574 = vrot.slane %v2468, 7
      %v2575 = vsel %vm524, %v2573, %v2574
      %v2576 = vrot.slane %v2469, 7
      %v2577 = vrot.slane %v2470, 7
      %v2578 = vsel %vm524, %v2576, %v2577
      %v2579 = vrot.slane %v2471, 7
      %v2580 = vrot.slane %v2472, 7
      %v2581 = vsel %vm524, %v2579, %v2580
      %v2582 = vrot.slane %v2473, 7
      %v2583 = vrot.slane %v2474, 7
      %v2584 = vsel %vm524, %v2582, %v2583
      %v2585 = vrot.slane %v2475, 7
      %v2586 = vrot.slane %v2476, 7
      %v2587 = vsel %vm524, %v2585, %v2586
      %v2588 = vrot.slane %v2477, 7
      %v2589 = vrot.slane %v2478, 7
      %v2590 = vsel %vm524, %v2588, %v2589
      %v2638 = vrot.slane %v2450, 5
      %v2639 = vrot.slane %v2448, 5
      %v2640 = vrot.slane %v2452, 5
      %v2641 = vrot.slane %v2454, 5
      %v2642 = vrot.slane %v2456, 5
      %v2643 = vrot.slane %v2458, 5
      %v2644 = vrot.slane %v2460, 5
      %v2645 = vrot.slane %v2462, 5
      %v2646 = vrot.slane %v2464, 5
      %v2647 = vrot.slane %v2466, 5
      %v2648 = vrot.slane %v2468, 5
      %v2649 = vrot.slane %v2470, 5
      %v2650 = vrot.slane %v2472, 5
      %v2651 = vrot.slane %v2474, 5
      %v2652 = vrot.slane %v2476, 5
      %v2653 = vrot.slane %v2478, 5
      %v2670 = vsel %vm524, %v2495, %v2543
      %v2671 = vsel %vm524, %v2496, %v2546
      %v2672 = vsel %vm524, %v2497, %v2549
      %v2673 = vsel %vm524, %v2498, %v2552
      %v2674 = vsel %vm524, %v2499, %v2555
      %v2675 = vsel %vm524, %v2500, %v2558
      %v2676 = vsel %vm524, %v2501, %v2561
      %v2677 = vsel %vm524, %v2502, %v2564
      %v2678 = vsel %vm524, %v2503, %v2567
      %v2679 = vsel %vm524, %v2504, %v2570
      %v2680 = vsel %vm524, %v2505, %v2573
      %v2681 = vsel %vm524, %v2506, %v2576
      %v2682 = vsel %vm524, %v2507, %v2579
      %v2683 = vsel %vm524, %v2508, %v2582
      %v2684 = vsel %vm524, %v2509, %v2585
      %v2685 = vsel %vm524, %v2510, %v2588
      %v2686 = vsel %vm524, %v2544, %v2638
      %v2687 = vsel %vm524, %v2547, %v2639
      %v2688 = vsel %vm524, %v2550, %v2640
      %v2689 = vsel %vm524, %v2553, %v2641
      %v2690 = vsel %vm524, %v2556, %v2642
      %v2691 = vsel %vm524, %v2559, %v2643
      %v2692 = vsel %vm524, %v2562, %v2644
      %v2693 = vsel %vm524, %v2565, %v2645
      %v2694 = vsel %vm524, %v2568, %v2646
      %v2695 = vsel %vm524, %v2571, %v2647
      %v2696 = vsel %vm524, %v2574, %v2648
      %v2697 = vsel %vm524, %v2577, %v2649
      %v2698 = vsel %vm524, %v2580, %v2650
      %v2699 = vsel %vm524, %v2583, %v2651
      %v2700 = vsel %vm524, %v2586, %v2652
      %v2701 = vsel %vm524, %v2589, %v2653
      %v2732 = vrot.slane %v2670, 1
      %v2733 = vrot.slane %v2545, 1
      %v2734 = vsel %vm714, %v2732, %v2733
      %v2735 = vrot.slane %v2686, 1
      %v2736 = vsel %vm714, %v2733, %v2735
      %v2737 = vrot.slane %v2671, 1
      %v2738 = vrot.slane %v2548, 1
      %v2739 = vsel %vm714, %v2737, %v2738
      %v2740 = vrot.slane %v2687, 1
      %v2741 = vsel %vm714, %v2738, %v2740
      %v2742 = vrot.slane %v2672, 1
      %v2743 = vrot.slane %v2551, 1
      %v2744 = vsel %vm714, %v2742, %v2743
      %v2745 = vrot.slane %v2688, 1
      %v2746 = vsel %vm714, %v2743, %v2745
      %v2747 = vrot.slane %v2673, 1
      %v2748 = vrot.slane %v2554, 1
      %v2749 = vsel %vm714, %v2747, %v2748
      %v2750 = vrot.slane %v2689, 1
      %v2751 = vsel %vm714, %v2748, %v2750
      %v2752 = vrot.slane %v2674, 1
      %v2753 = vrot.slane %v2557, 1
      %v2754 = vsel %vm714, %v2752, %v2753
      %v2755 = vrot.slane %v2690, 1
      %v2756 = vsel %vm714, %v2753, %v2755
      %v2757 = vrot.slane %v2675, 1
      %v2758 = vrot.slane %v2560, 1
      %v2759 = vsel %vm714, %v2757, %v2758
      %v2760 = vrot.slane %v2691, 1
      %v2761 = vsel %vm714, %v2758, %v2760
      %v2762 = vrot.slane %v2676, 1
      %v2763 = vrot.slane %v2563, 1
      %v2764 = vsel %vm714, %v2762, %v2763
      %v2765 = vrot.slane %v2692, 1
      %v2766 = vsel %vm714, %v2763, %v2765
      %v2767 = vrot.slane %v2677, 1
      %v2768 = vrot.slane %v2566, 1
      %v2769 = vsel %vm714, %v2767, %v2768
      %v2770 = vrot.slane %v2693, 1
      %v2771 = vsel %vm714, %v2768, %v2770
      %v2772 = vrot.slane %v2678, 1
      %v2773 = vrot.slane %v2569, 1
      %v2774 = vsel %vm714, %v2772, %v2773
      %v2775 = vrot.slane %v2694, 1
      %v2776 = vsel %vm714, %v2773, %v2775
      %v2777 = vrot.slane %v2679, 1
      %v2778 = vrot.slane %v2572, 1
      %v2779 = vsel %vm714, %v2777, %v2778
      %v2780 = vrot.slane %v2695, 1
      %v2781 = vsel %vm714, %v2778, %v2780
      %v2782 = vrot.slane %v2680, 1
      %v2783 = vrot.slane %v2575, 1
      %v2784 = vsel %vm714, %v2782, %v2783
      %v2785 = vrot.slane %v2696, 1
      %v2786 = vsel %vm714, %v2783, %v2785
      %v2787 = vrot.slane %v2681, 1
      %v2788 = vrot.slane %v2578, 1
      %v2789 = vsel %vm714, %v2787, %v2788
      %v2790 = vrot.slane %v2697, 1
      %v2791 = vsel %vm714, %v2788, %v2790
      %v2792 = vrot.slane %v2682, 1
      %v2793 = vrot.slane %v2581, 1
      %v2794 = vsel %vm714, %v2792, %v2793
      %v2795 = vrot.slane %v2698, 1
      %v2796 = vsel %vm714, %v2793, %v2795
      %v2797 = vrot.slane %v2683, 1
      %v2798 = vrot.slane %v2584, 1
      %v2799 = vsel %vm714, %v2797, %v2798
      %v2800 = vrot.slane %v2699, 1
      %v2801 = vsel %vm714, %v2798, %v2800
      %v2802 = vrot.slane %v2684, 1
      %v2803 = vrot.slane %v2587, 1
      %v2804 = vsel %vm714, %v2802, %v2803
      %v2805 = vrot.slane %v2700, 1
      %v2806 = vsel %vm714, %v2803, %v2805
      %v2807 = vrot.slane %v2670, 2
      %v2808 = vrot.slane %v2545, 2
      %v2809 = vsel %vm790, %v2807, %v2808
      %v2810 = vrot.slane %v2686, 2
      %v2811 = vsel %vm790, %v2808, %v2810
      %v2812 = vrot.slane %v2671, 2
      %v2813 = vrot.slane %v2548, 2
      %v2814 = vsel %vm790, %v2812, %v2813
      %v2815 = vrot.slane %v2687, 2
      %v2816 = vsel %vm790, %v2813, %v2815
      %v2817 = vrot.slane %v2672, 2
      %v2818 = vrot.slane %v2551, 2
      %v2819 = vsel %vm790, %v2817, %v2818
      %v2820 = vrot.slane %v2688, 2
      %v2821 = vsel %vm790, %v2818, %v2820
      %v2822 = vrot.slane %v2673, 2
      %v2823 = vrot.slane %v2554, 2
      %v2824 = vsel %vm790, %v2822, %v2823
      %v2825 = vrot.slane %v2689, 2
      %v2826 = vsel %vm790, %v2823, %v2825
      %v2827 = vrot.slane %v2674, 2
      %v2828 = vrot.slane %v2557, 2
      %v2829 = vsel %vm790, %v2827, %v2828
      %v2830 = vrot.slane %v2690, 2
      %v2831 = vsel %vm790, %v2828, %v2830
      %v2832 = vrot.slane %v2675, 2
      %v2833 = vrot.slane %v2560, 2
      %v2834 = vsel %vm790, %v2832, %v2833
      %v2835 = vrot.slane %v2691, 2
      %v2836 = vsel %vm790, %v2833, %v2835
      %v2837 = vrot.slane %v2676, 2
      %v2838 = vrot.slane %v2563, 2
      %v2839 = vsel %vm790, %v2837, %v2838
      %v2840 = vrot.slane %v2692, 2
      %v2841 = vsel %vm790, %v2838, %v2840
      %v2842 = vrot.slane %v2677, 2
      %v2843 = vrot.slane %v2566, 2
      %v2844 = vsel %vm790, %v2842, %v2843
      %v2845 = vrot.slane %v2693, 2
      %v2846 = vsel %vm790, %v2843, %v2845
      %v2847 = vrot.slane %v2678, 2
      %v2848 = vrot.slane %v2569, 2
      %v2849 = vsel %vm790, %v2847, %v2848
      %v2850 = vrot.slane %v2694, 2
      %v2851 = vsel %vm790, %v2848, %v2850
      %v2852 = vrot.slane %v2679, 2
      %v2853 = vrot.slane %v2572, 2
      %v2854 = vsel %vm790, %v2852, %v2853
      %v2855 = vrot.slane %v2695, 2
      %v2856 = vsel %vm790, %v2853, %v2855
      %v2857 = vrot.slane %v2680, 2
      %v2858 = vrot.slane %v2575, 2
      %v2859 = vsel %vm790, %v2857, %v2858
      %v2860 = vrot.slane %v2696, 2
      %v2861 = vsel %vm790, %v2858, %v2860
      %v2862 = vrot.slane %v2681, 2
      %v2863 = vrot.slane %v2578, 2
      %v2864 = vsel %vm790, %v2862, %v2863
      %v2865 = vrot.slane %v2697, 2
      %v2866 = vsel %vm790, %v2863, %v2865
      %v2867 = vrot.slane %v2682, 2
      %v2868 = vrot.slane %v2581, 2
      %v2869 = vsel %vm790, %v2867, %v2868
      %v2870 = vrot.slane %v2698, 2
      %v2871 = vsel %vm790, %v2868, %v2870
      %v2872 = vrot.slane %v2683, 2
      %v2873 = vrot.slane %v2584, 2
      %v2874 = vsel %vm790, %v2872, %v2873
      %v2875 = vrot.slane %v2699, 2
      %v2876 = vsel %vm790, %v2873, %v2875
      %v2877 = vrot.slane %v2684, 2
      %v2878 = vrot.slane %v2587, 2
      %v2879 = vsel %vm790, %v2877, %v2878
      %v2880 = vrot.slane %v2700, 2
      %v2881 = vsel %vm790, %v2878, %v2880
      %v2884 = vrot.slane %v2685, 1
      %v2885 = vrot.slane %v2590, 1
      %v2886 = vsel %vm714, %v2884, %v2885
      %v2887 = vrot.slane %v2701, 1
      %v2888 = vsel %vm714, %v2885, %v2887
      %v2889 = vrot.slane %v2685, 2
      %v2890 = vrot.slane %v2590, 2
      %v2891 = vsel %vm790, %v2889, %v2890
      %v2892 = vrot.slane %v2701, 2
      %v2893 = vsel %vm790, %v2890, %v2892
      %2894 = vrot.lane.b32.xlu0 %v2734, 8
      %v2895 = vpop.permute.xlu0 %2894
      %2896 = vrot.lane.b32.xlu0 %v2736, 8
      %v2897 = vpop.permute.xlu0 %2896
      %2898 = vrot.lane.b32.xlu0 %v2739, 8
      %v2899 = vpop.permute.xlu0 %2898
      %2900 = vrot.lane.b32.xlu0 %v2741, 8
      %v2901 = vpop.permute.xlu0 %2900
      %2902 = vrot.lane.b32.xlu0 %v2744, 8
      %v2903 = vpop.permute.xlu0 %2902
      %2904 = vrot.lane.b32.xlu0 %v2746, 8
      %v2905 = vpop.permute.xlu0 %2904
      %2906 = vrot.lane.b32.xlu0 %v2749, 8
      %v2907 = vpop.permute.xlu0 %2906
      %2908 = vrot.lane.b32.xlu0 %v2751, 8
      %v2909 = vpop.permute.xlu0 %2908
      %2910 = vrot.lane.b32.xlu0 %v2754, 8
      %v2911 = vpop.permute.xlu0 %2910
      %2912 = vrot.lane.b32.xlu0 %v2756, 8
      %v2913 = vpop.permute.xlu0 %2912
      %2914 = vrot.lane.b32.xlu0 %v2759, 8
      %v2915 = vpop.permute.xlu0 %2914
      %2916 = vrot.lane.b32.xlu0 %v2761, 8
      %v2917 = vpop.permute.xlu0 %2916
      %2918 = vrot.lane.b32.xlu0 %v2764, 8
      %v2919 = vpop.permute.xlu0 %2918
      %2920 = vrot.lane.b32.xlu0 %v2766, 8
      %v2921 = vpop.permute.xlu0 %2920
      %2922 = vrot.lane.b32.xlu0 %v2769, 8
      %v2923 = vpop.permute.xlu0 %2922
      %2924 = vrot.lane.b32.xlu0 %v2771, 8
      %v2925 = vpop.permute.xlu0 %2924
      %2926 = vrot.lane.b32.xlu0 %v2774, 8
      %v2927 = vpop.permute.xlu0 %2926
      %2928 = vrot.lane.b32.xlu0 %v2776, 8
      %v2929 = vpop.permute.xlu0 %2928
      %2930 = vrot.lane.b32.xlu0 %v2779, 8
      %v2931 = vpop.permute.xlu0 %2930
      %2932 = vrot.lane.b32.xlu0 %v2781, 8
      %v2933 = vpop.permute.xlu0 %2932
      %2934 = vrot.lane.b32.xlu0 %v2784, 8
      %v2935 = vpop.permute.xlu0 %2934
      %2936 = vrot.lane.b32.xlu0 %v2786, 8
      %v2937 = vpop.permute.xlu0 %2936
      %2938 = vrot.lane.b32.xlu0 %v2789, 8
      %v2939 = vpop.permute.xlu0 %2938
      %2940 = vrot.lane.b32.xlu0 %v2791, 8
      %v2941 = vpop.permute.xlu0 %2940
      %2942 = vrot.lane.b32.xlu0 %v2794, 8
      %v2943 = vpop.permute.xlu0 %2942
      %2944 = vrot.lane.b32.xlu0 %v2796, 8
      %v2945 = vpop.permute.xlu0 %2944
      %2946 = vrot.lane.b32.xlu0 %v2799, 8
      %v2947 = vpop.permute.xlu0 %2946
      %2948 = vrot.lane.b32.xlu0 %v2801, 8
      %v2949 = vpop.permute.xlu0 %2948
      %2950 = vrot.lane.b32.xlu0 %v2804, 8
      %v2951 = vpop.permute.xlu0 %2950
      %2952 = vrot.lane.b32.xlu0 %v2806, 8
      %v2953 = vpop.permute.xlu0 %2952
      %2984 = vrot.lane.b32.xlu0 %v2809, 16
      %v2985 = vpop.permute.xlu0 %2984
      %2986 = vrot.lane.b32.xlu0 %v2811, 16
      %v2987 = vpop.permute.xlu0 %2986
      %2988 = vrot.lane.b32.xlu0 %v2814, 16
      %v2989 = vpop.permute.xlu0 %2988
      %2990 = vrot.lane.b32.xlu0 %v2816, 16
      %v2991 = vpop.permute.xlu0 %2990
      %2992 = vrot.lane.b32.xlu0 %v2819, 16
      %v2993 = vpop.permute.xlu0 %2992
      %2994 = vrot.lane.b32.xlu0 %v2821, 16
      %v2995 = vpop.permute.xlu0 %2994
      %2996 = vrot.lane.b32.xlu0 %v2824, 16
      %v2997 = vpop.permute.xlu0 %2996
      %2998 = vrot.lane.b32.xlu0 %v2826, 16
      %v2999 = vpop.permute.xlu0 %2998
      %3000 = vrot.lane.b32.xlu0 %v2829, 16
      %v3001 = vpop.permute.xlu0 %3000
      %3002 = vrot.lane.b32.xlu0 %v2831, 16
      %v3003 = vpop.permute.xlu0 %3002
      %3004 = vrot.lane.b32.xlu0 %v2834, 16
      %v3005 = vpop.permute.xlu0 %3004
      %3006 = vrot.lane.b32.xlu0 %v2836, 16
      %v3007 = vpop.permute.xlu0 %3006
      %3008 = vrot.lane.b32.xlu0 %v2839, 16
      %v3009 = vpop.permute.xlu0 %3008
      %3010 = vrot.lane.b32.xlu0 %v2841, 16
      %v3011 = vpop.permute.xlu0 %3010
      %3012 = vrot.lane.b32.xlu0 %v2844, 16
      %v3013 = vpop.permute.xlu0 %3012
      %3014 = vrot.lane.b32.xlu0 %v2846, 16
      %v3015 = vpop.permute.xlu0 %3014
      %3016 = vrot.lane.b32.xlu0 %v2849, 16
      %v3017 = vpop.permute.xlu0 %3016
      %3018 = vrot.lane.b32.xlu0 %v2851, 16
      %v3019 = vpop.permute.xlu0 %3018
      %3020 = vrot.lane.b32.xlu0 %v2854, 16
      %v3021 = vpop.permute.xlu0 %3020
      %3022 = vrot.lane.b32.xlu0 %v2856, 16
      %v3023 = vpop.permute.xlu0 %3022
      %3024 = vrot.lane.b32.xlu0 %v2859, 16
      %v3025 = vpop.permute.xlu0 %3024
      %3026 = vrot.lane.b32.xlu0 %v2861, 16
      %v3027 = vpop.permute.xlu0 %3026
      %3028 = vrot.lane.b32.xlu0 %v2864, 16
      %v3029 = vpop.permute.xlu0 %3028
      %3030 = vrot.lane.b32.xlu0 %v2866, 16
      %v3031 = vpop.permute.xlu0 %3030
      %3032 = vrot.lane.b32.xlu0 %v2869, 16
      %v3033 = vpop.permute.xlu0 %3032
      %3034 = vrot.lane.b32.xlu0 %v2871, 16
      %v3035 = vpop.permute.xlu0 %3034
      %3036 = vrot.lane.b32.xlu0 %v2874, 16
      %v3037 = vpop.permute.xlu0 %3036
      %3038 = vrot.lane.b32.xlu0 %v2876, 16
      %v3039 = vpop.permute.xlu0 %3038
      %3040 = vrot.lane.b32.xlu0 %v2879, 16
      %v3041 = vpop.permute.xlu0 %3040
      %3042 = vrot.lane.b32.xlu0 %v2881, 16
      %v3043 = vpop.permute.xlu0 %3042
      %3074 = vrot.lane.b32.xlu0 %v2671, 24
      %v3075 = vpop.permute.xlu0 %3074
      %3076 = vrot.lane.b32.xlu0 %v2548, 24
      %v3077 = vpop.permute.xlu0 %3076
      %3078 = vrot.lane.b32.xlu0 %v2670, 24
      %v3079 = vpop.permute.xlu0 %3078
      %3080 = vrot.lane.b32.xlu0 %v2545, 24
      %v3081 = vpop.permute.xlu0 %3080
      %3082 = vrot.lane.b32.xlu0 %v2672, 24
      %v3083 = vpop.permute.xlu0 %3082
      %3084 = vrot.lane.b32.xlu0 %v2551, 24
      %v3085 = vpop.permute.xlu0 %3084
      %3086 = vrot.lane.b32.xlu0 %v2673, 24
      %v3087 = vpop.permute.xlu0 %3086
      %3088 = vrot.lane.b32.xlu0 %v2554, 24
      %v3089 = vpop.permute.xlu0 %3088
      %3090 = vrot.lane.b32.xlu0 %v2674, 24
      %v3091 = vpop.permute.xlu0 %3090
      %3092 = vrot.lane.b32.xlu0 %v2557, 24
      %v3093 = vpop.permute.xlu0 %3092
      %3094 = vrot.lane.b32.xlu0 %v2675, 24
      %v3095 = vpop.permute.xlu0 %3094
      %3096 = vrot.lane.b32.xlu0 %v2560, 24
      %v3097 = vpop.permute.xlu0 %3096
      %3098 = vrot.lane.b32.xlu0 %v2676, 24
      %v3099 = vpop.permute.xlu0 %3098
      %3100 = vrot.lane.b32.xlu0 %v2563, 24
      %v3101 = vpop.permute.xlu0 %3100
      %3102 = vrot.lane.b32.xlu0 %v2677, 24
      %v3103 = vpop.permute.xlu0 %3102
      %3104 = vrot.lane.b32.xlu0 %v2566, 24
      %v3105 = vpop.permute.xlu0 %3104
      %3106 = vrot.lane.b32.xlu0 %v2678, 24
      %v3107 = vpop.permute.xlu0 %3106
      %3108 = vrot.lane.b32.xlu0 %v2569, 24
      %v3109 = vpop.permute.xlu0 %3108
      %3110 = vrot.lane.b32.xlu0 %v2679, 24
      %v3111 = vpop.permute.xlu0 %3110
      %3112 = vrot.lane.b32.xlu0 %v2572, 24
      %v3113 = vpop.permute.xlu0 %3112
      %3114 = vrot.lane.b32.xlu0 %v2680, 24
      %v3115 = vpop.permute.xlu0 %3114
      %3116 = vrot.lane.b32.xlu0 %v2575, 24
      %v3117 = vpop.permute.xlu0 %3116
      %3118 = vrot.lane.b32.xlu0 %v2681, 24
      %v3119 = vpop.permute.xlu0 %3118
      %3120 = vrot.lane.b32.xlu0 %v2578, 24
      %v3121 = vpop.permute.xlu0 %3120
      %3122 = vrot.lane.b32.xlu0 %v2682, 24
      %v3123 = vpop.permute.xlu0 %3122
      %3124 = vrot.lane.b32.xlu0 %v2581, 24
      %v3125 = vpop.permute.xlu0 %3124
      %3126 = vrot.lane.b32.xlu0 %v2683, 24
      %v3127 = vpop.permute.xlu0 %3126
      %3128 = vrot.lane.b32.xlu0 %v2584, 24
      %v3129 = vpop.permute.xlu0 %3128
      %3130 = vrot.lane.b32.xlu0 %v2684, 24
      %v3131 = vpop.permute.xlu0 %3130
      %3132 = vrot.lane.b32.xlu0 %v2587, 24
      %v3133 = vpop.permute.xlu0 %3132
      %3134 = vrot.lane.b32.xlu0 %v2685, 24
      %v3135 = vpop.permute.xlu0 %3134
      %3136 = vrot.lane.b32.xlu0 %v2590, 24
      %v3137 = vpop.permute.xlu0 %3136
      %3170 = vrot.lane.b32.xlu0 %v2739, 32
      %v3171 = vpop.permute.xlu0 %3170
      %3172 = vrot.lane.b32.xlu0 %v2741, 32
      %v3173 = vpop.permute.xlu0 %3172
      %3174 = vrot.lane.b32.xlu0 %v2734, 32
      %v3175 = vpop.permute.xlu0 %3174
      %3176 = vrot.lane.b32.xlu0 %v2736, 32
      %v3177 = vpop.permute.xlu0 %3176
      %3178 = vrot.lane.b32.xlu0 %v2744, 32
      %v3179 = vpop.permute.xlu0 %3178
      %3180 = vrot.lane.b32.xlu0 %v2746, 32
      %v3181 = vpop.permute.xlu0 %3180
      %3182 = vrot.lane.b32.xlu0 %v2749, 32
      %v3183 = vpop.permute.xlu0 %3182
      %3184 = vrot.lane.b32.xlu0 %v2751, 32
      %v3185 = vpop.permute.xlu0 %3184
      %3186 = vrot.lane.b32.xlu0 %v2754, 32
      %v3187 = vpop.permute.xlu0 %3186
      %3188 = vrot.lane.b32.xlu0 %v2756, 32
      %v3189 = vpop.permute.xlu0 %3188
      %3190 = vrot.lane.b32.xlu0 %v2759, 32
      %v3191 = vpop.permute.xlu0 %3190
      %3192 = vrot.lane.b32.xlu0 %v2761, 32
      %v3193 = vpop.permute.xlu0 %3192
      %3194 = vrot.lane.b32.xlu0 %v2764, 32
      %v3195 = vpop.permute.xlu0 %3194
      %3196 = vrot.lane.b32.xlu0 %v2766, 32
      %v3197 = vpop.permute.xlu0 %3196
      %3198 = vrot.lane.b32.xlu0 %v2769, 32
      %v3199 = vpop.permute.xlu0 %3198
      %3200 = vrot.lane.b32.xlu0 %v2771, 32
      %v3201 = vpop.permute.xlu0 %3200
      %3202 = vrot.lane.b32.xlu0 %v2774, 32
      %v3203 = vpop.permute.xlu0 %3202
      %3204 = vrot.lane.b32.xlu0 %v2776, 32
      %v3205 = vpop.permute.xlu0 %3204
      %3206 = vrot.lane.b32.xlu0 %v2779, 32
      %v3207 = vpop.permute.xlu0 %3206
      %3208 = vrot.lane.b32.xlu0 %v2781, 32
      %v3209 = vpop.permute.xlu0 %3208
      %3210 = vrot.lane.b32.xlu0 %v2784, 32
      %v3211 = vpop.permute.xlu0 %3210
      %3212 = vrot.lane.b32.xlu0 %v2786, 32
      %v3213 = vpop.permute.xlu0 %3212
      %3214 = vrot.lane.b32.xlu0 %v2789, 32
      %v3215 = vpop.permute.xlu0 %3214
      %3216 = vrot.lane.b32.xlu0 %v2791, 32
      %v3217 = vpop.permute.xlu0 %3216
      %3218 = vrot.lane.b32.xlu0 %v2794, 32
      %v3219 = vpop.permute.xlu0 %3218
      %3220 = vrot.lane.b32.xlu0 %v2796, 32
      %v3221 = vpop.permute.xlu0 %3220
      %3222 = vrot.lane.b32.xlu0 %v2799, 32
      %v3223 = vpop.permute.xlu0 %3222
      %3224 = vrot.lane.b32.xlu0 %v2801, 32
      %v3225 = vpop.permute.xlu0 %3224
      %3226 = vrot.lane.b32.xlu0 %v2804, 32
      %v3227 = vpop.permute.xlu0 %3226
      %3228 = vrot.lane.b32.xlu0 %v2806, 32
      %v3229 = vpop.permute.xlu0 %3228
      %3230 = vrot.lane.b32.xlu0 %v2886, 32
      %v3231 = vpop.permute.xlu0 %3230
      %3232 = vrot.lane.b32.xlu0 %v2888, 32
      %v3233 = vpop.permute.xlu0 %3232
      %3266 = vrot.lane.b32.xlu0 %v2814, 40
      %v3267 = vpop.permute.xlu0 %3266
      %3268 = vrot.lane.b32.xlu0 %v2816, 40
      %v3269 = vpop.permute.xlu0 %3268
      %3270 = vrot.lane.b32.xlu0 %v2809, 40
      %v3271 = vpop.permute.xlu0 %3270
      %3272 = vrot.lane.b32.xlu0 %v2811, 40
      %v3273 = vpop.permute.xlu0 %3272
      %3274 = vrot.lane.b32.xlu0 %v2819, 40
      %v3275 = vpop.permute.xlu0 %3274
      %3276 = vrot.lane.b32.xlu0 %v2821, 40
      %v3277 = vpop.permute.xlu0 %3276
      %3278 = vrot.lane.b32.xlu0 %v2824, 40
      %v3279 = vpop.permute.xlu0 %3278
      %3280 = vrot.lane.b32.xlu0 %v2826, 40
      %v3281 = vpop.permute.xlu0 %3280
      %3282 = vrot.lane.b32.xlu0 %v2829, 40
      %v3283 = vpop.permute.xlu0 %3282
      %3284 = vrot.lane.b32.xlu0 %v2831, 40
      %v3285 = vpop.permute.xlu0 %3284
      %3286 = vrot.lane.b32.xlu0 %v2834, 40
      %v3287 = vpop.permute.xlu0 %3286
      %3288 = vrot.lane.b32.xlu0 %v2836, 40
      %v3289 = vpop.permute.xlu0 %3288
      %3290 = vrot.lane.b32.xlu0 %v2839, 40
      %v3291 = vpop.permute.xlu0 %3290
      %3292 = vrot.lane.b32.xlu0 %v2841, 40
      %v3293 = vpop.permute.xlu0 %3292
      %3294 = vrot.lane.b32.xlu0 %v2844, 40
      %v3295 = vpop.permute.xlu0 %3294
      %3296 = vrot.lane.b32.xlu0 %v2846, 40
      %v3297 = vpop.permute.xlu0 %3296
      %3298 = vrot.lane.b32.xlu0 %v2849, 40
      %v3299 = vpop.permute.xlu0 %3298
      %3300 = vrot.lane.b32.xlu0 %v2851, 40
      %v3301 = vpop.permute.xlu0 %3300
      %3302 = vrot.lane.b32.xlu0 %v2854, 40
      %v3303 = vpop.permute.xlu0 %3302
      %3304 = vrot.lane.b32.xlu0 %v2856, 40
      %v3305 = vpop.permute.xlu0 %3304
      %3306 = vrot.lane.b32.xlu0 %v2859, 40
      %v3307 = vpop.permute.xlu0 %3306
      %3308 = vrot.lane.b32.xlu0 %v2861, 40
      %v3309 = vpop.permute.xlu0 %3308
      %3310 = vrot.lane.b32.xlu0 %v2864, 40
      %v3311 = vpop.permute.xlu0 %3310
      %3312 = vrot.lane.b32.xlu0 %v2866, 40
      %v3313 = vpop.permute.xlu0 %3312
      %3314 = vrot.lane.b32.xlu0 %v2869, 40
      %v3315 = vpop.permute.xlu0 %3314
      %3316 = vrot.lane.b32.xlu0 %v2871, 40
      %v3317 = vpop.permute.xlu0 %3316
      %3318 = vrot.lane.b32.xlu0 %v2874, 40
      %v3319 = vpop.permute.xlu0 %3318
      %3320 = vrot.lane.b32.xlu0 %v2876, 40
      %v3321 = vpop.permute.xlu0 %3320
      %3322 = vrot.lane.b32.xlu0 %v2879, 40
      %v3323 = vpop.permute.xlu0 %3322
      %3324 = vrot.lane.b32.xlu0 %v2881, 40
      %v3325 = vpop.permute.xlu0 %3324
      %3326 = vrot.lane.b32.xlu0 %v2891, 40
      %v3327 = vpop.permute.xlu0 %3326
      %3328 = vrot.lane.b32.xlu0 %v2893, 40
      %v3329 = vpop.permute.xlu0 %3328
      %3362 = vrot.lane.b32.xlu0 %v2670, 48
      %v3363 = vpop.permute.xlu0 %3362
      %3364 = vrot.lane.b32.xlu0 %v2545, 48
      %v3365 = vpop.permute.xlu0 %3364
      %3366 = vrot.lane.b32.xlu0 %v2672, 48
      %v3367 = vpop.permute.xlu0 %3366
      %3368 = vrot.lane.b32.xlu0 %v2551, 48
      %v3369 = vpop.permute.xlu0 %3368
      %3370 = vrot.lane.b32.xlu0 %v2673, 48
      %v3371 = vpop.permute.xlu0 %3370
      %3372 = vrot.lane.b32.xlu0 %v2554, 48
      %v3373 = vpop.permute.xlu0 %3372
      %3374 = vrot.lane.b32.xlu0 %v2674, 48
      %v3375 = vpop.permute.xlu0 %3374
      %3376 = vrot.lane.b32.xlu0 %v2557, 48
      %v3377 = vpop.permute.xlu0 %3376
      %3378 = vrot.lane.b32.xlu0 %v2675, 48
      %v3379 = vpop.permute.xlu0 %3378
      %3380 = vrot.lane.b32.xlu0 %v2560, 48
      %v3381 = vpop.permute.xlu0 %3380
      %3382 = vrot.lane.b32.xlu0 %v2676, 48
      %v3383 = vpop.permute.xlu0 %3382
      %3384 = vrot.lane.b32.xlu0 %v2563, 48
      %v3385 = vpop.permute.xlu0 %3384
      %3386 = vrot.lane.b32.xlu0 %v2677, 48
      %v3387 = vpop.permute.xlu0 %3386
      %3388 = vrot.lane.b32.xlu0 %v2566, 48
      %v3389 = vpop.permute.xlu0 %3388
      %3390 = vrot.lane.b32.xlu0 %v2678, 48
      %v3391 = vpop.permute.xlu0 %3390
      %3392 = vrot.lane.b32.xlu0 %v2569, 48
      %v3393 = vpop.permute.xlu0 %3392
      %3394 = vrot.lane.b32.xlu0 %v2679, 48
      %v3395 = vpop.permute.xlu0 %3394
      %3396 = vrot.lane.b32.xlu0 %v2572, 48
      %v3397 = vpop.permute.xlu0 %3396
      %3398 = vrot.lane.b32.xlu0 %v2680, 48
      %v3399 = vpop.permute.xlu0 %3398
      %3400 = vrot.lane.b32.xlu0 %v2575, 48
      %v3401 = vpop.permute.xlu0 %3400
      %3402 = vrot.lane.b32.xlu0 %v2681, 48
      %v3403 = vpop.permute.xlu0 %3402
      %3404 = vrot.lane.b32.xlu0 %v2578, 48
      %v3405 = vpop.permute.xlu0 %3404
      %3406 = vrot.lane.b32.xlu0 %v2682, 48
      %v3407 = vpop.permute.xlu0 %3406
      %3408 = vrot.lane.b32.xlu0 %v2581, 48
      %v3409 = vpop.permute.xlu0 %3408
      %3410 = vrot.lane.b32.xlu0 %v2683, 48
      %v3411 = vpop.permute.xlu0 %3410
      %3412 = vrot.lane.b32.xlu0 %v2584, 48
      %v3413 = vpop.permute.xlu0 %3412
      %3414 = vrot.lane.b32.xlu0 %v2684, 48
      %v3415 = vpop.permute.xlu0 %3414
      %3416 = vrot.lane.b32.xlu0 %v2587, 48
      %v3417 = vpop.permute.xlu0 %3416
      %3418 = vrot.lane.b32.xlu0 %v2685, 48
      %v3419 = vpop.permute.xlu0 %3418
      %3420 = vrot.lane.b32.xlu0 %v2590, 48
      %v3421 = vpop.permute.xlu0 %3420
      %3452 = vrot.lane.b32.xlu0 %v2734, 56
      %v3453 = vpop.permute.xlu0 %3452
      %3454 = vrot.lane.b32.xlu0 %v2736, 56
      %v3455 = vpop.permute.xlu0 %3454
      %3456 = vrot.lane.b32.xlu0 %v2744, 56
      %v3457 = vpop.permute.xlu0 %3456
      %3458 = vrot.lane.b32.xlu0 %v2746, 56
      %v3459 = vpop.permute.xlu0 %3458
      %3460 = vrot.lane.b32.xlu0 %v2749, 56
      %v3461 = vpop.permute.xlu0 %3460
      %3462 = vrot.lane.b32.xlu0 %v2751, 56
      %v3463 = vpop.permute.xlu0 %3462
      %3464 = vrot.lane.b32.xlu0 %v2754, 56
      %v3465 = vpop.permute.xlu0 %3464
      %3466 = vrot.lane.b32.xlu0 %v2756, 56
      %v3467 = vpop.permute.xlu0 %3466
      %3468 = vrot.lane.b32.xlu0 %v2759, 56
      %v3469 = vpop.permute.xlu0 %3468
      %3470 = vrot.lane.b32.xlu0 %v2761, 56
      %v3471 = vpop.permute.xlu0 %3470
      %3472 = vrot.lane.b32.xlu0 %v2764, 56
      %v3473 = vpop.permute.xlu0 %3472
      %3474 = vrot.lane.b32.xlu0 %v2766, 56
      %v3475 = vpop.permute.xlu0 %3474
      %3476 = vrot.lane.b32.xlu0 %v2769, 56
      %v3477 = vpop.permute.xlu0 %3476
      %3478 = vrot.lane.b32.xlu0 %v2771, 56
      %v3479 = vpop.permute.xlu0 %3478
      %3480 = vrot.lane.b32.xlu0 %v2774, 56
      %v3481 = vpop.permute.xlu0 %3480
      %3482 = vrot.lane.b32.xlu0 %v2776, 56
      %v3483 = vpop.permute.xlu0 %3482
      %3484 = vrot.lane.b32.xlu0 %v2779, 56
      %v3485 = vpop.permute.xlu0 %3484
      %3486 = vrot.lane.b32.xlu0 %v2781, 56
      %v3487 = vpop.permute.xlu0 %3486
      %3488 = vrot.lane.b32.xlu0 %v2784, 56
      %v3489 = vpop.permute.xlu0 %3488
      %3490 = vrot.lane.b32.xlu0 %v2786, 56
      %v3491 = vpop.permute.xlu0 %3490
      %3492 = vrot.lane.b32.xlu0 %v2789, 56
      %v3493 = vpop.permute.xlu0 %3492
      %3494 = vrot.lane.b32.xlu0 %v2791, 56
      %v3495 = vpop.permute.xlu0 %3494
      %3496 = vrot.lane.b32.xlu0 %v2794, 56
      %v3497 = vpop.permute.xlu0 %3496
      %3498 = vrot.lane.b32.xlu0 %v2796, 56
      %v3499 = vpop.permute.xlu0 %3498
      %3500 = vrot.lane.b32.xlu0 %v2799, 56
      %v3501 = vpop.permute.xlu0 %3500
      %3502 = vrot.lane.b32.xlu0 %v2801, 56
      %v3503 = vpop.permute.xlu0 %3502
      %3504 = vrot.lane.b32.xlu0 %v2804, 56
      %v3505 = vpop.permute.xlu0 %3504
      %3506 = vrot.lane.b32.xlu0 %v2806, 56
      %v3507 = vpop.permute.xlu0 %3506
      %3508 = vrot.lane.b32.xlu0 %v2886, 56
      %v3509 = vpop.permute.xlu0 %3508
      %3510 = vrot.lane.b32.xlu0 %v2888, 56
      %v3511 = vpop.permute.xlu0 %3510
      %3542 = vrot.lane.b32.xlu0 %v2809, 64
      %v3543 = vpop.permute.xlu0 %3542
      %3544 = vrot.lane.b32.xlu0 %v2811, 64
      %v3545 = vpop.permute.xlu0 %3544
      %3546 = vrot.lane.b32.xlu0 %v2819, 64
      %v3547 = vpop.permute.xlu0 %3546
      %3548 = vrot.lane.b32.xlu0 %v2821, 64
      %v3549 = vpop.permute.xlu0 %3548
      %3550 = vrot.lane.b32.xlu0 %v2824, 64
      %v3551 = vpop.permute.xlu0 %3550
      %3552 = vrot.lane.b32.xlu0 %v2826, 64
      %v3553 = vpop.permute.xlu0 %3552
      %3554 = vrot.lane.b32.xlu0 %v2829, 64
      %v3555 = vpop.permute.xlu0 %3554
      %3556 = vrot.lane.b32.xlu0 %v2831, 64
      %v3557 = vpop.permute.xlu0 %3556
      %3558 = vrot.lane.b32.xlu0 %v2834, 64
      %v3559 = vpop.permute.xlu0 %3558
      %3560 = vrot.lane.b32.xlu0 %v2836, 64
      %v3561 = vpop.permute.xlu0 %3560
      %3562 = vrot.lane.b32.xlu0 %v2839, 64
      %v3563 = vpop.permute.xlu0 %3562
      %3564 = vrot.lane.b32.xlu0 %v2841, 64
      %v3565 = vpop.permute.xlu0 %3564
      %3566 = vrot.lane.b32.xlu0 %v2844, 64
      %v3567 = vpop.permute.xlu0 %3566
      %3568 = vrot.lane.b32.xlu0 %v2846, 64
      %v3569 = vpop.permute.xlu0 %3568
      %3570 = vrot.lane.b32.xlu0 %v2849, 64
      %v3571 = vpop.permute.xlu0 %3570
      %3572 = vrot.lane.b32.xlu0 %v2851, 64
      %v3573 = vpop.permute.xlu0 %3572
      %3574 = vrot.lane.b32.xlu0 %v2854, 64
      %v3575 = vpop.permute.xlu0 %3574
      %3576 = vrot.lane.b32.xlu0 %v2856, 64
      %v3577 = vpop.permute.xlu0 %3576
      %3578 = vrot.lane.b32.xlu0 %v2859, 64
      %v3579 = vpop.permute.xlu0 %3578
      %3580 = vrot.lane.b32.xlu0 %v2861, 64
      %v3581 = vpop.permute.xlu0 %3580
      %3582 = vrot.lane.b32.xlu0 %v2864, 64
      %v3583 = vpop.permute.xlu0 %3582
      %3584 = vrot.lane.b32.xlu0 %v2866, 64
      %v3585 = vpop.permute.xlu0 %3584
      %3586 = vrot.lane.b32.xlu0 %v2869, 64
      %v3587 = vpop.permute.xlu0 %3586
      %3588 = vrot.lane.b32.xlu0 %v2871, 64
      %v3589 = vpop.permute.xlu0 %3588
      %3590 = vrot.lane.b32.xlu0 %v2874, 64
      %v3591 = vpop.permute.xlu0 %3590
      %3592 = vrot.lane.b32.xlu0 %v2876, 64
      %v3593 = vpop.permute.xlu0 %3592
      %3594 = vrot.lane.b32.xlu0 %v2879, 64
      %v3595 = vpop.permute.xlu0 %3594
      %3596 = vrot.lane.b32.xlu0 %v2881, 64
      %v3597 = vpop.permute.xlu0 %3596
      %3598 = vrot.lane.b32.xlu0 %v2891, 64
      %v3599 = vpop.permute.xlu0 %3598
      %3600 = vrot.lane.b32.xlu0 %v2893, 64
      %v3601 = vpop.permute.xlu0 %3600
      %v3632 = vsel %vm2130, %v2670, %v2895
      %v3633 = vsel %vm2130, %v2545, %v2897
      %v3634 = vsel %vm2130, %v2671, %v2899
      %v3635 = vsel %vm2130, %v2548, %v2901
      %v3636 = vsel %vm2130, %v2672, %v2903
      %v3637 = vsel %vm2130, %v2551, %v2905
      %v3638 = vsel %vm2130, %v2673, %v2907
      %v3639 = vsel %vm2130, %v2554, %v2909
      %v3640 = vsel %vm2130, %v2674, %v2911
      %v3641 = vsel %vm2130, %v2557, %v2913
      %v3642 = vsel %vm2130, %v2675, %v2915
      %v3643 = vsel %vm2130, %v2560, %v2917
      %v3644 = vsel %vm2130, %v2676, %v2919
      %v3645 = vsel %vm2130, %v2563, %v2921
      %v3646 = vsel %vm2130, %v2677, %v2923
      %v3647 = vsel %vm2130, %v2566, %v2925
      %v3648 = vsel %vm2130, %v2678, %v2927
      %v3649 = vsel %vm2130, %v2569, %v2929
      %v3650 = vsel %vm2130, %v2679, %v2931
      %v3651 = vsel %vm2130, %v2572, %v2933
      %v3652 = vsel %vm2130, %v2680, %v2935
      %v3653 = vsel %vm2130, %v2575, %v2937
      %v3654 = vsel %vm2130, %v2681, %v2939
      %v3655 = vsel %vm2130, %v2578, %v2941
      %v3656 = vsel %vm2130, %v2682, %v2943
      %v3657 = vsel %vm2130, %v2581, %v2945
      %v3658 = vsel %vm2130, %v2683, %v2947
      %v3659 = vsel %vm2130, %v2584, %v2949
      %v3660 = vsel %vm2130, %v2684, %v2951
      %v3661 = vsel %vm2130, %v2587, %v2953
      %vm3662 = vcmask 130048
      %v3663 = vsel %vm3662, %v3632, %v2985
      %v3664 = vsel %vm3662, %v3633, %v2987
      %v3665 = vsel %vm3662, %v3634, %v2989
      %v3666 = vsel %vm3662, %v3635, %v2991
      %v3667 = vsel %vm3662, %v3636, %v2993
      %v3668 = vsel %vm3662, %v3637, %v2995
      %v3669 = vsel %vm3662, %v3638, %v2997
      %v3670 = vsel %vm3662, %v3639, %v2999
      %v3671 = vsel %vm3662, %v3640, %v3001
      %v3672 = vsel %vm3662, %v3641, %v3003
      %v3673 = vsel %vm3662, %v3642, %v3005
      %v3674 = vsel %vm3662, %v3643, %v3007
      %v3675 = vsel %vm3662, %v3644, %v3009
      %v3676 = vsel %vm3662, %v3645, %v3011
      %v3677 = vsel %vm3662, %v3646, %v3013
      %v3678 = vsel %vm3662, %v3647, %v3015
      %v3679 = vsel %vm3662, %v3648, %v3017
      %v3680 = vsel %vm3662, %v3649, %v3019
      %v3681 = vsel %vm3662, %v3650, %v3021
      %v3682 = vsel %vm3662, %v3651, %v3023
      %v3683 = vsel %vm3662, %v3652, %v3025
      %v3684 = vsel %vm3662, %v3653, %v3027
      %v3685 = vsel %vm3662, %v3654, %v3029
      %v3686 = vsel %vm3662, %v3655, %v3031
      %v3687 = vsel %vm3662, %v3656, %v3033
      %v3688 = vsel %vm3662, %v3657, %v3035
      %v3689 = vsel %vm3662, %v3658, %v3037
      %v3690 = vsel %vm3662, %v3659, %v3039
      %v3691 = vsel %vm3662, %v3660, %v3041
      %v3692 = vsel %vm3662, %v3661, %v3043
      %vm3693 = vcmask 195584
      %v3694 = vsel %vm3693, %v3663, %v3075
      %v3695 = vsel %vm3693, %v3664, %v3077
      %v3696 = vsel %vm3693, %v3665, %v3079
      %v3697 = vsel %vm3693, %v3666, %v3081
      %v3698 = vsel %vm3693, %v3663, %v3083
      %v3699 = vsel %vm3693, %v3664, %v3085
      %v3700 = vsel %vm3693, %v3667, %v3087
      %v3701 = vsel %vm3693, %v3668, %v3089
      %v3702 = vsel %vm3693, %v3669, %v3091
      %v3703 = vsel %vm3693, %v3670, %v3093
      %v3704 = vsel %vm3693, %v3671, %v3095
      %v3705 = vsel %vm3693, %v3672, %v3097
      %v3706 = vsel %vm3693, %v3673, %v3099
      %v3707 = vsel %vm3693, %v3674, %v3101
      %v3708 = vsel %vm3693, %v3675, %v3103
      %v3709 = vsel %vm3693, %v3676, %v3105
      %v3710 = vsel %vm3693, %v3677, %v3107
      %v3711 = vsel %vm3693, %v3678, %v3109
      %v3712 = vsel %vm3693, %v3679, %v3111
      %v3713 = vsel %vm3693, %v3680, %v3113
      %v3714 = vsel %vm3693, %v3681, %v3115
      %v3715 = vsel %vm3693, %v3682, %v3117
      %v3716 = vsel %vm3693, %v3683, %v3119
      %v3717 = vsel %vm3693, %v3684, %v3121
      %v3718 = vsel %vm3693, %v3685, %v3123
      %v3719 = vsel %vm3693, %v3686, %v3125
      %v3720 = vsel %vm3693, %v3687, %v3127
      %v3721 = vsel %vm3693, %v3688, %v3129
      %v3722 = vsel %vm3693, %v3689, %v3131
      %v3723 = vsel %vm3693, %v3690, %v3133
      %v3724 = vsel %vm3693, %v3691, %v3135
      %v3725 = vsel %vm3693, %v3692, %v3137
      %vm3726 = vcmask 261120
      %v3727 = vsel %vm3726, %v3694, %v3171
      %v3728 = vsel %vm3726, %v3695, %v3173
      %v3729 = vsel %vm3726, %v3696, %v3175
      %v3730 = vsel %vm3726, %v3697, %v3177
      %v3731 = vsel %vm3726, %v3698, %v3179
      %v3732 = vsel %vm3726, %v3699, %v3181
      %v3733 = vsel %vm3726, %v3700, %v3183
      %v3734 = vsel %vm3726, %v3701, %v3185
      %v3735 = vsel %vm3726, %v3702, %v3187
      %v3736 = vsel %vm3726, %v3703, %v3189
      %v3737 = vsel %vm3726, %v3704, %v3191
      %v3738 = vsel %vm3726, %v3705, %v3193
      %v3739 = vsel %vm3726, %v3706, %v3195
      %v3740 = vsel %vm3726, %v3707, %v3197
      %v3741 = vsel %vm3726, %v3708, %v3199
      %v3742 = vsel %vm3726, %v3709, %v3201
      %v3743 = vsel %vm3726, %v3710, %v3203
      %v3744 = vsel %vm3726, %v3711, %v3205
      %v3745 = vsel %vm3726, %v3712, %v3207
      %v3746 = vsel %vm3726, %v3713, %v3209
      %v3747 = vsel %vm3726, %v3714, %v3211
      %v3748 = vsel %vm3726, %v3715, %v3213
      %v3749 = vsel %vm3726, %v3716, %v3215
      %v3750 = vsel %vm3726, %v3717, %v3217
      %v3751 = vsel %vm3726, %v3718, %v3219
      %v3752 = vsel %vm3726, %v3719, %v3221
      %v3753 = vsel %vm3726, %v3720, %v3223
      %v3754 = vsel %vm3726, %v3721, %v3225
      %v3755 = vsel %vm3726, %v3722, %v3227
      %v3756 = vsel %vm3726, %v3723, %v3229
      %v3757 = vsel %vm3726, %v3724, %v3231
      %v3758 = vsel %vm3726, %v3725, %v3233
      %v3759 = vsel %vm1843, %v3727, %v3267
      %v3760 = vsel %vm1843, %v3728, %v3269
      %v3761 = vsel %vm1843, %v3729, %v3271
      %v3762 = vsel %vm1843, %v3730, %v3273
      %v3763 = vsel %vm1843, %v3731, %v3275
      %v3764 = vsel %vm1843, %v3732, %v3277
      %v3765 = vsel %vm1843, %v3733, %v3279
      %v3766 = vsel %vm1843, %v3734, %v3281
      %v3767 = vsel %vm1843, %v3735, %v3283
      %v3768 = vsel %vm1843, %v3736, %v3285
      %v3769 = vsel %vm1843, %v3737, %v3287
      %v3770 = vsel %vm1843, %v3738, %v3289
      %v3771 = vsel %vm1843, %v3739, %v3291
      %v3772 = vsel %vm1843, %v3740, %v3293
      %v3773 = vsel %vm1843, %v3741, %v3295
      %v3774 = vsel %vm1843, %v3742, %v3297
      %v3775 = vsel %vm1843, %v3743, %v3299
      %v3776 = vsel %vm1843, %v3744, %v3301
      %v3777 = vsel %vm1843, %v3745, %v3303
      %v3778 = vsel %vm1843, %v3746, %v3305
      %v3779 = vsel %vm1843, %v3747, %v3307
      %v3780 = vsel %vm1843, %v3748, %v3309
      %v3781 = vsel %vm1843, %v3749, %v3311
      %v3782 = vsel %vm1843, %v3750, %v3313
      %v3783 = vsel %vm1843, %v3751, %v3315
      %v3784 = vsel %vm1843, %v3752, %v3317
      %v3785 = vsel %vm1843, %v3753, %v3319
      %v3786 = vsel %vm1843, %v3754, %v3321
      %v3787 = vsel %vm1843, %v3755, %v3323
      %v3788 = vsel %vm1843, %v3756, %v3325
      %v3789 = vsel %vm1843, %v3757, %v3327
      %v3790 = vsel %vm1843, %v3758, %v3329
      %vm3791 = vcmask 392192
      %v3792 = vsel %vm3791, %v3759, %v3363
      %v3793 = vsel %vm3791, %v3760, %v3365
      %v3794 = vsel %vm3791, %v3761, %v3367
      %v3795 = vsel %vm3791, %v3762, %v3369
      %v3796 = vsel %vm3791, %v3763, %v3371
      %v3797 = vsel %vm3791, %v3764, %v3373
      %v3798 = vsel %vm3791, %v3765, %v3375
      %v3799 = vsel %vm3791, %v3766, %v3377
      %v3800 = vsel %vm3791, %v3767, %v3379
      %v3801 = vsel %vm3791, %v3768, %v3381
      %v3802 = vsel %vm3791, %v3769, %v3383
      %v3803 = vsel %vm3791, %v3770, %v3385
      %v3804 = vsel %vm3791, %v3771, %v3387
      %v3805 = vsel %vm3791, %v3772, %v3389
      %v3806 = vsel %vm3791, %v3773, %v3391
      %v3807 = vsel %vm3791, %v3774, %v3393
      %v3808 = vsel %vm3791, %v3775, %v3395
      %v3809 = vsel %vm3791, %v3776, %v3397
      %v3810 = vsel %vm3791, %v3777, %v3399
      %v3811 = vsel %vm3791, %v3778, %v3401
      %v3812 = vsel %vm3791, %v3779, %v3403
      %v3813 = vsel %vm3791, %v3780, %v3405
      %v3814 = vsel %vm3791, %v3781, %v3407
      %v3815 = vsel %vm3791, %v3782, %v3409
      %v3816 = vsel %vm3791, %v3783, %v3411
      %v3817 = vsel %vm3791, %v3784, %v3413
      %v3818 = vsel %vm3791, %v3785, %v3415
      %v3819 = vsel %vm3791, %v3786, %v3417
      %v3820 = vsel %vm3791, %v3787, %v3419
      %v3821 = vsel %vm3791, %v3788, %v3421
      %v3822 = vsel %vm3791, %v3789, %v3415
      %v3823 = vsel %vm3791, %v3790, %v3417
      %vm3824 = vcmask 457728
      %v3825 = vsel %vm3824, %v3792, %v3453
      %v3826 = vsel %vm3824, %v3793, %v3455
      %v3827 = vsel %vm3824, %v3794, %v3457
      %v3828 = vsel %vm3824, %v3795, %v3459
      %v3829 = vsel %vm3824, %v3796, %v3461
      %v3830 = vsel %vm3824, %v3797, %v3463
      %v3831 = vsel %vm3824, %v3798, %v3465
      %v3832 = vsel %vm3824, %v3799, %v3467
      %v3833 = vsel %vm3824, %v3800, %v3469
      %v3834 = vsel %vm3824, %v3801, %v3471
      %v3835 = vsel %vm3824, %v3802, %v3473
      %v3836 = vsel %vm3824, %v3803, %v3475
      %v3837 = vsel %vm3824, %v3804, %v3477
      %v3838 = vsel %vm3824, %v3805, %v3479
      %v3839 = vsel %vm3824, %v3806, %v3481
      %v3840 = vsel %vm3824, %v3807, %v3483
      %v3841 = vsel %vm3824, %v3808, %v3485
      %v3842 = vsel %vm3824, %v3809, %v3487
      %v3843 = vsel %vm3824, %v3810, %v3489
      %v3844 = vsel %vm3824, %v3811, %v3491
      %v3845 = vsel %vm3824, %v3812, %v3493
      %v3846 = vsel %vm3824, %v3813, %v3495
      %v3847 = vsel %vm3824, %v3814, %v3497
      %v3848 = vsel %vm3824, %v3815, %v3499
      %v3849 = vsel %vm3824, %v3816, %v3501
      %v3850 = vsel %vm3824, %v3817, %v3503
      %v3851 = vsel %vm3824, %v3818, %v3505
      %v3852 = vsel %vm3824, %v3819, %v3507
      %v3853 = vsel %vm3824, %v3820, %v3509
      %v3854 = vsel %vm3824, %v3821, %v3511
      %v3855 = vsel %vm3824, %v3822, %v3505
      %v3856 = vsel %vm3824, %v3823, %v3507
      %vm3857 = vcmask 523264
      %v3858 = vsel %vm3857, %v3825, %v3543
      %v3859 = vsel %vm3857, %v3826, %v3545
      %v3860 = vsel %vm3857, %v3827, %v3547
      %v3861 = vsel %vm3857, %v3828, %v3549
      %v3862 = vsel %vm3857, %v3829, %v3551
      %v3863 = vsel %vm3857, %v3830, %v3553
      %v3864 = vsel %vm3857, %v3831, %v3555
      %v3865 = vsel %vm3857, %v3832, %v3557
      %v3866 = vsel %vm3857, %v3833, %v3559
      %v3867 = vsel %vm3857, %v3834, %v3561
      %v3868 = vsel %vm3857, %v3835, %v3563
      %v3869 = vsel %vm3857, %v3836, %v3565
      %v3870 = vsel %vm3857, %v3837, %v3567
      %v3871 = vsel %vm3857, %v3838, %v3569
      %v3872 = vsel %vm3857, %v3839, %v3571
      %v3873 = vsel %vm3857, %v3840, %v3573
      %v3874 = vsel %vm3857, %v3841, %v3575
      %v3875 = vsel %vm3857, %v3842, %v3577
      %v3876 = vsel %vm3857, %v3843, %v3579
      %v3877 = vsel %vm3857, %v3844, %v3581
      %v3878 = vsel %vm3857, %v3845, %v3583
      %v3879 = vsel %vm3857, %v3846, %v3585
      %v3880 = vsel %vm3857, %v3847, %v3587
      %v3881 = vsel %vm3857, %v3848, %v3589
      %v3882 = vsel %vm3857, %v3849, %v3591
      %v3883 = vsel %vm3857, %v3850, %v3593
      %v3884 = vsel %vm3857, %v3851, %v3595
      %v3885 = vsel %vm3857, %v3852, %v3597
      %v3886 = vsel %vm3857, %v3853, %v3599
      %v3887 = vsel %vm3857, %v3854, %v3601
      %v3888 = vsel %vm3857, %v3855, %v3595
      %v3889 = vsel %vm3857, %v3856, %v3597
      %v3890 = vpack.c.bf16 %v3859, %v3858
      %v3891 = vpack.c.bf16 %v3861, %v3860
      %v3892 = vpack.c.bf16 %v3863, %v3862
      %v3893 = vpack.c.bf16 %v3865, %v3864
      %v3894 = vpack.c.bf16 %v3867, %v3866
      %v3895 = vpack.c.bf16 %v3869, %v3868
      %v3896 = vpack.c.bf16 %v3871, %v3870
      %v3897 = vpack.c.bf16 %v3873, %v3872
      %v3898 = vpack.c.bf16 %v3875, %v3874
      %v3899 = vpack.c.bf16 %v3877, %v3876
      %v3900 = vpack.c.bf16 %v3879, %v3878
      %v3901 = vpack.c.bf16 %v3881, %v3880
      %v3902 = vpack.c.bf16 %v3883, %v3882
      %v3903 = vpack.c.bf16 %v3885, %v3884
      %v3904 = vpack.c.bf16 %v3887, %v3886
      %v3905 = vpack.c.bf16 %v3889, %v3888
      %v3906 = vld [vmem:[%s3] sm:$0xf]
      %v3907 = vld [vmem:[%s3 + $0x4] sm:$0xf]
      %v3908 = vld [vmem:[%s3 + $0x8] sm:$0xf]
      %v3909 = vld [vmem:[%s3 + $0xc] sm:$0xf]
      %v3910 = vld [vmem:[%s3 + $0x10] sm:$0xf]
      %v3911 = vld [vmem:[%s3 + $0x14] sm:$0xf]
      %v3912 = vld [vmem:[%s3 + $0x18] sm:$0xf]
      %v3913 = vld [vmem:[%s3 + $0x1c] sm:$0xf]
      %v3914 = vld [vmem:[%s3 + $0x20] sm:$0xf]
      %v3924 = vunpack.c.l.b16 %v3906
      %v3925 = vunpack.c.l.b16 %v3907
      %v3926 = vunpack.c.l.b16 %v3908
      %v3927 = vunpack.c.l.b16 %v3909
      %v3928 = vunpack.c.l.b16 %v3910
      %v3929 = vunpack.c.l.b16 %v3911
      %v3930 = vunpack.c.l.b16 %v3912
      %v3931 = vunpack.c.l.b16 %v3913
      %v3932 = vunpack.c.l.b16 %v3914
      %v3933 = vpack.c.b16 %v3925, %v3924
      %v3934 = vpack.c.b16 %v3927, %v3926
      %v3935 = vpack.c.b16 %v3929, %v3928
      %v3936 = vpack.c.b16 %v3931, %v3930
      %v3937 = vpack.c.b16 %v3932, %v3932
      %vm3942 = vcmask 588800
      %v3944 = vsel %vm3942, %v3890, 0
      %v3947 = vsel %vm3942, %v3891, 0
      %v3950 = vsel %vm3942, %v3892, 0
      %v3953 = vsel %vm3942, %v3893, 0
      %v3956 = vsel %vm3942, %v3894, 0
      %v3959 = vsel %vm3942, %v3895, 0
      %v3962 = vsel %vm3942, %v3896, 0
      %v3965 = vsel %vm3942, %v3897, 0
      %v3968 = vsel %vm3942, %v3898, 0
      %v3971 = vsel %vm3942, %v3899, 0
      %v3974 = vsel %vm3942, %v3900, 0
      %v3977 = vsel %vm3942, %v3901, 0
      %v3980 = vsel %vm3942, %v3902, 0
      %v3983 = vsel %vm3942, %v3903, 0
      %v3986 = vsel %vm3942, %v3904, 0
      %v3989 = vsel %vm3942, %v3905, 0
      %vm3991 = vcmask 1043456
      %v3993 = vsel %vm3991, %v3937, 0
      %3995 = vmatprep.subr.bf16.mxu0 0
      %3996 = vmatpush1.bf16.msra.mxu0 %v3933
      %3997 = vmatprep.subr.bf16.mxu0 0
      %3998 = vmatpush1.bf16.msra.mxu0 %v3934
      %3999 = vmatprep.subr.bf16.mxu0 0
      %4000 = vmatpush1.bf16.msra.mxu0 %v3935
      %4001 = vmatprep.subr.bf16.mxu0 0
      %4002 = vmatpush1.bf16.msra.mxu0 %v3936
      %4003 = vmatprep.subr.bf16.mxu0 0
      %4004 = vmatpush1.bf16.msra.mxu0 %v3993
      %4005 = vmatprep.subr.bf16.mxu0 0
      %4006 = vmatpush1.bf16.msra.mxu0 0
      %4007 = vmatprep.subr.bf16.mxu0 0
      %4008 = vmatpush1.bf16.msra.mxu0 0
      %4009 = vmatprep.subr.bf16.mxu0 0
      %4010 = vmatpush1.bf16.msra.mxu0 0
      %4011 = vmatprep.subr.bf16.mxu0 0
      %4012 = vmatpush1.bf16.msra.mxu0 0
      %4013 = vmatprep.subr.bf16.mxu0 0
      %4014 = vmatpush1.bf16.msra.mxu0 0
      %4015 = vmatprep.subr.bf16.mxu0 0
      %4016 = vmatpush1.bf16.msra.mxu0 0
      %4017 = vmatprep.subr.bf16.mxu0 0
      %4018 = vmatpush1.bf16.msra.mxu0 0
      %4019 = vmatprep.subr.bf16.mxu0 0
      %4020 = vmatpush1.bf16.msra.mxu0 0
      %4021 = vmatprep.subr.bf16.mxu0 0
      %4022 = vmatpush1.bf16.msra.mxu0 0
      %4023 = vmatprep.subr.bf16.mxu0 0
      %4024 = vmatpush1.bf16.msra.mxu0 0
      %4025 = vmatprep.subr.bf16.mxu0 0
      %4026 = vmatpush1.bf16.msra.mxu0 0
      %4027 = vmatprep.mubr.bf16.mxu0 0
      %4028 = vmatmul.mubr.bf16.gmra.mrb[0].mxu0 %v3944
      %v4029 = vpop.f32.mrb[0].mxu0
      %v4030 = vadd.f32 0.0, %v4029
      %v4031 = vpop.f32.mrb[0].mxu0
      %v4032 = vpop.f32.mrb[0].mxu0
      %v4033 = vadd.f32 0.0, %v4032
      %v4034 = vpop.f32.mrb[0].mxu0
      %4035 = vmatprep.mubr.bf16.mxu0 0
      %4036 = vmatmul.mubr.bf16.gmra.mrb[0].mxu0 %v3947
      %v4037 = vpop.f32.mrb[0].mxu0
      %v4038 = vadd.f32 0.0, %v4037
      %v4039 = vpop.f32.mrb[0].mxu0
      %v4040 = vpop.f32.mrb[0].mxu0
      %v4041 = vadd.f32 0.0, %v4040
      %v4042 = vpop.f32.mrb[0].mxu0
      %4043 = vmatprep.mubr.bf16.mxu0 0
      %4044 = vmatmul.mubr.bf16.gmra.mrb[0].mxu0 %v3950
      %v4045 = vpop.f32.mrb[0].mxu0
      %v4046 = vadd.f32 0.0, %v4045
      %v4047 = vpop.f32.mrb[0].mxu0
      %v4048 = vpop.f32.mrb[0].mxu0
      %v4049 = vadd.f32 0.0, %v4048
      %v4050 = vpop.f32.mrb[0].mxu0
      %4051 = vmatprep.mubr.bf16.mxu0 0
      %4052 = vmatmul.mubr.bf16.gmra.mrb[0].mxu0 %v3953
      %v4053 = vpop.f32.mrb[0].mxu0
      %v4054 = vadd.f32 0.0, %v4053
      %v4055 = vpop.f32.mrb[0].mxu0
      %v4056 = vpop.f32.mrb[0].mxu0
      %v4057 = vadd.f32 0.0, %v4056
      %v4058 = vpop.f32.mrb[0].mxu0
      %4059 = vmatprep.mubr.bf16.mxu0 0
      %4060 = vmatmul.mubr.bf16.gmra.mrb[0].mxu0 %v3956
      %v4061 = vpop.f32.mrb[0].mxu0
      %v4062 = vadd.f32 0.0, %v4061
      %v4063 = vpop.f32.mrb[0].mxu0
      %v4064 = vpop.f32.mrb[0].mxu0
      %v4065 = vadd.f32 0.0, %v4064
      %v4066 = vpop.f32.mrb[0].mxu0
      %4067 = vmatprep.mubr.bf16.mxu0 0
      %4068 = vmatmul.mubr.bf16.gmra.mrb[0].mxu0 %v3959
      %v4069 = vpop.f32.mrb[0].mxu0
      %v4070 = vadd.f32 0.0, %v4069
      %v4071 = vpop.f32.mrb[0].mxu0
      %v4072 = vpop.f32.mrb[0].mxu0
      %v4073 = vadd.f32 0.0, %v4072
      %v4074 = vpop.f32.mrb[0].mxu0
      %4075 = vmatprep.mubr.bf16.mxu0 0
      %4076 = vmatmul.mubr.bf16.gmra.mrb[0].mxu0 %v3962
      %v4077 = vpop.f32.mrb[0].mxu0
      %v4078 = vadd.f32 0.0, %v4077
      %v4079 = vpop.f32.mrb[0].mxu0
      %v4080 = vpop.f32.mrb[0].mxu0
      %v4081 = vadd.f32 0.0, %v4080
      %v4082 = vpop.f32.mrb[0].mxu0
      %4083 = vmatprep.mubr.bf16.mxu0 0
      %4084 = vmatmul.mubr.bf16.gmra.mrb[0].mxu0 %v3965
      %v4085 = vpop.f32.mrb[0].mxu0
      %v4086 = vadd.f32 0.0, %v4085
      %v4087 = vpop.f32.mrb[0].mxu0
      %v4088 = vpop.f32.mrb[0].mxu0
      %v4089 = vadd.f32 0.0, %v4088
      %v4090 = vpop.f32.mrb[0].mxu0
      %4091 = vmatprep.mubr.bf16.mxu0 0
      %4092 = vmatmul.mubr.bf16.gmra.mrb[0].mxu0 %v3968
      %v4093 = vpop.f32.mrb[0].mxu0
      %v4094 = vadd.f32 0.0, %v4093
      %v4095 = vpop.f32.mrb[0].mxu0
      %v4096 = vpop.f32.mrb[0].mxu0
      %v4097 = vadd.f32 0.0, %v4096
      %v4098 = vpop.f32.mrb[0].mxu0
      %4099 = vmatprep.mubr.bf16.mxu0 0
      %4100 = vmatmul.mubr.bf16.gmra.mrb[0].mxu0 %v3971
      %v4101 = vpop.f32.mrb[0].mxu0
      %v4102 = vadd.f32 0.0, %v4101
      %v4103 = vpop.f32.mrb[0].mxu0
      %v4104 = vpop.f32.mrb[0].mxu0
      %v4105 = vadd.f32 0.0, %v4104
      %v4106 = vpop.f32.mrb[0].mxu0
      %4107 = vmatprep.mubr.bf16.mxu0 0
      %4108 = vmatmul.mubr.bf16.gmra.mrb[0].mxu0 %v3974
      %v4109 = vpop.f32.mrb[0].mxu0
      %v4110 = vadd.f32 0.0, %v4109
      %v4111 = vpop.f32.mrb[0].mxu0
      %v4112 = vpop.f32.mrb[0].mxu0
      %v4113 = vadd.f32 0.0, %v4112
      %v4114 = vpop.f32.mrb[0].mxu0
      %4115 = vmatprep.mubr.bf16.mxu0 0
      %4116 = vmatmul.mubr.bf16.gmra.mrb[0].mxu0 %v3977
      %v4117 = vpop.f32.mrb[0].mxu0
      %v4118 = vadd.f32 0.0, %v4117
      %v4119 = vpop.f32.mrb[0].mxu0
      %v4120 = vpop.f32.mrb[0].mxu0
      %v4121 = vadd.f32 0.0, %v4120
      %v4122 = vpop.f32.mrb[0].mxu0
      %4123 = vmatprep.mubr.bf16.mxu0 0
      %4124 = vmatmul.mubr.bf16.gmra.mrb[0].mxu0 %v3980
      %v4125 = vpop.f32.mrb[0].mxu0
      %v4126 = vadd.f32 0.0, %v4125
      %v4127 = vpop.f32.mrb[0].mxu0
      %v4128 = vpop.f32.mrb[0].mxu0
      %v4129 = vadd.f32 0.0, %v4128
      %v4130 = vpop.f32.mrb[0].mxu0
      %4131 = vmatprep.mubr.bf16.mxu0 0
      %4132 = vmatmul.mubr.bf16.gmra.mrb[0].mxu0 %v3983
      %v4133 = vpop.f32.mrb[0].mxu0
      %v4134 = vadd.f32 0.0, %v4133
      %v4135 = vpop.f32.mrb[0].mxu0
      %v4136 = vpop.f32.mrb[0].mxu0
      %v4137 = vadd.f32 0.0, %v4136
      %v4138 = vpop.f32.mrb[0].mxu0
      %4139 = vmatprep.mubr.bf16.mxu0 0
      %4140 = vmatmul.mubr.bf16.gmra.mrb[0].mxu0 %v3986
      %v4141 = vpop.f32.mrb[0].mxu0
      %v4142 = vadd.f32 0.0, %v4141
      %v4143 = vpop.f32.mrb[0].mxu0
      %v4144 = vpop.f32.mrb[0].mxu0
      %v4145 = vadd.f32 0.0, %v4144
      %v4146 = vpop.f32.mrb[0].mxu0
      %4147 = vmatprep.mubr.bf16.mxu0 0
      %4148 = vmatmul.mubr.bf16.gmra.mrb[0].mxu0 %v3989
      %v4149 = vpop.f32.mrb[0].mxu0
      %v4150 = vadd.f32 0.0, %v4149
      %v4151 = vpop.f32.mrb[0].mxu0
      %v4152 = vpop.f32.mrb[0].mxu0
      %v4153 = vadd.f32 0.0, %v4152
      %v4154 = vpop.f32.mrb[0].mxu0
      %4155 = vdwg.mxu0
      %v4156 = vsel %vm3662, %v4030, 0.0
      %v4157 = vsel %vm3662, %v4033, 0.0
      %v4158 = vadd.f32 %v4156, %v4157
      %v4159 = vsel %vm3662, %v4038, 0.0
      %v4160 = vadd.f32 %v4158, %v4159
      %v4161 = vsel %vm3662, %v4041, 0.0
      %v4162 = vadd.f32 %v4160, %v4161
      %v4163 = vsel %vm3662, %v4046, 0.0
      %v4164 = vadd.f32 %v4162, %v4163
      %v4165 = vsel %vm3662, %v4049, 0.0
      %v4166 = vadd.f32 %v4164, %v4165
      %v4167 = vsel %vm3662, %v4054, 0.0
      %v4168 = vadd.f32 %v4166, %v4167
      %v4169 = vsel %vm3662, %v4057, 0.0
      %v4170 = vadd.f32 %v4168, %v4169
      %v4171 = vsel %vm3662, %v4062, 0.0
      %v4172 = vadd.f32 %v4170, %v4171
      %v4173 = vsel %vm3662, %v4065, 0.0
      %v4174 = vadd.f32 %v4172, %v4173
      %v4175 = vsel %vm3662, %v4070, 0.0
      %v4176 = vadd.f32 %v4174, %v4175
      %v4177 = vsel %vm3662, %v4073, 0.0
      %v4178 = vadd.f32 %v4176, %v4177
      %v4179 = vsel %vm3662, %v4078, 0.0
      %v4180 = vadd.f32 %v4178, %v4179
      %v4181 = vsel %vm3662, %v4081, 0.0
      %v4182 = vadd.f32 %v4180, %v4181
      %v4183 = vsel %vm3662, %v4086, 0.0
      %v4184 = vadd.f32 %v4182, %v4183
      %v4185 = vsel %vm3662, %v4089, 0.0
      %v4186 = vadd.f32 %v4184, %v4185
      %v4187 = vsel %vm3662, %v4094, 0.0
      %v4188 = vadd.f32 %v4186, %v4187
      %v4189 = vsel %vm3662, %v4097, 0.0
      %v4190 = vadd.f32 %v4188, %v4189
      %v4191 = vsel %vm3662, %v4102, 0.0
      %v4192 = vadd.f32 %v4190, %v4191
      %v4193 = vsel %vm3662, %v4105, 0.0
      %v4194 = vadd.f32 %v4192, %v4193
      %v4195 = vsel %vm3662, %v4110, 0.0
      %v4196 = vadd.f32 %v4194, %v4195
      %v4197 = vsel %vm3662, %v4113, 0.0
      %v4198 = vadd.f32 %v4196, %v4197
      %v4199 = vsel %vm3662, %v4118, 0.0
      %v4200 = vadd.f32 %v4198, %v4199
      %v4201 = vsel %vm3662, %v4121, 0.0
      %v4202 = vadd.f32 %v4200, %v4201
      %v4203 = vsel %vm3662, %v4126, 0.0
      %v4204 = vadd.f32 %v4202, %v4203
      %v4205 = vsel %vm3662, %v4129, 0.0
      %v4206 = vadd.f32 %v4204, %v4205
      %v4207 = vsel %vm3662, %v4134, 0.0
      %v4208 = vadd.f32 %v4206, %v4207
      %v4209 = vsel %vm3662, %v4137, 0.0
      %v4210 = vadd.f32 %v4208, %v4209
      %v4211 = vsel %vm3662, %v4142, 0.0
      %v4212 = vadd.f32 %v4210, %v4211
      %v4213 = vsel %vm3662, %v4145, 0.0
      %v4214 = vadd.f32 %v4212, %v4213
      %v4215 = vsel %vm3662, %v4150, 0.0
      %v4216 = vadd.f32 %v4214, %v4215
      %v4217 = vsel %vm3662, %v4153, 0.0
      %v4218 = vadd.f32 %v4216, %v4217
      %v4219 = vrot.slane %v4218, 4
      %v4220 = vadd.f32 %v4218, %v4219
      %v4221 = vrot.slane %v4220, 2
      %v4222 = vadd.f32 %v4220, %v4221
      %v4223 = vrot.slane %v4222, 1
      %v4224 = vadd.f32 %v4222, %v4223
      %v4225 = vmul.f32 %v4224, %v2200
      %v4226 = vmul.f32 %v4030, %v4030
      %v4227 = vmul.f32 %v4033, %v4033
      %v4228 = vmul.f32 %v4038, %v4038
      %v4229 = vmul.f32 %v4041, %v4041
      %v4230 = vmul.f32 %v4046, %v4046
      %v4231 = vmul.f32 %v4049, %v4049
      %v4232 = vmul.f32 %v4054, %v4054
      %v4233 = vmul.f32 %v4057, %v4057
      %v4234 = vmul.f32 %v4062, %v4062
      %v4235 = vmul.f32 %v4065, %v4065
      %v4236 = vmul.f32 %v4070, %v4070
      %v4237 = vmul.f32 %v4073, %v4073
      %v4238 = vmul.f32 %v4078, %v4078
      %v4239 = vmul.f32 %v4081, %v4081
      %v4240 = vmul.f32 %v4086, %v4086
      %v4241 = vmul.f32 %v4089, %v4089
      %v4242 = vmul.f32 %v4094, %v4094
      %v4243 = vmul.f32 %v4097, %v4097
      %v4244 = vmul.f32 %v4102, %v4102
      %v4245 = vmul.f32 %v4105, %v4105
      %v4246 = vmul.f32 %v4110, %v4110
      %v4247 = vmul.f32 %v4113, %v4113
      %v4248 = vmul.f32 %v4118, %v4118
      %v4249 = vmul.f32 %v4121, %v4121
      %v4250 = vmul.f32 %v4126, %v4126
      %v4251 = vmul.f32 %v4129, %v4129
      %v4252 = vmul.f32 %v4134, %v4134
      %v4253 = vmul.f32 %v4137, %v4137
      %v4254 = vmul.f32 %v4142, %v4142
      %v4255 = vmul.f32 %v4145, %v4145
      %v4256 = vmul.f32 %v4150, %v4150
      %v4257 = vmul.f32 %v4153, %v4153
      %v4258 = vsel %vm3662, %v4226, 0.0
      %v4259 = vsel %vm3662, %v4227, 0.0
      %v4260 = vadd.f32 %v4258, %v4259
      %v4261 = vsel %vm3662, %v4228, 0.0
      %v4262 = vadd.f32 %v4260, %v4261
      %v4263 = vsel %vm3662, %v4229, 0.0
      %v4264 = vadd.f32 %v4262, %v4263
      %v4265 = vsel %vm3662, %v4230, 0.0
      %v4266 = vadd.f32 %v4264, %v4265
      %v4267 = vsel %vm3662, %v4231, 0.0
      %v4268 = vadd.f32 %v4266, %v4267
      %v4269 = vsel %vm3662, %v4232, 0.0
      %v4270 = vadd.f32 %v4268, %v4269
      %v4271 = vsel %vm3662, %v4233, 0.0
      %v4272 = vadd.f32 %v4270, %v4271
      %v4273 = vsel %vm3662, %v4234, 0.0
      %v4274 = vadd.f32 %v4272, %v4273
      %v4275 = vsel %vm3662, %v4235, 0.0
      %v4276 = vadd.f32 %v4274, %v4275
      %v4277 = vsel %vm3662, %v4236, 0.0
      %v4278 = vadd.f32 %v4276, %v4277
      %v4279 = vsel %vm3662, %v4237, 0.0
      %v4280 = vadd.f32 %v4278, %v4279
      %v4281 = vsel %vm3662, %v4238, 0.0
      %v4282 = vadd.f32 %v4280, %v4281
      %v4283 = vsel %vm3662, %v4239, 0.0
      %v4284 = vadd.f32 %v4282, %v4283
      %v4285 = vsel %vm3662, %v4240, 0.0
      %v4286 = vadd.f32 %v4284, %v4285
      %v4287 = vsel %vm3662, %v4241, 0.0
      %v4288 = vadd.f32 %v4286, %v4287
      %v4289 = vsel %vm3662, %v4242, 0.0
      %v4290 = vadd.f32 %v4288, %v4289
      %v4291 = vsel %vm3662, %v4243, 0.0
      %v4292 = vadd.f32 %v4290, %v4291
      %v4293 = vsel %vm3662, %v4244, 0.0
      %v4294 = vadd.f32 %v4292, %v4293
      %v4295 = vsel %vm3662, %v4245, 0.0
      %v4296 = vadd.f32 %v4294, %v4295
      %v4297 = vsel %vm3662, %v4246, 0.0
      %v4298 = vadd.f32 %v4296, %v4297
      %v4299 = vsel %vm3662, %v4247, 0.0
      %v4300 = vadd.f32 %v4298, %v4299
      %v4301 = vsel %vm3662, %v4248, 0.0
      %v4302 = vadd.f32 %v4300, %v4301
      %v4303 = vsel %vm3662, %v4249, 0.0
      %v4304 = vadd.f32 %v4302, %v4303
      %v4305 = vsel %vm3662, %v4250, 0.0
      %v4306 = vadd.f32 %v4304, %v4305
      %v4307 = vsel %vm3662, %v4251, 0.0
      %v4308 = vadd.f32 %v4306, %v4307
      %v4309 = vsel %vm3662, %v4252, 0.0
      %v4310 = vadd.f32 %v4308, %v4309
      %v4311 = vsel %vm3662, %v4253, 0.0
      %v4312 = vadd.f32 %v4310, %v4311
      %v4313 = vsel %vm3662, %v4254, 0.0
      %v4314 = vadd.f32 %v4312, %v4313
      %v4315 = vsel %vm3662, %v4255, 0.0
      %v4316 = vadd.f32 %v4314, %v4315
      %v4317 = vsel %vm3662, %v4256, 0.0
      %v4318 = vadd.f32 %v4316, %v4317
      %v4319 = vsel %vm3662, %v4257, 0.0
      %v4320 = vadd.f32 %v4318, %v4319
      %v4321 = vrot.slane %v4320, 4
      %v4322 = vadd.f32 %v4320, %v4321
      %v4323 = vrot.slane %v4322, 2
      %v4324 = vadd.f32 %v4322, %v4323
      %v4325 = vrot.slane %v4324, 1
      %v4326 = vadd.f32 %v4324, %v4325
      %v4327 = vmul.f32 %v4326, %v2200
      %v4328 = vmul.f32 %v4225, %v4225
      %v4329 = vsub.f32 %v4327, %v4328
      %v4330 = vmax.f32 %v4329, 0.0
      %v4331 = vsub.f32 %v4030, %v4225
      %v4332 = vsub.f32 %v4033, %v4225
      %v4333 = vsub.f32 %v4038, %v4225
      %v4334 = vsub.f32 %v4041, %v4225
      %v4335 = vsub.f32 %v4046, %v4225
      %v4336 = vsub.f32 %v4049, %v4225
      %v4337 = vsub.f32 %v4054, %v4225
      %v4338 = vsub.f32 %v4057, %v4225
      %v4339 = vsub.f32 %v4062, %v4225
      %v4340 = vsub.f32 %v4065, %v4225
      %v4341 = vsub.f32 %v4070, %v4225
      %v4342 = vsub.f32 %v4073, %v4225
      %v4343 = vsub.f32 %v4078, %v4225
      %v4344 = vsub.f32 %v4081, %v4225
      %v4345 = vsub.f32 %v4086, %v4225
      %v4346 = vsub.f32 %v4089, %v4225
      %v4347 = vsub.f32 %v4094, %v4225
      %v4348 = vsub.f32 %v4097, %v4225
      %v4349 = vsub.f32 %v4102, %v4225
      %v4350 = vsub.f32 %v4105, %v4225
      %v4351 = vsub.f32 %v4110, %v4225
      %v4352 = vsub.f32 %v4113, %v4225
      %v4353 = vsub.f32 %v4118, %v4225
      %v4354 = vsub.f32 %v4121, %v4225
      %v4355 = vsub.f32 %v4126, %v4225
      %v4356 = vsub.f32 %v4129, %v4225
      %v4357 = vsub.f32 %v4134, %v4225
      %v4358 = vsub.f32 %v4137, %v4225
      %v4359 = vsub.f32 %v4142, %v4225
      %v4360 = vsub.f32 %v4145, %v4225
      %v4361 = vsub.f32 %v4150, %v4225
      %v4362 = vsub.f32 %v4153, %v4225
      %v4363 = vadd.f32 %v4330, 1e-05
      %v4364 = vrsqrt.pop %v4363
      %v4365 = vmul.f32 %v4331, %v4364
      %v4366 = vmul.f32 %v4332, %v4364
      %v4367 = vmul.f32 %v4333, %v4364
      %v4368 = vmul.f32 %v4334, %v4364
      %v4369 = vmul.f32 %v4335, %v4364
      %v4370 = vmul.f32 %v4336, %v4364
      %v4371 = vmul.f32 %v4337, %v4364
      %v4372 = vmul.f32 %v4338, %v4364
      %v4373 = vmul.f32 %v4339, %v4364
      %v4374 = vmul.f32 %v4340, %v4364
      %v4375 = vmul.f32 %v4341, %v4364
      %v4376 = vmul.f32 %v4342, %v4364
      %v4377 = vmul.f32 %v4343, %v4364
      %v4378 = vmul.f32 %v4344, %v4364
      %v4379 = vmul.f32 %v4345, %v4364
      %v4380 = vmul.f32 %v4346, %v4364
      %v4381 = vmul.f32 %v4347, %v4364
      %v4382 = vmul.f32 %v4348, %v4364
      %v4383 = vmul.f32 %v4349, %v4364
      %v4384 = vmul.f32 %v4350, %v4364
      %v4385 = vmul.f32 %v4351, %v4364
      %v4386 = vmul.f32 %v4352, %v4364
      %v4387 = vmul.f32 %v4353, %v4364
      %v4388 = vmul.f32 %v4354, %v4364
      %v4389 = vmul.f32 %v4355, %v4364
      %v4390 = vmul.f32 %v4356, %v4364
      %v4391 = vmul.f32 %v4357, %v4364
      %v4392 = vmul.f32 %v4358, %v4364
      %v4393 = vmul.f32 %v4359, %v4364
      %v4394 = vmul.f32 %v4360, %v4364
      %v4395 = vmul.f32 %v4361, %v4364
      %v4396 = vmul.f32 %v4362, %v4364
      %v4397 = vld [vmem:[%s4] sm:$0x1]
      %v4398 = vlaneseq
      %v4399 = vshrl.u32 %v4398, 7
      %v4400 = vsub.s32 0, %v4399
      %v4401 = vrot.slane %v4397, %v4400
      %v4402 = vmul.f32 %v4365, %v4401
      %v4403 = vmul.f32 %v4366, %v4401
      %v4404 = vmul.f32 %v4367, %v4401
      %v4405 = vmul.f32 %v4368, %v4401
      %v4406 = vmul.f32 %v4369, %v4401
      %v4407 = vmul.f32 %v4370, %v4401
      %v4408 = vmul.f32 %v4371, %v4401
      %v4409 = vmul.f32 %v4372, %v4401
      %v4410 = vmul.f32 %v4373, %v4401
      %v4411 = vmul.f32 %v4374, %v4401
      %v4412 = vmul.f32 %v4375, %v4401
      %v4413 = vmul.f32 %v4376, %v4401
      %v4414 = vmul.f32 %v4377, %v4401
      %v4415 = vmul.f32 %v4378, %v4401
      %v4416 = vmul.f32 %v4379, %v4401
      %v4417 = vmul.f32 %v4380, %v4401
      %v4418 = vmul.f32 %v4381, %v4401
      %v4419 = vmul.f32 %v4382, %v4401
      %v4420 = vmul.f32 %v4383, %v4401
      %v4421 = vmul.f32 %v4384, %v4401
      %v4422 = vmul.f32 %v4385, %v4401
      %v4423 = vmul.f32 %v4386, %v4401
      %v4424 = vmul.f32 %v4387, %v4401
      %v4425 = vmul.f32 %v4388, %v4401
      %v4426 = vmul.f32 %v4389, %v4401
      %v4427 = vmul.f32 %v4390, %v4401
      %v4428 = vmul.f32 %v4391, %v4401
      %v4429 = vmul.f32 %v4392, %v4401
      %v4430 = vmul.f32 %v4393, %v4401
      %v4431 = vmul.f32 %v4394, %v4401
      %v4432 = vmul.f32 %v4395, %v4401
      %v4433 = vmul.f32 %v4396, %v4401
      %v4434 = vld [vmem:[%s4 + $0x1] sm:$0x1]
      %v4435 = vlaneseq
      %v4436 = vshrl.u32 %v4435, 7
      %v4437 = vsub.s32 0, %v4436
      %v4438 = vrot.slane %v4434, %v4437
      %v4439 = vadd.f32 %v4402, %v4438
      %v4440 = vadd.f32 %v4403, %v4438
      %v4441 = vadd.f32 %v4404, %v4438
      %v4442 = vadd.f32 %v4405, %v4438
      %v4443 = vadd.f32 %v4406, %v4438
      %v4444 = vadd.f32 %v4407, %v4438
      %v4445 = vadd.f32 %v4408, %v4438
      %v4446 = vadd.f32 %v4409, %v4438
      %v4447 = vadd.f32 %v4410, %v4438
      %v4448 = vadd.f32 %v4411, %v4438
      %v4449 = vadd.f32 %v4412, %v4438
      %v4450 = vadd.f32 %v4413, %v4438
      %v4451 = vadd.f32 %v4414, %v4438
      %v4452 = vadd.f32 %v4415, %v4438
      %v4453 = vadd.f32 %v4416, %v4438
      %v4454 = vadd.f32 %v4417, %v4438
      %v4455 = vadd.f32 %v4418, %v4438
      %v4456 = vadd.f32 %v4419, %v4438
      %v4457 = vadd.f32 %v4420, %v4438
      %v4458 = vadd.f32 %v4421, %v4438
      %v4459 = vadd.f32 %v4422, %v4438
      %v4460 = vadd.f32 %v4423, %v4438
      %v4461 = vadd.f32 %v4424, %v4438
      %v4462 = vadd.f32 %v4425, %v4438
      %v4463 = vadd.f32 %v4426, %v4438
      %v4464 = vadd.f32 %v4427, %v4438
      %v4465 = vadd.f32 %v4428, %v4438
      %v4466 = vadd.f32 %v4429, %v4438
      %v4467 = vadd.f32 %v4430, %v4438
      %v4468 = vadd.f32 %v4431, %v4438
      %v4469 = vadd.f32 %v4432, %v4438
      %v4470 = vadd.f32 %v4433, %v4438
      %v4471 = vmax.f32 %v4439, 0.0
      %v4472 = vmax.f32 %v4440, 0.0
      %v4473 = vmax.f32 %v4441, 0.0
      %v4474 = vmax.f32 %v4442, 0.0
      %v4475 = vmax.f32 %v4443, 0.0
      %v4476 = vmax.f32 %v4444, 0.0
      %v4477 = vmax.f32 %v4445, 0.0
      %v4478 = vmax.f32 %v4446, 0.0
      %v4479 = vmax.f32 %v4447, 0.0
      %v4480 = vmax.f32 %v4448, 0.0
      %v4481 = vmax.f32 %v4449, 0.0
      %v4482 = vmax.f32 %v4450, 0.0
      %v4483 = vmax.f32 %v4451, 0.0
      %v4484 = vmax.f32 %v4452, 0.0
      %v4485 = vmax.f32 %v4453, 0.0
      %v4486 = vmax.f32 %v4454, 0.0
      %v4487 = vmax.f32 %v4455, 0.0
      %v4488 = vmax.f32 %v4456, 0.0
      %v4489 = vmax.f32 %v4457, 0.0
      %v4490 = vmax.f32 %v4458, 0.0
      %v4491 = vmax.f32 %v4459, 0.0
      %v4492 = vmax.f32 %v4460, 0.0
      %v4493 = vmax.f32 %v4461, 0.0
      %v4494 = vmax.f32 %v4462, 0.0
      %v4495 = vmax.f32 %v4463, 0.0
      %v4496 = vmax.f32 %v4464, 0.0
      %v4497 = vmax.f32 %v4465, 0.0
      %v4498 = vmax.f32 %v4466, 0.0
      %v4499 = vmax.f32 %v4467, 0.0
      %v4500 = vmax.f32 %v4468, 0.0
      %v4501 = vmax.f32 %v4469, 0.0
      %v4502 = vmax.f32 %v4470, 0.0
      %v4519 = vrot.slane %v4473, 1
      %v4520 = vrot.slane %v4471, 1
      %v4521 = vrot.slane %v4475, 1
      %v4522 = vrot.slane %v4477, 1
      %v4523 = vrot.slane %v4479, 1
      %v4524 = vrot.slane %v4481, 1
      %v4525 = vrot.slane %v4483, 1
      %v4526 = vrot.slane %v4485, 1
      %v4527 = vrot.slane %v4487, 1
      %v4528 = vrot.slane %v4489, 1
      %v4529 = vrot.slane %v4491, 1
      %v4530 = vrot.slane %v4493, 1
      %v4531 = vrot.slane %v4495, 1
      %v4532 = vrot.slane %v4497, 1
      %v4533 = vrot.slane %v4499, 1
      %v4534 = vrot.slane %v4501, 1
      %v4567 = vrot.slane %v4473, 7
      %v4568 = vrot.slane %v4474, 7
      %v4569 = vsel %vm524, %v4567, %v4568
      %v4570 = vrot.slane %v4471, 7
      %v4571 = vrot.slane %v4472, 7
      %v4572 = vsel %vm524, %v4570, %v4571
      %v4573 = vrot.slane %v4475, 7
      %v4574 = vrot.slane %v4476, 7
      %v4575 = vsel %vm524, %v4573, %v4574
      %v4576 = vrot.slane %v4477, 7
      %v4577 = vrot.slane %v4478, 7
      %v4578 = vsel %vm524, %v4576, %v4577
      %v4579 = vrot.slane %v4479, 7
      %v4580 = vrot.slane %v4480, 7
      %v4581 = vsel %vm524, %v4579, %v4580
      %v4582 = vrot.slane %v4481, 7
      %v4583 = vrot.slane %v4482, 7
      %v4584 = vsel %vm524, %v4582, %v4583
      %v4585 = vrot.slane %v4483, 7
      %v4586 = vrot.slane %v4484, 7
      %v4587 = vsel %vm524, %v4585, %v4586
      %v4588 = vrot.slane %v4485, 7
      %v4589 = vrot.slane %v4486, 7
      %v4590 = vsel %vm524, %v4588, %v4589
      %v4591 = vrot.slane %v4487, 7
      %v4592 = vrot.slane %v4488, 7
      %v4593 = vsel %vm524, %v4591, %v4592
      %v4594 = vrot.slane %v4489, 7
      %v4595 = vrot.slane %v4490, 7
      %v4596 = vsel %vm524, %v4594, %v4595
      %v4597 = vrot.slane %v4491, 7
      %v4598 = vrot.slane %v4492, 7
      %v4599 = vsel %vm524, %v4597, %v4598
      %v4600 = vrot.slane %v4493, 7
      %v4601 = vrot.slane %v4494, 7
      %v4602 = vsel %vm524, %v4600, %v4601
      %v4603 = vrot.slane %v4495, 7
      %v4604 = vrot.slane %v4496, 7
      %v4605 = vsel %vm524, %v4603, %v4604
      %v4606 = vrot.slane %v4497, 7
      %v4607 = vrot.slane %v4498, 7
      %v4608 = vsel %vm524, %v4606, %v4607
      %v4609 = vrot.slane %v4499, 7
      %v4610 = vrot.slane %v4500, 7
      %v4611 = vsel %vm524, %v4609, %v4610
      %v4612 = vrot.slane %v4501, 7
      %v4613 = vrot.slane %v4502, 7
      %v4614 = vsel %vm524, %v4612, %v4613
      %v4662 = vrot.slane %v4474, 5
      %v4663 = vrot.slane %v4472, 5
      %v4664 = vrot.slane %v4476, 5
      %v4665 = vrot.slane %v4478, 5
      %v4666 = vrot.slane %v4480, 5
      %v4667 = vrot.slane %v4482, 5
      %v4668 = vrot.slane %v4484, 5
      %v4669 = vrot.slane %v4486, 5
      %v4670 = vrot.slane %v4488, 5
      %v4671 = vrot.slane %v4490, 5
      %v4672 = vrot.slane %v4492, 5
      %v4673 = vrot.slane %v4494, 5
      %v4674 = vrot.slane %v4496, 5
      %v4675 = vrot.slane %v4498, 5
      %v4676 = vrot.slane %v4500, 5
      %v4677 = vrot.slane %v4502, 5
      %v4694 = vsel %vm524, %v4519, %v4567
      %v4695 = vsel %vm524, %v4520, %v4570
      %v4696 = vsel %vm524, %v4521, %v4573
      %v4697 = vsel %vm524, %v4522, %v4576
      %v4698 = vsel %vm524, %v4523, %v4579
      %v4699 = vsel %vm524, %v4524, %v4582
      %v4700 = vsel %vm524, %v4525, %v4585
      %v4701 = vsel %vm524, %v4526, %v4588
      %v4702 = vsel %vm524, %v4527, %v4591
      %v4703 = vsel %vm524, %v4528, %v4594
      %v4704 = vsel %vm524, %v4529, %v4597
      %v4705 = vsel %vm524, %v4530, %v4600
      %v4706 = vsel %vm524, %v4531, %v4603
      %v4707 = vsel %vm524, %v4532, %v4606
      %v4708 = vsel %vm524, %v4533, %v4609
      %v4709 = vsel %vm524, %v4534, %v4612
      %v4710 = vsel %vm524, %v4568, %v4662
      %v4711 = vsel %vm524, %v4571, %v4663
      %v4712 = vsel %vm524, %v4574, %v4664
      %v4713 = vsel %vm524, %v4577, %v4665
      %v4714 = vsel %vm524, %v4580, %v4666
      %v4715 = vsel %vm524, %v4583, %v4667
      %v4716 = vsel %vm524, %v4586, %v4668
      %v4717 = vsel %vm524, %v4589, %v4669
      %v4718 = vsel %vm524, %v4592, %v4670
      %v4719 = vsel %vm524, %v4595, %v4671
      %v4720 = vsel %vm524, %v4598, %v4672
      %v4721 = vsel %vm524, %v4601, %v4673
      %v4722 = vsel %vm524, %v4604, %v4674
      %v4723 = vsel %vm524, %v4607, %v4675
      %v4724 = vsel %vm524, %v4610, %v4676
      %v4725 = vsel %vm524, %v4613, %v4677
      %v4756 = vrot.slane %v4694, 1
      %v4757 = vrot.slane %v4569, 1
      %v4758 = vsel %vm714, %v4756, %v4757
      %v4759 = vrot.slane %v4710, 1
      %v4760 = vsel %vm714, %v4757, %v4759
      %v4761 = vrot.slane %v4695, 1
      %v4762 = vrot.slane %v4572, 1
      %v4763 = vsel %vm714, %v4761, %v4762
      %v4764 = vrot.slane %v4711, 1
      %v4765 = vsel %vm714, %v4762, %v4764
      %v4766 = vrot.slane %v4696, 1
      %v4767 = vrot.slane %v4575, 1
      %v4768 = vsel %vm714, %v4766, %v4767
      %v4769 = vrot.slane %v4712, 1
      %v4770 = vsel %vm714, %v4767, %v4769
      %v4771 = vrot.slane %v4697, 1
      %v4772 = vrot.slane %v4578, 1
      %v4773 = vsel %vm714, %v4771, %v4772
      %v4774 = vrot.slane %v4713, 1
      %v4775 = vsel %vm714, %v4772, %v4774
      %v4776 = vrot.slane %v4698, 1
      %v4777 = vrot.slane %v4581, 1
      %v4778 = vsel %vm714, %v4776, %v4777
      %v4779 = vrot.slane %v4714, 1
      %v4780 = vsel %vm714, %v4777, %v4779
      %v4781 = vrot.slane %v4699, 1
      %v4782 = vrot.slane %v4584, 1
      %v4783 = vsel %vm714, %v4781, %v4782
      %v4784 = vrot.slane %v4715, 1
      %v4785 = vsel %vm714, %v4782, %v4784
      %v4786 = vrot.slane %v4700, 1
      %v4787 = vrot.slane %v4587, 1
      %v4788 = vsel %vm714, %v4786, %v4787
      %v4789 = vrot.slane %v4716, 1
      %v4790 = vsel %vm714, %v4787, %v4789
      %v4791 = vrot.slane %v4701, 1
      %v4792 = vrot.slane %v4590, 1
      %v4793 = vsel %vm714, %v4791, %v4792
      %v4794 = vrot.slane %v4717, 1
      %v4795 = vsel %vm714, %v4792, %v4794
      %v4796 = vrot.slane %v4702, 1
      %v4797 = vrot.slane %v4593, 1
      %v4798 = vsel %vm714, %v4796, %v4797
      %v4799 = vrot.slane %v4718, 1
      %v4800 = vsel %vm714, %v4797, %v4799
      %v4801 = vrot.slane %v4703, 1
      %v4802 = vrot.slane %v4596, 1
      %v4803 = vsel %vm714, %v4801, %v4802
      %v4804 = vrot.slane %v4719, 1
      %v4805 = vsel %vm714, %v4802, %v4804
      %v4806 = vrot.slane %v4704, 1
      %v4807 = vrot.slane %v4599, 1
      %v4808 = vsel %vm714, %v4806, %v4807
      %v4809 = vrot.slane %v4720, 1
      %v4810 = vsel %vm714, %v4807, %v4809
      %v4811 = vrot.slane %v4705, 1
      %v4812 = vrot.slane %v4602, 1
      %v4813 = vsel %vm714, %v4811, %v4812
      %v4814 = vrot.slane %v4721, 1
      %v4815 = vsel %vm714, %v4812, %v4814
      %v4816 = vrot.slane %v4706, 1
      %v4817 = vrot.slane %v4605, 1
      %v4818 = vsel %vm714, %v4816, %v4817
      %v4819 = vrot.slane %v4722, 1
      %v4820 = vsel %vm714, %v4817, %v4819
      %v4821 = vrot.slane %v4707, 1
      %v4822 = vrot.slane %v4608, 1
      %v4823 = vsel %vm714, %v4821, %v4822
      %v4824 = vrot.slane %v4723, 1
      %v4825 = vsel %vm714, %v4822, %v4824
      %v4826 = vrot.slane %v4708, 1
      %v4827 = vrot.slane %v4611, 1
      %v4828 = vsel %vm714, %v4826, %v4827
      %v4829 = vrot.slane %v4724, 1
      %v4830 = vsel %vm714, %v4827, %v4829
      %v4831 = vrot.slane %v4694, 2
      %v4832 = vrot.slane %v4569, 2
      %v4833 = vsel %vm790, %v4831, %v4832
      %v4834 = vrot.slane %v4710, 2
      %v4835 = vsel %vm790, %v4832, %v4834
      %v4836 = vrot.slane %v4695, 2
      %v4837 = vrot.slane %v4572, 2
      %v4838 = vsel %vm790, %v4836, %v4837
      %v4839 = vrot.slane %v4711, 2
      %v4840 = vsel %vm790, %v4837, %v4839
      %v4841 = vrot.slane %v4696, 2
      %v4842 = vrot.slane %v4575, 2
      %v4843 = vsel %vm790, %v4841, %v4842
      %v4844 = vrot.slane %v4712, 2
      %v4845 = vsel %vm790, %v4842, %v4844
      %v4846 = vrot.slane %v4697, 2
      %v4847 = vrot.slane %v4578, 2
      %v4848 = vsel %vm790, %v4846, %v4847
      %v4849 = vrot.slane %v4713, 2
      %v4850 = vsel %vm790, %v4847, %v4849
      %v4851 = vrot.slane %v4698, 2
      %v4852 = vrot.slane %v4581, 2
      %v4853 = vsel %vm790, %v4851, %v4852
      %v4854 = vrot.slane %v4714, 2
      %v4855 = vsel %vm790, %v4852, %v4854
      %v4856 = vrot.slane %v4699, 2
      %v4857 = vrot.slane %v4584, 2
      %v4858 = vsel %vm790, %v4856, %v4857
      %v4859 = vrot.slane %v4715, 2
      %v4860 = vsel %vm790, %v4857, %v4859
      %v4861 = vrot.slane %v4700, 2
      %v4862 = vrot.slane %v4587, 2
      %v4863 = vsel %vm790, %v4861, %v4862
      %v4864 = vrot.slane %v4716, 2
      %v4865 = vsel %vm790, %v4862, %v4864
      %v4866 = vrot.slane %v4701, 2
      %v4867 = vrot.slane %v4590, 2
      %v4868 = vsel %vm790, %v4866, %v4867
      %v4869 = vrot.slane %v4717, 2
      %v4870 = vsel %vm790, %v4867, %v4869
      %v4871 = vrot.slane %v4702, 2
      %v4872 = vrot.slane %v4593, 2
      %v4873 = vsel %vm790, %v4871, %v4872
      %v4874 = vrot.slane %v4718, 2
      %v4875 = vsel %vm790, %v4872, %v4874
      %v4876 = vrot.slane %v4703, 2
      %v4877 = vrot.slane %v4596, 2
      %v4878 = vsel %vm790, %v4876, %v4877
      %v4879 = vrot.slane %v4719, 2
      %v4880 = vsel %vm790, %v4877, %v4879
      %v4881 = vrot.slane %v4704, 2
      %v4882 = vrot.slane %v4599, 2
      %v4883 = vsel %vm790, %v4881, %v4882
      %v4884 = vrot.slane %v4720, 2
      %v4885 = vsel %vm790, %v4882, %v4884
      %v4886 = vrot.slane %v4705, 2
      %v4887 = vrot.slane %v4602, 2
      %v4888 = vsel %vm790, %v4886, %v4887
      %v4889 = vrot.slane %v4721, 2
      %v4890 = vsel %vm790, %v4887, %v4889
      %v4891 = vrot.slane %v4706, 2
      %v4892 = vrot.slane %v4605, 2
      %v4893 = vsel %vm790, %v4891, %v4892
      %v4894 = vrot.slane %v4722, 2
      %v4895 = vsel %vm790, %v4892, %v4894
      %v4896 = vrot.slane %v4707, 2
      %v4897 = vrot.slane %v4608, 2
      %v4898 = vsel %vm790, %v4896, %v4897
      %v4899 = vrot.slane %v4723, 2
      %v4900 = vsel %vm790, %v4897, %v4899
      %v4901 = vrot.slane %v4708, 2
      %v4902 = vrot.slane %v4611, 2
      %v4903 = vsel %vm790, %v4901, %v4902
      %v4904 = vrot.slane %v4724, 2
      %v4905 = vsel %vm790, %v4902, %v4904
      %v4908 = vrot.slane %v4709, 1
      %v4909 = vrot.slane %v4614, 1
      %v4910 = vsel %vm714, %v4908, %v4909
      %v4911 = vrot.slane %v4725, 1
      %v4912 = vsel %vm714, %v4909, %v4911
      %v4913 = vrot.slane %v4709, 2
      %v4914 = vrot.slane %v4614, 2
      %v4915 = vsel %vm790, %v4913, %v4914
      %v4916 = vrot.slane %v4725, 2
      %v4917 = vsel %vm790, %v4914, %v4916
      %4948 = vrot.lane.b32.xlu0 %v4758, 16
      %v4949 = vpop.permute.xlu0 %4948
      %4950 = vrot.lane.b32.xlu0 %v4760, 16
      %v4951 = vpop.permute.xlu0 %4950
      %4952 = vrot.lane.b32.xlu0 %v4763, 16
      %v4953 = vpop.permute.xlu0 %4952
      %4954 = vrot.lane.b32.xlu0 %v4765, 16
      %v4955 = vpop.permute.xlu0 %4954
      %4956 = vrot.lane.b32.xlu0 %v4768, 16
      %v4957 = vpop.permute.xlu0 %4956
      %4958 = vrot.lane.b32.xlu0 %v4770, 16
      %v4959 = vpop.permute.xlu0 %4958
      %4960 = vrot.lane.b32.xlu0 %v4773, 16
      %v4961 = vpop.permute.xlu0 %4960
      %4962 = vrot.lane.b32.xlu0 %v4775, 16
      %v4963 = vpop.permute.xlu0 %4962
      %4964 = vrot.lane.b32.xlu0 %v4778, 16
      %v4965 = vpop.permute.xlu0 %4964
      %4966 = vrot.lane.b32.xlu0 %v4780, 16
      %v4967 = vpop.permute.xlu0 %4966
      %4968 = vrot.lane.b32.xlu0 %v4783, 16
      %v4969 = vpop.permute.xlu0 %4968
      %4970 = vrot.lane.b32.xlu0 %v4785, 16
      %v4971 = vpop.permute.xlu0 %4970
      %4972 = vrot.lane.b32.xlu0 %v4788, 16
      %v4973 = vpop.permute.xlu0 %4972
      %4974 = vrot.lane.b32.xlu0 %v4790, 16
      %v4975 = vpop.permute.xlu0 %4974
      %4976 = vrot.lane.b32.xlu0 %v4793, 16
      %v4977 = vpop.permute.xlu0 %4976
      %4978 = vrot.lane.b32.xlu0 %v4795, 16
      %v4979 = vpop.permute.xlu0 %4978
      %4980 = vrot.lane.b32.xlu0 %v4798, 16
      %v4981 = vpop.permute.xlu0 %4980
      %4982 = vrot.lane.b32.xlu0 %v4800, 16
      %v4983 = vpop.permute.xlu0 %4982
      %4984 = vrot.lane.b32.xlu0 %v4803, 16
      %v4985 = vpop.permute.xlu0 %4984
      %4986 = vrot.lane.b32.xlu0 %v4805, 16
      %v4987 = vpop.permute.xlu0 %4986
      %4988 = vrot.lane.b32.xlu0 %v4808, 16
      %v4989 = vpop.permute.xlu0 %4988
      %4990 = vrot.lane.b32.xlu0 %v4810, 16
      %v4991 = vpop.permute.xlu0 %4990
      %4992 = vrot.lane.b32.xlu0 %v4813, 16
      %v4993 = vpop.permute.xlu0 %4992
      %4994 = vrot.lane.b32.xlu0 %v4815, 16
      %v4995 = vpop.permute.xlu0 %4994
      %4996 = vrot.lane.b32.xlu0 %v4818, 16
      %v4997 = vpop.permute.xlu0 %4996
      %4998 = vrot.lane.b32.xlu0 %v4820, 16
      %v4999 = vpop.permute.xlu0 %4998
      %5000 = vrot.lane.b32.xlu0 %v4823, 16
      %v5001 = vpop.permute.xlu0 %5000
      %5002 = vrot.lane.b32.xlu0 %v4825, 16
      %v5003 = vpop.permute.xlu0 %5002
      %5004 = vrot.lane.b32.xlu0 %v4828, 16
      %v5005 = vpop.permute.xlu0 %5004
      %5006 = vrot.lane.b32.xlu0 %v4830, 16
      %v5007 = vpop.permute.xlu0 %5006
      %5038 = vrot.lane.b32.xlu0 %v4833, 32
      %v5039 = vpop.permute.xlu0 %5038
      %5040 = vrot.lane.b32.xlu0 %v4835, 32
      %v5041 = vpop.permute.xlu0 %5040
      %5042 = vrot.lane.b32.xlu0 %v4838, 32
      %v5043 = vpop.permute.xlu0 %5042
      %5044 = vrot.lane.b32.xlu0 %v4840, 32
      %v5045 = vpop.permute.xlu0 %5044
      %5046 = vrot.lane.b32.xlu0 %v4843, 32
      %v5047 = vpop.permute.xlu0 %5046
      %5048 = vrot.lane.b32.xlu0 %v4845, 32
      %v5049 = vpop.permute.xlu0 %5048
      %5050 = vrot.lane.b32.xlu0 %v4848, 32
      %v5051 = vpop.permute.xlu0 %5050
      %5052 = vrot.lane.b32.xlu0 %v4850, 32
      %v5053 = vpop.permute.xlu0 %5052
      %5054 = vrot.lane.b32.xlu0 %v4853, 32
      %v5055 = vpop.permute.xlu0 %5054
      %5056 = vrot.lane.b32.xlu0 %v4855, 32
      %v5057 = vpop.permute.xlu0 %5056
      %5058 = vrot.lane.b32.xlu0 %v4858, 32
      %v5059 = vpop.permute.xlu0 %5058
      %5060 = vrot.lane.b32.xlu0 %v4860, 32
      %v5061 = vpop.permute.xlu0 %5060
      %5062 = vrot.lane.b32.xlu0 %v4863, 32
      %v5063 = vpop.permute.xlu0 %5062
      %5064 = vrot.lane.b32.xlu0 %v4865, 32
      %v5065 = vpop.permute.xlu0 %5064
      %5066 = vrot.lane.b32.xlu0 %v4868, 32
      %v5067 = vpop.permute.xlu0 %5066
      %5068 = vrot.lane.b32.xlu0 %v4870, 32
      %v5069 = vpop.permute.xlu0 %5068
      %5070 = vrot.lane.b32.xlu0 %v4873, 32
      %v5071 = vpop.permute.xlu0 %5070
      %5072 = vrot.lane.b32.xlu0 %v4875, 32
      %v5073 = vpop.permute.xlu0 %5072
      %5074 = vrot.lane.b32.xlu0 %v4878, 32
      %v5075 = vpop.permute.xlu0 %5074
      %5076 = vrot.lane.b32.xlu0 %v4880, 32
      %v5077 = vpop.permute.xlu0 %5076
      %5078 = vrot.lane.b32.xlu0 %v4883, 32
      %v5079 = vpop.permute.xlu0 %5078
      %5080 = vrot.lane.b32.xlu0 %v4885, 32
      %v5081 = vpop.permute.xlu0 %5080
      %5082 = vrot.lane.b32.xlu0 %v4888, 32
      %v5083 = vpop.permute.xlu0 %5082
      %5084 = vrot.lane.b32.xlu0 %v4890, 32
      %v5085 = vpop.permute.xlu0 %5084
      %5086 = vrot.lane.b32.xlu0 %v4893, 32
      %v5087 = vpop.permute.xlu0 %5086
      %5088 = vrot.lane.b32.xlu0 %v4895, 32
      %v5089 = vpop.permute.xlu0 %5088
      %5090 = vrot.lane.b32.xlu0 %v4898, 32
      %v5091 = vpop.permute.xlu0 %5090
      %5092 = vrot.lane.b32.xlu0 %v4900, 32
      %v5093 = vpop.permute.xlu0 %5092
      %5094 = vrot.lane.b32.xlu0 %v4903, 32
      %v5095 = vpop.permute.xlu0 %5094
      %5096 = vrot.lane.b32.xlu0 %v4905, 32
      %v5097 = vpop.permute.xlu0 %5096
      %5128 = vrot.lane.b32.xlu0 %v4695, 48
      %v5129 = vpop.permute.xlu0 %5128
      %5130 = vrot.lane.b32.xlu0 %v4572, 48
      %v5131 = vpop.permute.xlu0 %5130
      %5132 = vrot.lane.b32.xlu0 %v4694, 48
      %v5133 = vpop.permute.xlu0 %5132
      %5134 = vrot.lane.b32.xlu0 %v4569, 48
      %v5135 = vpop.permute.xlu0 %5134
      %5136 = vrot.lane.b32.xlu0 %v4696, 48
      %v5137 = vpop.permute.xlu0 %5136
      %5138 = vrot.lane.b32.xlu0 %v4575, 48
      %v5139 = vpop.permute.xlu0 %5138
      %5140 = vrot.lane.b32.xlu0 %v4697, 48
      %v5141 = vpop.permute.xlu0 %5140
      %5142 = vrot.lane.b32.xlu0 %v4578, 48
      %v5143 = vpop.permute.xlu0 %5142
      %5144 = vrot.lane.b32.xlu0 %v4698, 48
      %v5145 = vpop.permute.xlu0 %5144
      %5146 = vrot.lane.b32.xlu0 %v4581, 48
      %v5147 = vpop.permute.xlu0 %5146
      %5148 = vrot.lane.b32.xlu0 %v4699, 48
      %v5149 = vpop.permute.xlu0 %5148
      %5150 = vrot.lane.b32.xlu0 %v4584, 48
      %v5151 = vpop.permute.xlu0 %5150
      %5152 = vrot.lane.b32.xlu0 %v4700, 48
      %v5153 = vpop.permute.xlu0 %5152
      %5154 = vrot.lane.b32.xlu0 %v4587, 48
      %v5155 = vpop.permute.xlu0 %5154
      %5156 = vrot.lane.b32.xlu0 %v4701, 48
      %v5157 = vpop.permute.xlu0 %5156
      %5158 = vrot.lane.b32.xlu0 %v4590, 48
      %v5159 = vpop.permute.xlu0 %5158
      %5160 = vrot.lane.b32.xlu0 %v4702, 48
      %v5161 = vpop.permute.xlu0 %5160
      %5162 = vrot.lane.b32.xlu0 %v4593, 48
      %v5163 = vpop.permute.xlu0 %5162
      %5164 = vrot.lane.b32.xlu0 %v4703, 48
      %v5165 = vpop.permute.xlu0 %5164
      %5166 = vrot.lane.b32.xlu0 %v4596, 48
      %v5167 = vpop.permute.xlu0 %5166
      %5168 = vrot.lane.b32.xlu0 %v4704, 48
      %v5169 = vpop.permute.xlu0 %5168
      %5170 = vrot.lane.b32.xlu0 %v4599, 48
      %v5171 = vpop.permute.xlu0 %5170
      %5172 = vrot.lane.b32.xlu0 %v4705, 48
      %v5173 = vpop.permute.xlu0 %5172
      %5174 = vrot.lane.b32.xlu0 %v4602, 48
      %v5175 = vpop.permute.xlu0 %5174
      %5176 = vrot.lane.b32.xlu0 %v4706, 48
      %v5177 = vpop.permute.xlu0 %5176
      %5178 = vrot.lane.b32.xlu0 %v4605, 48
      %v5179 = vpop.permute.xlu0 %5178
      %5180 = vrot.lane.b32.xlu0 %v4707, 48
      %v5181 = vpop.permute.xlu0 %5180
      %5182 = vrot.lane.b32.xlu0 %v4608, 48
      %v5183 = vpop.permute.xlu0 %5182
      %5184 = vrot.lane.b32.xlu0 %v4708, 48
      %v5185 = vpop.permute.xlu0 %5184
      %5186 = vrot.lane.b32.xlu0 %v4611, 48
      %v5187 = vpop.permute.xlu0 %5186
      %5188 = vrot.lane.b32.xlu0 %v4709, 48
      %v5189 = vpop.permute.xlu0 %5188
      %5190 = vrot.lane.b32.xlu0 %v4614, 48
      %v5191 = vpop.permute.xlu0 %5190
      %5224 = vrot.lane.b32.xlu0 %v4763, 64
      %v5225 = vpop.permute.xlu0 %5224
      %5226 = vrot.lane.b32.xlu0 %v4765, 64
      %v5227 = vpop.permute.xlu0 %5226
      %5228 = vrot.lane.b32.xlu0 %v4758, 64
      %v5229 = vpop.permute.xlu0 %5228
      %5230 = vrot.lane.b32.xlu0 %v4760, 64
      %v5231 = vpop.permute.xlu0 %5230
      %5232 = vrot.lane.b32.xlu0 %v4768, 64
      %v5233 = vpop.permute.xlu0 %5232
      %5234 = vrot.lane.b32.xlu0 %v4770, 64
      %v5235 = vpop.permute.xlu0 %5234
      %5236 = vrot.lane.b32.xlu0 %v4773, 64
      %v5237 = vpop.permute.xlu0 %5236
      %5238 = vrot.lane.b32.xlu0 %v4775, 64
      %v5239 = vpop.permute.xlu0 %5238
      %5240 = vrot.lane.b32.xlu0 %v4778, 64
      %v5241 = vpop.permute.xlu0 %5240
      %5242 = vrot.lane.b32.xlu0 %v4780, 64
      %v5243 = vpop.permute.xlu0 %5242
      %5244 = vrot.lane.b32.xlu0 %v4783, 64
      %v5245 = vpop.permute.xlu0 %5244
      %5246 = vrot.lane.b32.xlu0 %v4785, 64
      %v5247 = vpop.permute.xlu0 %5246
      %5248 = vrot.lane.b32.xlu0 %v4788, 64
      %v5249 = vpop.permute.xlu0 %5248
      %5250 = vrot.lane.b32.xlu0 %v4790, 64
      %v5251 = vpop.permute.xlu0 %5250
      %5252 = vrot.lane.b32.xlu0 %v4793, 64
      %v5253 = vpop.permute.xlu0 %5252
      %5254 = vrot.lane.b32.xlu0 %v4795, 64
      %v5255 = vpop.permute.xlu0 %5254
      %5256 = vrot.lane.b32.xlu0 %v4798, 64
      %v5257 = vpop.permute.xlu0 %5256
      %5258 = vrot.lane.b32.xlu0 %v4800, 64
      %v5259 = vpop.permute.xlu0 %5258
      %5260 = vrot.lane.b32.xlu0 %v4803, 64
      %v5261 = vpop.permute.xlu0 %5260
      %5262 = vrot.lane.b32.xlu0 %v4805, 64
      %v5263 = vpop.permute.xlu0 %5262
      %5264 = vrot.lane.b32.xlu0 %v4808, 64
      %v5265 = vpop.permute.xlu0 %5264
      %5266 = vrot.lane.b32.xlu0 %v4810, 64
      %v5267 = vpop.permute.xlu0 %5266
      %5268 = vrot.lane.b32.xlu0 %v4813, 64
      %v5269 = vpop.permute.xlu0 %5268
      %5270 = vrot.lane.b32.xlu0 %v4815, 64
      %v5271 = vpop.permute.xlu0 %5270
      %5272 = vrot.lane.b32.xlu0 %v4818, 64
      %v5273 = vpop.permute.xlu0 %5272
      %5274 = vrot.lane.b32.xlu0 %v4820, 64
      %v5275 = vpop.permute.xlu0 %5274
      %5276 = vrot.lane.b32.xlu0 %v4823, 64
      %v5277 = vpop.permute.xlu0 %5276
      %5278 = vrot.lane.b32.xlu0 %v4825, 64
      %v5279 = vpop.permute.xlu0 %5278
      %5280 = vrot.lane.b32.xlu0 %v4828, 64
      %v5281 = vpop.permute.xlu0 %5280
      %5282 = vrot.lane.b32.xlu0 %v4830, 64
      %v5283 = vpop.permute.xlu0 %5282
      %5284 = vrot.lane.b32.xlu0 %v4910, 64
      %v5285 = vpop.permute.xlu0 %5284
      %5286 = vrot.lane.b32.xlu0 %v4912, 64
      %v5287 = vpop.permute.xlu0 %5286
      %5320 = vrot.lane.b32.xlu0 %v4838, 80
      %v5321 = vpop.permute.xlu0 %5320
      %5322 = vrot.lane.b32.xlu0 %v4840, 80
      %v5323 = vpop.permute.xlu0 %5322
      %5324 = vrot.lane.b32.xlu0 %v4833, 80
      %v5325 = vpop.permute.xlu0 %5324
      %5326 = vrot.lane.b32.xlu0 %v4835, 80
      %v5327 = vpop.permute.xlu0 %5326
      %5328 = vrot.lane.b32.xlu0 %v4843, 80
      %v5329 = vpop.permute.xlu0 %5328
      %5330 = vrot.lane.b32.xlu0 %v4845, 80
      %v5331 = vpop.permute.xlu0 %5330
      %5332 = vrot.lane.b32.xlu0 %v4848, 80
      %v5333 = vpop.permute.xlu0 %5332
      %5334 = vrot.lane.b32.xlu0 %v4850, 80
      %v5335 = vpop.permute.xlu0 %5334
      %5336 = vrot.lane.b32.xlu0 %v4853, 80
      %v5337 = vpop.permute.xlu0 %5336
      %5338 = vrot.lane.b32.xlu0 %v4855, 80
      %v5339 = vpop.permute.xlu0 %5338
      %5340 = vrot.lane.b32.xlu0 %v4858, 80
      %v5341 = vpop.permute.xlu0 %5340
      %5342 = vrot.lane.b32.xlu0 %v4860, 80
      %v5343 = vpop.permute.xlu0 %5342
      %5344 = vrot.lane.b32.xlu0 %v4863, 80
      %v5345 = vpop.permute.xlu0 %5344
      %5346 = vrot.lane.b32.xlu0 %v4865, 80
      %v5347 = vpop.permute.xlu0 %5346
      %5348 = vrot.lane.b32.xlu0 %v4868, 80
      %v5349 = vpop.permute.xlu0 %5348
      %5350 = vrot.lane.b32.xlu0 %v4870, 80
      %v5351 = vpop.permute.xlu0 %5350
      %5352 = vrot.lane.b32.xlu0 %v4873, 80
      %v5353 = vpop.permute.xlu0 %5352
      %5354 = vrot.lane.b32.xlu0 %v4875, 80
      %v5355 = vpop.permute.xlu0 %5354
      %5356 = vrot.lane.b32.xlu0 %v4878, 80
      %v5357 = vpop.permute.xlu0 %5356
      %5358 = vrot.lane.b32.xlu0 %v4880, 80
      %v5359 = vpop.permute.xlu0 %5358
      %5360 = vrot.lane.b32.xlu0 %v4883, 80
      %v5361 = vpop.permute.xlu0 %5360
      %5362 = vrot.lane.b32.xlu0 %v4885, 80
      %v5363 = vpop.permute.xlu0 %5362
      %5364 = vrot.lane.b32.xlu0 %v4888, 80
      %v5365 = vpop.permute.xlu0 %5364
      %5366 = vrot.lane.b32.xlu0 %v4890, 80
      %v5367 = vpop.permute.xlu0 %5366
      %5368 = vrot.lane.b32.xlu0 %v4893, 80
      %v5369 = vpop.permute.xlu0 %5368
      %5370 = vrot.lane.b32.xlu0 %v4895, 80
      %v5371 = vpop.permute.xlu0 %5370
      %5372 = vrot.lane.b32.xlu0 %v4898, 80
      %v5373 = vpop.permute.xlu0 %5372
      %5374 = vrot.lane.b32.xlu0 %v4900, 80
      %v5375 = vpop.permute.xlu0 %5374
      %5376 = vrot.lane.b32.xlu0 %v4903, 80
      %v5377 = vpop.permute.xlu0 %5376
      %5378 = vrot.lane.b32.xlu0 %v4905, 80
      %v5379 = vpop.permute.xlu0 %5378
      %5380 = vrot.lane.b32.xlu0 %v4915, 80
      %v5381 = vpop.permute.xlu0 %5380
      %5382 = vrot.lane.b32.xlu0 %v4917, 80
      %v5383 = vpop.permute.xlu0 %5382
      %5416 = vrot.lane.b32.xlu0 %v4694, 96
      %v5417 = vpop.permute.xlu0 %5416
      %5418 = vrot.lane.b32.xlu0 %v4569, 96
      %v5419 = vpop.permute.xlu0 %5418
      %5420 = vrot.lane.b32.xlu0 %v4696, 96
      %v5421 = vpop.permute.xlu0 %5420
      %5422 = vrot.lane.b32.xlu0 %v4575, 96
      %v5423 = vpop.permute.xlu0 %5422
      %5424 = vrot.lane.b32.xlu0 %v4697, 96
      %v5425 = vpop.permute.xlu0 %5424
      %5426 = vrot.lane.b32.xlu0 %v4578, 96
      %v5427 = vpop.permute.xlu0 %5426
      %5428 = vrot.lane.b32.xlu0 %v4698, 96
      %v5429 = vpop.permute.xlu0 %5428
      %5430 = vrot.lane.b32.xlu0 %v4581, 96
      %v5431 = vpop.permute.xlu0 %5430
      %5432 = vrot.lane.b32.xlu0 %v4699, 96
      %v5433 = vpop.permute.xlu0 %5432
      %5434 = vrot.lane.b32.xlu0 %v4584, 96
      %v5435 = vpop.permute.xlu0 %5434
      %5436 = vrot.lane.b32.xlu0 %v4700, 96
      %v5437 = vpop.permute.xlu0 %5436
      %5438 = vrot.lane.b32.xlu0 %v4587, 96
      %v5439 = vpop.permute.xlu0 %5438
      %5440 = vrot.lane.b32.xlu0 %v4701, 96
      %v5441 = vpop.permute.xlu0 %5440
      %5442 = vrot.lane.b32.xlu0 %v4590, 96
      %v5443 = vpop.permute.xlu0 %5442
      %5444 = vrot.lane.b32.xlu0 %v4702, 96
      %v5445 = vpop.permute.xlu0 %5444
      %5446 = vrot.lane.b32.xlu0 %v4593, 96
      %v5447 = vpop.permute.xlu0 %5446
      %5448 = vrot.lane.b32.xlu0 %v4703, 96
      %v5449 = vpop.permute.xlu0 %5448
      %5450 = vrot.lane.b32.xlu0 %v4596, 96
      %v5451 = vpop.permute.xlu0 %5450
      %5452 = vrot.lane.b32.xlu0 %v4704, 96
      %v5453 = vpop.permute.xlu0 %5452
      %5454 = vrot.lane.b32.xlu0 %v4599, 96
      %v5455 = vpop.permute.xlu0 %5454
      %5456 = vrot.lane.b32.xlu0 %v4705, 96
      %v5457 = vpop.permute.xlu0 %5456
      %5458 = vrot.lane.b32.xlu0 %v4602, 96
      %v5459 = vpop.permute.xlu0 %5458
      %5460 = vrot.lane.b32.xlu0 %v4706, 96
      %v5461 = vpop.permute.xlu0 %5460
      %5462 = vrot.lane.b32.xlu0 %v4605, 96
      %v5463 = vpop.permute.xlu0 %5462
      %5464 = vrot.lane.b32.xlu0 %v4707, 96
      %v5465 = vpop.permute.xlu0 %5464
      %5466 = vrot.lane.b32.xlu0 %v4608, 96
      %v5467 = vpop.permute.xlu0 %5466
      %5468 = vrot.lane.b32.xlu0 %v4708, 96
      %v5469 = vpop.permute.xlu0 %5468
      %5470 = vrot.lane.b32.xlu0 %v4611, 96
      %v5471 = vpop.permute.xlu0 %5470
      %5472 = vrot.lane.b32.xlu0 %v4709, 96
      %v5473 = vpop.permute.xlu0 %5472
      %5474 = vrot.lane.b32.xlu0 %v4614, 96
      %v5475 = vpop.permute.xlu0 %5474
      %5506 = vrot.lane.b32.xlu0 %v4758, 112
      %v5507 = vpop.permute.xlu0 %5506
      %5508 = vrot.lane.b32.xlu0 %v4760, 112
      %v5509 = vpop.permute.xlu0 %5508
      %5510 = vrot.lane.b32.xlu0 %v4768, 112
      %v5511 = vpop.permute.xlu0 %5510
      %5512 = vrot.lane.b32.xlu0 %v4770, 112
      %v5513 = vpop.permute.xlu0 %5512
      %5514 = vrot.lane.b32.xlu0 %v4773, 112
      %v5515 = vpop.permute.xlu0 %5514
      %5516 = vrot.lane.b32.xlu0 %v4775, 112
      %v5517 = vpop.permute.xlu0 %5516
      %5518 = vrot.lane.b32.xlu0 %v4778, 112
      %v5519 = vpop.permute.xlu0 %5518
      %5520 = vrot.lane.b32.xlu0 %v4780, 112
      %v5521 = vpop.permute.xlu0 %5520
      %5522 = vrot.lane.b32.xlu0 %v4783, 112
      %v5523 = vpop.permute.xlu0 %5522
      %5524 = vrot.lane.b32.xlu0 %v4785, 112
      %v5525 = vpop.permute.xlu0 %5524
      %5526 = vrot.lane.b32.xlu0 %v4788, 112
      %v5527 = vpop.permute.xlu0 %5526
      %5528 = vrot.lane.b32.xlu0 %v4790, 112
      %v5529 = vpop.permute.xlu0 %5528
      %5530 = vrot.lane.b32.xlu0 %v4793, 112
      %v5531 = vpop.permute.xlu0 %5530
      %5532 = vrot.lane.b32.xlu0 %v4795, 112
      %v5533 = vpop.permute.xlu0 %5532
      %5534 = vrot.lane.b32.xlu0 %v4798, 112
      %v5535 = vpop.permute.xlu0 %5534
      %5536 = vrot.lane.b32.xlu0 %v4800, 112
      %v5537 = vpop.permute.xlu0 %5536
      %5538 = vrot.lane.b32.xlu0 %v4803, 112
      %v5539 = vpop.permute.xlu0 %5538
      %5540 = vrot.lane.b32.xlu0 %v4805, 112
      %v5541 = vpop.permute.xlu0 %5540
      %5542 = vrot.lane.b32.xlu0 %v4808, 112
      %v5543 = vpop.permute.xlu0 %5542
      %5544 = vrot.lane.b32.xlu0 %v4810, 112
      %v5545 = vpop.permute.xlu0 %5544
      %5546 = vrot.lane.b32.xlu0 %v4813, 112
      %v5547 = vpop.permute.xlu0 %5546
      %5548 = vrot.lane.b32.xlu0 %v4815, 112
      %v5549 = vpop.permute.xlu0 %5548
      %5550 = vrot.lane.b32.xlu0 %v4818, 112
      %v5551 = vpop.permute.xlu0 %5550
      %5552 = vrot.lane.b32.xlu0 %v4820, 112
      %v5553 = vpop.permute.xlu0 %5552
      %5554 = vrot.lane.b32.xlu0 %v4823, 112
      %v5555 = vpop.permute.xlu0 %5554
      %5556 = vrot.lane.b32.xlu0 %v4825, 112
      %v5557 = vpop.permute.xlu0 %5556
      %5558 = vrot.lane.b32.xlu0 %v4828, 112
      %v5559 = vpop.permute.xlu0 %5558
      %5560 = vrot.lane.b32.xlu0 %v4830, 112
      %v5561 = vpop.permute.xlu0 %5560
      %5562 = vrot.lane.b32.xlu0 %v4910, 112
      %v5563 = vpop.permute.xlu0 %5562
      %5564 = vrot.lane.b32.xlu0 %v4912, 112
      %v5565 = vpop.permute.xlu0 %5564
      %v5596 = vsel %vm3662, %v4694, %v4949
      %v5597 = vsel %vm3662, %v4569, %v4951
      %v5598 = vsel %vm3662, %v4695, %v4953
      %v5599 = vsel %vm3662, %v4572, %v4955
      %v5600 = vsel %vm3662, %v4696, %v4957
      %v5601 = vsel %vm3662, %v4575, %v4959
      %v5602 = vsel %vm3662, %v4697, %v4961
      %v5603 = vsel %vm3662, %v4578, %v4963
      %v5604 = vsel %vm3662, %v4698, %v4965
      %v5605 = vsel %vm3662, %v4581, %v4967
      %v5606 = vsel %vm3662, %v4699, %v4969
      %v5607 = vsel %vm3662, %v4584, %v4971
      %v5608 = vsel %vm3662, %v4700, %v4973
      %v5609 = vsel %vm3662, %v4587, %v4975
      %v5610 = vsel %vm3662, %v4701, %v4977
      %v5611 = vsel %vm3662, %v4590, %v4979
      %v5612 = vsel %vm3662, %v4702, %v4981
      %v5613 = vsel %vm3662, %v4593, %v4983
      %v5614 = vsel %vm3662, %v4703, %v4985
      %v5615 = vsel %vm3662, %v4596, %v4987
      %v5616 = vsel %vm3662, %v4704, %v4989
      %v5617 = vsel %vm3662, %v4599, %v4991
      %v5618 = vsel %vm3662, %v4705, %v4993
      %v5619 = vsel %vm3662, %v4602, %v4995
      %v5620 = vsel %vm3662, %v4706, %v4997
      %v5621 = vsel %vm3662, %v4605, %v4999
      %v5622 = vsel %vm3662, %v4707, %v5001
      %v5623 = vsel %vm3662, %v4608, %v5003
      %v5624 = vsel %vm3662, %v4708, %v5005
      %v5625 = vsel %vm3662, %v4611, %v5007
      %v5626 = vsel %vm3726, %v5596, %v5039
      %v5627 = vsel %vm3726, %v5597, %v5041
      %v5628 = vsel %vm3726, %v5598, %v5043
      %v5629 = vsel %vm3726, %v5599, %v5045
      %v5630 = vsel %vm3726, %v5600, %v5047
      %v5631 = vsel %vm3726, %v5601, %v5049
      %v5632 = vsel %vm3726, %v5602, %v5051
      %v5633 = vsel %vm3726, %v5603, %v5053
      %v5634 = vsel %vm3726, %v5604, %v5055
      %v5635 = vsel %vm3726, %v5605, %v5057
      %v5636 = vsel %vm3726, %v5606, %v5059
      %v5637 = vsel %vm3726, %v5607, %v5061
      %v5638 = vsel %vm3726, %v5608, %v5063
      %v5639 = vsel %vm3726, %v5609, %v5065
      %v5640 = vsel %vm3726, %v5610, %v5067
      %v5641 = vsel %vm3726, %v5611, %v5069
      %v5642 = vsel %vm3726, %v5612, %v5071
      %v5643 = vsel %vm3726, %v5613, %v5073
      %v5644 = vsel %vm3726, %v5614, %v5075
      %v5645 = vsel %vm3726, %v5615, %v5077
      %v5646 = vsel %vm3726, %v5616, %v5079
      %v5647 = vsel %vm3726, %v5617, %v5081
      %v5648 = vsel %vm3726, %v5618, %v5083
      %v5649 = vsel %vm3726, %v5619, %v5085
      %v5650 = vsel %vm3726, %v5620, %v5087
      %v5651 = vsel %vm3726, %v5621, %v5089
      %v5652 = vsel %vm3726, %v5622, %v5091
      %v5653 = vsel %vm3726, %v5623, %v5093
      %v5654 = vsel %vm3726, %v5624, %v5095
      %v5655 = vsel %vm3726, %v5625, %v5097
      %v5656 = vsel %vm3791, %v5626, %v5129
      %v5657 = vsel %vm3791, %v5627, %v5131
      %v5658 = vsel %vm3791, %v5628, %v5133
      %v5659 = vsel %vm3791, %v5629, %v5135
      %v5660 = vsel %vm3791, %v5626, %v5137
      %v5661 = vsel %vm3791, %v5627, %v5139
      %v5662 = vsel %vm3791, %v5630, %v5141
      %v5663 = vsel %vm3791, %v5631, %v5143
      %v5664 = vsel %vm3791, %v5632, %v5145
      %v5665 = vsel %vm3791, %v5633, %v5147
      %v5666 = vsel %vm3791, %v5634, %v5149
      %v5667 = vsel %vm3791, %v5635, %v5151
      %v5668 = vsel %vm3791, %v5636, %v5153
      %v5669 = vsel %vm3791, %v5637, %v5155
      %v5670 = vsel %vm3791, %v5638, %v5157
      %v5671 = vsel %vm3791, %v5639, %v5159
      %v5672 = vsel %vm3791, %v5640, %v5161
      %v5673 = vsel %vm3791, %v5641, %v5163
      %v5674 = vsel %vm3791, %v5642, %v5165
      %v5675 = vsel %vm3791, %v5643, %v5167
      %v5676 = vsel %vm3791, %v5644, %v5169
      %v5677 = vsel %vm3791, %v5645, %v5171
      %v5678 = vsel %vm3791, %v5646, %v5173
      %v5679 = vsel %vm3791, %v5647, %v5175
      %v5680 = vsel %vm3791, %v5648, %v5177
      %v5681 = vsel %vm3791, %v5649, %v5179
      %v5682 = vsel %vm3791, %v5650, %v5181
      %v5683 = vsel %vm3791, %v5651, %v5183
      %v5684 = vsel %vm3791, %v5652, %v5185
      %v5685 = vsel %vm3791, %v5653, %v5187
      %v5686 = vsel %vm3791, %v5654, %v5189
      %v5687 = vsel %vm3791, %v5655, %v5191
      %v5688 = vsel %vm3857, %v5656, %v5225
      %v5689 = vsel %vm3857, %v5657, %v5227
      %v5690 = vsel %vm3857, %v5658, %v5229
      %v5691 = vsel %vm3857, %v5659, %v5231
      %v5692 = vsel %vm3857, %v5660, %v5233
      %v5693 = vsel %vm3857, %v5661, %v5235
      %v5694 = vsel %vm3857, %v5662, %v5237
      %v5695 = vsel %vm3857, %v5663, %v5239
      %v5696 = vsel %vm3857, %v5664, %v5241
      %v5697 = vsel %vm3857, %v5665, %v5243
      %v5698 = vsel %vm3857, %v5666, %v5245
      %v5699 = vsel %vm3857, %v5667, %v5247
      %v5700 = vsel %vm3857, %v5668, %v5249
      %v5701 = vsel %vm3857, %v5669, %v5251
      %v5702 = vsel %vm3857, %v5670, %v5253
      %v5703 = vsel %vm3857, %v5671, %v5255
      %v5704 = vsel %vm3857, %v5672, %v5257
      %v5705 = vsel %vm3857, %v5673, %v5259
      %v5706 = vsel %vm3857, %v5674, %v5261
      %v5707 = vsel %vm3857, %v5675, %v5263
      %v5708 = vsel %vm3857, %v5676, %v5265
      %v5709 = vsel %vm3857, %v5677, %v5267
      %v5710 = vsel %vm3857, %v5678, %v5269
      %v5711 = vsel %vm3857, %v5679, %v5271
      %v5712 = vsel %vm3857, %v5680, %v5273
      %v5713 = vsel %vm3857, %v5681, %v5275
      %v5714 = vsel %vm3857, %v5682, %v5277
      %v5715 = vsel %vm3857, %v5683, %v5279
      %v5716 = vsel %vm3857, %v5684, %v5281
      %v5717 = vsel %vm3857, %v5685, %v5283
      %v5718 = vsel %vm3857, %v5686, %v5285
      %v5719 = vsel %vm3857, %v5687, %v5287
      %vm5720 = vcmask 654336
      %v5721 = vsel %vm5720, %v5688, %v5321
      %v5722 = vsel %vm5720, %v5689, %v5323
      %v5723 = vsel %vm5720, %v5690, %v5325
      %v5724 = vsel %vm5720, %v5691, %v5327
      %v5725 = vsel %vm5720, %v5692, %v5329
      %v5726 = vsel %vm5720, %v5693, %v5331
      %v5727 = vsel %vm5720, %v5694, %v5333
      %v5728 = vsel %vm5720, %v5695, %v5335
      %v5729 = vsel %vm5720, %v5696, %v5337
      %v5730 = vsel %vm5720, %v5697, %v5339
      %v5731 = vsel %vm5720, %v5698, %v5341
      %v5732 = vsel %vm5720, %v5699, %v5343
      %v5733 = vsel %vm5720, %v5700, %v5345
      %v5734 = vsel %vm5720, %v5701, %v5347
      %v5735 = vsel %vm5720, %v5702, %v5349
      %v5736 = vsel %vm5720, %v5703, %v5351
      %v5737 = vsel %vm5720, %v5704, %v5353
      %v5738 = vsel %vm5720, %v5705, %v5355
      %v5739 = vsel %vm5720, %v5706, %v5357
      %v5740 = vsel %vm5720, %v5707, %v5359
      %v5741 = vsel %vm5720, %v5708, %v5361
      %v5742 = vsel %vm5720, %v5709, %v5363
      %v5743 = vsel %vm5720, %v5710, %v5365
      %v5744 = vsel %vm5720, %v5711, %v5367
      %v5745 = vsel %vm5720, %v5712, %v5369
      %v5746 = vsel %vm5720, %v5713, %v5371
      %v5747 = vsel %vm5720, %v5714, %v5373
      %v5748 = vsel %vm5720, %v5715, %v5375
      %v5749 = vsel %vm5720, %v5716, %v5377
      %v5750 = vsel %vm5720, %v5717, %v5379
      %v5751 = vsel %vm5720, %v5718, %v5381
      %v5752 = vsel %vm5720, %v5719, %v5383
      %vm5753 = vcmask 785408
      %v5754 = vsel %vm5753, %v5721, %v5417
      %v5755 = vsel %vm5753, %v5722, %v5419
      %v5756 = vsel %vm5753, %v5723, %v5421
      %v5757 = vsel %vm5753, %v5724, %v5423
      %v5758 = vsel %vm5753, %v5725, %v5425
      %v5759 = vsel %vm5753, %v5726, %v5427
      %v5760 = vsel %vm5753, %v5727, %v5429
      %v5761 = vsel %vm5753, %v5728, %v5431
      %v5762 = vsel %vm5753, %v5729, %v5433
      %v5763 = vsel %vm5753, %v5730, %v5435
      %v5764 = vsel %vm5753, %v5731, %v5437
      %v5765 = vsel %vm5753, %v5732, %v5439
      %v5766 = vsel %vm5753, %v5733, %v5441
      %v5767 = vsel %vm5753, %v5734, %v5443
      %v5768 = vsel %vm5753, %v5735, %v5445
      %v5769 = vsel %vm5753, %v5736, %v5447
      %v5770 = vsel %vm5753, %v5737, %v5449
      %v5771 = vsel %vm5753, %v5738, %v5451
      %v5772 = vsel %vm5753, %v5739, %v5453
      %v5773 = vsel %vm5753, %v5740, %v5455
      %v5774 = vsel %vm5753, %v5741, %v5457
      %v5775 = vsel %vm5753, %v5742, %v5459
      %v5776 = vsel %vm5753, %v5743, %v5461
      %v5777 = vsel %vm5753, %v5744, %v5463
      %v5778 = vsel %vm5753, %v5745, %v5465
      %v5779 = vsel %vm5753, %v5746, %v5467
      %v5780 = vsel %vm5753, %v5747, %v5469
      %v5781 = vsel %vm5753, %v5748, %v5471
      %v5782 = vsel %vm5753, %v5749, %v5473
      %v5783 = vsel %vm5753, %v5750, %v5475
      %v5784 = vsel %vm5753, %v5751, %v5469
      %v5785 = vsel %vm5753, %v5752, %v5471
      %vm5786 = vcmask 916480
      %v5787 = vsel %vm5786, %v5754, %v5507
      %v5788 = vsel %vm5786, %v5755, %v5509
      %v5789 = vsel %vm5786, %v5756, %v5511
      %v5790 = vsel %vm5786, %v5757, %v5513
      %v5791 = vsel %vm5786, %v5758, %v5515
      %v5792 = vsel %vm5786, %v5759, %v5517
      %v5793 = vsel %vm5786, %v5760, %v5519
      %v5794 = vsel %vm5786, %v5761, %v5521
      %v5795 = vsel %vm5786, %v5762, %v5523
      %v5796 = vsel %vm5786, %v5763, %v5525
      %v5797 = vsel %vm5786, %v5764, %v5527
      %v5798 = vsel %vm5786, %v5765, %v5529
      %v5799 = vsel %vm5786, %v5766, %v5531
      %v5800 = vsel %vm5786, %v5767, %v5533
      %v5801 = vsel %vm5786, %v5768, %v5535
      %v5802 = vsel %vm5786, %v5769, %v5537
      %v5803 = vsel %vm5786, %v5770, %v5539
      %v5804 = vsel %vm5786, %v5771, %v5541
      %v5805 = vsel %vm5786, %v5772, %v5543
      %v5806 = vsel %vm5786, %v5773, %v5545
      %v5807 = vsel %vm5786, %v5774, %v5547
      %v5808 = vsel %vm5786, %v5775, %v5549
      %v5809 = vsel %vm5786, %v5776, %v5551
      %v5810 = vsel %vm5786, %v5777, %v5553
      %v5811 = vsel %vm5786, %v5778, %v5555
      %v5812 = vsel %vm5786, %v5779, %v5557
      %v5813 = vsel %vm5786, %v5780, %v5559
      %v5814 = vsel %vm5786, %v5781, %v5561
      %v5815 = vsel %vm5786, %v5782, %v5563
      %v5816 = vsel %vm5786, %v5783, %v5565
      %v5817 = vsel %vm5786, %v5784, %v5559
      %v5818 = vsel %vm5786, %v5785, %v5561
      %v5819 = vpack.c.bf16 %v5788, %v5787
      %v5820 = vpack.c.bf16 %v4835, %v4833
      %v5821 = vpack.c.bf16 %v5790, %v5789
      %v5822 = vpack.c.bf16 %v4845, %v4843
      %v5823 = vpack.c.bf16 %v5792, %v5791
      %v5824 = vpack.c.bf16 %v4850, %v4848
      %v5825 = vpack.c.bf16 %v5794, %v5793
      %v5826 = vpack.c.bf16 %v4855, %v4853
      %v5827 = vpack.c.bf16 %v5796, %v5795
      %v5828 = vpack.c.bf16 %v4860, %v4858
      %v5829 = vpack.c.bf16 %v5798, %v5797
      %v5830 = vpack.c.bf16 %v4865, %v4863
      %v5831 = vpack.c.bf16 %v5800, %v5799
      %v5832 = vpack.c.bf16 %v4870, %v4868
      %v5833 = vpack.c.bf16 %v5802, %v5801
      %v5834 = vpack.c.bf16 %v4875, %v4873
      %v5835 = vpack.c.bf16 %v5804, %v5803
      %v5836 = vpack.c.bf16 %v4880, %v4878
      %v5837 = vpack.c.bf16 %v5806, %v5805
      %v5838 = vpack.c.bf16 %v4885, %v4883
      %v5839 = vpack.c.bf16 %v5808, %v5807
      %v5840 = vpack.c.bf16 %v4890, %v4888
      %v5841 = vpack.c.bf16 %v5810, %v5809
      %v5842 = vpack.c.bf16 %v4895, %v4893
      %v5843 = vpack.c.bf16 %v5812, %v5811
      %v5844 = vpack.c.bf16 %v4900, %v4898
      %v5845 = vpack.c.bf16 %v5814, %v5813
      %v5846 = vpack.c.bf16 %v4905, %v4903
      %v5847 = vpack.c.bf16 %v5816, %v5815
      %v5848 = vpack.c.bf16 %v4917, %v4915
      %v5849 = vpack.c.bf16 %v5818, %v5817
      %v5850 = vld [vmem:[%s5] sm:$0xf]
      %v5851 = vld [vmem:[%s5 + $0x4] sm:$0xf]
      %v5852 = vld [vmem:[%s5 + $0x8] sm:$0xf]
      %v5853 = vld [vmem:[%s5 + $0xc] sm:$0xf]
      %v5854 = vld [vmem:[%s5 + $0x10] sm:$0xf]
      %v5855 = vld [vmem:[%s5 + $0x14] sm:$0xf]
      %v5856 = vld [vmem:[%s5 + $0x18] sm:$0xf]
      %v5857 = vld [vmem:[%s5 + $0x1c] sm:$0xf]
      %v5858 = vld [vmem:[%s5 + $0x20] sm:$0xf]
      %v5859 = vld [vmem:[%s5 + $0x24] sm:$0xf]
      %v5860 = vld [vmem:[%s5 + $0x28] sm:$0xf]
      %v5861 = vld [vmem:[%s5 + $0x2c] sm:$0xf]
      %v5862 = vld [vmem:[%s5 + $0x30] sm:$0xf]
      %v5863 = vld [vmem:[%s5 + $0x34] sm:$0xf]
      %v5864 = vld [vmem:[%s5 + $0x38] sm:$0xf]
      %v5865 = vld [vmem:[%s5 + $0x3c] sm:$0xf]
      %v5866 = vld [vmem:[%s5 + $0x40] sm:$0xf]
      %v5867 = vld [vmem:[%s5 + $0x44] sm:$0xf]
      %v5886 = vunpack.c.l.b16 %v5850
      %v5887 = vunpack.c.l.b16 %v5851
      %v5888 = vunpack.c.l.b16 %v5852
      %v5889 = vunpack.c.l.b16 %v5853
      %v5890 = vunpack.c.l.b16 %v5854
      %v5891 = vunpack.c.l.b16 %v5855
      %v5892 = vunpack.c.l.b16 %v5856
      %v5893 = vunpack.c.l.b16 %v5857
      %v5894 = vunpack.c.l.b16 %v5858
      %v5895 = vunpack.c.l.b16 %v5859
      %v5896 = vunpack.c.l.b16 %v5860
      %v5897 = vunpack.c.l.b16 %v5861
      %v5898 = vunpack.c.l.b16 %v5862
      %v5899 = vunpack.c.l.b16 %v5863
      %v5900 = vunpack.c.l.b16 %v5864
      %v5901 = vunpack.c.l.b16 %v5865
      %v5902 = vunpack.c.l.b16 %v5866
      %v5903 = vunpack.c.l.b16 %v5867
      %v5904 = vpack.c.b16 %v5887, %v5886
      %v5905 = vpack.c.b16 %v5889, %v5888
      %v5906 = vpack.c.b16 %v5891, %v5890
      %v5907 = vpack.c.b16 %v5893, %v5892
      %v5908 = vpack.c.b16 %v5895, %v5894
      %v5909 = vpack.c.b16 %v5897, %v5896
      %v5910 = vpack.c.b16 %v5899, %v5898
      %v5911 = vpack.c.b16 %v5901, %v5900
      %v5912 = vpack.c.b16 %v5903, %v5902
      %v5923 = vsel %vm3662, %v5820, 0
      %v5926 = vsel %vm3662, %v5822, 0
      %v5929 = vsel %vm3662, %v5824, 0
      %v5932 = vsel %vm3662, %v5826, 0
      %v5935 = vsel %vm3662, %v5828, 0
      %v5938 = vsel %vm3662, %v5830, 0
      %v5941 = vsel %vm3662, %v5832, 0
      %v5944 = vsel %vm3662, %v5834, 0
      %v5947 = vsel %vm3662, %v5836, 0
      %v5950 = vsel %vm3662, %v5838, 0
      %v5953 = vsel %vm3662, %v5840, 0
      %v5956 = vsel %vm3662, %v5842, 0
      %v5959 = vsel %vm3662, %v5844, 0
      %v5962 = vsel %vm3662, %v5846, 0
      %v5965 = vsel %vm3662, %v5848, 0
      %5967 = vmatprep.subr.bf16.mxu0 0
      %5968 = vmatpush1.bf16.msra.mxu0 %v5904
      %5969 = vmatprep.subr.bf16.mxu0 0
      %5970 = vmatpush1.bf16.msra.mxu0 %v5905
      %5971 = vmatprep.subr.bf16.mxu0 0
      %5972 = vmatpush1.bf16.msra.mxu0 %v5906
      %5973 = vmatprep.subr.bf16.mxu0 0
      %5974 = vmatpush1.bf16.msra.mxu0 %v5907
      %5975 = vmatprep.subr.bf16.mxu0 0
      %5976 = vmatpush1.bf16.msra.mxu0 %v5908
      %5977 = vmatprep.subr.bf16.mxu0 0
      %5978 = vmatpush1.bf16.msra.mxu0 %v5909
      %5979 = vmatprep.subr.bf16.mxu0 0
      %5980 = vmatpush1.bf16.msra.mxu0 %v5910
      %5981 = vmatprep.subr.bf16.mxu0 0
      %5982 = vmatpush1.bf16.msra.mxu0 %v5911
      %5983 = vmatprep.subr.bf16.mxu0 0
      %5984 = vmatpush1.bf16.msra.mxu0 %v5912
      %5985 = vmatprep.subr.bf16.mxu0 0
      %5986 = vmatpush1.bf16.msra.mxu0 0
      %5987 = vmatprep.subr.bf16.mxu0 0
      %5988 = vmatpush1.bf16.msra.mxu0 0
      %5989 = vmatprep.subr.bf16.mxu0 0
      %5990 = vmatpush1.bf16.msra.mxu0 0
      %5991 = vmatprep.subr.bf16.mxu0 0
      %5992 = vmatpush1.bf16.msra.mxu0 0
      %5993 = vmatprep.subr.bf16.mxu0 0
      %5994 = vmatpush1.bf16.msra.mxu0 0
      %5995 = vmatprep.subr.bf16.mxu0 0
      %5996 = vmatpush1.bf16.msra.mxu0 0
      %5997 = vmatprep.subr.bf16.mxu0 0
      %5998 = vmatpush1.bf16.msra.mxu0 0
      %5999 = vmatprep.mubr.bf16.mxu0 %v5923
      %6000 = vmatmul.mubr.bf16.gmra.mrb[0].mxu0 %v5819
      %v6001 = vpop.f32.mrb[0].mxu0
      %v6002 = vadd.f32 0.0, %v6001
      %v6003 = vpop.f32.mrb[0].mxu0
      %v6004 = vpop.f32.mrb[0].mxu0
      %v6005 = vadd.f32 0.0, %v6004
      %v6006 = vpop.f32.mrb[0].mxu0
      %6007 = vmatprep.mubr.bf16.mxu0 %v5926
      %6008 = vmatmul.mubr.bf16.gmra.mrb[0].mxu0 %v5821
      %v6009 = vpop.f32.mrb[0].mxu0
      %v6010 = vadd.f32 0.0, %v6009
      %v6011 = vpop.f32.mrb[0].mxu0
      %v6012 = vpop.f32.mrb[0].mxu0
      %v6013 = vadd.f32 0.0, %v6012
      %v6014 = vpop.f32.mrb[0].mxu0
      %6015 = vmatprep.mubr.bf16.mxu0 %v5929
      %6016 = vmatmul.mubr.bf16.gmra.mrb[0].mxu0 %v5823
      %v6017 = vpop.f32.mrb[0].mxu0
      %v6018 = vadd.f32 0.0, %v6017
      %v6019 = vpop.f32.mrb[0].mxu0
      %v6020 = vpop.f32.mrb[0].mxu0
      %v6021 = vadd.f32 0.0, %v6020
      %v6022 = vpop.f32.mrb[0].mxu0
      %6023 = vmatprep.mubr.bf16.mxu0 %v5932
      %6024 = vmatmul.mubr.bf16.gmra.mrb[0].mxu0 %v5825
      %v6025 = vpop.f32.mrb[0].mxu0
      %v6026 = vadd.f32 0.0, %v6025
      %v6027 = vpop.f32.mrb[0].mxu0
      %v6028 = vpop.f32.mrb[0].mxu0
      %v6029 = vadd.f32 0.0, %v6028
      %v6030 = vpop.f32.mrb[0].mxu0
      %6031 = vmatprep.mubr.bf16.mxu0 %v5935
      %6032 = vmatmul.mubr.bf16.gmra.mrb[0].mxu0 %v5827
      %v6033 = vpop.f32.mrb[0].mxu0
      %v6034 = vadd.f32 0.0, %v6033
      %v6035 = vpop.f32.mrb[0].mxu0
      %v6036 = vpop.f32.mrb[0].mxu0
      %v6037 = vadd.f32 0.0, %v6036
      %v6038 = vpop.f32.mrb[0].mxu0
      %6039 = vmatprep.mubr.bf16.mxu0 %v5938
      %6040 = vmatmul.mubr.bf16.gmra.mrb[0].mxu0 %v5829
      %v6041 = vpop.f32.mrb[0].mxu0
      %v6042 = vadd.f32 0.0, %v6041
      %v6043 = vpop.f32.mrb[0].mxu0
      %v6044 = vpop.f32.mrb[0].mxu0
      %v6045 = vadd.f32 0.0, %v6044
      %v6046 = vpop.f32.mrb[0].mxu0
      %6047 = vmatprep.mubr.bf16.mxu0 %v5941
      %6048 = vmatmul.mubr.bf16.gmra.mrb[0].mxu0 %v5831
      %v6049 = vpop.f32.mrb[0].mxu0
      %v6050 = vadd.f32 0.0, %v6049
      %v6051 = vpop.f32.mrb[0].mxu0
      %v6052 = vpop.f32.mrb[0].mxu0
      %v6053 = vadd.f32 0.0, %v6052
      %v6054 = vpop.f32.mrb[0].mxu0
      %6055 = vmatprep.mubr.bf16.mxu0 %v5944
      %6056 = vmatmul.mubr.bf16.gmra.mrb[0].mxu0 %v5833
      %v6057 = vpop.f32.mrb[0].mxu0
      %v6058 = vadd.f32 0.0, %v6057
      %v6059 = vpop.f32.mrb[0].mxu0
      %v6060 = vpop.f32.mrb[0].mxu0
      %v6061 = vadd.f32 0.0, %v6060
      %v6062 = vpop.f32.mrb[0].mxu0
      %6063 = vmatprep.mubr.bf16.mxu0 %v5947
      %6064 = vmatmul.mubr.bf16.gmra.mrb[0].mxu0 %v5835
      %v6065 = vpop.f32.mrb[0].mxu0
      %v6066 = vadd.f32 0.0, %v6065
      %v6067 = vpop.f32.mrb[0].mxu0
      %v6068 = vpop.f32.mrb[0].mxu0
      %v6069 = vadd.f32 0.0, %v6068
      %v6070 = vpop.f32.mrb[0].mxu0
      %6071 = vmatprep.mubr.bf16.mxu0 %v5950
      %6072 = vmatmul.mubr.bf16.gmra.mrb[0].mxu0 %v5837
      %v6073 = vpop.f32.mrb[0].mxu0
      %v6074 = vadd.f32 0.0, %v6073
      %v6075 = vpop.f32.mrb[0].mxu0
      %v6076 = vpop.f32.mrb[0].mxu0
      %v6077 = vadd.f32 0.0, %v6076
      %v6078 = vpop.f32.mrb[0].mxu0
      %6079 = vmatprep.mubr.bf16.mxu0 %v5953
      %6080 = vmatmul.mubr.bf16.gmra.mrb[0].mxu0 %v5839
      %v6081 = vpop.f32.mrb[0].mxu0
      %v6082 = vadd.f32 0.0, %v6081
      %v6083 = vpop.f32.mrb[0].mxu0
      %v6084 = vpop.f32.mrb[0].mxu0
      %v6085 = vadd.f32 0.0, %v6084
      %v6086 = vpop.f32.mrb[0].mxu0
      %6087 = vmatprep.mubr.bf16.mxu0 %v5956
      %6088 = vmatmul.mubr.bf16.gmra.mrb[0].mxu0 %v5841
      %v6089 = vpop.f32.mrb[0].mxu0
      %v6090 = vadd.f32 0.0, %v6089
      %v6091 = vpop.f32.mrb[0].mxu0
      %v6092 = vpop.f32.mrb[0].mxu0
      %v6093 = vadd.f32 0.0, %v6092
      %v6094 = vpop.f32.mrb[0].mxu0
      %6095 = vmatprep.mubr.bf16.mxu0 %v5959
      %6096 = vmatmul.mubr.bf16.gmra.mrb[0].mxu0 %v5843
      %v6097 = vpop.f32.mrb[0].mxu0
      %v6098 = vadd.f32 0.0, %v6097
      %v6099 = vpop.f32.mrb[0].mxu0
      %v6100 = vpop.f32.mrb[0].mxu0
      %v6101 = vadd.f32 0.0, %v6100
      %v6102 = vpop.f32.mrb[0].mxu0
      %6103 = vmatprep.mubr.bf16.mxu0 %v5962
      %6104 = vmatmul.mubr.bf16.gmra.mrb[0].mxu0 %v5845
      %v6105 = vpop.f32.mrb[0].mxu0
      %v6106 = vadd.f32 0.0, %v6105
      %v6107 = vpop.f32.mrb[0].mxu0
      %v6108 = vpop.f32.mrb[0].mxu0
      %v6109 = vadd.f32 0.0, %v6108
      %v6110 = vpop.f32.mrb[0].mxu0
      %6111 = vmatprep.mubr.bf16.mxu0 %v5965
      %6112 = vmatmul.mubr.bf16.gmra.mrb[0].mxu0 %v5847
      %v6113 = vpop.f32.mrb[0].mxu0
      %v6114 = vadd.f32 0.0, %v6113
      %v6115 = vpop.f32.mrb[0].mxu0
      %v6116 = vpop.f32.mrb[0].mxu0
      %v6117 = vadd.f32 0.0, %v6116
      %v6118 = vpop.f32.mrb[0].mxu0
      %6119 = vmatprep.mubr.bf16.mxu0 %v5962
      %6120 = vmatmul.mubr.bf16.gmra.mrb[0].mxu0 %v5849
      %v6121 = vpop.f32.mrb[0].mxu0
      %v6122 = vadd.f32 0.0, %v6121
      %v6123 = vpop.f32.mrb[0].mxu0
      %v6124 = vpop.f32.mrb[0].mxu0
      %v6125 = vadd.f32 0.0, %v6124
      %v6126 = vpop.f32.mrb[0].mxu0
      %6127 = vdwg.mxu0
      %v6128 = vsel %vm3726, %v6002, 0.0
      %v6129 = vsel %vm3726, %v6005, 0.0
      %v6130 = vadd.f32 %v6128, %v6129
      %v6131 = vsel %vm3726, %v6010, 0.0
      %v6132 = vadd.f32 %v6130, %v6131
      %v6133 = vsel %vm3726, %v6013, 0.0
      %v6134 = vadd.f32 %v6132, %v6133
      %v6135 = vsel %vm3726, %v6018, 0.0
      %v6136 = vadd.f32 %v6134, %v6135
      %v6137 = vsel %vm3726, %v6021, 0.0
      %v6138 = vadd.f32 %v6136, %v6137
      %v6139 = vsel %vm3726, %v6026, 0.0
      %v6140 = vadd.f32 %v6138, %v6139
      %v6141 = vsel %vm3726, %v6029, 0.0
      %v6142 = vadd.f32 %v6140, %v6141
      %v6143 = vsel %vm3726, %v6034, 0.0
      %v6144 = vadd.f32 %v6142, %v6143
      %v6145 = vsel %vm3726, %v6037, 0.0
      %v6146 = vadd.f32 %v6144, %v6145
      %v6147 = vsel %vm3726, %v6042, 0.0
      %v6148 = vadd.f32 %v6146, %v6147
      %v6149 = vsel %vm3726, %v6045, 0.0
      %v6150 = vadd.f32 %v6148, %v6149
      %v6151 = vsel %vm3726, %v6050, 0.0
      %v6152 = vadd.f32 %v6150, %v6151
      %v6153 = vsel %vm3726, %v6053, 0.0
      %v6154 = vadd.f32 %v6152, %v6153
      %v6155 = vsel %vm3726, %v6058, 0.0
      %v6156 = vadd.f32 %v6154, %v6155
      %v6157 = vsel %vm3726, %v6061, 0.0
      %v6158 = vadd.f32 %v6156, %v6157
      %v6159 = vsel %vm3726, %v6066, 0.0
      %v6160 = vadd.f32 %v6158, %v6159
      %v6161 = vsel %vm3726, %v6069, 0.0
      %v6162 = vadd.f32 %v6160, %v6161
      %v6163 = vsel %vm3726, %v6074, 0.0
      %v6164 = vadd.f32 %v6162, %v6163
      %v6165 = vsel %vm3726, %v6077, 0.0
      %v6166 = vadd.f32 %v6164, %v6165
      %v6167 = vsel %vm3726, %v6082, 0.0
      %v6168 = vadd.f32 %v6166, %v6167
      %v6169 = vsel %vm3726, %v6085, 0.0
      %v6170 = vadd.f32 %v6168, %v6169
      %v6171 = vsel %vm3726, %v6090, 0.0
      %v6172 = vadd.f32 %v6170, %v6171
      %v6173 = vsel %vm3726, %v6093, 0.0
      %v6174 = vadd.f32 %v6172, %v6173
      %v6175 = vsel %vm3726, %v6098, 0.0
      %v6176 = vadd.f32 %v6174, %v6175
      %v6177 = vsel %vm3726, %v6101, 0.0
      %v6178 = vadd.f32 %v6176, %v6177
      %v6179 = vsel %vm3726, %v6106, 0.0
      %v6180 = vadd.f32 %v6178, %v6179
      %v6181 = vsel %vm3726, %v6109, 0.0
      %v6182 = vadd.f32 %v6180, %v6181
      %v6183 = vsel %vm3726, %v6114, 0.0
      %v6184 = vadd.f32 %v6182, %v6183
      %v6185 = vsel %vm3726, %v6117, 0.0
      %v6186 = vadd.f32 %v6184, %v6185
      %v6187 = vsel %vm3726, %v6122, 0.0
      %v6188 = vadd.f32 %v6186, %v6187
      %v6189 = vsel %vm3726, %v6125, 0.0
      %v6190 = vadd.f32 %v6188, %v6189
      %v6191 = vrot.slane %v6190, 4
      %v6192 = vadd.f32 %v6190, %v6191
      %v6193 = vrot.slane %v6192, 2
      %v6194 = vadd.f32 %v6192, %v6193
      %v6195 = vrot.slane %v6194, 1
      %v6196 = vadd.f32 %v6194, %v6195
      %v6197 = vmul.f32 %v6196, %v2200
      %v6198 = vmul.f32 %v6002, %v6002
      %v6199 = vmul.f32 %v6005, %v6005
      %v6200 = vmul.f32 %v6010, %v6010
      %v6201 = vmul.f32 %v6013, %v6013
      %v6202 = vmul.f32 %v6018, %v6018
      %v6203 = vmul.f32 %v6021, %v6021
      %v6204 = vmul.f32 %v6026, %v6026
      %v6205 = vmul.f32 %v6029, %v6029
      %v6206 = vmul.f32 %v6034, %v6034
      %v6207 = vmul.f32 %v6037, %v6037
      %v6208 = vmul.f32 %v6042, %v6042
      %v6209 = vmul.f32 %v6045, %v6045
      %v6210 = vmul.f32 %v6050, %v6050
      %v6211 = vmul.f32 %v6053, %v6053
      %v6212 = vmul.f32 %v6058, %v6058
      %v6213 = vmul.f32 %v6061, %v6061
      %v6214 = vmul.f32 %v6066, %v6066
      %v6215 = vmul.f32 %v6069, %v6069
      %v6216 = vmul.f32 %v6074, %v6074
      %v6217 = vmul.f32 %v6077, %v6077
      %v6218 = vmul.f32 %v6082, %v6082
      %v6219 = vmul.f32 %v6085, %v6085
      %v6220 = vmul.f32 %v6090, %v6090
      %v6221 = vmul.f32 %v6093, %v6093
      %v6222 = vmul.f32 %v6098, %v6098
      %v6223 = vmul.f32 %v6101, %v6101
      %v6224 = vmul.f32 %v6106, %v6106
      %v6225 = vmul.f32 %v6109, %v6109
      %v6226 = vmul.f32 %v6114, %v6114
      %v6227 = vmul.f32 %v6117, %v6117
      %v6228 = vmul.f32 %v6122, %v6122
      %v6229 = vmul.f32 %v6125, %v6125
      %v6230 = vsel %vm3726, %v6198, 0.0
      %v6231 = vsel %vm3726, %v6199, 0.0
      %v6232 = vadd.f32 %v6230, %v6231
      %v6233 = vsel %vm3726, %v6200, 0.0
      %v6234 = vadd.f32 %v6232, %v6233
      %v6235 = vsel %vm3726, %v6201, 0.0
      %v6236 = vadd.f32 %v6234, %v6235
      %v6237 = vsel %vm3726, %v6202, 0.0
      %v6238 = vadd.f32 %v6236, %v6237
      %v6239 = vsel %vm3726, %v6203, 0.0
      %v6240 = vadd.f32 %v6238, %v6239
      %v6241 = vsel %vm3726, %v6204, 0.0
      %v6242 = vadd.f32 %v6240, %v6241
      %v6243 = vsel %vm3726, %v6205, 0.0
      %v6244 = vadd.f32 %v6242, %v6243
      %v6245 = vsel %vm3726, %v6206, 0.0
      %v6246 = vadd.f32 %v6244, %v6245
      %v6247 = vsel %vm3726, %v6207, 0.0
      %v6248 = vadd.f32 %v6246, %v6247
      %v6249 = vsel %vm3726, %v6208, 0.0
      %v6250 = vadd.f32 %v6248, %v6249
      %v6251 = vsel %vm3726, %v6209, 0.0
      %v6252 = vadd.f32 %v6250, %v6251
      %v6253 = vsel %vm3726, %v6210, 0.0
      %v6254 = vadd.f32 %v6252, %v6253
      %v6255 = vsel %vm3726, %v6211, 0.0
      %v6256 = vadd.f32 %v6254, %v6255
      %v6257 = vsel %vm3726, %v6212, 0.0
      %v6258 = vadd.f32 %v6256, %v6257
      %v6259 = vsel %vm3726, %v6213, 0.0
      %v6260 = vadd.f32 %v6258, %v6259
      %v6261 = vsel %vm3726, %v6214, 0.0
      %v6262 = vadd.f32 %v6260, %v6261
      %v6263 = vsel %vm3726, %v6215, 0.0
      %v6264 = vadd.f32 %v6262, %v6263
      %v6265 = vsel %vm3726, %v6216, 0.0
      %v6266 = vadd.f32 %v6264, %v6265
      %v6267 = vsel %vm3726, %v6217, 0.0
      %v6268 = vadd.f32 %v6266, %v6267
      %v6269 = vsel %vm3726, %v6218, 0.0
      %v6270 = vadd.f32 %v6268, %v6269
      %v6271 = vsel %vm3726, %v6219, 0.0
      %v6272 = vadd.f32 %v6270, %v6271
      %v6273 = vsel %vm3726, %v6220, 0.0
      %v6274 = vadd.f32 %v6272, %v6273
      %v6275 = vsel %vm3726, %v6221, 0.0
      %v6276 = vadd.f32 %v6274, %v6275
      %v6277 = vsel %vm3726, %v6222, 0.0
      %v6278 = vadd.f32 %v6276, %v6277
      %v6279 = vsel %vm3726, %v6223, 0.0
      %v6280 = vadd.f32 %v6278, %v6279
      %v6281 = vsel %vm3726, %v6224, 0.0
      %v6282 = vadd.f32 %v6280, %v6281
      %v6283 = vsel %vm3726, %v6225, 0.0
      %v6284 = vadd.f32 %v6282, %v6283
      %v6285 = vsel %vm3726, %v6226, 0.0
      %v6286 = vadd.f32 %v6284, %v6285
      %v6287 = vsel %vm3726, %v6227, 0.0
      %v6288 = vadd.f32 %v6286, %v6287
      %v6289 = vsel %vm3726, %v6228, 0.0
      %v6290 = vadd.f32 %v6288, %v6289
      %v6291 = vsel %vm3726, %v6229, 0.0
      %v6292 = vadd.f32 %v6290, %v6291
      %v6293 = vrot.slane %v6292, 4
      %v6294 = vadd.f32 %v6292, %v6293
      %v6295 = vrot.slane %v6294, 2
      %v6296 = vadd.f32 %v6294, %v6295
      %v6297 = vrot.slane %v6296, 1
      %v6298 = vadd.f32 %v6296, %v6297
      %v6299 = vmul.f32 %v6298, %v2200
      %v6300 = vmul.f32 %v6197, %v6197
      %v6301 = vsub.f32 %v6299, %v6300
      %v6302 = vmax.f32 %v6301, 0.0
      %v6303 = vsub.f32 %v6002, %v6197
      %v6304 = vsub.f32 %v6005, %v6197
      %v6305 = vsub.f32 %v6010, %v6197
      %v6306 = vsub.f32 %v6013, %v6197
      %v6307 = vsub.f32 %v6018, %v6197
      %v6308 = vsub.f32 %v6021, %v6197
      %v6309 = vsub.f32 %v6026, %v6197
      %v6310 = vsub.f32 %v6029, %v6197
      %v6311 = vsub.f32 %v6034, %v6197
      %v6312 = vsub.f32 %v6037, %v6197
      %v6313 = vsub.f32 %v6042, %v6197
      %v6314 = vsub.f32 %v6045, %v6197
      %v6315 = vsub.f32 %v6050, %v6197
      %v6316 = vsub.f32 %v6053, %v6197
      %v6317 = vsub.f32 %v6058, %v6197
      %v6318 = vsub.f32 %v6061, %v6197
      %v6319 = vsub.f32 %v6066, %v6197
      %v6320 = vsub.f32 %v6069, %v6197
      %v6321 = vsub.f32 %v6074, %v6197
      %v6322 = vsub.f32 %v6077, %v6197
      %v6323 = vsub.f32 %v6082, %v6197
      %v6324 = vsub.f32 %v6085, %v6197
      %v6325 = vsub.f32 %v6090, %v6197
      %v6326 = vsub.f32 %v6093, %v6197
      %v6327 = vsub.f32 %v6098, %v6197
      %v6328 = vsub.f32 %v6101, %v6197
      %v6329 = vsub.f32 %v6106, %v6197
      %v6330 = vsub.f32 %v6109, %v6197
      %v6331 = vsub.f32 %v6114, %v6197
      %v6332 = vsub.f32 %v6117, %v6197
      %v6333 = vsub.f32 %v6122, %v6197
      %v6334 = vsub.f32 %v6125, %v6197
      %v6335 = vadd.f32 %v6302, 1e-05
      %v6336 = vrsqrt.pop %v6335
      %v6337 = vmul.f32 %v6303, %v6336
      %v6338 = vmul.f32 %v6304, %v6336
      %v6339 = vmul.f32 %v6305, %v6336
      %v6340 = vmul.f32 %v6306, %v6336
      %v6341 = vmul.f32 %v6307, %v6336
      %v6342 = vmul.f32 %v6308, %v6336
      %v6343 = vmul.f32 %v6309, %v6336
      %v6344 = vmul.f32 %v6310, %v6336
      %v6345 = vmul.f32 %v6311, %v6336
      %v6346 = vmul.f32 %v6312, %v6336
      %v6347 = vmul.f32 %v6313, %v6336
      %v6348 = vmul.f32 %v6314, %v6336
      %v6349 = vmul.f32 %v6315, %v6336
      %v6350 = vmul.f32 %v6316, %v6336
      %v6351 = vmul.f32 %v6317, %v6336
      %v6352 = vmul.f32 %v6318, %v6336
      %v6353 = vmul.f32 %v6319, %v6336
      %v6354 = vmul.f32 %v6320, %v6336
      %v6355 = vmul.f32 %v6321, %v6336
      %v6356 = vmul.f32 %v6322, %v6336
      %v6357 = vmul.f32 %v6323, %v6336
      %v6358 = vmul.f32 %v6324, %v6336
      %v6359 = vmul.f32 %v6325, %v6336
      %v6360 = vmul.f32 %v6326, %v6336
      %v6361 = vmul.f32 %v6327, %v6336
      %v6362 = vmul.f32 %v6328, %v6336
      %v6363 = vmul.f32 %v6329, %v6336
      %v6364 = vmul.f32 %v6330, %v6336
      %v6365 = vmul.f32 %v6331, %v6336
      %v6366 = vmul.f32 %v6332, %v6336
      %v6367 = vmul.f32 %v6333, %v6336
      %v6368 = vmul.f32 %v6334, %v6336
      %v6369 = vld [vmem:[%s6] sm:$0x1]
      %v6370 = vlaneseq
      %v6371 = vshrl.u32 %v6370, 7
      %v6372 = vsub.s32 0, %v6371
      %v6373 = vrot.slane %v6369, %v6372
      %v6374 = vmul.f32 %v6337, %v6373
      %v6375 = vmul.f32 %v6338, %v6373
      %v6376 = vmul.f32 %v6339, %v6373
      %v6377 = vmul.f32 %v6340, %v6373
      %v6378 = vmul.f32 %v6341, %v6373
      %v6379 = vmul.f32 %v6342, %v6373
      %v6380 = vmul.f32 %v6343, %v6373
      %v6381 = vmul.f32 %v6344, %v6373
      %v6382 = vmul.f32 %v6345, %v6373
      %v6383 = vmul.f32 %v6346, %v6373
      %v6384 = vmul.f32 %v6347, %v6373
      %v6385 = vmul.f32 %v6348, %v6373
      %v6386 = vmul.f32 %v6349, %v6373
      %v6387 = vmul.f32 %v6350, %v6373
      %v6388 = vmul.f32 %v6351, %v6373
      %v6389 = vmul.f32 %v6352, %v6373
      %v6390 = vmul.f32 %v6353, %v6373
      %v6391 = vmul.f32 %v6354, %v6373
      %v6392 = vmul.f32 %v6355, %v6373
      %v6393 = vmul.f32 %v6356, %v6373
      %v6394 = vmul.f32 %v6357, %v6373
      %v6395 = vmul.f32 %v6358, %v6373
      %v6396 = vmul.f32 %v6359, %v6373
      %v6397 = vmul.f32 %v6360, %v6373
      %v6398 = vmul.f32 %v6361, %v6373
      %v6399 = vmul.f32 %v6362, %v6373
      %v6400 = vmul.f32 %v6363, %v6373
      %v6401 = vmul.f32 %v6364, %v6373
      %v6402 = vmul.f32 %v6365, %v6373
      %v6403 = vmul.f32 %v6366, %v6373
      %v6404 = vmul.f32 %v6367, %v6373
      %v6405 = vmul.f32 %v6368, %v6373
      %v6406 = vld [vmem:[%s6 + $0x1] sm:$0x1]
      %v6407 = vlaneseq
      %v6408 = vshrl.u32 %v6407, 7
      %v6409 = vsub.s32 0, %v6408
      %v6410 = vrot.slane %v6406, %v6409
      %v6411 = vadd.f32 %v6374, %v6410
      %v6412 = vadd.f32 %v6375, %v6410
      %v6413 = vadd.f32 %v6376, %v6410
      %v6414 = vadd.f32 %v6377, %v6410
      %v6415 = vadd.f32 %v6378, %v6410
      %v6416 = vadd.f32 %v6379, %v6410
      %v6417 = vadd.f32 %v6380, %v6410
      %v6418 = vadd.f32 %v6381, %v6410
      %v6419 = vadd.f32 %v6382, %v6410
      %v6420 = vadd.f32 %v6383, %v6410
      %v6421 = vadd.f32 %v6384, %v6410
      %v6422 = vadd.f32 %v6385, %v6410
      %v6423 = vadd.f32 %v6386, %v6410
      %v6424 = vadd.f32 %v6387, %v6410
      %v6425 = vadd.f32 %v6388, %v6410
      %v6426 = vadd.f32 %v6389, %v6410
      %v6427 = vadd.f32 %v6390, %v6410
      %v6428 = vadd.f32 %v6391, %v6410
      %v6429 = vadd.f32 %v6392, %v6410
      %v6430 = vadd.f32 %v6393, %v6410
      %v6431 = vadd.f32 %v6394, %v6410
      %v6432 = vadd.f32 %v6395, %v6410
      %v6433 = vadd.f32 %v6396, %v6410
      %v6434 = vadd.f32 %v6397, %v6410
      %v6435 = vadd.f32 %v6398, %v6410
      %v6436 = vadd.f32 %v6399, %v6410
      %v6437 = vadd.f32 %v6400, %v6410
      %v6438 = vadd.f32 %v6401, %v6410
      %v6439 = vadd.f32 %v6402, %v6410
      %v6440 = vadd.f32 %v6403, %v6410
      %v6441 = vadd.f32 %v6404, %v6410
      %v6442 = vadd.f32 %v6405, %v6410
      %v6443 = vmax.f32 %v6411, 0.0
      %v6444 = vmax.f32 %v6412, 0.0
      %v6445 = vmax.f32 %v6413, 0.0
      %v6446 = vmax.f32 %v6414, 0.0
      %v6447 = vmax.f32 %v6415, 0.0
      %v6448 = vmax.f32 %v6416, 0.0
      %v6449 = vmax.f32 %v6417, 0.0
      %v6450 = vmax.f32 %v6418, 0.0
      %v6451 = vmax.f32 %v6419, 0.0
      %v6452 = vmax.f32 %v6420, 0.0
      %v6453 = vmax.f32 %v6421, 0.0
      %v6454 = vmax.f32 %v6422, 0.0
      %v6455 = vmax.f32 %v6423, 0.0
      %v6456 = vmax.f32 %v6424, 0.0
      %v6457 = vmax.f32 %v6425, 0.0
      %v6458 = vmax.f32 %v6426, 0.0
      %v6459 = vmax.f32 %v6427, 0.0
      %v6460 = vmax.f32 %v6428, 0.0
      %v6461 = vmax.f32 %v6429, 0.0
      %v6462 = vmax.f32 %v6430, 0.0
      %v6463 = vmax.f32 %v6431, 0.0
      %v6464 = vmax.f32 %v6432, 0.0
      %v6465 = vmax.f32 %v6433, 0.0
      %v6466 = vmax.f32 %v6434, 0.0
      %v6467 = vmax.f32 %v6435, 0.0
      %v6468 = vmax.f32 %v6436, 0.0
      %v6469 = vmax.f32 %v6437, 0.0
      %v6470 = vmax.f32 %v6438, 0.0
      %v6471 = vmax.f32 %v6439, 0.0
      %v6472 = vmax.f32 %v6440, 0.0
      %v6473 = vmax.f32 %v6441, 0.0
      %v6474 = vmax.f32 %v6442, 0.0
      %v6491 = vrot.slane %v6445, 1
      %v6492 = vrot.slane %v6443, 1
      %v6493 = vrot.slane %v6447, 1
      %v6494 = vrot.slane %v6449, 1
      %v6495 = vrot.slane %v6451, 1
      %v6496 = vrot.slane %v6453, 1
      %v6497 = vrot.slane %v6455, 1
      %v6498 = vrot.slane %v6457, 1
      %v6499 = vrot.slane %v6459, 1
      %v6500 = vrot.slane %v6461, 1
      %v6501 = vrot.slane %v6463, 1
      %v6502 = vrot.slane %v6465, 1
      %v6503 = vrot.slane %v6467, 1
      %v6504 = vrot.slane %v6469, 1
      %v6505 = vrot.slane %v6471, 1
      %v6506 = vrot.slane %v6473, 1
      %v6539 = vrot.slane %v6445, 7
      %v6540 = vrot.slane %v6446, 7
      %v6541 = vsel %vm524, %v6539, %v6540
      %v6542 = vrot.slane %v6443, 7
      %v6543 = vrot.slane %v6444, 7
      %v6544 = vsel %vm524, %v6542, %v6543
      %v6545 = vrot.slane %v6447, 7
      %v6546 = vrot.slane %v6448, 7
      %v6547 = vsel %vm524, %v6545, %v6546
      %v6548 = vrot.slane %v6449, 7
      %v6549 = vrot.slane %v6450, 7
      %v6550 = vsel %vm524, %v6548, %v6549
      %v6551 = vrot.slane %v6451, 7
      %v6552 = vrot.slane %v6452, 7
      %v6553 = vsel %vm524, %v6551, %v6552
      %v6554 = vrot.slane %v6453, 7
      %v6555 = vrot.slane %v6454, 7
      %v6556 = vsel %vm524, %v6554, %v6555
      %v6557 = vrot.slane %v6455, 7
      %v6558 = vrot.slane %v6456, 7
      %v6559 = vsel %vm524, %v6557, %v6558
      %v6560 = vrot.slane %v6457, 7
      %v6561 = vrot.slane %v6458, 7
      %v6562 = vsel %vm524, %v6560, %v6561
      %v6563 = vrot.slane %v6459, 7
      %v6564 = vrot.slane %v6460, 7
      %v6565 = vsel %vm524, %v6563, %v6564
      %v6566 = vrot.slane %v6461, 7
      %v6567 = vrot.slane %v6462, 7
      %v6568 = vsel %vm524, %v6566, %v6567
      %v6569 = vrot.slane %v6463, 7
      %v6570 = vrot.slane %v6464, 7
      %v6571 = vsel %vm524, %v6569, %v6570
      %v6572 = vrot.slane %v6465, 7
      %v6573 = vrot.slane %v6466, 7
      %v6574 = vsel %vm524, %v6572, %v6573
      %v6575 = vrot.slane %v6467, 7
      %v6576 = vrot.slane %v6468, 7
      %v6577 = vsel %vm524, %v6575, %v6576
      %v6578 = vrot.slane %v6469, 7
      %v6579 = vrot.slane %v6470, 7
      %v6580 = vsel %vm524, %v6578, %v6579
      %v6581 = vrot.slane %v6471, 7
      %v6582 = vrot.slane %v6472, 7
      %v6583 = vsel %vm524, %v6581, %v6582
      %v6584 = vrot.slane %v6473, 7
      %v6585 = vrot.slane %v6474, 7
      %v6586 = vsel %vm524, %v6584, %v6585
      %v6634 = vrot.slane %v6446, 5
      %v6635 = vrot.slane %v6444, 5
      %v6636 = vrot.slane %v6448, 5
      %v6637 = vrot.slane %v6450, 5
      %v6638 = vrot.slane %v6452, 5
      %v6639 = vrot.slane %v6454, 5
      %v6640 = vrot.slane %v6456, 5
      %v6641 = vrot.slane %v6458, 5
      %v6642 = vrot.slane %v6460, 5
      %v6643 = vrot.slane %v6462, 5
      %v6644 = vrot.slane %v6464, 5
      %v6645 = vrot.slane %v6466, 5
      %v6646 = vrot.slane %v6468, 5
      %v6647 = vrot.slane %v6470, 5
      %v6648 = vrot.slane %v6472, 5
      %v6649 = vrot.slane %v6474, 5
      %v6666 = vsel %vm524, %v6491, %v6539
      %v6667 = vsel %vm524, %v6492, %v6542
      %v6668 = vsel %vm524, %v6493, %v6545
      %v6669 = vsel %vm524, %v6494, %v6548
      %v6670 = vsel %vm524, %v6495, %v6551
      %v6671 = vsel %vm524, %v6496, %v6554
      %v6672 = vsel %vm524, %v6497, %v6557
      %v6673 = vsel %vm524, %v6498, %v6560
      %v6674 = vsel %vm524, %v6499, %v6563
      %v6675 = vsel %vm524, %v6500, %v6566
      %v6676 = vsel %vm524, %v6501, %v6569
      %v6677 = vsel %vm524, %v6502, %v6572
      %v6678 = vsel %vm524, %v6503, %v6575
      %v6679 = vsel %vm524, %v6504, %v6578
      %v6680 = vsel %vm524, %v6505, %v6581
      %v6681 = vsel %vm524, %v6506, %v6584
      %v6682 = vsel %vm524, %v6540, %v6634
      %v6683 = vsel %vm524, %v6543, %v6635
      %v6684 = vsel %vm524, %v6546, %v6636
      %v6685 = vsel %vm524, %v6549, %v6637
      %v6686 = vsel %vm524, %v6552, %v6638
      %v6687 = vsel %vm524, %v6555, %v6639
      %v6688 = vsel %vm524, %v6558, %v6640
      %v6689 = vsel %vm524, %v6561, %v6641
      %v6690 = vsel %vm524, %v6564, %v6642
      %v6691 = vsel %vm524, %v6567, %v6643
      %v6692 = vsel %vm524, %v6570, %v6644
      %v6693 = vsel %vm524, %v6573, %v6645
      %v6694 = vsel %vm524, %v6576, %v6646
      %v6695 = vsel %vm524, %v6579, %v6647
      %v6696 = vsel %vm524, %v6582, %v6648
      %v6697 = vsel %vm524, %v6585, %v6649
      %v6728 = vrot.slane %v6666, 1
      %v6729 = vrot.slane %v6541, 1
      %v6730 = vsel %vm714, %v6728, %v6729
      %v6731 = vrot.slane %v6682, 1
      %v6732 = vsel %vm714, %v6729, %v6731
      %v6733 = vrot.slane %v6667, 1
      %v6734 = vrot.slane %v6544, 1
      %v6735 = vsel %vm714, %v6733, %v6734
      %v6736 = vrot.slane %v6683, 1
      %v6737 = vsel %vm714, %v6734, %v6736
      %v6738 = vrot.slane %v6668, 1
      %v6739 = vrot.slane %v6547, 1
      %v6740 = vsel %vm714, %v6738, %v6739
      %v6741 = vrot.slane %v6684, 1
      %v6742 = vsel %vm714, %v6739, %v6741
      %v6743 = vrot.slane %v6669, 1
      %v6744 = vrot.slane %v6550, 1
      %v6745 = vsel %vm714, %v6743, %v6744
      %v6746 = vrot.slane %v6685, 1
      %v6747 = vsel %vm714, %v6744, %v6746
      %v6748 = vrot.slane %v6670, 1
      %v6749 = vrot.slane %v6553, 1
      %v6750 = vsel %vm714, %v6748, %v6749
      %v6751 = vrot.slane %v6686, 1
      %v6752 = vsel %vm714, %v6749, %v6751
      %v6753 = vrot.slane %v6671, 1
      %v6754 = vrot.slane %v6556, 1
      %v6755 = vsel %vm714, %v6753, %v6754
      %v6756 = vrot.slane %v6687, 1
      %v6757 = vsel %vm714, %v6754, %v6756
      %v6758 = vrot.slane %v6672, 1
      %v6759 = vrot.slane %v6559, 1
      %v6760 = vsel %vm714, %v6758, %v6759
      %v6761 = vrot.slane %v6688, 1
      %v6762 = vsel %vm714, %v6759, %v6761
      %v6763 = vrot.slane %v6673, 1
      %v6764 = vrot.slane %v6562, 1
      %v6765 = vsel %vm714, %v6763, %v6764
      %v6766 = vrot.slane %v6689, 1
      %v6767 = vsel %vm714, %v6764, %v6766
      %v6768 = vrot.slane %v6674, 1
      %v6769 = vrot.slane %v6565, 1
      %v6770 = vsel %vm714, %v6768, %v6769
      %v6771 = vrot.slane %v6690, 1
      %v6772 = vsel %vm714, %v6769, %v6771
      %v6773 = vrot.slane %v6675, 1
      %v6774 = vrot.slane %v6568, 1
      %v6775 = vsel %vm714, %v6773, %v6774
      %v6776 = vrot.slane %v6691, 1
      %v6777 = vsel %vm714, %v6774, %v6776
      %v6778 = vrot.slane %v6676, 1
      %v6779 = vrot.slane %v6571, 1
      %v6780 = vsel %vm714, %v6778, %v6779
      %v6781 = vrot.slane %v6692, 1
      %v6782 = vsel %vm714, %v6779, %v6781
      %v6783 = vrot.slane %v6677, 1
      %v6784 = vrot.slane %v6574, 1
      %v6785 = vsel %vm714, %v6783, %v6784
      %v6786 = vrot.slane %v6693, 1
      %v6787 = vsel %vm714, %v6784, %v6786
      %v6788 = vrot.slane %v6678, 1
      %v6789 = vrot.slane %v6577, 1
      %v6790 = vsel %vm714, %v6788, %v6789
      %v6791 = vrot.slane %v6694, 1
      %v6792 = vsel %vm714, %v6789, %v6791
      %v6793 = vrot.slane %v6679, 1
      %v6794 = vrot.slane %v6580, 1
      %v6795 = vsel %vm714, %v6793, %v6794
      %v6796 = vrot.slane %v6695, 1
      %v6797 = vsel %vm714, %v6794, %v6796
      %v6798 = vrot.slane %v6680, 1
      %v6799 = vrot.slane %v6583, 1
      %v6800 = vsel %vm714, %v6798, %v6799
      %v6801 = vrot.slane %v6696, 1
      %v6802 = vsel %vm714, %v6799, %v6801
      %v6803 = vrot.slane %v6666, 2
      %v6804 = vrot.slane %v6541, 2
      %v6805 = vsel %vm790, %v6803, %v6804
      %v6806 = vrot.slane %v6682, 2
      %v6807 = vsel %vm790, %v6804, %v6806
      %v6808 = vrot.slane %v6667, 2
      %v6809 = vrot.slane %v6544, 2
      %v6810 = vsel %vm790, %v6808, %v6809
      %v6811 = vrot.slane %v6683, 2
      %v6812 = vsel %vm790, %v6809, %v6811
      %v6813 = vrot.slane %v6668, 2
      %v6814 = vrot.slane %v6547, 2
      %v6815 = vsel %vm790, %v6813, %v6814
      %v6816 = vrot.slane %v6684, 2
      %v6817 = vsel %vm790, %v6814, %v6816
      %v6818 = vrot.slane %v6669, 2
      %v6819 = vrot.slane %v6550, 2
      %v6820 = vsel %vm790, %v6818, %v6819
      %v6821 = vrot.slane %v6685, 2
      %v6822 = vsel %vm790, %v6819, %v6821
      %v6823 = vrot.slane %v6670, 2
      %v6824 = vrot.slane %v6553, 2
      %v6825 = vsel %vm790, %v6823, %v6824
      %v6826 = vrot.slane %v6686, 2
      %v6827 = vsel %vm790, %v6824, %v6826
      %v6828 = vrot.slane %v6671, 2
      %v6829 = vrot.slane %v6556, 2
      %v6830 = vsel %vm790, %v6828, %v6829
      %v6831 = vrot.slane %v6687, 2
      %v6832 = vsel %vm790, %v6829, %v6831
      %v6833 = vrot.slane %v6672, 2
      %v6834 = vrot.slane %v6559, 2
      %v6835 = vsel %vm790, %v6833, %v6834
      %v6836 = vrot.slane %v6688, 2
      %v6837 = vsel %vm790, %v6834, %v6836
      %v6838 = vrot.slane %v6673, 2
      %v6839 = vrot.slane %v6562, 2
      %v6840 = vsel %vm790, %v6838, %v6839
      %v6841 = vrot.slane %v6689, 2
      %v6842 = vsel %vm790, %v6839, %v6841
      %v6843 = vrot.slane %v6674, 2
      %v6844 = vrot.slane %v6565, 2
      %v6845 = vsel %vm790, %v6843, %v6844
      %v6846 = vrot.slane %v6690, 2
      %v6847 = vsel %vm790, %v6844, %v6846
      %v6848 = vrot.slane %v6675, 2
      %v6849 = vrot.slane %v6568, 2
      %v6850 = vsel %vm790, %v6848, %v6849
      %v6851 = vrot.slane %v6691, 2
      %v6852 = vsel %vm790, %v6849, %v6851
      %v6853 = vrot.slane %v6676, 2
      %v6854 = vrot.slane %v6571, 2
      %v6855 = vsel %vm790, %v6853, %v6854
      %v6856 = vrot.slane %v6692, 2
      %v6857 = vsel %vm790, %v6854, %v6856
      %v6858 = vrot.slane %v6677, 2
      %v6859 = vrot.slane %v6574, 2
      %v6860 = vsel %vm790, %v6858, %v6859
      %v6861 = vrot.slane %v6693, 2
      %v6862 = vsel %vm790, %v6859, %v6861
      %v6863 = vrot.slane %v6678, 2
      %v6864 = vrot.slane %v6577, 2
      %v6865 = vsel %vm790, %v6863, %v6864
      %v6866 = vrot.slane %v6694, 2
      %v6867 = vsel %vm790, %v6864, %v6866
      %v6868 = vrot.slane %v6679, 2
      %v6869 = vrot.slane %v6580, 2
      %v6870 = vsel %vm790, %v6868, %v6869
      %v6871 = vrot.slane %v6695, 2
      %v6872 = vsel %vm790, %v6869, %v6871
      %v6873 = vrot.slane %v6680, 2
      %v6874 = vrot.slane %v6583, 2
      %v6875 = vsel %vm790, %v6873, %v6874
      %v6876 = vrot.slane %v6696, 2
      %v6877 = vsel %vm790, %v6874, %v6876
      %v6880 = vrot.slane %v6681, 1
      %v6881 = vrot.slane %v6586, 1
      %v6882 = vsel %vm714, %v6880, %v6881
      %v6883 = vrot.slane %v6697, 1
      %v6884 = vsel %vm714, %v6881, %v6883
      %v6917 = vrot.slane %v6681, 2
      %v6918 = vrot.slane %v6586, 2
      %v6919 = vsel %vm790, %v6917, %v6918
      %v6920 = vrot.slane %v6697, 2
      %v6921 = vsel %vm790, %v6918, %v6920
      %6952 = vrot.lane.b32.xlu0 %v6730, 32
      %v6953 = vpop.permute.xlu0 %6952
      %6954 = vrot.lane.b32.xlu0 %v6732, 32
      %v6955 = vpop.permute.xlu0 %6954
      %6956 = vrot.lane.b32.xlu0 %v6735, 32
      %v6957 = vpop.permute.xlu0 %6956
      %6958 = vrot.lane.b32.xlu0 %v6737, 32
      %v6959 = vpop.permute.xlu0 %6958
      %6960 = vrot.lane.b32.xlu0 %v6740, 32
      %v6961 = vpop.permute.xlu0 %6960
      %6962 = vrot.lane.b32.xlu0 %v6742, 32
      %v6963 = vpop.permute.xlu0 %6962
      %6964 = vrot.lane.b32.xlu0 %v6745, 32
      %v6965 = vpop.permute.xlu0 %6964
      %6966 = vrot.lane.b32.xlu0 %v6747, 32
      %v6967 = vpop.permute.xlu0 %6966
      %6968 = vrot.lane.b32.xlu0 %v6750, 32
      %v6969 = vpop.permute.xlu0 %6968
      %6970 = vrot.lane.b32.xlu0 %v6752, 32
      %v6971 = vpop.permute.xlu0 %6970
      %6972 = vrot.lane.b32.xlu0 %v6755, 32
      %v6973 = vpop.permute.xlu0 %6972
      %6974 = vrot.lane.b32.xlu0 %v6757, 32
      %v6975 = vpop.permute.xlu0 %6974
      %6976 = vrot.lane.b32.xlu0 %v6760, 32
      %v6977 = vpop.permute.xlu0 %6976
      %6978 = vrot.lane.b32.xlu0 %v6762, 32
      %v6979 = vpop.permute.xlu0 %6978
      %6980 = vrot.lane.b32.xlu0 %v6765, 32
      %v6981 = vpop.permute.xlu0 %6980
      %6982 = vrot.lane.b32.xlu0 %v6767, 32
      %v6983 = vpop.permute.xlu0 %6982
      %6984 = vrot.lane.b32.xlu0 %v6770, 32
      %v6985 = vpop.permute.xlu0 %6984
      %6986 = vrot.lane.b32.xlu0 %v6772, 32
      %v6987 = vpop.permute.xlu0 %6986
      %6988 = vrot.lane.b32.xlu0 %v6775, 32
      %v6989 = vpop.permute.xlu0 %6988
      %6990 = vrot.lane.b32.xlu0 %v6777, 32
      %v6991 = vpop.permute.xlu0 %6990
      %6992 = vrot.lane.b32.xlu0 %v6780, 32
      %v6993 = vpop.permute.xlu0 %6992
      %6994 = vrot.lane.b32.xlu0 %v6782, 32
      %v6995 = vpop.permute.xlu0 %6994
      %6996 = vrot.lane.b32.xlu0 %v6785, 32
      %v6997 = vpop.permute.xlu0 %6996
      %6998 = vrot.lane.b32.xlu0 %v6787, 32
      %v6999 = vpop.permute.xlu0 %6998
      %7000 = vrot.lane.b32.xlu0 %v6790, 32
      %v7001 = vpop.permute.xlu0 %7000
      %7002 = vrot.lane.b32.xlu0 %v6792, 32
      %v7003 = vpop.permute.xlu0 %7002
      %7004 = vrot.lane.b32.xlu0 %v6795, 32
      %v7005 = vpop.permute.xlu0 %7004
      %7006 = vrot.lane.b32.xlu0 %v6797, 32
      %v7007 = vpop.permute.xlu0 %7006
      %7008 = vrot.lane.b32.xlu0 %v6800, 32
      %v7009 = vpop.permute.xlu0 %7008
      %7010 = vrot.lane.b32.xlu0 %v6802, 32
      %v7011 = vpop.permute.xlu0 %7010
      %7042 = vrot.lane.b32.xlu0 %v6805, 64
      %v7043 = vpop.permute.xlu0 %7042
      %7044 = vrot.lane.b32.xlu0 %v6807, 64
      %v7045 = vpop.permute.xlu0 %7044
      %7046 = vrot.lane.b32.xlu0 %v6810, 64
      %v7047 = vpop.permute.xlu0 %7046
      %7048 = vrot.lane.b32.xlu0 %v6812, 64
      %v7049 = vpop.permute.xlu0 %7048
      %7050 = vrot.lane.b32.xlu0 %v6815, 64
      %v7051 = vpop.permute.xlu0 %7050
      %7052 = vrot.lane.b32.xlu0 %v6817, 64
      %v7053 = vpop.permute.xlu0 %7052
      %7054 = vrot.lane.b32.xlu0 %v6820, 64
      %v7055 = vpop.permute.xlu0 %7054
      %7056 = vrot.lane.b32.xlu0 %v6822, 64
      %v7057 = vpop.permute.xlu0 %7056
      %7058 = vrot.lane.b32.xlu0 %v6825, 64
      %v7059 = vpop.permute.xlu0 %7058
      %7060 = vrot.lane.b32.xlu0 %v6827, 64
      %v7061 = vpop.permute.xlu0 %7060
      %7062 = vrot.lane.b32.xlu0 %v6830, 64
      %v7063 = vpop.permute.xlu0 %7062
      %7064 = vrot.lane.b32.xlu0 %v6832, 64
      %v7065 = vpop.permute.xlu0 %7064
      %7066 = vrot.lane.b32.xlu0 %v6835, 64
      %v7067 = vpop.permute.xlu0 %7066
      %7068 = vrot.lane.b32.xlu0 %v6837, 64
      %v7069 = vpop.permute.xlu0 %7068
      %7070 = vrot.lane.b32.xlu0 %v6840, 64
      %v7071 = vpop.permute.xlu0 %7070
      %7072 = vrot.lane.b32.xlu0 %v6842, 64
      %v7073 = vpop.permute.xlu0 %7072
      %7074 = vrot.lane.b32.xlu0 %v6845, 64
      %v7075 = vpop.permute.xlu0 %7074
      %7076 = vrot.lane.b32.xlu0 %v6847, 64
      %v7077 = vpop.permute.xlu0 %7076
      %7078 = vrot.lane.b32.xlu0 %v6850, 64
      %v7079 = vpop.permute.xlu0 %7078
      %7080 = vrot.lane.b32.xlu0 %v6852, 64
      %v7081 = vpop.permute.xlu0 %7080
      %7082 = vrot.lane.b32.xlu0 %v6855, 64
      %v7083 = vpop.permute.xlu0 %7082
      %7084 = vrot.lane.b32.xlu0 %v6857, 64
      %v7085 = vpop.permute.xlu0 %7084
      %7086 = vrot.lane.b32.xlu0 %v6860, 64
      %v7087 = vpop.permute.xlu0 %7086
      %7088 = vrot.lane.b32.xlu0 %v6862, 64
      %v7089 = vpop.permute.xlu0 %7088
      %7090 = vrot.lane.b32.xlu0 %v6865, 64
      %v7091 = vpop.permute.xlu0 %7090
      %7092 = vrot.lane.b32.xlu0 %v6867, 64
      %v7093 = vpop.permute.xlu0 %7092
      %7094 = vrot.lane.b32.xlu0 %v6870, 64
      %v7095 = vpop.permute.xlu0 %7094
      %7096 = vrot.lane.b32.xlu0 %v6872, 64
      %v7097 = vpop.permute.xlu0 %7096
      %7098 = vrot.lane.b32.xlu0 %v6875, 64
      %v7099 = vpop.permute.xlu0 %7098
      %7100 = vrot.lane.b32.xlu0 %v6877, 64
      %v7101 = vpop.permute.xlu0 %7100
      %7132 = vrot.lane.b32.xlu0 %v6667, 96
      %v7133 = vpop.permute.xlu0 %7132
      %7134 = vrot.lane.b32.xlu0 %v6544, 96
      %v7135 = vpop.permute.xlu0 %7134
      %7136 = vrot.lane.b32.xlu0 %v6666, 96
      %v7137 = vpop.permute.xlu0 %7136
      %7138 = vrot.lane.b32.xlu0 %v6541, 96
      %v7139 = vpop.permute.xlu0 %7138
      %7140 = vrot.lane.b32.xlu0 %v6668, 96
      %v7141 = vpop.permute.xlu0 %7140
      %7142 = vrot.lane.b32.xlu0 %v6547, 96
      %v7143 = vpop.permute.xlu0 %7142
      %7144 = vrot.lane.b32.xlu0 %v6669, 96
      %v7145 = vpop.permute.xlu0 %7144
      %7146 = vrot.lane.b32.xlu0 %v6550, 96
      %v7147 = vpop.permute.xlu0 %7146
      %7148 = vrot.lane.b32.xlu0 %v6670, 96
      %v7149 = vpop.permute.xlu0 %7148
      %7150 = vrot.lane.b32.xlu0 %v6553, 96
      %v7151 = vpop.permute.xlu0 %7150
      %7152 = vrot.lane.b32.xlu0 %v6671, 96
      %v7153 = vpop.permute.xlu0 %7152
      %7154 = vrot.lane.b32.xlu0 %v6556, 96
      %v7155 = vpop.permute.xlu0 %7154
      %7156 = vrot.lane.b32.xlu0 %v6672, 96
      %v7157 = vpop.permute.xlu0 %7156
      %7158 = vrot.lane.b32.xlu0 %v6559, 96
      %v7159 = vpop.permute.xlu0 %7158
      %7160 = vrot.lane.b32.xlu0 %v6673, 96
      %v7161 = vpop.permute.xlu0 %7160
      %7162 = vrot.lane.b32.xlu0 %v6562, 96
      %v7163 = vpop.permute.xlu0 %7162
      %7164 = vrot.lane.b32.xlu0 %v6674, 96
      %v7165 = vpop.permute.xlu0 %7164
      %7166 = vrot.lane.b32.xlu0 %v6565, 96
      %v7167 = vpop.permute.xlu0 %7166
      %7168 = vrot.lane.b32.xlu0 %v6675, 96
      %v7169 = vpop.permute.xlu0 %7168
      %7170 = vrot.lane.b32.xlu0 %v6568, 96
      %v7171 = vpop.permute.xlu0 %7170
      %7172 = vrot.lane.b32.xlu0 %v6676, 96
      %v7173 = vpop.permute.xlu0 %7172
      %7174 = vrot.lane.b32.xlu0 %v6571, 96
      %v7175 = vpop.permute.xlu0 %7174
      %7176 = vrot.lane.b32.xlu0 %v6677, 96
      %v7177 = vpop.permute.xlu0 %7176
      %7178 = vrot.lane.b32.xlu0 %v6574, 96
      %v7179 = vpop.permute.xlu0 %7178
      %7180 = vrot.lane.b32.xlu0 %v6678, 96
      %v7181 = vpop.permute.xlu0 %7180
      %7182 = vrot.lane.b32.xlu0 %v6577, 96
      %v7183 = vpop.permute.xlu0 %7182
      %7184 = vrot.lane.b32.xlu0 %v6679, 96
      %v7185 = vpop.permute.xlu0 %7184
      %7186 = vrot.lane.b32.xlu0 %v6580, 96
      %v7187 = vpop.permute.xlu0 %7186
      %7188 = vrot.lane.b32.xlu0 %v6680, 96
      %v7189 = vpop.permute.xlu0 %7188
      %7190 = vrot.lane.b32.xlu0 %v6583, 96
      %v7191 = vpop.permute.xlu0 %7190
      %7192 = vrot.lane.b32.xlu0 %v6681, 96
      %v7193 = vpop.permute.xlu0 %7192
      %7194 = vrot.lane.b32.xlu0 %v6586, 96
      %v7195 = vpop.permute.xlu0 %7194
      %7228 = vrot.lane.b32.xlu0 %v6810, 32
      %v7229 = vpop.permute.xlu0 %7228
      %7230 = vrot.lane.b32.xlu0 %v6812, 32
      %v7231 = vpop.permute.xlu0 %7230
      %7232 = vrot.lane.b32.xlu0 %v6805, 32
      %v7233 = vpop.permute.xlu0 %7232
      %7234 = vrot.lane.b32.xlu0 %v6807, 32
      %v7235 = vpop.permute.xlu0 %7234
      %7236 = vrot.lane.b32.xlu0 %v6815, 32
      %v7237 = vpop.permute.xlu0 %7236
      %7238 = vrot.lane.b32.xlu0 %v6817, 32
      %v7239 = vpop.permute.xlu0 %7238
      %7240 = vrot.lane.b32.xlu0 %v6820, 32
      %v7241 = vpop.permute.xlu0 %7240
      %7242 = vrot.lane.b32.xlu0 %v6822, 32
      %v7243 = vpop.permute.xlu0 %7242
      %7244 = vrot.lane.b32.xlu0 %v6825, 32
      %v7245 = vpop.permute.xlu0 %7244
      %7246 = vrot.lane.b32.xlu0 %v6827, 32
      %v7247 = vpop.permute.xlu0 %7246
      %7248 = vrot.lane.b32.xlu0 %v6830, 32
      %v7249 = vpop.permute.xlu0 %7248
      %7250 = vrot.lane.b32.xlu0 %v6832, 32
      %v7251 = vpop.permute.xlu0 %7250
      %7252 = vrot.lane.b32.xlu0 %v6835, 32
      %v7253 = vpop.permute.xlu0 %7252
      %7254 = vrot.lane.b32.xlu0 %v6837, 32
      %v7255 = vpop.permute.xlu0 %7254
      %7256 = vrot.lane.b32.xlu0 %v6840, 32
      %v7257 = vpop.permute.xlu0 %7256
      %7258 = vrot.lane.b32.xlu0 %v6842, 32
      %v7259 = vpop.permute.xlu0 %7258
      %7260 = vrot.lane.b32.xlu0 %v6845, 32
      %v7261 = vpop.permute.xlu0 %7260
      %7262 = vrot.lane.b32.xlu0 %v6847, 32
      %v7263 = vpop.permute.xlu0 %7262
      %7264 = vrot.lane.b32.xlu0 %v6850, 32
      %v7265 = vpop.permute.xlu0 %7264
      %7266 = vrot.lane.b32.xlu0 %v6852, 32
      %v7267 = vpop.permute.xlu0 %7266
      %7268 = vrot.lane.b32.xlu0 %v6855, 32
      %v7269 = vpop.permute.xlu0 %7268
      %7270 = vrot.lane.b32.xlu0 %v6857, 32
      %v7271 = vpop.permute.xlu0 %7270
      %7272 = vrot.lane.b32.xlu0 %v6860, 32
      %v7273 = vpop.permute.xlu0 %7272
      %7274 = vrot.lane.b32.xlu0 %v6862, 32
      %v7275 = vpop.permute.xlu0 %7274
      %7276 = vrot.lane.b32.xlu0 %v6865, 32
      %v7277 = vpop.permute.xlu0 %7276
      %7278 = vrot.lane.b32.xlu0 %v6867, 32
      %v7279 = vpop.permute.xlu0 %7278
      %7280 = vrot.lane.b32.xlu0 %v6870, 32
      %v7281 = vpop.permute.xlu0 %7280
      %7282 = vrot.lane.b32.xlu0 %v6872, 32
      %v7283 = vpop.permute.xlu0 %7282
      %7284 = vrot.lane.b32.xlu0 %v6875, 32
      %v7285 = vpop.permute.xlu0 %7284
      %7286 = vrot.lane.b32.xlu0 %v6877, 32
      %v7287 = vpop.permute.xlu0 %7286
      %7288 = vrot.lane.b32.xlu0 %v6919, 32
      %v7289 = vpop.permute.xlu0 %7288
      %7290 = vrot.lane.b32.xlu0 %v6921, 32
      %v7291 = vpop.permute.xlu0 %7290
      %7324 = vrot.lane.b32.xlu0 %v6666, 64
      %v7325 = vpop.permute.xlu0 %7324
      %7326 = vrot.lane.b32.xlu0 %v6541, 64
      %v7327 = vpop.permute.xlu0 %7326
      %7328 = vrot.lane.b32.xlu0 %v6668, 64
      %v7329 = vpop.permute.xlu0 %7328
      %7330 = vrot.lane.b32.xlu0 %v6547, 64
      %v7331 = vpop.permute.xlu0 %7330
      %7332 = vrot.lane.b32.xlu0 %v6669, 64
      %v7333 = vpop.permute.xlu0 %7332
      %7334 = vrot.lane.b32.xlu0 %v6550, 64
      %v7335 = vpop.permute.xlu0 %7334
      %7336 = vrot.lane.b32.xlu0 %v6670, 64
      %v7337 = vpop.permute.xlu0 %7336
      %7338 = vrot.lane.b32.xlu0 %v6553, 64
      %v7339 = vpop.permute.xlu0 %7338
      %7340 = vrot.lane.b32.xlu0 %v6671, 64
      %v7341 = vpop.permute.xlu0 %7340
      %7342 = vrot.lane.b32.xlu0 %v6556, 64
      %v7343 = vpop.permute.xlu0 %7342
      %7344 = vrot.lane.b32.xlu0 %v6672, 64
      %v7345 = vpop.permute.xlu0 %7344
      %7346 = vrot.lane.b32.xlu0 %v6559, 64
      %v7347 = vpop.permute.xlu0 %7346
      %7348 = vrot.lane.b32.xlu0 %v6673, 64
      %v7349 = vpop.permute.xlu0 %7348
      %7350 = vrot.lane.b32.xlu0 %v6562, 64
      %v7351 = vpop.permute.xlu0 %7350
      %7352 = vrot.lane.b32.xlu0 %v6674, 64
      %v7353 = vpop.permute.xlu0 %7352
      %7354 = vrot.lane.b32.xlu0 %v6565, 64
      %v7355 = vpop.permute.xlu0 %7354
      %7356 = vrot.lane.b32.xlu0 %v6675, 64
      %v7357 = vpop.permute.xlu0 %7356
      %7358 = vrot.lane.b32.xlu0 %v6568, 64
      %v7359 = vpop.permute.xlu0 %7358
      %7360 = vrot.lane.b32.xlu0 %v6676, 64
      %v7361 = vpop.permute.xlu0 %7360
      %7362 = vrot.lane.b32.xlu0 %v6571, 64
      %v7363 = vpop.permute.xlu0 %7362
      %7364 = vrot.lane.b32.xlu0 %v6677, 64
      %v7365 = vpop.permute.xlu0 %7364
      %7366 = vrot.lane.b32.xlu0 %v6574, 64
      %v7367 = vpop.permute.xlu0 %7366
      %7368 = vrot.lane.b32.xlu0 %v6678, 64
      %v7369 = vpop.permute.xlu0 %7368
      %7370 = vrot.lane.b32.xlu0 %v6577, 64
      %v7371 = vpop.permute.xlu0 %7370
      %7372 = vrot.lane.b32.xlu0 %v6679, 64
      %v7373 = vpop.permute.xlu0 %7372
      %7374 = vrot.lane.b32.xlu0 %v6580, 64
      %v7375 = vpop.permute.xlu0 %7374
      %7376 = vrot.lane.b32.xlu0 %v6680, 64
      %v7377 = vpop.permute.xlu0 %7376
      %7378 = vrot.lane.b32.xlu0 %v6583, 64
      %v7379 = vpop.permute.xlu0 %7378
      %7380 = vrot.lane.b32.xlu0 %v6681, 64
      %v7381 = vpop.permute.xlu0 %7380
      %7382 = vrot.lane.b32.xlu0 %v6586, 64
      %v7383 = vpop.permute.xlu0 %7382
      %7414 = vrot.lane.b32.xlu0 %v6730, 96
      %v7415 = vpop.permute.xlu0 %7414
      %7416 = vrot.lane.b32.xlu0 %v6732, 96
      %v7417 = vpop.permute.xlu0 %7416
      %7418 = vrot.lane.b32.xlu0 %v6740, 96
      %v7419 = vpop.permute.xlu0 %7418
      %7420 = vrot.lane.b32.xlu0 %v6742, 96
      %v7421 = vpop.permute.xlu0 %7420
      %7422 = vrot.lane.b32.xlu0 %v6745, 96
      %v7423 = vpop.permute.xlu0 %7422
      %7424 = vrot.lane.b32.xlu0 %v6747, 96
      %v7425 = vpop.permute.xlu0 %7424
      %7426 = vrot.lane.b32.xlu0 %v6750, 96
      %v7427 = vpop.permute.xlu0 %7426
      %7428 = vrot.lane.b32.xlu0 %v6752, 96
      %v7429 = vpop.permute.xlu0 %7428
      %7430 = vrot.lane.b32.xlu0 %v6755, 96
      %v7431 = vpop.permute.xlu0 %7430
      %7432 = vrot.lane.b32.xlu0 %v6757, 96
      %v7433 = vpop.permute.xlu0 %7432
      %7434 = vrot.lane.b32.xlu0 %v6760, 96
      %v7435 = vpop.permute.xlu0 %7434
      %7436 = vrot.lane.b32.xlu0 %v6762, 96
      %v7437 = vpop.permute.xlu0 %7436
      %7438 = vrot.lane.b32.xlu0 %v6765, 96
      %v7439 = vpop.permute.xlu0 %7438
      %7440 = vrot.lane.b32.xlu0 %v6767, 96
      %v7441 = vpop.permute.xlu0 %7440
      %7442 = vrot.lane.b32.xlu0 %v6770, 96
      %v7443 = vpop.permute.xlu0 %7442
      %7444 = vrot.lane.b32.xlu0 %v6772, 96
      %v7445 = vpop.permute.xlu0 %7444
      %7446 = vrot.lane.b32.xlu0 %v6775, 96
      %v7447 = vpop.permute.xlu0 %7446
      %7448 = vrot.lane.b32.xlu0 %v6777, 96
      %v7449 = vpop.permute.xlu0 %7448
      %7450 = vrot.lane.b32.xlu0 %v6780, 96
      %v7451 = vpop.permute.xlu0 %7450
      %7452 = vrot.lane.b32.xlu0 %v6782, 96
      %v7453 = vpop.permute.xlu0 %7452
      %7454 = vrot.lane.b32.xlu0 %v6785, 96
      %v7455 = vpop.permute.xlu0 %7454
      %7456 = vrot.lane.b32.xlu0 %v6787, 96
      %v7457 = vpop.permute.xlu0 %7456
      %7458 = vrot.lane.b32.xlu0 %v6790, 96
      %v7459 = vpop.permute.xlu0 %7458
      %7460 = vrot.lane.b32.xlu0 %v6792, 96
      %v7461 = vpop.permute.xlu0 %7460
      %7462 = vrot.lane.b32.xlu0 %v6795, 96
      %v7463 = vpop.permute.xlu0 %7462
      %7464 = vrot.lane.b32.xlu0 %v6797, 96
      %v7465 = vpop.permute.xlu0 %7464
      %7466 = vrot.lane.b32.xlu0 %v6800, 96
      %v7467 = vpop.permute.xlu0 %7466
      %7468 = vrot.lane.b32.xlu0 %v6802, 96
      %v7469 = vpop.permute.xlu0 %7468
      %7470 = vrot.lane.b32.xlu0 %v6882, 96
      %v7471 = vpop.permute.xlu0 %7470
      %7472 = vrot.lane.b32.xlu0 %v6884, 96
      %v7473 = vpop.permute.xlu0 %7472
      %v7504 = vsel %vm3726, %v6666, %v6953
      %v7505 = vsel %vm3726, %v6541, %v6955
      %v7506 = vsel %vm3726, %v6667, %v6957
      %v7507 = vsel %vm3726, %v6544, %v6959
      %v7508 = vsel %vm3726, %v6668, %v6961
      %v7509 = vsel %vm3726, %v6547, %v6963
      %v7510 = vsel %vm3726, %v6669, %v6965
      %v7511 = vsel %vm3726, %v6550, %v6967
      %v7512 = vsel %vm3726, %v6670, %v6969
      %v7513 = vsel %vm3726, %v6553, %v6971
      %v7514 = vsel %vm3726, %v6671, %v6973
      %v7515 = vsel %vm3726, %v6556, %v6975
      %v7516 = vsel %vm3726, %v6672, %v6977
      %v7517 = vsel %vm3726, %v6559, %v6979
      %v7518 = vsel %vm3726, %v6673, %v6981
      %v7519 = vsel %vm3726, %v6562, %v6983
      %v7520 = vsel %vm3726, %v6674, %v6985
      %v7521 = vsel %vm3726, %v6565, %v6987
      %v7522 = vsel %vm3726, %v6675, %v6989
      %v7523 = vsel %vm3726, %v6568, %v6991
      %v7524 = vsel %vm3726, %v6676, %v6993
      %v7525 = vsel %vm3726, %v6571, %v6995
      %v7526 = vsel %vm3726, %v6677, %v6997
      %v7527 = vsel %vm3726, %v6574, %v6999
      %v7528 = vsel %vm3726, %v6678, %v7001
      %v7529 = vsel %vm3726, %v6577, %v7003
      %v7530 = vsel %vm3726, %v6679, %v7005
      %v7531 = vsel %vm3726, %v6580, %v7007
      %v7532 = vsel %vm3726, %v6680, %v7009
      %v7533 = vsel %vm3726, %v6583, %v7011
      %v7534 = vsel %vm3857, %v7504, %v7043
      %v7535 = vsel %vm3857, %v7505, %v7045
      %v7536 = vsel %vm3857, %v7506, %v7047
      %v7537 = vsel %vm3857, %v7507, %v7049
      %v7538 = vsel %vm3857, %v7508, %v7051
      %v7539 = vsel %vm3857, %v7509, %v7053
      %v7540 = vsel %vm3857, %v7510, %v7055
      %v7541 = vsel %vm3857, %v7511, %v7057
      %v7542 = vsel %vm3857, %v7512, %v7059
      %v7543 = vsel %vm3857, %v7513, %v7061
      %v7544 = vsel %vm3857, %v7514, %v7063
      %v7545 = vsel %vm3857, %v7515, %v7065
      %v7546 = vsel %vm3857, %v7516, %v7067
      %v7547 = vsel %vm3857, %v7517, %v7069
      %v7548 = vsel %vm3857, %v7518, %v7071
      %v7549 = vsel %vm3857, %v7519, %v7073
      %v7550 = vsel %vm3857, %v7520, %v7075
      %v7551 = vsel %vm3857, %v7521, %v7077
      %v7552 = vsel %vm3857, %v7522, %v7079
      %v7553 = vsel %vm3857, %v7523, %v7081
      %v7554 = vsel %vm3857, %v7524, %v7083
      %v7555 = vsel %vm3857, %v7525, %v7085
      %v7556 = vsel %vm3857, %v7526, %v7087
      %v7557 = vsel %vm3857, %v7527, %v7089
      %v7558 = vsel %vm3857, %v7528, %v7091
      %v7559 = vsel %vm3857, %v7529, %v7093
      %v7560 = vsel %vm3857, %v7530, %v7095
      %v7561 = vsel %vm3857, %v7531, %v7097
      %v7562 = vsel %vm3857, %v7532, %v7099
      %v7563 = vsel %vm3857, %v7533, %v7101
      %v7564 = vsel %vm5753, %v7534, %v7133
      %v7565 = vsel %vm5753, %v7535, %v7135
      %v7566 = vsel %vm5753, %v7536, %v7137
      %v7567 = vsel %vm5753, %v7537, %v7139
      %v7568 = vsel %vm5753, %v7534, %v7141
      %v7569 = vsel %vm5753, %v7535, %v7143
      %v7570 = vsel %vm5753, %v7538, %v7145
      %v7571 = vsel %vm5753, %v7539, %v7147
      %v7572 = vsel %vm5753, %v7540, %v7149
      %v7573 = vsel %vm5753, %v7541, %v7151
      %v7574 = vsel %vm5753, %v7542, %v7153
      %v7575 = vsel %vm5753, %v7543, %v7155
      %v7576 = vsel %vm5753, %v7544, %v7157
      %v7577 = vsel %vm5753, %v7545, %v7159
      %v7578 = vsel %vm5753, %v7546, %v7161
      %v7579 = vsel %vm5753, %v7547, %v7163
      %v7580 = vsel %vm5753, %v7548, %v7165
      %v7581 = vsel %vm5753, %v7549, %v7167
      %v7582 = vsel %vm5753, %v7550, %v7169
      %v7583 = vsel %vm5753, %v7551, %v7171
      %v7584 = vsel %vm5753, %v7552, %v7173
      %v7585 = vsel %vm5753, %v7553, %v7175
      %v7586 = vsel %vm5753, %v7554, %v7177
      %v7587 = vsel %vm5753, %v7555, %v7179
      %v7588 = vsel %vm5753, %v7556, %v7181
      %v7589 = vsel %vm5753, %v7557, %v7183
      %v7590 = vsel %vm5753, %v7558, %v7185
      %v7591 = vsel %vm5753, %v7559, %v7187
      %v7592 = vsel %vm5753, %v7560, %v7189
      %v7593 = vsel %vm5753, %v7561, %v7191
      %v7594 = vsel %vm5753, %v7562, %v7193
      %v7595 = vsel %vm5753, %v7563, %v7195
      %v7596 = vsel %vm3726, %v6735, %v7229
      %v7597 = vsel %vm3726, %v6737, %v7231
      %v7598 = vsel %vm3726, %v6730, %v7233
      %v7599 = vsel %vm3726, %v6732, %v7235
      %v7600 = vsel %vm3726, %v6740, %v7237
      %v7601 = vsel %vm3726, %v6742, %v7239
      %v7602 = vsel %vm3726, %v6745, %v7241
      %v7603 = vsel %vm3726, %v6747, %v7243
      %v7604 = vsel %vm3726, %v6750, %v7245
      %v7605 = vsel %vm3726, %v6752, %v7247
      %v7606 = vsel %vm3726, %v6755, %v7249
      %v7607 = vsel %vm3726, %v6757, %v7251
      %v7608 = vsel %vm3726, %v6760, %v7253
      %v7609 = vsel %vm3726, %v6762, %v7255
      %v7610 = vsel %vm3726, %v6765, %v7257
      %v7611 = vsel %vm3726, %v6767, %v7259
      %v7612 = vsel %vm3726, %v6770, %v7261
      %v7613 = vsel %vm3726, %v6772, %v7263
      %v7614 = vsel %vm3726, %v6775, %v7265
      %v7615 = vsel %vm3726, %v6777, %v7267
      %v7616 = vsel %vm3726, %v6780, %v7269
      %v7617 = vsel %vm3726, %v6782, %v7271
      %v7618 = vsel %vm3726, %v6785, %v7273
      %v7619 = vsel %vm3726, %v6787, %v7275
      %v7620 = vsel %vm3726, %v6790, %v7277
      %v7621 = vsel %vm3726, %v6792, %v7279
      %v7622 = vsel %vm3726, %v6795, %v7281
      %v7623 = vsel %vm3726, %v6797, %v7283
      %v7624 = vsel %vm3726, %v6800, %v7285
      %v7625 = vsel %vm3726, %v6802, %v7287
      %v7626 = vsel %vm3726, %v6882, %v7289
      %v7627 = vsel %vm3726, %v6884, %v7291
      %v7628 = vsel %vm3857, %v7596, %v7325
      %v7629 = vsel %vm3857, %v7597, %v7327
      %v7630 = vsel %vm3857, %v7598, %v7329
      %v7631 = vsel %vm3857, %v7599, %v7331
      %v7632 = vsel %vm3857, %v7600, %v7333
      %v7633 = vsel %vm3857, %v7601, %v7335
      %v7634 = vsel %vm3857, %v7602, %v7337
      %v7635 = vsel %vm3857, %v7603, %v7339
      %v7636 = vsel %vm3857, %v7604, %v7341
      %v7637 = vsel %vm3857, %v7605, %v7343
      %v7638 = vsel %vm3857, %v7606, %v7345
      %v7639 = vsel %vm3857, %v7607, %v7347
      %v7640 = vsel %vm3857, %v7608, %v7349
      %v7641 = vsel %vm3857, %v7609, %v7351
      %v7642 = vsel %vm3857, %v7610, %v7353
      %v7643 = vsel %vm3857, %v7611, %v7355
      %v7644 = vsel %vm3857, %v7612, %v7357
      %v7645 = vsel %vm3857, %v7613, %v7359
      %v7646 = vsel %vm3857, %v7614, %v7361
      %v7647 = vsel %vm3857, %v7615, %v7363
      %v7648 = vsel %vm3857, %v7616, %v7365
      %v7649 = vsel %vm3857, %v7617, %v7367
      %v7650 = vsel %vm3857, %v7618, %v7369
      %v7651 = vsel %vm3857, %v7619, %v7371
      %v7652 = vsel %vm3857, %v7620, %v7373
      %v7653 = vsel %vm3857, %v7621, %v7375
      %v7654 = vsel %vm3857, %v7622, %v7377
      %v7655 = vsel %vm3857, %v7623, %v7379
      %v7656 = vsel %vm3857, %v7624, %v7381
      %v7657 = vsel %vm3857, %v7625, %v7383
      %v7658 = vsel %vm3857, %v7626, %v7377
      %v7659 = vsel %vm3857, %v7627, %v7379
      %v7660 = vsel %vm5753, %v7628, %v7415
      %v7661 = vsel %vm5753, %v7629, %v7417
      %v7662 = vsel %vm5753, %v7630, %v7419
      %v7663 = vsel %vm5753, %v7631, %v7421
      %v7664 = vsel %vm5753, %v7632, %v7423
      %v7665 = vsel %vm5753, %v7633, %v7425
      %v7666 = vsel %vm5753, %v7634, %v7427
      %v7667 = vsel %vm5753, %v7635, %v7429
      %v7668 = vsel %vm5753, %v7636, %v7431
      %v7669 = vsel %vm5753, %v7637, %v7433
      %v7670 = vsel %vm5753, %v7638, %v7435
      %v7671 = vsel %vm5753, %v7639, %v7437
      %v7672 = vsel %vm5753, %v7640, %v7439
      %v7673 = vsel %vm5753, %v7641, %v7441
      %v7674 = vsel %vm5753, %v7642, %v7443
      %v7675 = vsel %vm5753, %v7643, %v7445
      %v7676 = vsel %vm5753, %v7644, %v7447
      %v7677 = vsel %vm5753, %v7645, %v7449
      %v7678 = vsel %vm5753, %v7646, %v7451
      %v7679 = vsel %vm5753, %v7647, %v7453
      %v7680 = vsel %vm5753, %v7648, %v7455
      %v7681 = vsel %vm5753, %v7649, %v7457
      %v7682 = vsel %vm5753, %v7650, %v7459
      %v7683 = vsel %vm5753, %v7651, %v7461
      %v7684 = vsel %vm5753, %v7652, %v7463
      %v7685 = vsel %vm5753, %v7653, %v7465
      %v7686 = vsel %vm5753, %v7654, %v7467
      %v7687 = vsel %vm5753, %v7655, %v7469
      %v7688 = vsel %vm5753, %v7656, %v7471
      %v7689 = vsel %vm5753, %v7657, %v7473
      %v7690 = vsel %vm5753, %v7658, %v7467
      %v7691 = vsel %vm5753, %v7659, %v7469
      %v7692 = vpack.c.bf16 %v7565, %v7564
      %v7693 = vpack.c.bf16 %v7661, %v7660
      %v7694 = vpack.c.bf16 %v6807, %v6805
      %v7695 = vpack.c.bf16 %v7567, %v7566
      %v7696 = vpack.c.bf16 %v7663, %v7662
      %v7697 = vpack.c.bf16 %v6817, %v6815
      %v7698 = vpack.c.bf16 %v7569, %v7568
      %v7699 = vpack.c.bf16 %v7665, %v7664
      %v7700 = vpack.c.bf16 %v6822, %v6820
      %v7701 = vpack.c.bf16 %v7571, %v7570
      %v7702 = vpack.c.bf16 %v7667, %v7666
      %v7703 = vpack.c.bf16 %v6827, %v6825
      %v7704 = vpack.c.bf16 %v7573, %v7572
      %v7705 = vpack.c.bf16 %v7669, %v7668
      %v7706 = vpack.c.bf16 %v6832, %v6830
      %v7707 = vpack.c.bf16 %v7575, %v7574
      %v7708 = vpack.c.bf16 %v7671, %v7670
      %v7709 = vpack.c.bf16 %v6837, %v6835
      %v7710 = vpack.c.bf16 %v7577, %v7576
      %v7711 = vpack.c.bf16 %v7673, %v7672
      %v7712 = vpack.c.bf16 %v6842, %v6840
      %v7713 = vpack.c.bf16 %v7579, %v7578
      %v7714 = vpack.c.bf16 %v7675, %v7674
      %v7715 = vpack.c.bf16 %v6847, %v6845
      %v7716 = vpack.c.bf16 %v7581, %v7580
      %v7717 = vpack.c.bf16 %v7677, %v7676
      %v7718 = vpack.c.bf16 %v6852, %v6850
      %v7719 = vpack.c.bf16 %v7583, %v7582
      %v7720 = vpack.c.bf16 %v7679, %v7678
      %v7721 = vpack.c.bf16 %v6857, %v6855
      %v7722 = vpack.c.bf16 %v7585, %v7584
      %v7723 = vpack.c.bf16 %v7681, %v7680
      %v7724 = vpack.c.bf16 %v6862, %v6860
      %v7725 = vpack.c.bf16 %v7587, %v7586
      %v7726 = vpack.c.bf16 %v7683, %v7682
      %v7727 = vpack.c.bf16 %v6867, %v6865
      %v7728 = vpack.c.bf16 %v7589, %v7588
      %v7729 = vpack.c.bf16 %v7685, %v7684
      %v7730 = vpack.c.bf16 %v6872, %v6870
      %v7731 = vpack.c.bf16 %v7591, %v7590
      %v7732 = vpack.c.bf16 %v7687, %v7686
      %v7733 = vpack.c.bf16 %v6877, %v6875
      %v7734 = vpack.c.bf16 %v7593, %v7592
      %v7735 = vpack.c.bf16 %v7689, %v7688
      %v7736 = vpack.c.bf16 %v6921, %v6919
      %v7737 = vpack.c.bf16 %v7595, %v7594
      %v7738 = vpack.c.bf16 %v7691, %v7690
      %v7739 = vld [vmem:[%s7] sm:$0xf]
      %v7740 = vld [vmem:[%s7 + $0x4] sm:$0xf]
      %v7741 = vld [vmem:[%s7 + $0x8] sm:$0xf]
      %v7742 = vld [vmem:[%s7 + $0xc] sm:$0xf]
      %v7743 = vld [vmem:[%s7 + $0x10] sm:$0xf]
      %v7744 = vld [vmem:[%s7 + $0x14] sm:$0xf]
      %v7745 = vld [vmem:[%s7 + $0x18] sm:$0xf]
      %v7746 = vld [vmem:[%s7 + $0x1c] sm:$0xf]
      %v7747 = vld [vmem:[%s7 + $0x20] sm:$0xf]
      %v7748 = vld [vmem:[%s7 + $0x24] sm:$0xf]
      %v7749 = vld [vmem:[%s7 + $0x28] sm:$0xf]
      %v7750 = vld [vmem:[%s7 + $0x2c] sm:$0xf]
      %v7751 = vld [vmem:[%s7 + $0x30] sm:$0xf]
      %v7752 = vld [vmem:[%s7 + $0x34] sm:$0xf]
      %v7753 = vld [vmem:[%s7 + $0x38] sm:$0xf]
      %v7754 = vld [vmem:[%s7 + $0x3c] sm:$0xf]
      %v7755 = vld [vmem:[%s7 + $0x40] sm:$0xf]
      %v7756 = vld [vmem:[%s7 + $0x44] sm:$0xf]
      %v7757 = vld [vmem:[%s7 + $0x48] sm:$0xf]
      %v7758 = vld [vmem:[%s7 + $0x4c] sm:$0xf]
      %v7759 = vld [vmem:[%s7 + $0x50] sm:$0xf]
      %v7760 = vld [vmem:[%s7 + $0x54] sm:$0xf]
      %v7761 = vld [vmem:[%s7 + $0x58] sm:$0xf]
      %v7762 = vld [vmem:[%s7 + $0x5c] sm:$0xf]
      %v7763 = vld [vmem:[%s7 + $0x60] sm:$0xf]
      %v7764 = vld [vmem:[%s7 + $0x64] sm:$0xf]
      %v7765 = vld [vmem:[%s7 + $0x68] sm:$0xf]
      %v7766 = vld [vmem:[%s7 + $0x6c] sm:$0xf]
      %v7767 = vld [vmem:[%s7 + $0x70] sm:$0xf]
      %v7768 = vld [vmem:[%s7 + $0x74] sm:$0xf]
      %v7769 = vld [vmem:[%s7 + $0x78] sm:$0xf]
      %v7770 = vld [vmem:[%s7 + $0x7c] sm:$0xf]
      %v7771 = vld [vmem:[%s7 + $0x80] sm:$0xf]
      %v7772 = vld [vmem:[%s7 + $0x84] sm:$0xf]
      %v7773 = vld [vmem:[%s7 + $0x88] sm:$0xf]
      %v7774 = vld [vmem:[%s7 + $0x8c] sm:$0xf]
      %v7811 = vunpack.c.l.b16 %v7739
      %v7812 = vunpack.c.l.b16 %v7740
      %v7813 = vunpack.c.l.b16 %v7741
      %v7814 = vunpack.c.l.b16 %v7742
      %v7815 = vunpack.c.l.b16 %v7743
      %v7816 = vunpack.c.l.b16 %v7744
      %v7817 = vunpack.c.l.b16 %v7745
      %v7818 = vunpack.c.l.b16 %v7746
      %v7819 = vunpack.c.l.b16 %v7747
      %v7820 = vunpack.c.l.b16 %v7748
      %v7821 = vunpack.c.l.b16 %v7749
      %v7822 = vunpack.c.l.b16 %v7750
      %v7823 = vunpack.c.l.b16 %v7751
      %v7824 = vunpack.c.l.b16 %v7752
      %v7825 = vunpack.c.l.b16 %v7753
      %v7826 = vunpack.c.l.b16 %v7754
      %v7827 = vunpack.c.l.b16 %v7755
      %v7828 = vunpack.c.l.b16 %v7756
      %v7829 = vunpack.c.l.b16 %v7757
      %v7830 = vunpack.c.l.b16 %v7758
      %v7831 = vunpack.c.l.b16 %v7759
      %v7832 = vunpack.c.l.b16 %v7760
      %v7833 = vunpack.c.l.b16 %v7761
      %v7834 = vunpack.c.l.b16 %v7762
      %v7835 = vunpack.c.l.b16 %v7763
      %v7836 = vunpack.c.l.b16 %v7764
      %v7837 = vunpack.c.l.b16 %v7765
      %v7838 = vunpack.c.l.b16 %v7766
      %v7839 = vunpack.c.l.b16 %v7767
      %v7840 = vunpack.c.l.b16 %v7768
      %v7841 = vunpack.c.l.b16 %v7769
      %v7842 = vunpack.c.l.b16 %v7770
      %v7843 = vunpack.c.l.b16 %v7771
      %v7844 = vunpack.c.l.b16 %v7772
      %v7845 = vunpack.c.l.b16 %v7773
      %v7846 = vunpack.c.l.b16 %v7774
      %v7847 = vpack.c.b16 %v7812, %v7811
      %v7848 = vpack.c.b16 %v7814, %v7813
      %v7849 = vpack.c.b16 %v7816, %v7815
      %v7850 = vpack.c.b16 %v7818, %v7817
      %v7851 = vpack.c.b16 %v7820, %v7819
      %v7852 = vpack.c.b16 %v7822, %v7821
      %v7853 = vpack.c.b16 %v7824, %v7823
      %v7854 = vpack.c.b16 %v7826, %v7825
      %v7855 = vpack.c.b16 %v7828, %v7827
      %v7856 = vpack.c.b16 %v7830, %v7829
      %v7857 = vpack.c.b16 %v7832, %v7831
      %v7858 = vpack.c.b16 %v7834, %v7833
      %v7859 = vpack.c.b16 %v7836, %v7835
      %v7860 = vpack.c.b16 %v7838, %v7837
      %v7861 = vpack.c.b16 %v7840, %v7839
      %v7862 = vpack.c.b16 %v7842, %v7841
      %v7863 = vpack.c.b16 %v7844, %v7843
      %v7864 = vpack.c.b16 %v7846, %v7845
      %v7884 = vsel %vm3726, %v7694, 0
      %v7887 = vsel %vm3726, %v7697, 0
      %v7890 = vsel %vm3726, %v7700, 0
      %v7893 = vsel %vm3726, %v7703, 0
      %v7896 = vsel %vm3726, %v7706, 0
      %v7899 = vsel %vm3726, %v7709, 0
      %v7902 = vsel %vm3726, %v7712, 0
      %v7905 = vsel %vm3726, %v7715, 0
      %v7908 = vsel %vm3726, %v7718, 0
      %v7911 = vsel %vm3726, %v7721, 0
      %v7914 = vsel %vm3726, %v7724, 0
      %v7917 = vsel %vm3726, %v7727, 0
      %v7920 = vsel %vm3726, %v7730, 0
      %v7923 = vsel %vm3726, %v7733, 0
      %v7926 = vsel %vm3726, %v7736, 0
      %7928 = vmatprep.subr.bf16.mxu0 0
      %7929 = vmatpush1.bf16.msra.mxu0 %v7847
      %7930 = vmatprep.subr.bf16.mxu0 0
      %7931 = vmatpush1.bf16.msra.mxu0 %v7848
      %7932 = vmatprep.subr.bf16.mxu0 0
      %7933 = vmatpush1.bf16.msra.mxu0 %v7849
      %7934 = vmatprep.subr.bf16.mxu0 0
      %7935 = vmatpush1.bf16.msra.mxu0 %v7850
      %7936 = vmatprep.subr.bf16.mxu0 0
      %7937 = vmatpush1.bf16.msra.mxu0 %v7851
      %7938 = vmatprep.subr.bf16.mxu0 0
      %7939 = vmatpush1.bf16.msra.mxu0 %v7852
      %7940 = vmatprep.subr.bf16.mxu0 0
      %7941 = vmatpush1.bf16.msra.mxu0 %v7853
      %7942 = vmatprep.subr.bf16.mxu0 0
      %7943 = vmatpush1.bf16.msra.mxu0 %v7854
      %7944 = vmatprep.subr.bf16.mxu0 0
      %7945 = vmatpush1.bf16.msra.mxu0 %v7855
      %7946 = vmatprep.subr.bf16.mxu0 0
      %7947 = vmatpush1.bf16.msra.mxu0 %v7856
      %7948 = vmatprep.subr.bf16.mxu0 0
      %7949 = vmatpush1.bf16.msra.mxu0 %v7857
      %7950 = vmatprep.subr.bf16.mxu0 0
      %7951 = vmatpush1.bf16.msra.mxu0 %v7858
      %7952 = vmatprep.subr.bf16.mxu0 0
      %7953 = vmatpush1.bf16.msra.mxu0 %v7859
      %7954 = vmatprep.subr.bf16.mxu0 0
      %7955 = vmatpush1.bf16.msra.mxu0 %v7860
      %7956 = vmatprep.subr.bf16.mxu0 0
      %7957 = vmatpush1.bf16.msra.mxu0 %v7861
      %7958 = vmatprep.subr.bf16.mxu0 0
      %7959 = vmatpush1.bf16.msra.mxu0 %v7862
      %7960 = vmatprep.mubr.bf16.mxu0 %v7693
      %7961 = vmatmul.mubr.bf16.gmra.mrb[0].mxu0 %v7692
      %v7962 = vpop.f32.mrb[0].mxu0
      %v7963 = vadd.f32 0.0, %v7962
      %v7964 = vpop.f32.mrb[0].mxu0
      %v7965 = vpop.f32.mrb[0].mxu0
      %v7966 = vadd.f32 0.0, %v7965
      %v7967 = vpop.f32.mrb[0].mxu0
      %7968 = vmatprep.mubr.bf16.mxu0 %v7696
      %7969 = vmatmul.mubr.bf16.gmra.mrb[0].mxu0 %v7695
      %v7970 = vpop.f32.mrb[0].mxu0
      %v7971 = vadd.f32 0.0, %v7970
      %v7972 = vpop.f32.mrb[0].mxu0
      %v7973 = vpop.f32.mrb[0].mxu0
      %v7974 = vadd.f32 0.0, %v7973
      %v7975 = vpop.f32.mrb[0].mxu0
      %7976 = vmatprep.mubr.bf16.mxu0 %v7699
      %7977 = vmatmul.mubr.bf16.gmra.mrb[0].mxu0 %v7698
      %v7978 = vpop.f32.mrb[0].mxu0
      %v7979 = vadd.f32 0.0, %v7978
      %v7980 = vpop.f32.mrb[0].mxu0
      %v7981 = vpop.f32.mrb[0].mxu0
      %v7982 = vadd.f32 0.0, %v7981
      %v7983 = vpop.f32.mrb[0].mxu0
      %7984 = vmatprep.mubr.bf16.mxu0 %v7702
      %7985 = vmatmul.mubr.bf16.gmra.mrb[0].mxu0 %v7701
      %v7986 = vpop.f32.mrb[0].mxu0
      %v7987 = vadd.f32 0.0, %v7986
      %v7988 = vpop.f32.mrb[0].mxu0
      %v7989 = vpop.f32.mrb[0].mxu0
      %v7990 = vadd.f32 0.0, %v7989
      %v7991 = vpop.f32.mrb[0].mxu0
      %7992 = vmatprep.mubr.bf16.mxu0 %v7705
      %7993 = vmatmul.mubr.bf16.gmra.mrb[0].mxu0 %v7704
      %v7994 = vpop.f32.mrb[0].mxu0
      %v7995 = vadd.f32 0.0, %v7994
      %v7996 = vpop.f32.mrb[0].mxu0
      %v7997 = vpop.f32.mrb[0].mxu0
      %v7998 = vadd.f32 0.0, %v7997
      %v7999 = vpop.f32.mrb[0].mxu0
      %8000 = vmatprep.mubr.bf16.mxu0 %v7708
      %8001 = vmatmul.mubr.bf16.gmra.mrb[0].mxu0 %v7707
      %v8002 = vpop.f32.mrb[0].mxu0
      %v8003 = vadd.f32 0.0, %v8002
      %v8004 = vpop.f32.mrb[0].mxu0
      %v8005 = vpop.f32.mrb[0].mxu0
      %v8006 = vadd.f32 0.0, %v8005
      %v8007 = vpop.f32.mrb[0].mxu0
      %8008 = vmatprep.mubr.bf16.mxu0 %v7711
      %8009 = vmatmul.mubr.bf16.gmra.mrb[0].mxu0 %v7710
      %v8010 = vpop.f32.mrb[0].mxu0
      %v8011 = vadd.f32 0.0, %v8010
      %v8012 = vpop.f32.mrb[0].mxu0
      %v8013 = vpop.f32.mrb[0].mxu0
      %v8014 = vadd.f32 0.0, %v8013
      %v8015 = vpop.f32.mrb[0].mxu0
      %8016 = vmatprep.mubr.bf16.mxu0 %v7714
      %8017 = vmatmul.mubr.bf16.gmra.mrb[0].mxu0 %v7713
      %v8018 = vpop.f32.mrb[0].mxu0
      %v8019 = vadd.f32 0.0, %v8018
      %v8020 = vpop.f32.mrb[0].mxu0
      %v8021 = vpop.f32.mrb[0].mxu0
      %v8022 = vadd.f32 0.0, %v8021
      %v8023 = vpop.f32.mrb[0].mxu0
      %8024 = vmatprep.mubr.bf16.mxu0 %v7717
      %8025 = vmatmul.mubr.bf16.gmra.mrb[0].mxu0 %v7716
      %v8026 = vpop.f32.mrb[0].mxu0
      %v8027 = vadd.f32 0.0, %v8026
      %v8028 = vpop.f32.mrb[0].mxu0
      %v8029 = vpop.f32.mrb[0].mxu0
      %v8030 = vadd.f32 0.0, %v8029
      %v8031 = vpop.f32.mrb[0].mxu0
      %8032 = vmatprep.mubr.bf16.mxu0 %v7720
      %8033 = vmatmul.mubr.bf16.gmra.mrb[0].mxu0 %v7719
      %v8034 = vpop.f32.mrb[0].mxu0
      %v8035 = vadd.f32 0.0, %v8034
      %v8036 = vpop.f32.mrb[0].mxu0
      %v8037 = vpop.f32.mrb[0].mxu0
      %v8038 = vadd.f32 0.0, %v8037
      %v8039 = vpop.f32.mrb[0].mxu0
      %8040 = vmatprep.mubr.bf16.mxu0 %v7723
      %8041 = vmatmul.mubr.bf16.gmra.mrb[0].mxu0 %v7722
      %v8042 = vpop.f32.mrb[0].mxu0
      %v8043 = vadd.f32 0.0, %v8042
      %v8044 = vpop.f32.mrb[0].mxu0
      %v8045 = vpop.f32.mrb[0].mxu0
      %v8046 = vadd.f32 0.0, %v8045
      %v8047 = vpop.f32.mrb[0].mxu0
      %8048 = vmatprep.mubr.bf16.mxu0 %v7726
      %8049 = vmatmul.mubr.bf16.gmra.mrb[0].mxu0 %v7725
      %v8050 = vpop.f32.mrb[0].mxu0
      %v8051 = vadd.f32 0.0, %v8050
      %v8052 = vpop.f32.mrb[0].mxu0
      %v8053 = vpop.f32.mrb[0].mxu0
      %v8054 = vadd.f32 0.0, %v8053
      %v8055 = vpop.f32.mrb[0].mxu0
      %8056 = vmatprep.mubr.bf16.mxu0 %v7729
      %8057 = vmatmul.mubr.bf16.gmra.mrb[0].mxu0 %v7728
      %v8058 = vpop.f32.mrb[0].mxu0
      %v8059 = vadd.f32 0.0, %v8058
      %v8060 = vpop.f32.mrb[0].mxu0
      %v8061 = vpop.f32.mrb[0].mxu0
      %v8062 = vadd.f32 0.0, %v8061
      %v8063 = vpop.f32.mrb[0].mxu0
      %8064 = vmatprep.mubr.bf16.mxu0 %v7732
      %8065 = vmatmul.mubr.bf16.gmra.mrb[0].mxu0 %v7731
      %v8066 = vpop.f32.mrb[0].mxu0
      %v8067 = vadd.f32 0.0, %v8066
      %v8068 = vpop.f32.mrb[0].mxu0
      %v8069 = vpop.f32.mrb[0].mxu0
      %v8070 = vadd.f32 0.0, %v8069
      %v8071 = vpop.f32.mrb[0].mxu0
      %8072 = vmatprep.mubr.bf16.mxu0 %v7735
      %8073 = vmatmul.mubr.bf16.gmra.mrb[0].mxu0 %v7734
      %v8074 = vpop.f32.mrb[0].mxu0
      %v8075 = vadd.f32 0.0, %v8074
      %v8076 = vpop.f32.mrb[0].mxu0
      %v8077 = vpop.f32.mrb[0].mxu0
      %v8078 = vadd.f32 0.0, %v8077
      %v8079 = vpop.f32.mrb[0].mxu0
      %8080 = vmatprep.mubr.bf16.mxu0 %v7738
      %8081 = vmatmul.mubr.bf16.gmra.mrb[0].mxu0 %v7737
      %v8082 = vpop.f32.mrb[0].mxu0
      %v8083 = vadd.f32 0.0, %v8082
      %v8084 = vpop.f32.mrb[0].mxu0
      %v8085 = vpop.f32.mrb[0].mxu0
      %v8086 = vadd.f32 0.0, %v8085
      %v8087 = vpop.f32.mrb[0].mxu0
      %8088 = vdwg.mxu0
      %8089 = vmatprep.subr.bf16.mxu0 0
      %8090 = vmatpush1.bf16.msra.mxu0 %v7863
      %8091 = vmatprep.subr.bf16.mxu0 0
      %8092 = vmatpush1.bf16.msra.mxu0 %v7864
      %8093 = vmatprep.subr.bf16.mxu0 0
      %8094 = vmatpush1.bf16.msra.mxu0 0
      %8095 = vmatprep.subr.bf16.mxu0 0
      %8096 = vmatpush1.bf16.msra.mxu0 0
      %8097 = vmatprep.subr.bf16.mxu0 0
      %8098 = vmatpush1.bf16.msra.mxu0 0
      %8099 = vmatprep.subr.bf16.mxu0 0
      %8100 = vmatpush1.bf16.msra.mxu0 0
      %8101 = vmatprep.subr.bf16.mxu0 0
      %8102 = vmatpush1.bf16.msra.mxu0 0
      %8103 = vmatprep.subr.bf16.mxu0 0
      %8104 = vmatpush1.bf16.msra.mxu0 0
      %8105 = vmatprep.subr.bf16.mxu0 0
      %8106 = vmatpush1.bf16.msra.mxu0 0
      %8107 = vmatprep.subr.bf16.mxu0 0
      %8108 = vmatpush1.bf16.msra.mxu0 0
      %8109 = vmatprep.subr.bf16.mxu0 0
      %8110 = vmatpush1.bf16.msra.mxu0 0
      %8111 = vmatprep.subr.bf16.mxu0 0
      %8112 = vmatpush1.bf16.msra.mxu0 0
      %8113 = vmatprep.subr.bf16.mxu0 0
      %8114 = vmatpush1.bf16.msra.mxu0 0
      %8115 = vmatprep.subr.bf16.mxu0 0
      %8116 = vmatpush1.bf16.msra.mxu0 0
      %8117 = vmatprep.subr.bf16.mxu0 0
      %8118 = vmatpush1.bf16.msra.mxu0 0
      %8119 = vmatprep.subr.bf16.mxu0 0
      %8120 = vmatpush1.bf16.msra.mxu0 0
      %8121 = vmatprep.mubr.bf16.mxu0 0
      %8122 = vmatmul.mubr.bf16.gmra.mrb[0].mxu0 %v7884
      %v8123 = vpop.f32.mrb[0].mxu0
      %v8124 = vadd.f32 %v7963, %v8123
      %v8125 = vpop.f32.mrb[0].mxu0
      %v8126 = vpop.f32.mrb[0].mxu0
      %v8127 = vadd.f32 %v7966, %v8126
      %v8128 = vpop.f32.mrb[0].mxu0
      %8129 = vmatprep.mubr.bf16.mxu0 0
      %8130 = vmatmul.mubr.bf16.gmra.mrb[0].mxu0 %v7887
      %v8131 = vpop.f32.mrb[0].mxu0
      %v8132 = vadd.f32 %v7971, %v8131
      %v8133 = vpop.f32.mrb[0].mxu0
      %v8134 = vpop.f32.mrb[0].mxu0
      %v8135 = vadd.f32 %v7974, %v8134
      %v8136 = vpop.f32.mrb[0].mxu0
      %8137 = vmatprep.mubr.bf16.mxu0 0
      %8138 = vmatmul.mubr.bf16.gmra.mrb[0].mxu0 %v7890
      %v8139 = vpop.f32.mrb[0].mxu0
      %v8140 = vadd.f32 %v7979, %v8139
      %v8141 = vpop.f32.mrb[0].mxu0
      %v8142 = vpop.f32.mrb[0].mxu0
      %v8143 = vadd.f32 %v7982, %v8142
      %v8144 = vpop.f32.mrb[0].mxu0
      %8145 = vmatprep.mubr.bf16.mxu0 0
      %8146 = vmatmul.mubr.bf16.gmra.mrb[0].mxu0 %v7893
      %v8147 = vpop.f32.mrb[0].mxu0
      %v8148 = vadd.f32 %v7987, %v8147
      %v8149 = vpop.f32.mrb[0].mxu0
      %v8150 = vpop.f32.mrb[0].mxu0
      %v8151 = vadd.f32 %v7990, %v8150
      %v8152 = vpop.f32.mrb[0].mxu0
      %8153 = vmatprep.mubr.bf16.mxu0 0
      %8154 = vmatmul.mubr.bf16.gmra.mrb[0].mxu0 %v7896
      %v8155 = vpop.f32.mrb[0].mxu0
      %v8156 = vadd.f32 %v7995, %v8155
      %v8157 = vpop.f32.mrb[0].mxu0
      %v8158 = vpop.f32.mrb[0].mxu0
      %v8159 = vadd.f32 %v7998, %v8158
      %v8160 = vpop.f32.mrb[0].mxu0
      %8161 = vmatprep.mubr.bf16.mxu0 0
      %8162 = vmatmul.mubr.bf16.gmra.mrb[0].mxu0 %v7899
      %v8163 = vpop.f32.mrb[0].mxu0
      %v8164 = vadd.f32 %v8003, %v8163
      %v8165 = vpop.f32.mrb[0].mxu0
      %v8166 = vpop.f32.mrb[0].mxu0
      %v8167 = vadd.f32 %v8006, %v8166
      %v8168 = vpop.f32.mrb[0].mxu0
      %8169 = vmatprep.mubr.bf16.mxu0 0
      %8170 = vmatmul.mubr.bf16.gmra.mrb[0].mxu0 %v7902
      %v8171 = vpop.f32.mrb[0].mxu0
      %v8172 = vadd.f32 %v8011, %v8171
      %v8173 = vpop.f32.mrb[0].mxu0
      %v8174 = vpop.f32.mrb[0].mxu0
      %v8175 = vadd.f32 %v8014, %v8174
      %v8176 = vpop.f32.mrb[0].mxu0
      %8177 = vmatprep.mubr.bf16.mxu0 0
      %8178 = vmatmul.mubr.bf16.gmra.mrb[0].mxu0 %v7905
      %v8179 = vpop.f32.mrb[0].mxu0
      %v8180 = vadd.f32 %v8019, %v8179
      %v8181 = vpop.f32.mrb[0].mxu0
      %v8182 = vpop.f32.mrb[0].mxu0
      %v8183 = vadd.f32 %v8022, %v8182
      %v8184 = vpop.f32.mrb[0].mxu0
      %8185 = vmatprep.mubr.bf16.mxu0 0
      %8186 = vmatmul.mubr.bf16.gmra.mrb[0].mxu0 %v7908
      %v8187 = vpop.f32.mrb[0].mxu0
      %v8188 = vadd.f32 %v8027, %v8187
      %v8189 = vpop.f32.mrb[0].mxu0
      %v8190 = vpop.f32.mrb[0].mxu0
      %v8191 = vadd.f32 %v8030, %v8190
      %v8192 = vpop.f32.mrb[0].mxu0
      %8193 = vmatprep.mubr.bf16.mxu0 0
      %8194 = vmatmul.mubr.bf16.gmra.mrb[0].mxu0 %v7911
      %v8195 = vpop.f32.mrb[0].mxu0
      %v8196 = vadd.f32 %v8035, %v8195
      %v8197 = vpop.f32.mrb[0].mxu0
      %v8198 = vpop.f32.mrb[0].mxu0
      %v8199 = vadd.f32 %v8038, %v8198
      %v8200 = vpop.f32.mrb[0].mxu0
      %8201 = vmatprep.mubr.bf16.mxu0 0
      %8202 = vmatmul.mubr.bf16.gmra.mrb[0].mxu0 %v7914
      %v8203 = vpop.f32.mrb[0].mxu0
      %v8204 = vadd.f32 %v8043, %v8203
      %v8205 = vpop.f32.mrb[0].mxu0
      %v8206 = vpop.f32.mrb[0].mxu0
      %v8207 = vadd.f32 %v8046, %v8206
      %v8208 = vpop.f32.mrb[0].mxu0
      %8209 = vmatprep.mubr.bf16.mxu0 0
      %8210 = vmatmul.mubr.bf16.gmra.mrb[0].mxu0 %v7917
      %v8211 = vpop.f32.mrb[0].mxu0
      %v8212 = vadd.f32 %v8051, %v8211
      %v8213 = vpop.f32.mrb[0].mxu0
      %v8214 = vpop.f32.mrb[0].mxu0
      %v8215 = vadd.f32 %v8054, %v8214
      %v8216 = vpop.f32.mrb[0].mxu0
      %8217 = vmatprep.mubr.bf16.mxu0 0
      %8218 = vmatmul.mubr.bf16.gmra.mrb[0].mxu0 %v7920
      %v8219 = vpop.f32.mrb[0].mxu0
      %v8220 = vadd.f32 %v8059, %v8219
      %v8221 = vpop.f32.mrb[0].mxu0
      %v8222 = vpop.f32.mrb[0].mxu0
      %v8223 = vadd.f32 %v8062, %v8222
      %v8224 = vpop.f32.mrb[0].mxu0
      %8225 = vmatprep.mubr.bf16.mxu0 0
      %8226 = vmatmul.mubr.bf16.gmra.mrb[0].mxu0 %v7923
      %v8227 = vpop.f32.mrb[0].mxu0
      %v8228 = vadd.f32 %v8067, %v8227
      %v8229 = vpop.f32.mrb[0].mxu0
      %v8230 = vpop.f32.mrb[0].mxu0
      %v8231 = vadd.f32 %v8070, %v8230
      %v8232 = vpop.f32.mrb[0].mxu0
      %8233 = vmatprep.mubr.bf16.mxu0 0
      %8234 = vmatmul.mubr.bf16.gmra.mrb[0].mxu0 %v7926
      %v8235 = vpop.f32.mrb[0].mxu0
      %v8236 = vadd.f32 %v8075, %v8235
      %v8237 = vpop.f32.mrb[0].mxu0
      %v8238 = vpop.f32.mrb[0].mxu0
      %v8239 = vadd.f32 %v8078, %v8238
      %v8240 = vpop.f32.mrb[0].mxu0
      %8241 = vmatprep.mubr.bf16.mxu0 0
      %8242 = vmatmul.mubr.bf16.gmra.mrb[0].mxu0 %v7923
      %v8243 = vpop.f32.mrb[0].mxu0
      %v8244 = vadd.f32 %v8083, %v8243
      %v8245 = vpop.f32.mrb[0].mxu0
      %v8246 = vpop.f32.mrb[0].mxu0
      %v8247 = vadd.f32 %v8086, %v8246
      %v8248 = vpop.f32.mrb[0].mxu0
      %8249 = vdwg.mxu0
      %v8250 = vsel %vm3857, %v8124, 0.0
      %v8251 = vsel %vm3857, %v8127, 0.0
      %v8252 = vadd.f32 %v8250, %v8251
      %v8253 = vsel %vm3857, %v8132, 0.0
      %v8254 = vadd.f32 %v8252, %v8253
      %v8255 = vsel %vm3857, %v8135, 0.0
      %v8256 = vadd.f32 %v8254, %v8255
      %v8257 = vsel %vm3857, %v8140, 0.0
      %v8258 = vadd.f32 %v8256, %v8257
      %v8259 = vsel %vm3857, %v8143, 0.0
      %v8260 = vadd.f32 %v8258, %v8259
      %v8261 = vsel %vm3857, %v8148, 0.0
      %v8262 = vadd.f32 %v8260, %v8261
      %v8263 = vsel %vm3857, %v8151, 0.0
      %v8264 = vadd.f32 %v8262, %v8263
      %v8265 = vsel %vm3857, %v8156, 0.0
      %v8266 = vadd.f32 %v8264, %v8265
      %v8267 = vsel %vm3857, %v8159, 0.0
      %v8268 = vadd.f32 %v8266, %v8267
      %v8269 = vsel %vm3857, %v8164, 0.0
      %v8270 = vadd.f32 %v8268, %v8269
      %v8271 = vsel %vm3857, %v8167, 0.0
      %v8272 = vadd.f32 %v8270, %v8271
      %v8273 = vsel %vm3857, %v8172, 0.0
      %v8274 = vadd.f32 %v8272, %v8273
      %v8275 = vsel %vm3857, %v8175, 0.0
      %v8276 = vadd.f32 %v8274, %v8275
      %v8277 = vsel %vm3857, %v8180, 0.0
      %v8278 = vadd.f32 %v8276, %v8277
      %v8279 = vsel %vm3857, %v8183, 0.0
      %v8280 = vadd.f32 %v8278, %v8279
      %v8281 = vsel %vm3857, %v8188, 0.0
      %v8282 = vadd.f32 %v8280, %v8281
      %v8283 = vsel %vm3857, %v8191, 0.0
      %v8284 = vadd.f32 %v8282, %v8283
      %v8285 = vsel %vm3857, %v8196, 0.0
      %v8286 = vadd.f32 %v8284, %v8285
      %v8287 = vsel %vm3857, %v8199, 0.0
      %v8288 = vadd.f32 %v8286, %v8287
      %v8289 = vsel %vm3857, %v8204, 0.0
      %v8290 = vadd.f32 %v8288, %v8289
      %v8291 = vsel %vm3857, %v8207, 0.0
      %v8292 = vadd.f32 %v8290, %v8291
      %v8293 = vsel %vm3857, %v8212, 0.0
      %v8294 = vadd.f32 %v8292, %v8293
      %v8295 = vsel %vm3857, %v8215, 0.0
      %v8296 = vadd.f32 %v8294, %v8295
      %v8297 = vsel %vm3857, %v8220, 0.0
      %v8298 = vadd.f32 %v8296, %v8297
      %v8299 = vsel %vm3857, %v8223, 0.0
      %v8300 = vadd.f32 %v8298, %v8299
      %v8301 = vsel %vm3857, %v8228, 0.0
      %v8302 = vadd.f32 %v8300, %v8301
      %v8303 = vsel %vm3857, %v8231, 0.0
      %v8304 = vadd.f32 %v8302, %v8303
      %v8305 = vsel %vm3857, %v8236, 0.0
      %v8306 = vadd.f32 %v8304, %v8305
      %v8307 = vsel %vm3857, %v8239, 0.0
      %v8308 = vadd.f32 %v8306, %v8307
      %v8309 = vsel %vm3857, %v8244, 0.0
      %v8310 = vadd.f32 %v8308, %v8309
      %v8311 = vsel %vm3857, %v8247, 0.0
      %v8312 = vadd.f32 %v8310, %v8311
      %v8313 = vrot.slane %v8312, 4
      %v8314 = vadd.f32 %v8312, %v8313
      %v8315 = vrot.slane %v8314, 2
      %v8316 = vadd.f32 %v8314, %v8315
      %v8317 = vrot.slane %v8316, 1
      %v8318 = vadd.f32 %v8316, %v8317
      %v8319 = vmul.f32 %v8318, %v2200
      %v8320 = vmul.f32 %v8124, %v8124
      %v8321 = vmul.f32 %v8127, %v8127
      %v8322 = vmul.f32 %v8132, %v8132
      %v8323 = vmul.f32 %v8135, %v8135
      %v8324 = vmul.f32 %v8140, %v8140
      %v8325 = vmul.f32 %v8143, %v8143
      %v8326 = vmul.f32 %v8148, %v8148
      %v8327 = vmul.f32 %v8151, %v8151
      %v8328 = vmul.f32 %v8156, %v8156
      %v8329 = vmul.f32 %v8159, %v8159
      %v8330 = vmul.f32 %v8164, %v8164
      %v8331 = vmul.f32 %v8167, %v8167
      %v8332 = vmul.f32 %v8172, %v8172
      %v8333 = vmul.f32 %v8175, %v8175
      %v8334 = vmul.f32 %v8180, %v8180
      %v8335 = vmul.f32 %v8183, %v8183
      %v8336 = vmul.f32 %v8188, %v8188
      %v8337 = vmul.f32 %v8191, %v8191
      %v8338 = vmul.f32 %v8196, %v8196
      %v8339 = vmul.f32 %v8199, %v8199
      %v8340 = vmul.f32 %v8204, %v8204
      %v8341 = vmul.f32 %v8207, %v8207
      %v8342 = vmul.f32 %v8212, %v8212
      %v8343 = vmul.f32 %v8215, %v8215
      %v8344 = vmul.f32 %v8220, %v8220
      %v8345 = vmul.f32 %v8223, %v8223
      %v8346 = vmul.f32 %v8228, %v8228
      %v8347 = vmul.f32 %v8231, %v8231
      %v8348 = vmul.f32 %v8236, %v8236
      %v8349 = vmul.f32 %v8239, %v8239
      %v8350 = vmul.f32 %v8244, %v8244
      %v8351 = vmul.f32 %v8247, %v8247
      %v8352 = vsel %vm3857, %v8320, 0.0
      %v8353 = vsel %vm3857, %v8321, 0.0
      %v8354 = vadd.f32 %v8352, %v8353
      %v8355 = vsel %vm3857, %v8322, 0.0
      %v8356 = vadd.f32 %v8354, %v8355
      %v8357 = vsel %vm3857, %v8323, 0.0
      %v8358 = vadd.f32 %v8356, %v8357
      %v8359 = vsel %vm3857, %v8324, 0.0
      %v8360 = vadd.f32 %v8358, %v8359
      %v8361 = vsel %vm3857, %v8325, 0.0
      %v8362 = vadd.f32 %v8360, %v8361
      %v8363 = vsel %vm3857, %v8326, 0.0
      %v8364 = vadd.f32 %v8362, %v8363
      %v8365 = vsel %vm3857, %v8327, 0.0
      %v8366 = vadd.f32 %v8364, %v8365
      %v8367 = vsel %vm3857, %v8328, 0.0
      %v8368 = vadd.f32 %v8366, %v8367
      %v8369 = vsel %vm3857, %v8329, 0.0
      %v8370 = vadd.f32 %v8368, %v8369
      %v8371 = vsel %vm3857, %v8330, 0.0
      %v8372 = vadd.f32 %v8370, %v8371
      %v8373 = vsel %vm3857, %v8331, 0.0
      %v8374 = vadd.f32 %v8372, %v8373
      %v8375 = vsel %vm3857, %v8332, 0.0
      %v8376 = vadd.f32 %v8374, %v8375
      %v8377 = vsel %vm3857, %v8333, 0.0
      %v8378 = vadd.f32 %v8376, %v8377
      %v8379 = vsel %vm3857, %v8334, 0.0
      %v8380 = vadd.f32 %v8378, %v8379
      %v8381 = vsel %vm3857, %v8335, 0.0
      %v8382 = vadd.f32 %v8380, %v8381
      %v8383 = vsel %vm3857, %v8336, 0.0
      %v8384 = vadd.f32 %v8382, %v8383
      %v8385 = vsel %vm3857, %v8337, 0.0
      %v8386 = vadd.f32 %v8384, %v8385
      %v8387 = vsel %vm3857, %v8338, 0.0
      %v8388 = vadd.f32 %v8386, %v8387
      %v8389 = vsel %vm3857, %v8339, 0.0
      %v8390 = vadd.f32 %v8388, %v8389
      %v8391 = vsel %vm3857, %v8340, 0.0
      %v8392 = vadd.f32 %v8390, %v8391
      %v8393 = vsel %vm3857, %v8341, 0.0
      %v8394 = vadd.f32 %v8392, %v8393
      %v8395 = vsel %vm3857, %v8342, 0.0
      %v8396 = vadd.f32 %v8394, %v8395
      %v8397 = vsel %vm3857, %v8343, 0.0
      %v8398 = vadd.f32 %v8396, %v8397
      %v8399 = vsel %vm3857, %v8344, 0.0
      %v8400 = vadd.f32 %v8398, %v8399
      %v8401 = vsel %vm3857, %v8345, 0.0
      %v8402 = vadd.f32 %v8400, %v8401
      %v8403 = vsel %vm3857, %v8346, 0.0
      %v8404 = vadd.f32 %v8402, %v8403
      %v8405 = vsel %vm3857, %v8347, 0.0
      %v8406 = vadd.f32 %v8404, %v8405
      %v8407 = vsel %vm3857, %v8348, 0.0
      %v8408 = vadd.f32 %v8406, %v8407
      %v8409 = vsel %vm3857, %v8349, 0.0
      %v8410 = vadd.f32 %v8408, %v8409
      %v8411 = vsel %vm3857, %v8350, 0.0
      %v8412 = vadd.f32 %v8410, %v8411
      %v8413 = vsel %vm3857, %v8351, 0.0
      %v8414 = vadd.f32 %v8412, %v8413
      %v8415 = vrot.slane %v8414, 4
      %v8416 = vadd.f32 %v8414, %v8415
      %v8417 = vrot.slane %v8416, 2
      %v8418 = vadd.f32 %v8416, %v8417
      %v8419 = vrot.slane %v8418, 1
      %v8420 = vadd.f32 %v8418, %v8419
      %v8421 = vmul.f32 %v8420, %v2200
      %v8422 = vmul.f32 %v8319, %v8319
      %v8423 = vsub.f32 %v8421, %v8422
      %v8424 = vmax.f32 %v8423, 0.0
      %v8425 = vsub.f32 %v8124, %v8319
      %v8426 = vsub.f32 %v8127, %v8319
      %v8427 = vsub.f32 %v8132, %v8319
      %v8428 = vsub.f32 %v8135, %v8319
      %v8429 = vsub.f32 %v8140, %v8319
      %v8430 = vsub.f32 %v8143, %v8319
      %v8431 = vsub.f32 %v8148, %v8319
      %v8432 = vsub.f32 %v8151, %v8319
      %v8433 = vsub.f32 %v8156, %v8319
      %v8434 = vsub.f32 %v8159, %v8319
      %v8435 = vsub.f32 %v8164, %v8319
      %v8436 = vsub.f32 %v8167, %v8319
      %v8437 = vsub.f32 %v8172, %v8319
      %v8438 = vsub.f32 %v8175, %v8319
      %v8439 = vsub.f32 %v8180, %v8319
      %v8440 = vsub.f32 %v8183, %v8319
      %v8441 = vsub.f32 %v8188, %v8319
      %v8442 = vsub.f32 %v8191, %v8319
      %v8443 = vsub.f32 %v8196, %v8319
      %v8444 = vsub.f32 %v8199, %v8319
      %v8445 = vsub.f32 %v8204, %v8319
      %v8446 = vsub.f32 %v8207, %v8319
      %v8447 = vsub.f32 %v8212, %v8319
      %v8448 = vsub.f32 %v8215, %v8319
      %v8449 = vsub.f32 %v8220, %v8319
      %v8450 = vsub.f32 %v8223, %v8319
      %v8451 = vsub.f32 %v8228, %v8319
      %v8452 = vsub.f32 %v8231, %v8319
      %v8453 = vsub.f32 %v8236, %v8319
      %v8454 = vsub.f32 %v8239, %v8319
      %v8455 = vsub.f32 %v8244, %v8319
      %v8456 = vsub.f32 %v8247, %v8319
      %v8457 = vadd.f32 %v8424, 1e-05
      %v8458 = vrsqrt.pop %v8457
      %v8459 = vmul.f32 %v8425, %v8458
      %v8460 = vmul.f32 %v8426, %v8458
      %v8461 = vmul.f32 %v8427, %v8458
      %v8462 = vmul.f32 %v8428, %v8458
      %v8463 = vmul.f32 %v8429, %v8458
      %v8464 = vmul.f32 %v8430, %v8458
      %v8465 = vmul.f32 %v8431, %v8458
      %v8466 = vmul.f32 %v8432, %v8458
      %v8467 = vmul.f32 %v8433, %v8458
      %v8468 = vmul.f32 %v8434, %v8458
      %v8469 = vmul.f32 %v8435, %v8458
      %v8470 = vmul.f32 %v8436, %v8458
      %v8471 = vmul.f32 %v8437, %v8458
      %v8472 = vmul.f32 %v8438, %v8458
      %v8473 = vmul.f32 %v8439, %v8458
      %v8474 = vmul.f32 %v8440, %v8458
      %v8475 = vmul.f32 %v8441, %v8458
      %v8476 = vmul.f32 %v8442, %v8458
      %v8477 = vmul.f32 %v8443, %v8458
      %v8478 = vmul.f32 %v8444, %v8458
      %v8479 = vmul.f32 %v8445, %v8458
      %v8480 = vmul.f32 %v8446, %v8458
      %v8481 = vmul.f32 %v8447, %v8458
      %v8482 = vmul.f32 %v8448, %v8458
      %v8483 = vmul.f32 %v8449, %v8458
      %v8484 = vmul.f32 %v8450, %v8458
      %v8485 = vmul.f32 %v8451, %v8458
      %v8486 = vmul.f32 %v8452, %v8458
      %v8487 = vmul.f32 %v8453, %v8458
      %v8488 = vmul.f32 %v8454, %v8458
      %v8489 = vmul.f32 %v8455, %v8458
      %v8490 = vmul.f32 %v8456, %v8458
      %v8491 = vld [vmem:[%s8] sm:$0x1]
      %v8492 = vlaneseq
      %v8493 = vshrl.u32 %v8492, 7
      %v8494 = vsub.s32 0, %v8493
      %v8495 = vrot.slane %v8491, %v8494
      %v8496 = vmul.f32 %v8459, %v8495
      %v8497 = vmul.f32 %v8460, %v8495
      %v8498 = vmul.f32 %v8461, %v8495
      %v8499 = vmul.f32 %v8462, %v8495
      %v8500 = vmul.f32 %v8463, %v8495
      %v8501 = vmul.f32 %v8464, %v8495
      %v8502 = vmul.f32 %v8465, %v8495
      %v8503 = vmul.f32 %v8466, %v8495
      %v8504 = vmul.f32 %v8467, %v8495
      %v8505 = vmul.f32 %v8468, %v8495
      %v8506 = vmul.f32 %v8469, %v8495
      %v8507 = vmul.f32 %v8470, %v8495
      %v8508 = vmul.f32 %v8471, %v8495
      %v8509 = vmul.f32 %v8472, %v8495
      %v8510 = vmul.f32 %v8473, %v8495
      %v8511 = vmul.f32 %v8474, %v8495
      %v8512 = vmul.f32 %v8475, %v8495
      %v8513 = vmul.f32 %v8476, %v8495
      %v8514 = vmul.f32 %v8477, %v8495
      %v8515 = vmul.f32 %v8478, %v8495
      %v8516 = vmul.f32 %v8479, %v8495
      %v8517 = vmul.f32 %v8480, %v8495
      %v8518 = vmul.f32 %v8481, %v8495
      %v8519 = vmul.f32 %v8482, %v8495
      %v8520 = vmul.f32 %v8483, %v8495
      %v8521 = vmul.f32 %v8484, %v8495
      %v8522 = vmul.f32 %v8485, %v8495
      %v8523 = vmul.f32 %v8486, %v8495
      %v8524 = vmul.f32 %v8487, %v8495
      %v8525 = vmul.f32 %v8488, %v8495
      %v8526 = vmul.f32 %v8489, %v8495
      %v8527 = vmul.f32 %v8490, %v8495
      %v8528 = vld [vmem:[%s8 + $0x1] sm:$0x1]
      %v8529 = vlaneseq
      %v8530 = vshrl.u32 %v8529, 7
      %v8531 = vsub.s32 0, %v8530
      %v8532 = vrot.slane %v8528, %v8531
      %v8533 = vadd.f32 %v8496, %v8532
      %v8534 = vadd.f32 %v8497, %v8532
      %v8535 = vadd.f32 %v8498, %v8532
      %v8536 = vadd.f32 %v8499, %v8532
      %v8537 = vadd.f32 %v8500, %v8532
      %v8538 = vadd.f32 %v8501, %v8532
      %v8539 = vadd.f32 %v8502, %v8532
      %v8540 = vadd.f32 %v8503, %v8532
      %v8541 = vadd.f32 %v8504, %v8532
      %v8542 = vadd.f32 %v8505, %v8532
      %v8543 = vadd.f32 %v8506, %v8532
      %v8544 = vadd.f32 %v8507, %v8532
      %v8545 = vadd.f32 %v8508, %v8532
      %v8546 = vadd.f32 %v8509, %v8532
      %v8547 = vadd.f32 %v8510, %v8532
      %v8548 = vadd.f32 %v8511, %v8532
      %v8549 = vadd.f32 %v8512, %v8532
      %v8550 = vadd.f32 %v8513, %v8532
      %v8551 = vadd.f32 %v8514, %v8532
      %v8552 = vadd.f32 %v8515, %v8532
      %v8553 = vadd.f32 %v8516, %v8532
      %v8554 = vadd.f32 %v8517, %v8532
      %v8555 = vadd.f32 %v8518, %v8532
      %v8556 = vadd.f32 %v8519, %v8532
      %v8557 = vadd.f32 %v8520, %v8532
      %v8558 = vadd.f32 %v8521, %v8532
      %v8559 = vadd.f32 %v8522, %v8532
      %v8560 = vadd.f32 %v8523, %v8532
      %v8561 = vadd.f32 %v8524, %v8532
      %v8562 = vadd.f32 %v8525, %v8532
      %v8563 = vadd.f32 %v8526, %v8532
      %v8564 = vadd.f32 %v8527, %v8532
      %v8565 = vmax.f32 %v8533, 0.0
      %v8566 = vmax.f32 %v8534, 0.0
      %v8567 = vmax.f32 %v8535, 0.0
      %v8568 = vmax.f32 %v8536, 0.0
      %v8569 = vmax.f32 %v8537, 0.0
      %v8570 = vmax.f32 %v8538, 0.0
      %v8571 = vmax.f32 %v8539, 0.0
      %v8572 = vmax.f32 %v8540, 0.0
      %v8573 = vmax.f32 %v8541, 0.0
      %v8574 = vmax.f32 %v8542, 0.0
      %v8575 = vmax.f32 %v8543, 0.0
      %v8576 = vmax.f32 %v8544, 0.0
      %v8577 = vmax.f32 %v8545, 0.0
      %v8578 = vmax.f32 %v8546, 0.0
      %v8579 = vmax.f32 %v8547, 0.0
      %v8580 = vmax.f32 %v8548, 0.0
      %v8581 = vmax.f32 %v8549, 0.0
      %v8582 = vmax.f32 %v8550, 0.0
      %v8583 = vmax.f32 %v8551, 0.0
      %v8584 = vmax.f32 %v8552, 0.0
      %v8585 = vmax.f32 %v8553, 0.0
      %v8586 = vmax.f32 %v8554, 0.0
      %v8587 = vmax.f32 %v8555, 0.0
      %v8588 = vmax.f32 %v8556, 0.0
      %v8589 = vmax.f32 %v8557, 0.0
      %v8590 = vmax.f32 %v8558, 0.0
      %v8591 = vmax.f32 %v8559, 0.0
      %v8592 = vmax.f32 %v8560, 0.0
      %v8593 = vmax.f32 %v8561, 0.0
      %v8594 = vmax.f32 %v8562, 0.0
      %v8595 = vmax.f32 %v8563, 0.0
      %v8596 = vmax.f32 %v8564, 0.0
      %v8597 = vpack.c.bf16 %v8566, %v8565
      %v8598 = vpack.c.bf16 %v8568, %v8567
      %v8599 = vpack.c.bf16 %v8570, %v8569
      %v8600 = vpack.c.bf16 %v8572, %v8571
      %v8601 = vpack.c.bf16 %v8574, %v8573
      %v8602 = vpack.c.bf16 %v8576, %v8575
      %v8603 = vpack.c.bf16 %v8578, %v8577
      %v8604 = vpack.c.bf16 %v8580, %v8579
      %v8605 = vpack.c.bf16 %v8582, %v8581
      %v8606 = vpack.c.bf16 %v8584, %v8583
      %v8607 = vpack.c.bf16 %v8586, %v8585
      %v8608 = vpack.c.bf16 %v8588, %v8587
      %v8609 = vpack.c.bf16 %v8590, %v8589
      %v8610 = vpack.c.bf16 %v8592, %v8591
      %v8611 = vpack.c.bf16 %v8594, %v8593
      %v8612 = vpack.c.bf16 %v8596, %v8595
      %v8613 = vld [vmem:[%s9] sm:$0xf]
      %v8614 = vld [vmem:[%s9 + $0x4] sm:$0xf]
      %v8615 = vld [vmem:[%s9 + $0x8] sm:$0xf]
      %v8616 = vld [vmem:[%s9 + $0xc] sm:$0xf]
      %v8617 = vld [vmem:[%s9 + $0x10] sm:$0xf]
      %v8618 = vld [vmem:[%s9 + $0x14] sm:$0xf]
      %v8619 = vld [vmem:[%s9 + $0x18] sm:$0xf]
      %v8620 = vld [vmem:[%s9 + $0x1c] sm:$0xf]
      %v8629 = vunpack.c.l.b16 %v8613
      %v8630 = vunpack.c.l.b16 %v8614
      %v8631 = vunpack.c.l.b16 %v8615
      %v8632 = vunpack.c.l.b16 %v8616
      %v8633 = vunpack.c.l.b16 %v8617
      %v8634 = vunpack.c.l.b16 %v8618
      %v8635 = vunpack.c.l.b16 %v8619
      %v8636 = vunpack.c.l.b16 %v8620
      %v8637 = vpack.c.b16 %v8630, %v8629
      %v8638 = vpack.c.b16 %v8632, %v8631
      %v8639 = vpack.c.b16 %v8634, %v8633
      %v8640 = vpack.c.b16 %v8636, %v8635
      %v8646 = vsel %vm3857, %v8597, 0
      %v8649 = vsel %vm3857, %v8598, 0
      %v8652 = vsel %vm3857, %v8599, 0
      %v8655 = vsel %vm3857, %v8600, 0
      %v8658 = vsel %vm3857, %v8601, 0
      %v8661 = vsel %vm3857, %v8602, 0
      %v8664 = vsel %vm3857, %v8603, 0
      %v8667 = vsel %vm3857, %v8604, 0
      %v8670 = vsel %vm3857, %v8605, 0
      %v8673 = vsel %vm3857, %v8606, 0
      %v8676 = vsel %vm3857, %v8607, 0
      %v8679 = vsel %vm3857, %v8608, 0
      %v8682 = vsel %vm3857, %v8609, 0
      %v8685 = vsel %vm3857, %v8610, 0
      %v8688 = vsel %vm3857, %v8611, 0
      %v8691 = vsel %vm3857, %v8612, 0
      %8693 = vmatprep.subr.bf16.mxu0 0
      %8694 = vmatpush1.bf16.msra.mxu0 %v8637
      %8695 = vmatprep.subr.bf16.mxu0 0
      %8696 = vmatpush1.bf16.msra.mxu0 %v8638
      %8697 = vmatprep.subr.bf16.mxu0 0
      %8698 = vmatpush1.bf16.msra.mxu0 %v8639
      %8699 = vmatprep.subr.bf16.mxu0 0
      %8700 = vmatpush1.bf16.msra.mxu0 %v8640
      %8701 = vmatprep.subr.bf16.mxu0 0
      %8702 = vmatpush1.bf16.msra.mxu0 0
      %8703 = vmatprep.subr.bf16.mxu0 0
      %8704 = vmatpush1.bf16.msra.mxu0 0
      %8705 = vmatprep.subr.bf16.mxu0 0
      %8706 = vmatpush1.bf16.msra.mxu0 0
      %8707 = vmatprep.subr.bf16.mxu0 0
      %8708 = vmatpush1.bf16.msra.mxu0 0
      %8709 = vmatprep.subr.bf16.mxu0 0
      %8710 = vmatpush1.bf16.msra.mxu0 0
      %8711 = vmatprep.subr.bf16.mxu0 0
      %8712 = vmatpush1.bf16.msra.mxu0 0
      %8713 = vmatprep.subr.bf16.mxu0 0
      %8714 = vmatpush1.bf16.msra.mxu0 0
      %8715 = vmatprep.subr.bf16.mxu0 0
      %8716 = vmatpush1.bf16.msra.mxu0 0
      %8717 = vmatprep.subr.bf16.mxu0 0
      %8718 = vmatpush1.bf16.msra.mxu0 0
      %8719 = vmatprep.subr.bf16.mxu0 0
      %8720 = vmatpush1.bf16.msra.mxu0 0
      %8721 = vmatprep.subr.bf16.mxu0 0
      %8722 = vmatpush1.bf16.msra.mxu0 0
      %8723 = vmatprep.subr.bf16.mxu0 0
      %8724 = vmatpush1.bf16.msra.mxu0 0
      %8725 = vmatprep.mubr.bf16.mxu0 0
      %8726 = vmatmul.mubr.bf16.gmra.mrb[0].mxu0 %v8646
      %v8727 = vpop.f32.mrb[0].mxu0
      %v8728 = vadd.f32 0.0, %v8727
      %v8729 = vpop.f32.mrb[0].mxu0
      %v8730 = vpop.f32.mrb[0].mxu0
      %v8731 = vadd.f32 0.0, %v8730
      %v8732 = vpop.f32.mrb[0].mxu0
      %8733 = vmatprep.mubr.bf16.mxu0 0
      %8734 = vmatmul.mubr.bf16.gmra.mrb[0].mxu0 %v8649
      %v8735 = vpop.f32.mrb[0].mxu0
      %v8736 = vadd.f32 0.0, %v8735
      %v8737 = vpop.f32.mrb[0].mxu0
      %v8738 = vpop.f32.mrb[0].mxu0
      %v8739 = vadd.f32 0.0, %v8738
      %v8740 = vpop.f32.mrb[0].mxu0
      %8741 = vmatprep.mubr.bf16.mxu0 0
      %8742 = vmatmul.mubr.bf16.gmra.mrb[0].mxu0 %v8652
      %v8743 = vpop.f32.mrb[0].mxu0
      %v8744 = vadd.f32 0.0, %v8743
      %v8745 = vpop.f32.mrb[0].mxu0
      %v8746 = vpop.f32.mrb[0].mxu0
      %v8747 = vadd.f32 0.0, %v8746
      %v8748 = vpop.f32.mrb[0].mxu0
      %8749 = vmatprep.mubr.bf16.mxu0 0
      %8750 = vmatmul.mubr.bf16.gmra.mrb[0].mxu0 %v8655
      %v8751 = vpop.f32.mrb[0].mxu0
      %v8752 = vadd.f32 0.0, %v8751
      %v8753 = vpop.f32.mrb[0].mxu0
      %v8754 = vpop.f32.mrb[0].mxu0
      %v8755 = vadd.f32 0.0, %v8754
      %v8756 = vpop.f32.mrb[0].mxu0
      %8757 = vmatprep.mubr.bf16.mxu0 0
      %8758 = vmatmul.mubr.bf16.gmra.mrb[0].mxu0 %v8658
      %v8759 = vpop.f32.mrb[0].mxu0
      %v8760 = vadd.f32 0.0, %v8759
      %v8761 = vpop.f32.mrb[0].mxu0
      %v8762 = vpop.f32.mrb[0].mxu0
      %v8763 = vadd.f32 0.0, %v8762
      %v8764 = vpop.f32.mrb[0].mxu0
      %8765 = vmatprep.mubr.bf16.mxu0 0
      %8766 = vmatmul.mubr.bf16.gmra.mrb[0].mxu0 %v8661
      %v8767 = vpop.f32.mrb[0].mxu0
      %v8768 = vadd.f32 0.0, %v8767
      %v8769 = vpop.f32.mrb[0].mxu0
      %v8770 = vpop.f32.mrb[0].mxu0
      %v8771 = vadd.f32 0.0, %v8770
      %v8772 = vpop.f32.mrb[0].mxu0
      %8773 = vmatprep.mubr.bf16.mxu0 0
      %8774 = vmatmul.mubr.bf16.gmra.mrb[0].mxu0 %v8664
      %v8775 = vpop.f32.mrb[0].mxu0
      %v8776 = vadd.f32 0.0, %v8775
      %v8777 = vpop.f32.mrb[0].mxu0
      %v8778 = vpop.f32.mrb[0].mxu0
      %v8779 = vadd.f32 0.0, %v8778
      %v8780 = vpop.f32.mrb[0].mxu0
      %8781 = vmatprep.mubr.bf16.mxu0 0
      %8782 = vmatmul.mubr.bf16.gmra.mrb[0].mxu0 %v8667
      %v8783 = vpop.f32.mrb[0].mxu0
      %v8784 = vadd.f32 0.0, %v8783
      %v8785 = vpop.f32.mrb[0].mxu0
      %v8786 = vpop.f32.mrb[0].mxu0
      %v8787 = vadd.f32 0.0, %v8786
      %v8788 = vpop.f32.mrb[0].mxu0
      %8789 = vmatprep.mubr.bf16.mxu0 0
      %8790 = vmatmul.mubr.bf16.gmra.mrb[0].mxu0 %v8670
      %v8791 = vpop.f32.mrb[0].mxu0
      %v8792 = vadd.f32 0.0, %v8791
      %v8793 = vpop.f32.mrb[0].mxu0
      %v8794 = vpop.f32.mrb[0].mxu0
      %v8795 = vadd.f32 0.0, %v8794
      %v8796 = vpop.f32.mrb[0].mxu0
      %8797 = vmatprep.mubr.bf16.mxu0 0
      %8798 = vmatmul.mubr.bf16.gmra.mrb[0].mxu0 %v8673
      %v8799 = vpop.f32.mrb[0].mxu0
      %v8800 = vadd.f32 0.0, %v8799
      %v8801 = vpop.f32.mrb[0].mxu0
      %v8802 = vpop.f32.mrb[0].mxu0
      %v8803 = vadd.f32 0.0, %v8802
      %v8804 = vpop.f32.mrb[0].mxu0
      %8805 = vmatprep.mubr.bf16.mxu0 0
      %8806 = vmatmul.mubr.bf16.gmra.mrb[0].mxu0 %v8676
      %v8807 = vpop.f32.mrb[0].mxu0
      %v8808 = vadd.f32 0.0, %v8807
      %v8809 = vpop.f32.mrb[0].mxu0
      %v8810 = vpop.f32.mrb[0].mxu0
      %v8811 = vadd.f32 0.0, %v8810
      %v8812 = vpop.f32.mrb[0].mxu0
      %8813 = vmatprep.mubr.bf16.mxu0 0
      %8814 = vmatmul.mubr.bf16.gmra.mrb[0].mxu0 %v8679
      %v8815 = vpop.f32.mrb[0].mxu0
      %v8816 = vadd.f32 0.0, %v8815
      %v8817 = vpop.f32.mrb[0].mxu0
      %v8818 = vpop.f32.mrb[0].mxu0
      %v8819 = vadd.f32 0.0, %v8818
      %v8820 = vpop.f32.mrb[0].mxu0
      %8821 = vmatprep.mubr.bf16.mxu0 0
      %8822 = vmatmul.mubr.bf16.gmra.mrb[0].mxu0 %v8682
      %v8823 = vpop.f32.mrb[0].mxu0
      %v8824 = vadd.f32 0.0, %v8823
      %v8825 = vpop.f32.mrb[0].mxu0
      %v8826 = vpop.f32.mrb[0].mxu0
      %v8827 = vadd.f32 0.0, %v8826
      %v8828 = vpop.f32.mrb[0].mxu0
      %8829 = vmatprep.mubr.bf16.mxu0 0
      %8830 = vmatmul.mubr.bf16.gmra.mrb[0].mxu0 %v8685
      %v8831 = vpop.f32.mrb[0].mxu0
      %v8832 = vadd.f32 0.0, %v8831
      %v8833 = vpop.f32.mrb[0].mxu0
      %v8834 = vpop.f32.mrb[0].mxu0
      %v8835 = vadd.f32 0.0, %v8834
      %v8836 = vpop.f32.mrb[0].mxu0
      %8837 = vmatprep.mubr.bf16.mxu0 0
      %8838 = vmatmul.mubr.bf16.gmra.mrb[0].mxu0 %v8688
      %v8839 = vpop.f32.mrb[0].mxu0
      %v8840 = vadd.f32 0.0, %v8839
      %v8841 = vpop.f32.mrb[0].mxu0
      %v8842 = vpop.f32.mrb[0].mxu0
      %v8843 = vadd.f32 0.0, %v8842
      %v8844 = vpop.f32.mrb[0].mxu0
      %8845 = vmatprep.mubr.bf16.mxu0 0
      %8846 = vmatmul.mubr.bf16.gmra.mrb[0].mxu0 %v8691
      %v8847 = vpop.f32.mrb[0].mxu0
      %v8848 = vadd.f32 0.0, %v8847
      %v8849 = vpop.f32.mrb[0].mxu0
      %v8850 = vpop.f32.mrb[0].mxu0
      %v8851 = vadd.f32 0.0, %v8850
      %v8852 = vpop.f32.mrb[0].mxu0
      %8853 = vdwg.mxu0
      %vm8854 = vcmask 187392
      %v8855 = vsel %vm8854, %v8728, 0.0
      %v8856 = vsel %vm8854, %v8731, 0.0
      %v8857 = vadd.f32 %v8855, %v8856
      %v8858 = vsel %vm8854, %v8736, 0.0
      %v8859 = vadd.f32 %v8857, %v8858
      %v8860 = vsel %vm8854, %v8739, 0.0
      %v8861 = vadd.f32 %v8859, %v8860
      %v8862 = vsel %vm8854, %v8744, 0.0
      %v8863 = vadd.f32 %v8861, %v8862
      %v8864 = vsel %vm8854, %v8747, 0.0
      %v8865 = vadd.f32 %v8863, %v8864
      %v8866 = vsel %vm8854, %v8752, 0.0
      %v8867 = vadd.f32 %v8865, %v8866
      %v8868 = vsel %vm8854, %v8755, 0.0
      %v8869 = vadd.f32 %v8867, %v8868
      %v8870 = vsel %vm8854, %v8760, 0.0
      %v8871 = vadd.f32 %v8869, %v8870
      %v8872 = vsel %vm8854, %v8763, 0.0
      %v8873 = vadd.f32 %v8871, %v8872
      %v8874 = vsel %vm8854, %v8768, 0.0
      %v8875 = vadd.f32 %v8873, %v8874
      %v8876 = vsel %vm8854, %v8771, 0.0
      %v8877 = vadd.f32 %v8875, %v8876
      %v8878 = vsel %vm8854, %v8776, 0.0
      %v8879 = vadd.f32 %v8877, %v8878
      %v8880 = vsel %vm8854, %v8779, 0.0
      %v8881 = vadd.f32 %v8879, %v8880
      %v8882 = vsel %vm8854, %v8784, 0.0
      %v8883 = vadd.f32 %v8881, %v8882
      %v8884 = vsel %vm8854, %v8787, 0.0
      %v8885 = vadd.f32 %v8883, %v8884
      %v8886 = vsel %vm8854, %v8792, 0.0
      %v8887 = vadd.f32 %v8885, %v8886
      %v8888 = vsel %vm8854, %v8795, 0.0
      %v8889 = vadd.f32 %v8887, %v8888
      %v8890 = vsel %vm8854, %v8800, 0.0
      %v8891 = vadd.f32 %v8889, %v8890
      %v8892 = vsel %vm8854, %v8803, 0.0
      %v8893 = vadd.f32 %v8891, %v8892
      %v8894 = vsel %vm8854, %v8808, 0.0
      %v8895 = vadd.f32 %v8893, %v8894
      %v8896 = vsel %vm8854, %v8811, 0.0
      %v8897 = vadd.f32 %v8895, %v8896
      %v8898 = vsel %vm8854, %v8816, 0.0
      %v8899 = vadd.f32 %v8897, %v8898
      %v8900 = vsel %vm8854, %v8819, 0.0
      %v8901 = vadd.f32 %v8899, %v8900
      %v8902 = vsel %vm8854, %v8824, 0.0
      %v8903 = vadd.f32 %v8901, %v8902
      %v8904 = vsel %vm8854, %v8827, 0.0
      %v8905 = vadd.f32 %v8903, %v8904
      %v8906 = vsel %vm8854, %v8832, 0.0
      %v8907 = vadd.f32 %v8905, %v8906
      %v8908 = vsel %vm8854, %v8835, 0.0
      %v8909 = vadd.f32 %v8907, %v8908
      %v8910 = vsel %vm8854, %v8840, 0.0
      %v8911 = vadd.f32 %v8909, %v8910
      %v8912 = vsel %vm8854, %v8843, 0.0
      %v8913 = vadd.f32 %v8911, %v8912
      %v8914 = vsel %vm8854, %v8848, 0.0
      %v8915 = vadd.f32 %v8913, %v8914
      %v8916 = vsel %vm8854, %v8851, 0.0
      %v8917 = vadd.f32 %v8915, %v8916
      %v8918 = vrot.slane %v8917, 4
      %v8919 = vadd.f32 %v8917, %v8918
      %v8920 = vrot.slane %v8919, 2
      %v8921 = vadd.f32 %v8919, %v8920
      %v8922 = vrot.slane %v8921, 1
      %v8923 = vadd.f32 %v8921, %v8922
      %v8924 = vmul.f32 %v8923, %v2200
      %v8925 = vmul.f32 %v8728, %v8728
      %v8926 = vmul.f32 %v8731, %v8731
      %v8927 = vmul.f32 %v8736, %v8736
      %v8928 = vmul.f32 %v8739, %v8739
      %v8929 = vmul.f32 %v8744, %v8744
      %v8930 = vmul.f32 %v8747, %v8747
      %v8931 = vmul.f32 %v8752, %v8752
      %v8932 = vmul.f32 %v8755, %v8755
      %v8933 = vmul.f32 %v8760, %v8760
      %v8934 = vmul.f32 %v8763, %v8763
      %v8935 = vmul.f32 %v8768, %v8768
      %v8936 = vmul.f32 %v8771, %v8771
      %v8937 = vmul.f32 %v8776, %v8776
      %v8938 = vmul.f32 %v8779, %v8779
      %v8939 = vmul.f32 %v8784, %v8784
      %v8940 = vmul.f32 %v8787, %v8787
      %v8941 = vmul.f32 %v8792, %v8792
      %v8942 = vmul.f32 %v8795, %v8795
      %v8943 = vmul.f32 %v8800, %v8800
      %v8944 = vmul.f32 %v8803, %v8803
      %v8945 = vmul.f32 %v8808, %v8808
      %v8946 = vmul.f32 %v8811, %v8811
      %v8947 = vmul.f32 %v8816, %v8816
      %v8948 = vmul.f32 %v8819, %v8819
      %v8949 = vmul.f32 %v8824, %v8824
      %v8950 = vmul.f32 %v8827, %v8827
      %v8951 = vmul.f32 %v8832, %v8832
      %v8952 = vmul.f32 %v8835, %v8835
      %v8953 = vmul.f32 %v8840, %v8840
      %v8954 = vmul.f32 %v8843, %v8843
      %v8955 = vmul.f32 %v8848, %v8848
      %v8956 = vmul.f32 %v8851, %v8851
      %v8957 = vsel %vm8854, %v8925, 0.0
      %v8958 = vsel %vm8854, %v8926, 0.0
      %v8959 = vadd.f32 %v8957, %v8958
      %v8960 = vsel %vm8854, %v8927, 0.0
      %v8961 = vadd.f32 %v8959, %v8960
      %v8962 = vsel %vm8854, %v8928, 0.0
      %v8963 = vadd.f32 %v8961, %v8962
      %v8964 = vsel %vm8854, %v8929, 0.0
      %v8965 = vadd.f32 %v8963, %v8964
      %v8966 = vsel %vm8854, %v8930, 0.0
      %v8967 = vadd.f32 %v8965, %v8966
      %v8968 = vsel %vm8854, %v8931, 0.0
      %v8969 = vadd.f32 %v8967, %v8968
      %v8970 = vsel %vm8854, %v8932, 0.0
      %v8971 = vadd.f32 %v8969, %v8970
      %v8972 = vsel %vm8854, %v8933, 0.0
      %v8973 = vadd.f32 %v8971, %v8972
      %v8974 = vsel %vm8854, %v8934, 0.0
      %v8975 = vadd.f32 %v8973, %v8974
      %v8976 = vsel %vm8854, %v8935, 0.0
      %v8977 = vadd.f32 %v8975, %v8976
      %v8978 = vsel %vm8854, %v8936, 0.0
      %v8979 = vadd.f32 %v8977, %v8978
      %v8980 = vsel %vm8854, %v8937, 0.0
      %v8981 = vadd.f32 %v8979, %v8980
      %v8982 = vsel %vm8854, %v8938, 0.0
      %v8983 = vadd.f32 %v8981, %v8982
      %v8984 = vsel %vm8854, %v8939, 0.0
      %v8985 = vadd.f32 %v8983, %v8984
      %v8986 = vsel %vm8854, %v8940, 0.0
      %v8987 = vadd.f32 %v8985, %v8986
      %v8988 = vsel %vm8854, %v8941, 0.0
      %v8989 = vadd.f32 %v8987, %v8988
      %v8990 = vsel %vm8854, %v8942, 0.0
      %v8991 = vadd.f32 %v8989, %v8990
      %v8992 = vsel %vm8854, %v8943, 0.0
      %v8993 = vadd.f32 %v8991, %v8992
      %v8994 = vsel %vm8854, %v8944, 0.0
      %v8995 = vadd.f32 %v8993, %v8994
      %v8996 = vsel %vm8854, %v8945, 0.0
      %v8997 = vadd.f32 %v8995, %v8996
      %v8998 = vsel %vm8854, %v8946, 0.0
      %v8999 = vadd.f32 %v8997, %v8998
      %v9000 = vsel %vm8854, %v8947, 0.0
      %v9001 = vadd.f32 %v8999, %v9000
      %v9002 = vsel %vm8854, %v8948, 0.0
      %v9003 = vadd.f32 %v9001, %v9002
      %v9004 = vsel %vm8854, %v8949, 0.0
      %v9005 = vadd.f32 %v9003, %v9004
      %v9006 = vsel %vm8854, %v8950, 0.0
      %v9007 = vadd.f32 %v9005, %v9006
      %v9008 = vsel %vm8854, %v8951, 0.0
      %v9009 = vadd.f32 %v9007, %v9008
      %v9010 = vsel %vm8854, %v8952, 0.0
      %v9011 = vadd.f32 %v9009, %v9010
      %v9012 = vsel %vm8854, %v8953, 0.0
      %v9013 = vadd.f32 %v9011, %v9012
      %v9014 = vsel %vm8854, %v8954, 0.0
      %v9015 = vadd.f32 %v9013, %v9014
      %v9016 = vsel %vm8854, %v8955, 0.0
      %v9017 = vadd.f32 %v9015, %v9016
      %v9018 = vsel %vm8854, %v8956, 0.0
      %v9019 = vadd.f32 %v9017, %v9018
      %v9020 = vrot.slane %v9019, 4
      %v9021 = vadd.f32 %v9019, %v9020
      %v9022 = vrot.slane %v9021, 2
      %v9023 = vadd.f32 %v9021, %v9022
      %v9024 = vrot.slane %v9023, 1
      %v9025 = vadd.f32 %v9023, %v9024
      %v9026 = vmul.f32 %v9025, %v2200
      %v9027 = vmul.f32 %v8924, %v8924
      %v9028 = vsub.f32 %v9026, %v9027
      %v9029 = vmax.f32 %v9028, 0.0
      %v9030 = vsub.f32 %v8728, %v8924
      %v9031 = vsub.f32 %v8731, %v8924
      %v9032 = vsub.f32 %v8736, %v8924
      %v9033 = vsub.f32 %v8739, %v8924
      %v9034 = vsub.f32 %v8744, %v8924
      %v9035 = vsub.f32 %v8747, %v8924
      %v9036 = vsub.f32 %v8752, %v8924
      %v9037 = vsub.f32 %v8755, %v8924
      %v9038 = vsub.f32 %v8760, %v8924
      %v9039 = vsub.f32 %v8763, %v8924
      %v9040 = vsub.f32 %v8768, %v8924
      %v9041 = vsub.f32 %v8771, %v8924
      %v9042 = vsub.f32 %v8776, %v8924
      %v9043 = vsub.f32 %v8779, %v8924
      %v9044 = vsub.f32 %v8784, %v8924
      %v9045 = vsub.f32 %v8787, %v8924
      %v9046 = vsub.f32 %v8792, %v8924
      %v9047 = vsub.f32 %v8795, %v8924
      %v9048 = vsub.f32 %v8800, %v8924
      %v9049 = vsub.f32 %v8803, %v8924
      %v9050 = vsub.f32 %v8808, %v8924
      %v9051 = vsub.f32 %v8811, %v8924
      %v9052 = vsub.f32 %v8816, %v8924
      %v9053 = vsub.f32 %v8819, %v8924
      %v9054 = vsub.f32 %v8824, %v8924
      %v9055 = vsub.f32 %v8827, %v8924
      %v9056 = vsub.f32 %v8832, %v8924
      %v9057 = vsub.f32 %v8835, %v8924
      %v9058 = vsub.f32 %v8840, %v8924
      %v9059 = vsub.f32 %v8843, %v8924
      %v9060 = vsub.f32 %v8848, %v8924
      %v9061 = vsub.f32 %v8851, %v8924
      %v9062 = vadd.f32 %v9029, 1e-05
      %v9063 = vrsqrt.pop %v9062
      %v9064 = vmul.f32 %v9030, %v9063
      %v9065 = vmul.f32 %v9031, %v9063
      %v9066 = vmul.f32 %v9032, %v9063
      %v9067 = vmul.f32 %v9033, %v9063
      %v9068 = vmul.f32 %v9034, %v9063
      %v9069 = vmul.f32 %v9035, %v9063
      %v9070 = vmul.f32 %v9036, %v9063
      %v9071 = vmul.f32 %v9037, %v9063
      %v9072 = vmul.f32 %v9038, %v9063
      %v9073 = vmul.f32 %v9039, %v9063
      %v9074 = vmul.f32 %v9040, %v9063
      %v9075 = vmul.f32 %v9041, %v9063
      %v9076 = vmul.f32 %v9042, %v9063
      %v9077 = vmul.f32 %v9043, %v9063
      %v9078 = vmul.f32 %v9044, %v9063
      %v9079 = vmul.f32 %v9045, %v9063
      %v9080 = vmul.f32 %v9046, %v9063
      %v9081 = vmul.f32 %v9047, %v9063
      %v9082 = vmul.f32 %v9048, %v9063
      %v9083 = vmul.f32 %v9049, %v9063
      %v9084 = vmul.f32 %v9050, %v9063
      %v9085 = vmul.f32 %v9051, %v9063
      %v9086 = vmul.f32 %v9052, %v9063
      %v9087 = vmul.f32 %v9053, %v9063
      %v9088 = vmul.f32 %v9054, %v9063
      %v9089 = vmul.f32 %v9055, %v9063
      %v9090 = vmul.f32 %v9056, %v9063
      %v9091 = vmul.f32 %v9057, %v9063
      %v9092 = vmul.f32 %v9058, %v9063
      %v9093 = vmul.f32 %v9059, %v9063
      %v9094 = vmul.f32 %v9060, %v9063
      %v9095 = vmul.f32 %v9061, %v9063
      %v9096 = vld [vmem:[%s10] sm:$0x1]
      %v9097 = vlaneseq
      %v9098 = vshrl.u32 %v9097, 7
      %v9099 = vsub.s32 0, %v9098
      %v9100 = vrot.slane %v9096, %v9099
      %v9101 = vmul.f32 %v9064, %v9100
      %v9102 = vmul.f32 %v9065, %v9100
      %v9103 = vmul.f32 %v9066, %v9100
      %v9104 = vmul.f32 %v9067, %v9100
      %v9105 = vmul.f32 %v9068, %v9100
      %v9106 = vmul.f32 %v9069, %v9100
      %v9107 = vmul.f32 %v9070, %v9100
      %v9108 = vmul.f32 %v9071, %v9100
      %v9109 = vmul.f32 %v9072, %v9100
      %v9110 = vmul.f32 %v9073, %v9100
      %v9111 = vmul.f32 %v9074, %v9100
      %v9112 = vmul.f32 %v9075, %v9100
      %v9113 = vmul.f32 %v9076, %v9100
      %v9114 = vmul.f32 %v9077, %v9100
      %v9115 = vmul.f32 %v9078, %v9100
      %v9116 = vmul.f32 %v9079, %v9100
      %v9117 = vmul.f32 %v9080, %v9100
      %v9118 = vmul.f32 %v9081, %v9100
      %v9119 = vmul.f32 %v9082, %v9100
      %v9120 = vmul.f32 %v9083, %v9100
      %v9121 = vmul.f32 %v9084, %v9100
      %v9122 = vmul.f32 %v9085, %v9100
      %v9123 = vmul.f32 %v9086, %v9100
      %v9124 = vmul.f32 %v9087, %v9100
      %v9125 = vmul.f32 %v9088, %v9100
      %v9126 = vmul.f32 %v9089, %v9100
      %v9127 = vmul.f32 %v9090, %v9100
      %v9128 = vmul.f32 %v9091, %v9100
      %v9129 = vmul.f32 %v9092, %v9100
      %v9130 = vmul.f32 %v9093, %v9100
      %v9131 = vmul.f32 %v9094, %v9100
      %v9132 = vmul.f32 %v9095, %v9100
      %v9133 = vld [vmem:[%s10 + $0x1] sm:$0x1]
      %v9134 = vlaneseq
      %v9135 = vshrl.u32 %v9134, 7
      %v9136 = vsub.s32 0, %v9135
      %v9137 = vrot.slane %v9133, %v9136
      %v9138 = vadd.f32 %v9101, %v9137
      %v9139 = vadd.f32 %v9102, %v9137
      %v9140 = vadd.f32 %v9103, %v9137
      %v9141 = vadd.f32 %v9104, %v9137
      %v9142 = vadd.f32 %v9105, %v9137
      %v9143 = vadd.f32 %v9106, %v9137
      %v9144 = vadd.f32 %v9107, %v9137
      %v9145 = vadd.f32 %v9108, %v9137
      %v9146 = vadd.f32 %v9109, %v9137
      %v9147 = vadd.f32 %v9110, %v9137
      %v9148 = vadd.f32 %v9111, %v9137
      %v9149 = vadd.f32 %v9112, %v9137
      %v9150 = vadd.f32 %v9113, %v9137
      %v9151 = vadd.f32 %v9114, %v9137
      %v9152 = vadd.f32 %v9115, %v9137
      %v9153 = vadd.f32 %v9116, %v9137
      %v9154 = vadd.f32 %v9117, %v9137
      %v9155 = vadd.f32 %v9118, %v9137
      %v9156 = vadd.f32 %v9119, %v9137
      %v9157 = vadd.f32 %v9120, %v9137
      %v9158 = vadd.f32 %v9121, %v9137
      %v9159 = vadd.f32 %v9122, %v9137
      %v9160 = vadd.f32 %v9123, %v9137
      %v9161 = vadd.f32 %v9124, %v9137
      %v9162 = vadd.f32 %v9125, %v9137
      %v9163 = vadd.f32 %v9126, %v9137
      %v9164 = vadd.f32 %v9127, %v9137
      %v9165 = vadd.f32 %v9128, %v9137
      %v9166 = vadd.f32 %v9129, %v9137
      %v9167 = vadd.f32 %v9130, %v9137
      %v9168 = vadd.f32 %v9131, %v9137
      %v9169 = vadd.f32 %v9132, %v9137
      %9171 = vset.pattern.permute.xlu0 13
      %9172 = vperm.xlu0 %9171, %v9138
      %v9173 = vpop.permute.xlu0 %9172
      %9176 = vset.pattern.permute.xlu0 13
      %9177 = vperm.xlu0 %9176, %v9139
      %v9178 = vpop.permute.xlu0 %9177
      %9181 = vset.pattern.permute.xlu0 13
      %9182 = vperm.xlu0 %9181, %v9140
      %v9183 = vpop.permute.xlu0 %9182
      %9186 = vset.pattern.permute.xlu0 13
      %9187 = vperm.xlu0 %9186, %v9141
      %v9188 = vpop.permute.xlu0 %9187
      %9191 = vset.pattern.permute.xlu0 13
      %9192 = vperm.xlu0 %9191, %v9142
      %v9193 = vpop.permute.xlu0 %9192
      %9196 = vset.pattern.permute.xlu0 13
      %9197 = vperm.xlu0 %9196, %v9143
      %v9198 = vpop.permute.xlu0 %9197
      %9201 = vset.pattern.permute.xlu0 13
      %9202 = vperm.xlu0 %9201, %v9144
      %v9203 = vpop.permute.xlu0 %9202
      %9206 = vset.pattern.permute.xlu0 13
      %9207 = vperm.xlu0 %9206, %v9145
      %v9208 = vpop.permute.xlu0 %9207
      %9211 = vset.pattern.permute.xlu0 13
      %9212 = vperm.xlu0 %9211, %v9146
      %v9213 = vpop.permute.xlu0 %9212
      %9216 = vset.pattern.permute.xlu0 13
      %9217 = vperm.xlu0 %9216, %v9147
      %v9218 = vpop.permute.xlu0 %9217
      %9221 = vset.pattern.permute.xlu0 13
      %9222 = vperm.xlu0 %9221, %v9148
      %v9223 = vpop.permute.xlu0 %9222
      %9226 = vset.pattern.permute.xlu0 13
      %9227 = vperm.xlu0 %9226, %v9149
      %v9228 = vpop.permute.xlu0 %9227
      %9231 = vset.pattern.permute.xlu0 13
      %9232 = vperm.xlu0 %9231, %v9150
      %v9233 = vpop.permute.xlu0 %9232
      %9236 = vset.pattern.permute.xlu0 13
      %9237 = vperm.xlu0 %9236, %v9151
      %v9238 = vpop.permute.xlu0 %9237
      %9241 = vset.pattern.permute.xlu0 13
      %9242 = vperm.xlu0 %9241, %v9152
      %v9243 = vpop.permute.xlu0 %9242
      %9246 = vset.pattern.permute.xlu0 13
      %9247 = vperm.xlu0 %9246, %v9153
      %v9248 = vpop.permute.xlu0 %9247
      %9251 = vset.pattern.permute.xlu0 13
      %9252 = vperm.xlu0 %9251, %v9154
      %v9253 = vpop.permute.xlu0 %9252
      %9256 = vset.pattern.permute.xlu0 13
      %9257 = vperm.xlu0 %9256, %v9155
      %v9258 = vpop.permute.xlu0 %9257
      %9261 = vset.pattern.permute.xlu0 13
      %9262 = vperm.xlu0 %9261, %v9156
      %v9263 = vpop.permute.xlu0 %9262
      %9266 = vset.pattern.permute.xlu0 13
      %9267 = vperm.xlu0 %9266, %v9157
      %v9268 = vpop.permute.xlu0 %9267
      %9271 = vset.pattern.permute.xlu0 13
      %9272 = vperm.xlu0 %9271, %v9158
      %v9273 = vpop.permute.xlu0 %9272
      %9276 = vset.pattern.permute.xlu0 13
      %9277 = vperm.xlu0 %9276, %v9159
      %v9278 = vpop.permute.xlu0 %9277
      %9281 = vset.pattern.permute.xlu0 13
      %9282 = vperm.xlu0 %9281, %v9160
      %v9283 = vpop.permute.xlu0 %9282
      %9286 = vset.pattern.permute.xlu0 13
      %9287 = vperm.xlu0 %9286, %v9161
      %v9288 = vpop.permute.xlu0 %9287
      %9291 = vset.pattern.permute.xlu0 13
      %9292 = vperm.xlu0 %9291, %v9162
      %v9293 = vpop.permute.xlu0 %9292
      %9296 = vset.pattern.permute.xlu0 13
      %9297 = vperm.xlu0 %9296, %v9163
      %v9298 = vpop.permute.xlu0 %9297
      %9301 = vset.pattern.permute.xlu0 13
      %9302 = vperm.xlu0 %9301, %v9164
      %v9303 = vpop.permute.xlu0 %9302
      %9306 = vset.pattern.permute.xlu0 13
      %9307 = vperm.xlu0 %9306, %v9165
      %v9308 = vpop.permute.xlu0 %9307
      %9311 = vset.pattern.permute.xlu0 13
      %9312 = vperm.xlu0 %9311, %v9166
      %v9313 = vpop.permute.xlu0 %9312
      %9316 = vset.pattern.permute.xlu0 13
      %9317 = vperm.xlu0 %9316, %v9167
      %v9318 = vpop.permute.xlu0 %9317
      %9321 = vset.pattern.permute.xlu0 13
      %9322 = vperm.xlu0 %9321, %v9168
      %v9323 = vpop.permute.xlu0 %9322
      %9326 = vset.pattern.permute.xlu0 13
      %9327 = vperm.xlu0 %9326, %v9169
      %v9328 = vpop.permute.xlu0 %9327
      %v9330 = vmul.f32 %v9173, %v9138
      %v9331 = vmul.f32 %v9178, %v9139
      %v9332 = vmul.f32 %v9183, %v9140
      %v9333 = vmul.f32 %v9188, %v9141
      %v9334 = vmul.f32 %v9193, %v9142
      %v9335 = vmul.f32 %v9198, %v9143
      %v9336 = vmul.f32 %v9203, %v9144
      %v9337 = vmul.f32 %v9208, %v9145
      %v9338 = vmul.f32 %v9213, %v9146
      %v9339 = vmul.f32 %v9218, %v9147
      %v9340 = vmul.f32 %v9223, %v9148
      %v9341 = vmul.f32 %v9228, %v9149
      %v9342 = vmul.f32 %v9233, %v9150
      %v9343 = vmul.f32 %v9238, %v9151
      %v9344 = vmul.f32 %v9243, %v9152
      %v9345 = vmul.f32 %v9248, %v9153
      %v9346 = vmul.f32 %v9253, %v9154
      %v9347 = vmul.f32 %v9258, %v9155
      %v9348 = vmul.f32 %v9263, %v9156
      %v9349 = vmul.f32 %v9268, %v9157
      %v9350 = vmul.f32 %v9273, %v9158
      %v9351 = vmul.f32 %v9278, %v9159
      %v9352 = vmul.f32 %v9283, %v9160
      %v9353 = vmul.f32 %v9288, %v9161
      %v9354 = vmul.f32 %v9293, %v9162
      %v9355 = vmul.f32 %v9298, %v9163
      %v9356 = vmul.f32 %v9303, %v9164
      %v9357 = vmul.f32 %v9308, %v9165
      %v9358 = vmul.f32 %v9313, %v9166
      %v9359 = vmul.f32 %v9318, %v9167
      %v9360 = vmul.f32 %v9323, %v9168
      %v9361 = vmul.f32 %v9328, %v9169
      %9362 = vset.pattern.permute.xlu0 14
      %9363 = vperm.xlu0 %9362, %v9138
      %v9364 = vpop.permute.xlu0 %9363
      %9366 = vset.pattern.permute.xlu0 14
      %9367 = vperm.xlu0 %9366, %v9139
      %v9368 = vpop.permute.xlu0 %9367
      %9370 = vset.pattern.permute.xlu0 14
      %9371 = vperm.xlu0 %9370, %v9140
      %v9372 = vpop.permute.xlu0 %9371
      %9374 = vset.pattern.permute.xlu0 14
      %9375 = vperm.xlu0 %9374, %v9141
      %v9376 = vpop.permute.xlu0 %9375
      %9378 = vset.pattern.permute.xlu0 14
      %9379 = vperm.xlu0 %9378, %v9142
      %v9380 = vpop.permute.xlu0 %9379
      %9382 = vset.pattern.permute.xlu0 14
      %9383 = vperm.xlu0 %9382, %v9143
      %v9384 = vpop.permute.xlu0 %9383
      %9386 = vset.pattern.permute.xlu0 14
      %9387 = vperm.xlu0 %9386, %v9144
      %v9388 = vpop.permute.xlu0 %9387
      %9390 = vset.pattern.permute.xlu0 14
      %9391 = vperm.xlu0 %9390, %v9145
      %v9392 = vpop.permute.xlu0 %9391
      %9394 = vset.pattern.permute.xlu0 14
      %9395 = vperm.xlu0 %9394, %v9146
      %v9396 = vpop.permute.xlu0 %9395
      %9398 = vset.pattern.permute.xlu0 14
      %9399 = vperm.xlu0 %9398, %v9147
      %v9400 = vpop.permute.xlu0 %9399
      %9402 = vset.pattern.permute.xlu0 14
      %9403 = vperm.xlu0 %9402, %v9148
      %v9404 = vpop.permute.xlu0 %9403
      %9406 = vset.pattern.permute.xlu0 14
      %9407 = vperm.xlu0 %9406, %v9149
      %v9408 = vpop.permute.xlu0 %9407
      %9410 = vset.pattern.permute.xlu0 14
      %9411 = vperm.xlu0 %9410, %v9150
      %v9412 = vpop.permute.xlu0 %9411
      %9414 = vset.pattern.permute.xlu0 14
      %9415 = vperm.xlu0 %9414, %v9151
      %v9416 = vpop.permute.xlu0 %9415
      %9418 = vset.pattern.permute.xlu0 14
      %9419 = vperm.xlu0 %9418, %v9152
      %v9420 = vpop.permute.xlu0 %9419
      %9422 = vset.pattern.permute.xlu0 14
      %9423 = vperm.xlu0 %9422, %v9153
      %v9424 = vpop.permute.xlu0 %9423
      %9426 = vset.pattern.permute.xlu0 14
      %9427 = vperm.xlu0 %9426, %v9154
      %v9428 = vpop.permute.xlu0 %9427
      %9430 = vset.pattern.permute.xlu0 14
      %9431 = vperm.xlu0 %9430, %v9155
      %v9432 = vpop.permute.xlu0 %9431
      %9434 = vset.pattern.permute.xlu0 14
      %9435 = vperm.xlu0 %9434, %v9156
      %v9436 = vpop.permute.xlu0 %9435
      %9438 = vset.pattern.permute.xlu0 14
      %9439 = vperm.xlu0 %9438, %v9157
      %v9440 = vpop.permute.xlu0 %9439
      %9442 = vset.pattern.permute.xlu0 14
      %9443 = vperm.xlu0 %9442, %v9158
      %v9444 = vpop.permute.xlu0 %9443
      %9446 = vset.pattern.permute.xlu0 14
      %9447 = vperm.xlu0 %9446, %v9159
      %v9448 = vpop.permute.xlu0 %9447
      %9450 = vset.pattern.permute.xlu0 14
      %9451 = vperm.xlu0 %9450, %v9160
      %v9452 = vpop.permute.xlu0 %9451
      %9454 = vset.pattern.permute.xlu0 14
      %9455 = vperm.xlu0 %9454, %v9161
      %v9456 = vpop.permute.xlu0 %9455
      %9458 = vset.pattern.permute.xlu0 14
      %9459 = vperm.xlu0 %9458, %v9162
      %v9460 = vpop.permute.xlu0 %9459
      %9462 = vset.pattern.permute.xlu0 14
      %9463 = vperm.xlu0 %9462, %v9163
      %v9464 = vpop.permute.xlu0 %9463
      %9466 = vset.pattern.permute.xlu0 14
      %9467 = vperm.xlu0 %9466, %v9164
      %v9468 = vpop.permute.xlu0 %9467
      %9470 = vset.pattern.permute.xlu0 14
      %9471 = vperm.xlu0 %9470, %v9165
      %v9472 = vpop.permute.xlu0 %9471
      %9474 = vset.pattern.permute.xlu0 14
      %9475 = vperm.xlu0 %9474, %v9166
      %v9476 = vpop.permute.xlu0 %9475
      %9478 = vset.pattern.permute.xlu0 14
      %9479 = vperm.xlu0 %9478, %v9167
      %v9480 = vpop.permute.xlu0 %9479
      %9482 = vset.pattern.permute.xlu0 14
      %9483 = vperm.xlu0 %9482, %v9168
      %v9484 = vpop.permute.xlu0 %9483
      %9486 = vset.pattern.permute.xlu0 14
      %9487 = vperm.xlu0 %9486, %v9169
      %v9488 = vpop.permute.xlu0 %9487
      %v9490 = vmul.f32 %v9364, %v9138
      %v9491 = vmul.f32 %v9368, %v9139
      %v9492 = vmul.f32 %v9372, %v9140
      %v9493 = vmul.f32 %v9376, %v9141
      %v9494 = vmul.f32 %v9380, %v9142
      %v9495 = vmul.f32 %v9384, %v9143
      %v9496 = vmul.f32 %v9388, %v9144
      %v9497 = vmul.f32 %v9392, %v9145
      %v9498 = vmul.f32 %v9396, %v9146
      %v9499 = vmul.f32 %v9400, %v9147
      %v9500 = vmul.f32 %v9404, %v9148
      %v9501 = vmul.f32 %v9408, %v9149
      %v9502 = vmul.f32 %v9412, %v9150
      %v9503 = vmul.f32 %v9416, %v9151
      %v9504 = vmul.f32 %v9420, %v9152
      %v9505 = vmul.f32 %v9424, %v9153
      %v9506 = vmul.f32 %v9428, %v9154
      %v9507 = vmul.f32 %v9432, %v9155
      %v9508 = vmul.f32 %v9436, %v9156
      %v9509 = vmul.f32 %v9440, %v9157
      %v9510 = vmul.f32 %v9444, %v9158
      %v9511 = vmul.f32 %v9448, %v9159
      %v9512 = vmul.f32 %v9452, %v9160
      %v9513 = vmul.f32 %v9456, %v9161
      %v9514 = vmul.f32 %v9460, %v9162
      %v9515 = vmul.f32 %v9464, %v9163
      %v9516 = vmul.f32 %v9468, %v9164
      %v9517 = vmul.f32 %v9472, %v9165
      %v9518 = vmul.f32 %v9476, %v9166
      %v9519 = vmul.f32 %v9480, %v9167
      %v9520 = vmul.f32 %v9484, %v9168
      %v9521 = vmul.f32 %v9488, %v9169
      %9522 = vset.pattern.permute.xlu0 15
      %9523 = vperm.xlu0 %9522, %v9138
      %v9524 = vpop.permute.xlu0 %9523
      %9526 = vset.pattern.permute.xlu0 15
      %9527 = vperm.xlu0 %9526, %v9139
      %v9528 = vpop.permute.xlu0 %9527
      %9530 = vset.pattern.permute.xlu0 15
      %9531 = vperm.xlu0 %9530, %v9140
      %v9532 = vpop.permute.xlu0 %9531
      %9534 = vset.pattern.permute.xlu0 15
      %9535 = vperm.xlu0 %9534, %v9141
      %v9536 = vpop.permute.xlu0 %9535
      %9538 = vset.pattern.permute.xlu0 15
      %9539 = vperm.xlu0 %9538, %v9142
      %v9540 = vpop.permute.xlu0 %9539
      %9542 = vset.pattern.permute.xlu0 15
      %9543 = vperm.xlu0 %9542, %v9143
      %v9544 = vpop.permute.xlu0 %9543
      %9546 = vset.pattern.permute.xlu0 15
      %9547 = vperm.xlu0 %9546, %v9144
      %v9548 = vpop.permute.xlu0 %9547
      %9550 = vset.pattern.permute.xlu0 15
      %9551 = vperm.xlu0 %9550, %v9145
      %v9552 = vpop.permute.xlu0 %9551
      %9554 = vset.pattern.permute.xlu0 15
      %9555 = vperm.xlu0 %9554, %v9146
      %v9556 = vpop.permute.xlu0 %9555
      %9558 = vset.pattern.permute.xlu0 15
      %9559 = vperm.xlu0 %9558, %v9147
      %v9560 = vpop.permute.xlu0 %9559
      %9562 = vset.pattern.permute.xlu0 15
      %9563 = vperm.xlu0 %9562, %v9148
      %v9564 = vpop.permute.xlu0 %9563
      %9566 = vset.pattern.permute.xlu0 15
      %9567 = vperm.xlu0 %9566, %v9149
      %v9568 = vpop.permute.xlu0 %9567
      %9570 = vset.pattern.permute.xlu0 15
      %9571 = vperm.xlu0 %9570, %v9150
      %v9572 = vpop.permute.xlu0 %9571
      %9574 = vset.pattern.permute.xlu0 15
      %9575 = vperm.xlu0 %9574, %v9151
      %v9576 = vpop.permute.xlu0 %9575
      %9578 = vset.pattern.permute.xlu0 15
      %9579 = vperm.xlu0 %9578, %v9152
      %v9580 = vpop.permute.xlu0 %9579
      %9582 = vset.pattern.permute.xlu0 15
      %9583 = vperm.xlu0 %9582, %v9153
      %v9584 = vpop.permute.xlu0 %9583
      %9586 = vset.pattern.permute.xlu0 15
      %9587 = vperm.xlu0 %9586, %v9154
      %v9588 = vpop.permute.xlu0 %9587
      %9590 = vset.pattern.permute.xlu0 15
      %9591 = vperm.xlu0 %9590, %v9155
      %v9592 = vpop.permute.xlu0 %9591
      %9594 = vset.pattern.permute.xlu0 15
      %9595 = vperm.xlu0 %9594, %v9156
      %v9596 = vpop.permute.xlu0 %9595
      %9598 = vset.pattern.permute.xlu0 15
      %9599 = vperm.xlu0 %9598, %v9157
      %v9600 = vpop.permute.xlu0 %9599
      %9602 = vset.pattern.permute.xlu0 15
      %9603 = vperm.xlu0 %9602, %v9158
      %v9604 = vpop.permute.xlu0 %9603
      %9606 = vset.pattern.permute.xlu0 15
      %9607 = vperm.xlu0 %9606, %v9159
      %v9608 = vpop.permute.xlu0 %9607
      %9610 = vset.pattern.permute.xlu0 15
      %9611 = vperm.xlu0 %9610, %v9160
      %v9612 = vpop.permute.xlu0 %9611
      %9614 = vset.pattern.permute.xlu0 15
      %9615 = vperm.xlu0 %9614, %v9161
      %v9616 = vpop.permute.xlu0 %9615
      %9618 = vset.pattern.permute.xlu0 15
      %9619 = vperm.xlu0 %9618, %v9162
      %v9620 = vpop.permute.xlu0 %9619
      %9622 = vset.pattern.permute.xlu0 15
      %9623 = vperm.xlu0 %9622, %v9163
      %v9624 = vpop.permute.xlu0 %9623
      %9626 = vset.pattern.permute.xlu0 15
      %9627 = vperm.xlu0 %9626, %v9164
      %v9628 = vpop.permute.xlu0 %9627
      %9630 = vset.pattern.permute.xlu0 15
      %9631 = vperm.xlu0 %9630, %v9165
      %v9632 = vpop.permute.xlu0 %9631
      %9634 = vset.pattern.permute.xlu0 15
      %9635 = vperm.xlu0 %9634, %v9166
      %v9636 = vpop.permute.xlu0 %9635
      %9638 = vset.pattern.permute.xlu0 15
      %9639 = vperm.xlu0 %9638, %v9167
      %v9640 = vpop.permute.xlu0 %9639
      %9642 = vset.pattern.permute.xlu0 15
      %9643 = vperm.xlu0 %9642, %v9168
      %v9644 = vpop.permute.xlu0 %9643
      %9646 = vset.pattern.permute.xlu0 15
      %9647 = vperm.xlu0 %9646, %v9169
      %v9648 = vpop.permute.xlu0 %9647
      %v9650 = vmul.f32 %v9524, %v9138
      %v9651 = vmul.f32 %v9528, %v9139
      %v9652 = vmul.f32 %v9532, %v9140
      %v9653 = vmul.f32 %v9536, %v9141
      %v9654 = vmul.f32 %v9540, %v9142
      %v9655 = vmul.f32 %v9544, %v9143
      %v9656 = vmul.f32 %v9548, %v9144
      %v9657 = vmul.f32 %v9552, %v9145
      %v9658 = vmul.f32 %v9556, %v9146
      %v9659 = vmul.f32 %v9560, %v9147
      %v9660 = vmul.f32 %v9564, %v9148
      %v9661 = vmul.f32 %v9568, %v9149
      %v9662 = vmul.f32 %v9572, %v9150
      %v9663 = vmul.f32 %v9576, %v9151
      %v9664 = vmul.f32 %v9580, %v9152
      %v9665 = vmul.f32 %v9584, %v9153
      %v9666 = vmul.f32 %v9588, %v9154
      %v9667 = vmul.f32 %v9592, %v9155
      %v9668 = vmul.f32 %v9596, %v9156
      %v9669 = vmul.f32 %v9600, %v9157
      %v9670 = vmul.f32 %v9604, %v9158
      %v9671 = vmul.f32 %v9608, %v9159
      %v9672 = vmul.f32 %v9612, %v9160
      %v9673 = vmul.f32 %v9616, %v9161
      %v9674 = vmul.f32 %v9620, %v9162
      %v9675 = vmul.f32 %v9624, %v9163
      %v9676 = vmul.f32 %v9628, %v9164
      %v9677 = vmul.f32 %v9632, %v9165
      %v9678 = vmul.f32 %v9636, %v9166
      %v9679 = vmul.f32 %v9640, %v9167
      %v9680 = vmul.f32 %v9644, %v9168
      %v9681 = vmul.f32 %v9648, %v9169
      %9682 = vset.pattern.permute.xlu0 16
      %9683 = vperm.xlu0 %9682, %v9138
      %v9684 = vpop.permute.xlu0 %9683
      %9686 = vset.pattern.permute.xlu0 16
      %9687 = vperm.xlu0 %9686, %v9139
      %v9688 = vpop.permute.xlu0 %9687
      %9690 = vset.pattern.permute.xlu0 16
      %9691 = vperm.xlu0 %9690, %v9140
      %v9692 = vpop.permute.xlu0 %9691
      %9694 = vset.pattern.permute.xlu0 16
      %9695 = vperm.xlu0 %9694, %v9141
      %v9696 = vpop.permute.xlu0 %9695
      %9698 = vset.pattern.permute.xlu0 16
      %9699 = vperm.xlu0 %9698, %v9142
      %v9700 = vpop.permute.xlu0 %9699
      %9702 = vset.pattern.permute.xlu0 16
      %9703 = vperm.xlu0 %9702, %v9143
      %v9704 = vpop.permute.xlu0 %9703
      %9706 = vset.pattern.permute.xlu0 16
      %9707 = vperm.xlu0 %9706, %v9144
      %v9708 = vpop.permute.xlu0 %9707
      %9710 = vset.pattern.permute.xlu0 16
      %9711 = vperm.xlu0 %9710, %v9145
      %v9712 = vpop.permute.xlu0 %9711
      %9714 = vset.pattern.permute.xlu0 16
      %9715 = vperm.xlu0 %9714, %v9146
      %v9716 = vpop.permute.xlu0 %9715
      %9718 = vset.pattern.permute.xlu0 16
      %9719 = vperm.xlu0 %9718, %v9147
      %v9720 = vpop.permute.xlu0 %9719
      %9722 = vset.pattern.permute.xlu0 16
      %9723 = vperm.xlu0 %9722, %v9148
      %v9724 = vpop.permute.xlu0 %9723
      %9726 = vset.pattern.permute.xlu0 16
      %9727 = vperm.xlu0 %9726, %v9149
      %v9728 = vpop.permute.xlu0 %9727
      %9730 = vset.pattern.permute.xlu0 16
      %9731 = vperm.xlu0 %9730, %v9150
      %v9732 = vpop.permute.xlu0 %9731
      %9734 = vset.pattern.permute.xlu0 16
      %9735 = vperm.xlu0 %9734, %v9151
      %v9736 = vpop.permute.xlu0 %9735
      %9738 = vset.pattern.permute.xlu0 16
      %9739 = vperm.xlu0 %9738, %v9152
      %v9740 = vpop.permute.xlu0 %9739
      %9742 = vset.pattern.permute.xlu0 16
      %9743 = vperm.xlu0 %9742, %v9153
      %v9744 = vpop.permute.xlu0 %9743
      %9746 = vset.pattern.permute.xlu0 16
      %9747 = vperm.xlu0 %9746, %v9154
      %v9748 = vpop.permute.xlu0 %9747
      %9750 = vset.pattern.permute.xlu0 16
      %9751 = vperm.xlu0 %9750, %v9155
      %v9752 = vpop.permute.xlu0 %9751
      %9754 = vset.pattern.permute.xlu0 16
      %9755 = vperm.xlu0 %9754, %v9156
      %v9756 = vpop.permute.xlu0 %9755
      %9758 = vset.pattern.permute.xlu0 16
      %9759 = vperm.xlu0 %9758, %v9157
      %v9760 = vpop.permute.xlu0 %9759
      %9762 = vset.pattern.permute.xlu0 16
      %9763 = vperm.xlu0 %9762, %v9158
      %v9764 = vpop.permute.xlu0 %9763
      %9766 = vset.pattern.permute.xlu0 16
      %9767 = vperm.xlu0 %9766, %v9159
      %v9768 = vpop.permute.xlu0 %9767
      %9770 = vset.pattern.permute.xlu0 16
      %9771 = vperm.xlu0 %9770, %v9160
      %v9772 = vpop.permute.xlu0 %9771
      %9774 = vset.pattern.permute.xlu0 16
      %9775 = vperm.xlu0 %9774, %v9161
      %v9776 = vpop.permute.xlu0 %9775
      %9778 = vset.pattern.permute.xlu0 16
      %9779 = vperm.xlu0 %9778, %v9162
      %v9780 = vpop.permute.xlu0 %9779
      %9782 = vset.pattern.permute.xlu0 16
      %9783 = vperm.xlu0 %9782, %v9163
      %v9784 = vpop.permute.xlu0 %9783
      %9786 = vset.pattern.permute.xlu0 16
      %9787 = vperm.xlu0 %9786, %v9164
      %v9788 = vpop.permute.xlu0 %9787
      %9790 = vset.pattern.permute.xlu0 16
      %9791 = vperm.xlu0 %9790, %v9165
      %v9792 = vpop.permute.xlu0 %9791
      %9794 = vset.pattern.permute.xlu0 16
      %9795 = vperm.xlu0 %9794, %v9166
      %v9796 = vpop.permute.xlu0 %9795
      %9798 = vset.pattern.permute.xlu0 16
      %9799 = vperm.xlu0 %9798, %v9167
      %v9800 = vpop.permute.xlu0 %9799
      %9802 = vset.pattern.permute.xlu0 16
      %9803 = vperm.xlu0 %9802, %v9168
      %v9804 = vpop.permute.xlu0 %9803
      %9806 = vset.pattern.permute.xlu0 16
      %9807 = vperm.xlu0 %9806, %v9169
      %v9808 = vpop.permute.xlu0 %9807
      %v9810 = vmul.f32 %v9684, %v9138
      %v9811 = vmul.f32 %v9688, %v9139
      %v9812 = vmul.f32 %v9692, %v9140
      %v9813 = vmul.f32 %v9696, %v9141
      %v9814 = vmul.f32 %v9700, %v9142
      %v9815 = vmul.f32 %v9704, %v9143
      %v9816 = vmul.f32 %v9708, %v9144
      %v9817 = vmul.f32 %v9712, %v9145
      %v9818 = vmul.f32 %v9716, %v9146
      %v9819 = vmul.f32 %v9720, %v9147
      %v9820 = vmul.f32 %v9724, %v9148
      %v9821 = vmul.f32 %v9728, %v9149
      %v9822 = vmul.f32 %v9732, %v9150
      %v9823 = vmul.f32 %v9736, %v9151
      %v9824 = vmul.f32 %v9740, %v9152
      %v9825 = vmul.f32 %v9744, %v9153
      %v9826 = vmul.f32 %v9748, %v9154
      %v9827 = vmul.f32 %v9752, %v9155
      %v9828 = vmul.f32 %v9756, %v9156
      %v9829 = vmul.f32 %v9760, %v9157
      %v9830 = vmul.f32 %v9764, %v9158
      %v9831 = vmul.f32 %v9768, %v9159
      %v9832 = vmul.f32 %v9772, %v9160
      %v9833 = vmul.f32 %v9776, %v9161
      %v9834 = vmul.f32 %v9780, %v9162
      %v9835 = vmul.f32 %v9784, %v9163
      %v9836 = vmul.f32 %v9788, %v9164
      %v9837 = vmul.f32 %v9792, %v9165
      %v9838 = vmul.f32 %v9796, %v9166
      %v9839 = vmul.f32 %v9800, %v9167
      %v9840 = vmul.f32 %v9804, %v9168
      %v9841 = vmul.f32 %v9808, %v9169
      %9842 = vset.pattern.permute.xlu0 17
      %9843 = vperm.xlu0 %9842, %v9138
      %v9844 = vpop.permute.xlu0 %9843
      %9846 = vset.pattern.permute.xlu0 17
      %9847 = vperm.xlu0 %9846, %v9139
      %v9848 = vpop.permute.xlu0 %9847
      %9850 = vset.pattern.permute.xlu0 17
      %9851 = vperm.xlu0 %9850, %v9140
      %v9852 = vpop.permute.xlu0 %9851
      %9854 = vset.pattern.permute.xlu0 17
      %9855 = vperm.xlu0 %9854, %v9141
      %v9856 = vpop.permute.xlu0 %9855
      %9858 = vset.pattern.permute.xlu0 17
      %9859 = vperm.xlu0 %9858, %v9142
      %v9860 = vpop.permute.xlu0 %9859
      %9862 = vset.pattern.permute.xlu0 17
      %9863 = vperm.xlu0 %9862, %v9143
      %v9864 = vpop.permute.xlu0 %9863
      %9866 = vset.pattern.permute.xlu0 17
      %9867 = vperm.xlu0 %9866, %v9144
      %v9868 = vpop.permute.xlu0 %9867
      %9870 = vset.pattern.permute.xlu0 17
      %9871 = vperm.xlu0 %9870, %v9145
      %v9872 = vpop.permute.xlu0 %9871
      %9874 = vset.pattern.permute.xlu0 17
      %9875 = vperm.xlu0 %9874, %v9146
      %v9876 = vpop.permute.xlu0 %9875
      %9878 = vset.pattern.permute.xlu0 17
      %9879 = vperm.xlu0 %9878, %v9147
      %v9880 = vpop.permute.xlu0 %9879
      %9882 = vset.pattern.permute.xlu0 17
      %9883 = vperm.xlu0 %9882, %v9148
      %v9884 = vpop.permute.xlu0 %9883
      %9886 = vset.pattern.permute.xlu0 17
      %9887 = vperm.xlu0 %9886, %v9149
      %v9888 = vpop.permute.xlu0 %9887
      %9890 = vset.pattern.permute.xlu0 17
      %9891 = vperm.xlu0 %9890, %v9150
      %v9892 = vpop.permute.xlu0 %9891
      %9894 = vset.pattern.permute.xlu0 17
      %9895 = vperm.xlu0 %9894, %v9151
      %v9896 = vpop.permute.xlu0 %9895
      %9898 = vset.pattern.permute.xlu0 17
      %9899 = vperm.xlu0 %9898, %v9152
      %v9900 = vpop.permute.xlu0 %9899
      %9902 = vset.pattern.permute.xlu0 17
      %9903 = vperm.xlu0 %9902, %v9153
      %v9904 = vpop.permute.xlu0 %9903
      %9906 = vset.pattern.permute.xlu0 17
      %9907 = vperm.xlu0 %9906, %v9154
      %v9908 = vpop.permute.xlu0 %9907
      %9910 = vset.pattern.permute.xlu0 17
      %9911 = vperm.xlu0 %9910, %v9155
      %v9912 = vpop.permute.xlu0 %9911
      %9914 = vset.pattern.permute.xlu0 17
      %9915 = vperm.xlu0 %9914, %v9156
      %v9916 = vpop.permute.xlu0 %9915
      %9918 = vset.pattern.permute.xlu0 17
      %9919 = vperm.xlu0 %9918, %v9157
      %v9920 = vpop.permute.xlu0 %9919
      %9922 = vset.pattern.permute.xlu0 17
      %9923 = vperm.xlu0 %9922, %v9158
      %v9924 = vpop.permute.xlu0 %9923
      %9926 = vset.pattern.permute.xlu0 17
      %9927 = vperm.xlu0 %9926, %v9159
      %v9928 = vpop.permute.xlu0 %9927
      %9930 = vset.pattern.permute.xlu0 17
      %9931 = vperm.xlu0 %9930, %v9160
      %v9932 = vpop.permute.xlu0 %9931
      %9934 = vset.pattern.permute.xlu0 17
      %9935 = vperm.xlu0 %9934, %v9161
      %v9936 = vpop.permute.xlu0 %9935
      %9938 = vset.pattern.permute.xlu0 17
      %9939 = vperm.xlu0 %9938, %v9162
      %v9940 = vpop.permute.xlu0 %9939
      %9942 = vset.pattern.permute.xlu0 17
      %9943 = vperm.xlu0 %9942, %v9163
      %v9944 = vpop.permute.xlu0 %9943
      %9946 = vset.pattern.permute.xlu0 17
      %9947 = vperm.xlu0 %9946, %v9164
      %v9948 = vpop.permute.xlu0 %9947
      %9950 = vset.pattern.permute.xlu0 17
      %9951 = vperm.xlu0 %9950, %v9165
      %v9952 = vpop.permute.xlu0 %9951
      %9954 = vset.pattern.permute.xlu0 17
      %9955 = vperm.xlu0 %9954, %v9166
      %v9956 = vpop.permute.xlu0 %9955
      %9958 = vset.pattern.permute.xlu0 17
      %9959 = vperm.xlu0 %9958, %v9167
      %v9960 = vpop.permute.xlu0 %9959
      %9962 = vset.pattern.permute.xlu0 17
      %9963 = vperm.xlu0 %9962, %v9168
      %v9964 = vpop.permute.xlu0 %9963
      %9966 = vset.pattern.permute.xlu0 17
      %9967 = vperm.xlu0 %9966, %v9169
      %v9968 = vpop.permute.xlu0 %9967
      %v9970 = vmul.f32 %v9844, %v9138
      %v9971 = vmul.f32 %v9848, %v9139
      %v9972 = vmul.f32 %v9852, %v9140
      %v9973 = vmul.f32 %v9856, %v9141
      %v9974 = vmul.f32 %v9860, %v9142
      %v9975 = vmul.f32 %v9864, %v9143
      %v9976 = vmul.f32 %v9868, %v9144
      %v9977 = vmul.f32 %v9872, %v9145
      %v9978 = vmul.f32 %v9876, %v9146
      %v9979 = vmul.f32 %v9880, %v9147
      %v9980 = vmul.f32 %v9884, %v9148
      %v9981 = vmul.f32 %v9888, %v9149
      %v9982 = vmul.f32 %v9892, %v9150
      %v9983 = vmul.f32 %v9896, %v9151
      %v9984 = vmul.f32 %v9900, %v9152
      %v9985 = vmul.f32 %v9904, %v9153
      %v9986 = vmul.f32 %v9908, %v9154
      %v9987 = vmul.f32 %v9912, %v9155
      %v9988 = vmul.f32 %v9916, %v9156
      %v9989 = vmul.f32 %v9920, %v9157
      %v9990 = vmul.f32 %v9924, %v9158
      %v9991 = vmul.f32 %v9928, %v9159
      %v9992 = vmul.f32 %v9932, %v9160
      %v9993 = vmul.f32 %v9936, %v9161
      %v9994 = vmul.f32 %v9940, %v9162
      %v9995 = vmul.f32 %v9944, %v9163
      %v9996 = vmul.f32 %v9948, %v9164
      %v9997 = vmul.f32 %v9952, %v9165
      %v9998 = vmul.f32 %v9956, %v9166
      %v9999 = vmul.f32 %v9960, %v9167
      %v10000 = vmul.f32 %v9964, %v9168
      %v10001 = vmul.f32 %v9968, %v9169
      %10002 = vset.pattern.permute.xlu0 18
      %10003 = vperm.xlu0 %10002, %v9138
      %v10004 = vpop.permute.xlu0 %10003
      %10006 = vset.pattern.permute.xlu0 18
      %10007 = vperm.xlu0 %10006, %v9139
      %v10008 = vpop.permute.xlu0 %10007
      %10010 = vset.pattern.permute.xlu0 18
      %10011 = vperm.xlu0 %10010, %v9140
      %v10012 = vpop.permute.xlu0 %10011
      %10014 = vset.pattern.permute.xlu0 18
      %10015 = vperm.xlu0 %10014, %v9141
      %v10016 = vpop.permute.xlu0 %10015
      %10018 = vset.pattern.permute.xlu0 18
      %10019 = vperm.xlu0 %10018, %v9142
      %v10020 = vpop.permute.xlu0 %10019
      %10022 = vset.pattern.permute.xlu0 18
      %10023 = vperm.xlu0 %10022, %v9143
      %v10024 = vpop.permute.xlu0 %10023
      %10026 = vset.pattern.permute.xlu0 18
      %10027 = vperm.xlu0 %10026, %v9144
      %v10028 = vpop.permute.xlu0 %10027
      %10030 = vset.pattern.permute.xlu0 18
      %10031 = vperm.xlu0 %10030, %v9145
      %v10032 = vpop.permute.xlu0 %10031
      %10034 = vset.pattern.permute.xlu0 18
      %10035 = vperm.xlu0 %10034, %v9146
      %v10036 = vpop.permute.xlu0 %10035
      %10038 = vset.pattern.permute.xlu0 18
      %10039 = vperm.xlu0 %10038, %v9147
      %v10040 = vpop.permute.xlu0 %10039
      %10042 = vset.pattern.permute.xlu0 18
      %10043 = vperm.xlu0 %10042, %v9148
      %v10044 = vpop.permute.xlu0 %10043
      %10046 = vset.pattern.permute.xlu0 18
      %10047 = vperm.xlu0 %10046, %v9149
      %v10048 = vpop.permute.xlu0 %10047
      %10050 = vset.pattern.permute.xlu0 18
      %10051 = vperm.xlu0 %10050, %v9150
      %v10052 = vpop.permute.xlu0 %10051
      %10054 = vset.pattern.permute.xlu0 18
      %10055 = vperm.xlu0 %10054, %v9151
      %v10056 = vpop.permute.xlu0 %10055
      %10058 = vset.pattern.permute.xlu0 18
      %10059 = vperm.xlu0 %10058, %v9152
      %v10060 = vpop.permute.xlu0 %10059
      %10062 = vset.pattern.permute.xlu0 18
      %10063 = vperm.xlu0 %10062, %v9153
      %v10064 = vpop.permute.xlu0 %10063
      %10066 = vset.pattern.permute.xlu0 18
      %10067 = vperm.xlu0 %10066, %v9154
      %v10068 = vpop.permute.xlu0 %10067
      %10070 = vset.pattern.permute.xlu0 18
      %10071 = vperm.xlu0 %10070, %v9155
      %v10072 = vpop.permute.xlu0 %10071
      %10074 = vset.pattern.permute.xlu0 18
      %10075 = vperm.xlu0 %10074, %v9156
      %v10076 = vpop.permute.xlu0 %10075
      %10078 = vset.pattern.permute.xlu0 18
      %10079 = vperm.xlu0 %10078, %v9157
      %v10080 = vpop.permute.xlu0 %10079
      %10082 = vset.pattern.permute.xlu0 18
      %10083 = vperm.xlu0 %10082, %v9158
      %v10084 = vpop.permute.xlu0 %10083
      %10086 = vset.pattern.permute.xlu0 18
      %10087 = vperm.xlu0 %10086, %v9159
      %v10088 = vpop.permute.xlu0 %10087
      %10090 = vset.pattern.permute.xlu0 18
      %10091 = vperm.xlu0 %10090, %v9160
      %v10092 = vpop.permute.xlu0 %10091
      %10094 = vset.pattern.permute.xlu0 18
      %10095 = vperm.xlu0 %10094, %v9161
      %v10096 = vpop.permute.xlu0 %10095
      %10098 = vset.pattern.permute.xlu0 18
      %10099 = vperm.xlu0 %10098, %v9162
      %v10100 = vpop.permute.xlu0 %10099
      %10102 = vset.pattern.permute.xlu0 18
      %10103 = vperm.xlu0 %10102, %v9163
      %v10104 = vpop.permute.xlu0 %10103
      %10106 = vset.pattern.permute.xlu0 18
      %10107 = vperm.xlu0 %10106, %v9164
      %v10108 = vpop.permute.xlu0 %10107
      %10110 = vset.pattern.permute.xlu0 18
      %10111 = vperm.xlu0 %10110, %v9165
      %v10112 = vpop.permute.xlu0 %10111
      %10114 = vset.pattern.permute.xlu0 18
      %10115 = vperm.xlu0 %10114, %v9166
      %v10116 = vpop.permute.xlu0 %10115
      %10118 = vset.pattern.permute.xlu0 18
      %10119 = vperm.xlu0 %10118, %v9167
      %v10120 = vpop.permute.xlu0 %10119
      %10122 = vset.pattern.permute.xlu0 18
      %10123 = vperm.xlu0 %10122, %v9168
      %v10124 = vpop.permute.xlu0 %10123
      %10126 = vset.pattern.permute.xlu0 18
      %10127 = vperm.xlu0 %10126, %v9169
      %v10128 = vpop.permute.xlu0 %10127
      %v10130 = vmul.f32 %v10004, %v9138
      %v10131 = vmul.f32 %v10008, %v9139
      %v10132 = vmul.f32 %v10012, %v9140
      %v10133 = vmul.f32 %v10016, %v9141
      %v10134 = vmul.f32 %v10020, %v9142
      %v10135 = vmul.f32 %v10024, %v9143
      %v10136 = vmul.f32 %v10028, %v9144
      %v10137 = vmul.f32 %v10032, %v9145
      %v10138 = vmul.f32 %v10036, %v9146
      %v10139 = vmul.f32 %v10040, %v9147
      %v10140 = vmul.f32 %v10044, %v9148
      %v10141 = vmul.f32 %v10048, %v9149
      %v10142 = vmul.f32 %v10052, %v9150
      %v10143 = vmul.f32 %v10056, %v9151
      %v10144 = vmul.f32 %v10060, %v9152
      %v10145 = vmul.f32 %v10064, %v9153
      %v10146 = vmul.f32 %v10068, %v9154
      %v10147 = vmul.f32 %v10072, %v9155
      %v10148 = vmul.f32 %v10076, %v9156
      %v10149 = vmul.f32 %v10080, %v9157
      %v10150 = vmul.f32 %v10084, %v9158
      %v10151 = vmul.f32 %v10088, %v9159
      %v10152 = vmul.f32 %v10092, %v9160
      %v10153 = vmul.f32 %v10096, %v9161
      %v10154 = vmul.f32 %v10100, %v9162
      %v10155 = vmul.f32 %v10104, %v9163
      %v10156 = vmul.f32 %v10108, %v9164
      %v10157 = vmul.f32 %v10112, %v9165
      %v10158 = vmul.f32 %v10116, %v9166
      %v10159 = vmul.f32 %v10120, %v9167
      %v10160 = vmul.f32 %v10124, %v9168
      %v10161 = vmul.f32 %v10128, %v9169
      %10162 = vset.pattern.permute.xlu0 19
      %10163 = vperm.xlu0 %10162, %v9138
      %v10164 = vpop.permute.xlu0 %10163
      %10166 = vset.pattern.permute.xlu0 19
      %10167 = vperm.xlu0 %10166, %v9139
      %v10168 = vpop.permute.xlu0 %10167
      %10170 = vset.pattern.permute.xlu0 19
      %10171 = vperm.xlu0 %10170, %v9140
      %v10172 = vpop.permute.xlu0 %10171
      %10174 = vset.pattern.permute.xlu0 19
      %10175 = vperm.xlu0 %10174, %v9141
      %v10176 = vpop.permute.xlu0 %10175
      %10178 = vset.pattern.permute.xlu0 19
      %10179 = vperm.xlu0 %10178, %v9142
      %v10180 = vpop.permute.xlu0 %10179
      %10182 = vset.pattern.permute.xlu0 19
      %10183 = vperm.xlu0 %10182, %v9143
      %v10184 = vpop.permute.xlu0 %10183
      %10186 = vset.pattern.permute.xlu0 19
      %10187 = vperm.xlu0 %10186, %v9144
      %v10188 = vpop.permute.xlu0 %10187
      %10190 = vset.pattern.permute.xlu0 19
      %10191 = vperm.xlu0 %10190, %v9145
      %v10192 = vpop.permute.xlu0 %10191
      %10194 = vset.pattern.permute.xlu0 19
      %10195 = vperm.xlu0 %10194, %v9146
      %v10196 = vpop.permute.xlu0 %10195
      %10198 = vset.pattern.permute.xlu0 19
      %10199 = vperm.xlu0 %10198, %v9147
      %v10200 = vpop.permute.xlu0 %10199
      %10202 = vset.pattern.permute.xlu0 19
      %10203 = vperm.xlu0 %10202, %v9148
      %v10204 = vpop.permute.xlu0 %10203
      %10206 = vset.pattern.permute.xlu0 19
      %10207 = vperm.xlu0 %10206, %v9149
      %v10208 = vpop.permute.xlu0 %10207
      %10210 = vset.pattern.permute.xlu0 19
      %10211 = vperm.xlu0 %10210, %v9150
      %v10212 = vpop.permute.xlu0 %10211
      %10214 = vset.pattern.permute.xlu0 19
      %10215 = vperm.xlu0 %10214, %v9151
      %v10216 = vpop.permute.xlu0 %10215
      %10218 = vset.pattern.permute.xlu0 19
      %10219 = vperm.xlu0 %10218, %v9152
      %v10220 = vpop.permute.xlu0 %10219
      %10222 = vset.pattern.permute.xlu0 19
      %10223 = vperm.xlu0 %10222, %v9153
      %v10224 = vpop.permute.xlu0 %10223
      %10226 = vset.pattern.permute.xlu0 19
      %10227 = vperm.xlu0 %10226, %v9154
      %v10228 = vpop.permute.xlu0 %10227
      %10230 = vset.pattern.permute.xlu0 19
      %10231 = vperm.xlu0 %10230, %v9155
      %v10232 = vpop.permute.xlu0 %10231
      %10234 = vset.pattern.permute.xlu0 19
      %10235 = vperm.xlu0 %10234, %v9156
      %v10236 = vpop.permute.xlu0 %10235
      %10238 = vset.pattern.permute.xlu0 19
      %10239 = vperm.xlu0 %10238, %v9157
      %v10240 = vpop.permute.xlu0 %10239
      %10242 = vset.pattern.permute.xlu0 19
      %10243 = vperm.xlu0 %10242, %v9158
      %v10244 = vpop.permute.xlu0 %10243
      %10246 = vset.pattern.permute.xlu0 19
      %10247 = vperm.xlu0 %10246, %v9159
      %v10248 = vpop.permute.xlu0 %10247
      %10250 = vset.pattern.permute.xlu0 19
      %10251 = vperm.xlu0 %10250, %v9160
      %v10252 = vpop.permute.xlu0 %10251
      %10254 = vset.pattern.permute.xlu0 19
      %10255 = vperm.xlu0 %10254, %v9161
      %v10256 = vpop.permute.xlu0 %10255
      %10258 = vset.pattern.permute.xlu0 19
      %10259 = vperm.xlu0 %10258, %v9162
      %v10260 = vpop.permute.xlu0 %10259
      %10262 = vset.pattern.permute.xlu0 19
      %10263 = vperm.xlu0 %10262, %v9163
      %v10264 = vpop.permute.xlu0 %10263
      %10266 = vset.pattern.permute.xlu0 19
      %10267 = vperm.xlu0 %10266, %v9164
      %v10268 = vpop.permute.xlu0 %10267
      %10270 = vset.pattern.permute.xlu0 19
      %10271 = vperm.xlu0 %10270, %v9165
      %v10272 = vpop.permute.xlu0 %10271
      %10274 = vset.pattern.permute.xlu0 19
      %10275 = vperm.xlu0 %10274, %v9166
      %v10276 = vpop.permute.xlu0 %10275
      %10278 = vset.pattern.permute.xlu0 19
      %10279 = vperm.xlu0 %10278, %v9167
      %v10280 = vpop.permute.xlu0 %10279
      %10282 = vset.pattern.permute.xlu0 19
      %10283 = vperm.xlu0 %10282, %v9168
      %v10284 = vpop.permute.xlu0 %10283
      %10286 = vset.pattern.permute.xlu0 19
      %10287 = vperm.xlu0 %10286, %v9169
      %v10288 = vpop.permute.xlu0 %10287
      %v10290 = vmul.f32 %v10164, %v9138
      %v10291 = vmul.f32 %v10168, %v9139
      %v10292 = vmul.f32 %v10172, %v9140
      %v10293 = vmul.f32 %v10176, %v9141
      %v10294 = vmul.f32 %v10180, %v9142
      %v10295 = vmul.f32 %v10184, %v9143
      %v10296 = vmul.f32 %v10188, %v9144
      %v10297 = vmul.f32 %v10192, %v9145
      %v10298 = vmul.f32 %v10196, %v9146
      %v10299 = vmul.f32 %v10200, %v9147
      %v10300 = vmul.f32 %v10204, %v9148
      %v10301 = vmul.f32 %v10208, %v9149
      %v10302 = vmul.f32 %v10212, %v9150
      %v10303 = vmul.f32 %v10216, %v9151
      %v10304 = vmul.f32 %v10220, %v9152
      %v10305 = vmul.f32 %v10224, %v9153
      %v10306 = vmul.f32 %v10228, %v9154
      %v10307 = vmul.f32 %v10232, %v9155
      %v10308 = vmul.f32 %v10236, %v9156
      %v10309 = vmul.f32 %v10240, %v9157
      %v10310 = vmul.f32 %v10244, %v9158
      %v10311 = vmul.f32 %v10248, %v9159
      %v10312 = vmul.f32 %v10252, %v9160
      %v10313 = vmul.f32 %v10256, %v9161
      %v10314 = vmul.f32 %v10260, %v9162
      %v10315 = vmul.f32 %v10264, %v9163
      %v10316 = vmul.f32 %v10268, %v9164
      %v10317 = vmul.f32 %v10272, %v9165
      %v10318 = vmul.f32 %v10276, %v9166
      %v10319 = vmul.f32 %v10280, %v9167
      %v10320 = vmul.f32 %v10284, %v9168
      %v10321 = vmul.f32 %v10288, %v9169
      %10322 = vset.pattern.permute.xlu0 20
      %10323 = vperm.xlu0 %10322, %v9138
      %v10324 = vpop.permute.xlu0 %10323
      %10326 = vset.pattern.permute.xlu0 20
      %10327 = vperm.xlu0 %10326, %v9139
      %v10328 = vpop.permute.xlu0 %10327
      %10330 = vset.pattern.permute.xlu0 20
      %10331 = vperm.xlu0 %10330, %v9140
      %v10332 = vpop.permute.xlu0 %10331
      %10334 = vset.pattern.permute.xlu0 20
      %10335 = vperm.xlu0 %10334, %v9141
      %v10336 = vpop.permute.xlu0 %10335
      %10338 = vset.pattern.permute.xlu0 20
      %10339 = vperm.xlu0 %10338, %v9142
      %v10340 = vpop.permute.xlu0 %10339
      %10342 = vset.pattern.permute.xlu0 20
      %10343 = vperm.xlu0 %10342, %v9143
      %v10344 = vpop.permute.xlu0 %10343
      %10346 = vset.pattern.permute.xlu0 20
      %10347 = vperm.xlu0 %10346, %v9144
      %v10348 = vpop.permute.xlu0 %10347
      %10350 = vset.pattern.permute.xlu0 20
      %10351 = vperm.xlu0 %10350, %v9145
      %v10352 = vpop.permute.xlu0 %10351
      %10354 = vset.pattern.permute.xlu0 20
      %10355 = vperm.xlu0 %10354, %v9146
      %v10356 = vpop.permute.xlu0 %10355
      %10358 = vset.pattern.permute.xlu0 20
      %10359 = vperm.xlu0 %10358, %v9147
      %v10360 = vpop.permute.xlu0 %10359
      %10362 = vset.pattern.permute.xlu0 20
      %10363 = vperm.xlu0 %10362, %v9148
      %v10364 = vpop.permute.xlu0 %10363
      %10366 = vset.pattern.permute.xlu0 20
      %10367 = vperm.xlu0 %10366, %v9149
      %v10368 = vpop.permute.xlu0 %10367
      %10370 = vset.pattern.permute.xlu0 20
      %10371 = vperm.xlu0 %10370, %v9150
      %v10372 = vpop.permute.xlu0 %10371
      %10374 = vset.pattern.permute.xlu0 20
      %10375 = vperm.xlu0 %10374, %v9151
      %v10376 = vpop.permute.xlu0 %10375
      %10378 = vset.pattern.permute.xlu0 20
      %10379 = vperm.xlu0 %10378, %v9152
      %v10380 = vpop.permute.xlu0 %10379
      %10382 = vset.pattern.permute.xlu0 20
      %10383 = vperm.xlu0 %10382, %v9153
      %v10384 = vpop.permute.xlu0 %10383
      %10386 = vset.pattern.permute.xlu0 20
      %10387 = vperm.xlu0 %10386, %v9154
      %v10388 = vpop.permute.xlu0 %10387
      %10390 = vset.pattern.permute.xlu0 20
      %10391 = vperm.xlu0 %10390, %v9155
      %v10392 = vpop.permute.xlu0 %10391
      %10394 = vset.pattern.permute.xlu0 20
      %10395 = vperm.xlu0 %10394, %v9156
      %v10396 = vpop.permute.xlu0 %10395
      %10398 = vset.pattern.permute.xlu0 20
      %10399 = vperm.xlu0 %10398, %v9157
      %v10400 = vpop.permute.xlu0 %10399
      %10402 = vset.pattern.permute.xlu0 20
      %10403 = vperm.xlu0 %10402, %v9158
      %v10404 = vpop.permute.xlu0 %10403
      %10406 = vset.pattern.permute.xlu0 20
      %10407 = vperm.xlu0 %10406, %v9159
      %v10408 = vpop.permute.xlu0 %10407
      %10410 = vset.pattern.permute.xlu0 20
      %10411 = vperm.xlu0 %10410, %v9160
      %v10412 = vpop.permute.xlu0 %10411
      %10414 = vset.pattern.permute.xlu0 20
      %10415 = vperm.xlu0 %10414, %v9161
      %v10416 = vpop.permute.xlu0 %10415
      %10418 = vset.pattern.permute.xlu0 20
      %10419 = vperm.xlu0 %10418, %v9162
      %v10420 = vpop.permute.xlu0 %10419
      %10422 = vset.pattern.permute.xlu0 20
      %10423 = vperm.xlu0 %10422, %v9163
      %v10424 = vpop.permute.xlu0 %10423
      %10426 = vset.pattern.permute.xlu0 20
      %10427 = vperm.xlu0 %10426, %v9164
      %v10428 = vpop.permute.xlu0 %10427
      %10430 = vset.pattern.permute.xlu0 20
      %10431 = vperm.xlu0 %10430, %v9165
      %v10432 = vpop.permute.xlu0 %10431
      %10434 = vset.pattern.permute.xlu0 20
      %10435 = vperm.xlu0 %10434, %v9166
      %v10436 = vpop.permute.xlu0 %10435
      %10438 = vset.pattern.permute.xlu0 20
      %10439 = vperm.xlu0 %10438, %v9167
      %v10440 = vpop.permute.xlu0 %10439
      %10442 = vset.pattern.permute.xlu0 20
      %10443 = vperm.xlu0 %10442, %v9168
      %v10444 = vpop.permute.xlu0 %10443
      %10446 = vset.pattern.permute.xlu0 20
      %10447 = vperm.xlu0 %10446, %v9169
      %v10448 = vpop.permute.xlu0 %10447
      %v10450 = vmul.f32 %v10324, %v9138
      %v10451 = vmul.f32 %v10328, %v9139
      %v10452 = vmul.f32 %v10332, %v9140
      %v10453 = vmul.f32 %v10336, %v9141
      %v10454 = vmul.f32 %v10340, %v9142
      %v10455 = vmul.f32 %v10344, %v9143
      %v10456 = vmul.f32 %v10348, %v9144
      %v10457 = vmul.f32 %v10352, %v9145
      %v10458 = vmul.f32 %v10356, %v9146
      %v10459 = vmul.f32 %v10360, %v9147
      %v10460 = vmul.f32 %v10364, %v9148
      %v10461 = vmul.f32 %v10368, %v9149
      %v10462 = vmul.f32 %v10372, %v9150
      %v10463 = vmul.f32 %v10376, %v9151
      %v10464 = vmul.f32 %v10380, %v9152
      %v10465 = vmul.f32 %v10384, %v9153
      %v10466 = vmul.f32 %v10388, %v9154
      %v10467 = vmul.f32 %v10392, %v9155
      %v10468 = vmul.f32 %v10396, %v9156
      %v10469 = vmul.f32 %v10400, %v9157
      %v10470 = vmul.f32 %v10404, %v9158
      %v10471 = vmul.f32 %v10408, %v9159
      %v10472 = vmul.f32 %v10412, %v9160
      %v10473 = vmul.f32 %v10416, %v9161
      %v10474 = vmul.f32 %v10420, %v9162
      %v10475 = vmul.f32 %v10424, %v9163
      %v10476 = vmul.f32 %v10428, %v9164
      %v10477 = vmul.f32 %v10432, %v9165
      %v10478 = vmul.f32 %v10436, %v9166
      %v10479 = vmul.f32 %v10440, %v9167
      %v10480 = vmul.f32 %v10444, %v9168
      %v10481 = vmul.f32 %v10448, %v9169
      %10482 = vset.pattern.permute.xlu0 21
      %10483 = vperm.xlu0 %10482, %v9138
      %v10484 = vpop.permute.xlu0 %10483
      %10486 = vset.pattern.permute.xlu0 21
      %10487 = vperm.xlu0 %10486, %v9139
      %v10488 = vpop.permute.xlu0 %10487
      %10490 = vset.pattern.permute.xlu0 21
      %10491 = vperm.xlu0 %10490, %v9140
      %v10492 = vpop.permute.xlu0 %10491
      %10494 = vset.pattern.permute.xlu0 21
      %10495 = vperm.xlu0 %10494, %v9141
      %v10496 = vpop.permute.xlu0 %10495
      %10498 = vset.pattern.permute.xlu0 21
      %10499 = vperm.xlu0 %10498, %v9142
      %v10500 = vpop.permute.xlu0 %10499
      %10502 = vset.pattern.permute.xlu0 21
      %10503 = vperm.xlu0 %10502, %v9143
      %v10504 = vpop.permute.xlu0 %10503
      %10506 = vset.pattern.permute.xlu0 21
      %10507 = vperm.xlu0 %10506, %v9144
      %v10508 = vpop.permute.xlu0 %10507
      %10510 = vset.pattern.permute.xlu0 21
      %10511 = vperm.xlu0 %10510, %v9145
      %v10512 = vpop.permute.xlu0 %10511
      %10514 = vset.pattern.permute.xlu0 21
      %10515 = vperm.xlu0 %10514, %v9146
      %v10516 = vpop.permute.xlu0 %10515
      %10518 = vset.pattern.permute.xlu0 21
      %10519 = vperm.xlu0 %10518, %v9147
      %v10520 = vpop.permute.xlu0 %10519
      %10522 = vset.pattern.permute.xlu0 21
      %10523 = vperm.xlu0 %10522, %v9148
      %v10524 = vpop.permute.xlu0 %10523
      %10526 = vset.pattern.permute.xlu0 21
      %10527 = vperm.xlu0 %10526, %v9149
      %v10528 = vpop.permute.xlu0 %10527
      %10530 = vset.pattern.permute.xlu0 21
      %10531 = vperm.xlu0 %10530, %v9150
      %v10532 = vpop.permute.xlu0 %10531
      %10534 = vset.pattern.permute.xlu0 21
      %10535 = vperm.xlu0 %10534, %v9151
      %v10536 = vpop.permute.xlu0 %10535
      %10538 = vset.pattern.permute.xlu0 21
      %10539 = vperm.xlu0 %10538, %v9152
      %v10540 = vpop.permute.xlu0 %10539
      %10542 = vset.pattern.permute.xlu0 21
      %10543 = vperm.xlu0 %10542, %v9153
      %v10544 = vpop.permute.xlu0 %10543
      %10546 = vset.pattern.permute.xlu0 21
      %10547 = vperm.xlu0 %10546, %v9154
      %v10548 = vpop.permute.xlu0 %10547
      %10550 = vset.pattern.permute.xlu0 21
      %10551 = vperm.xlu0 %10550, %v9155
      %v10552 = vpop.permute.xlu0 %10551
      %10554 = vset.pattern.permute.xlu0 21
      %10555 = vperm.xlu0 %10554, %v9156
      %v10556 = vpop.permute.xlu0 %10555
      %10558 = vset.pattern.permute.xlu0 21
      %10559 = vperm.xlu0 %10558, %v9157
      %v10560 = vpop.permute.xlu0 %10559
      %10562 = vset.pattern.permute.xlu0 21
      %10563 = vperm.xlu0 %10562, %v9158
      %v10564 = vpop.permute.xlu0 %10563
      %10566 = vset.pattern.permute.xlu0 21
      %10567 = vperm.xlu0 %10566, %v9159
      %v10568 = vpop.permute.xlu0 %10567
      %10570 = vset.pattern.permute.xlu0 21
      %10571 = vperm.xlu0 %10570, %v9160
      %v10572 = vpop.permute.xlu0 %10571
      %10574 = vset.pattern.permute.xlu0 21
      %10575 = vperm.xlu0 %10574, %v9161
      %v10576 = vpop.permute.xlu0 %10575
      %10578 = vset.pattern.permute.xlu0 21
      %10579 = vperm.xlu0 %10578, %v9162
      %v10580 = vpop.permute.xlu0 %10579
      %10582 = vset.pattern.permute.xlu0 21
      %10583 = vperm.xlu0 %10582, %v9163
      %v10584 = vpop.permute.xlu0 %10583
      %10586 = vset.pattern.permute.xlu0 21
      %10587 = vperm.xlu0 %10586, %v9164
      %v10588 = vpop.permute.xlu0 %10587
      %10590 = vset.pattern.permute.xlu0 21
      %10591 = vperm.xlu0 %10590, %v9165
      %v10592 = vpop.permute.xlu0 %10591
      %10594 = vset.pattern.permute.xlu0 21
      %10595 = vperm.xlu0 %10594, %v9166
      %v10596 = vpop.permute.xlu0 %10595
      %10598 = vset.pattern.permute.xlu0 21
      %10599 = vperm.xlu0 %10598, %v9167
      %v10600 = vpop.permute.xlu0 %10599
      %10602 = vset.pattern.permute.xlu0 21
      %10603 = vperm.xlu0 %10602, %v9168
      %v10604 = vpop.permute.xlu0 %10603
      %10606 = vset.pattern.permute.xlu0 21
      %10607 = vperm.xlu0 %10606, %v9169
      %v10608 = vpop.permute.xlu0 %10607
      %v10610 = vmul.f32 %v10484, %v9138
      %v10611 = vmul.f32 %v10488, %v9139
      %v10612 = vmul.f32 %v10492, %v9140
      %v10613 = vmul.f32 %v10496, %v9141
      %v10614 = vmul.f32 %v10500, %v9142
      %v10615 = vmul.f32 %v10504, %v9143
      %v10616 = vmul.f32 %v10508, %v9144
      %v10617 = vmul.f32 %v10512, %v9145
      %v10618 = vmul.f32 %v10516, %v9146
      %v10619 = vmul.f32 %v10520, %v9147
      %v10620 = vmul.f32 %v10524, %v9148
      %v10621 = vmul.f32 %v10528, %v9149
      %v10622 = vmul.f32 %v10532, %v9150
      %v10623 = vmul.f32 %v10536, %v9151
      %v10624 = vmul.f32 %v10540, %v9152
      %v10625 = vmul.f32 %v10544, %v9153
      %v10626 = vmul.f32 %v10548, %v9154
      %v10627 = vmul.f32 %v10552, %v9155
      %v10628 = vmul.f32 %v10556, %v9156
      %v10629 = vmul.f32 %v10560, %v9157
      %v10630 = vmul.f32 %v10564, %v9158
      %v10631 = vmul.f32 %v10568, %v9159
      %v10632 = vmul.f32 %v10572, %v9160
      %v10633 = vmul.f32 %v10576, %v9161
      %v10634 = vmul.f32 %v10580, %v9162
      %v10635 = vmul.f32 %v10584, %v9163
      %v10636 = vmul.f32 %v10588, %v9164
      %v10637 = vmul.f32 %v10592, %v9165
      %v10638 = vmul.f32 %v10596, %v9166
      %v10639 = vmul.f32 %v10600, %v9167
      %v10640 = vmul.f32 %v10604, %v9168
      %v10641 = vmul.f32 %v10608, %v9169
      %10642 = vset.pattern.permute.xlu0 22
      %10643 = vperm.xlu0 %10642, %v9138
      %v10644 = vpop.permute.xlu0 %10643
      %10646 = vset.pattern.permute.xlu0 22
      %10647 = vperm.xlu0 %10646, %v9139
      %v10648 = vpop.permute.xlu0 %10647
      %10650 = vset.pattern.permute.xlu0 22
      %10651 = vperm.xlu0 %10650, %v9140
      %v10652 = vpop.permute.xlu0 %10651
      %10654 = vset.pattern.permute.xlu0 22
      %10655 = vperm.xlu0 %10654, %v9141
      %v10656 = vpop.permute.xlu0 %10655
      %10658 = vset.pattern.permute.xlu0 22
      %10659 = vperm.xlu0 %10658, %v9142
      %v10660 = vpop.permute.xlu0 %10659
      %10662 = vset.pattern.permute.xlu0 22
      %10663 = vperm.xlu0 %10662, %v9143
      %v10664 = vpop.permute.xlu0 %10663
      %10666 = vset.pattern.permute.xlu0 22
      %10667 = vperm.xlu0 %10666, %v9144
      %v10668 = vpop.permute.xlu0 %10667
      %10670 = vset.pattern.permute.xlu0 22
      %10671 = vperm.xlu0 %10670, %v9145
      %v10672 = vpop.permute.xlu0 %10671
      %10674 = vset.pattern.permute.xlu0 22
      %10675 = vperm.xlu0 %10674, %v9146
      %v10676 = vpop.permute.xlu0 %10675
      %10678 = vset.pattern.permute.xlu0 22
      %10679 = vperm.xlu0 %10678, %v9147
      %v10680 = vpop.permute.xlu0 %10679
      %10682 = vset.pattern.permute.xlu0 22
      %10683 = vperm.xlu0 %10682, %v9148
      %v10684 = vpop.permute.xlu0 %10683
      %10686 = vset.pattern.permute.xlu0 22
      %10687 = vperm.xlu0 %10686, %v9149
      %v10688 = vpop.permute.xlu0 %10687
      %10690 = vset.pattern.permute.xlu0 22
      %10691 = vperm.xlu0 %10690, %v9150
      %v10692 = vpop.permute.xlu0 %10691
      %10694 = vset.pattern.permute.xlu0 22
      %10695 = vperm.xlu0 %10694, %v9151
      %v10696 = vpop.permute.xlu0 %10695
      %10698 = vset.pattern.permute.xlu0 22
      %10699 = vperm.xlu0 %10698, %v9152
      %v10700 = vpop.permute.xlu0 %10699
      %10702 = vset.pattern.permute.xlu0 22
      %10703 = vperm.xlu0 %10702, %v9153
      %v10704 = vpop.permute.xlu0 %10703
      %10706 = vset.pattern.permute.xlu0 22
      %10707 = vperm.xlu0 %10706, %v9154
      %v10708 = vpop.permute.xlu0 %10707
      %10710 = vset.pattern.permute.xlu0 22
      %10711 = vperm.xlu0 %10710, %v9155
      %v10712 = vpop.permute.xlu0 %10711
      %10714 = vset.pattern.permute.xlu0 22
      %10715 = vperm.xlu0 %10714, %v9156
      %v10716 = vpop.permute.xlu0 %10715
      %10718 = vset.pattern.permute.xlu0 22
      %10719 = vperm.xlu0 %10718, %v9157
      %v10720 = vpop.permute.xlu0 %10719
      %10722 = vset.pattern.permute.xlu0 22
      %10723 = vperm.xlu0 %10722, %v9158
      %v10724 = vpop.permute.xlu0 %10723
      %10726 = vset.pattern.permute.xlu0 22
      %10727 = vperm.xlu0 %10726, %v9159
      %v10728 = vpop.permute.xlu0 %10727
      %10730 = vset.pattern.permute.xlu0 22
      %10731 = vperm.xlu0 %10730, %v9160
      %v10732 = vpop.permute.xlu0 %10731
      %10734 = vset.pattern.permute.xlu0 22
      %10735 = vperm.xlu0 %10734, %v9161
      %v10736 = vpop.permute.xlu0 %10735
      %10738 = vset.pattern.permute.xlu0 22
      %10739 = vperm.xlu0 %10738, %v9162
      %v10740 = vpop.permute.xlu0 %10739
      %10742 = vset.pattern.permute.xlu0 22
      %10743 = vperm.xlu0 %10742, %v9163
      %v10744 = vpop.permute.xlu0 %10743
      %10746 = vset.pattern.permute.xlu0 22
      %10747 = vperm.xlu0 %10746, %v9164
      %v10748 = vpop.permute.xlu0 %10747
      %10750 = vset.pattern.permute.xlu0 22
      %10751 = vperm.xlu0 %10750, %v9165
      %v10752 = vpop.permute.xlu0 %10751
      %10754 = vset.pattern.permute.xlu0 22
      %10755 = vperm.xlu0 %10754, %v9166
      %v10756 = vpop.permute.xlu0 %10755
      %10758 = vset.pattern.permute.xlu0 22
      %10759 = vperm.xlu0 %10758, %v9167
      %v10760 = vpop.permute.xlu0 %10759
      %10762 = vset.pattern.permute.xlu0 22
      %10763 = vperm.xlu0 %10762, %v9168
      %v10764 = vpop.permute.xlu0 %10763
      %10766 = vset.pattern.permute.xlu0 22
      %10767 = vperm.xlu0 %10766, %v9169
      %v10768 = vpop.permute.xlu0 %10767
      %v10770 = vmul.f32 %v10644, %v9138
      %v10771 = vmul.f32 %v10648, %v9139
      %v10772 = vmul.f32 %v10652, %v9140
      %v10773 = vmul.f32 %v10656, %v9141
      %v10774 = vmul.f32 %v10660, %v9142
      %v10775 = vmul.f32 %v10664, %v9143
      %v10776 = vmul.f32 %v10668, %v9144
      %v10777 = vmul.f32 %v10672, %v9145
      %v10778 = vmul.f32 %v10676, %v9146
      %v10779 = vmul.f32 %v10680, %v9147
      %v10780 = vmul.f32 %v10684, %v9148
      %v10781 = vmul.f32 %v10688, %v9149
      %v10782 = vmul.f32 %v10692, %v9150
      %v10783 = vmul.f32 %v10696, %v9151
      %v10784 = vmul.f32 %v10700, %v9152
      %v10785 = vmul.f32 %v10704, %v9153
      %v10786 = vmul.f32 %v10708, %v9154
      %v10787 = vmul.f32 %v10712, %v9155
      %v10788 = vmul.f32 %v10716, %v9156
      %v10789 = vmul.f32 %v10720, %v9157
      %v10790 = vmul.f32 %v10724, %v9158
      %v10791 = vmul.f32 %v10728, %v9159
      %v10792 = vmul.f32 %v10732, %v9160
      %v10793 = vmul.f32 %v10736, %v9161
      %v10794 = vmul.f32 %v10740, %v9162
      %v10795 = vmul.f32 %v10744, %v9163
      %v10796 = vmul.f32 %v10748, %v9164
      %v10797 = vmul.f32 %v10752, %v9165
      %v10798 = vmul.f32 %v10756, %v9166
      %v10799 = vmul.f32 %v10760, %v9167
      %v10800 = vmul.f32 %v10764, %v9168
      %v10801 = vmul.f32 %v10768, %v9169
      %10834 = vrot.lane.b32.xlu0 %v9330, 125
      %v10835 = vpop.permute.xlu0 %10834
      %10836 = vrot.lane.b32.xlu0 %v9331, 125
      %v10837 = vpop.permute.xlu0 %10836
      %10838 = vrot.lane.b32.xlu0 %v9332, 125
      %v10839 = vpop.permute.xlu0 %10838
      %10840 = vrot.lane.b32.xlu0 %v9333, 125
      %v10841 = vpop.permute.xlu0 %10840
      %10842 = vrot.lane.b32.xlu0 %v9334, 125
      %v10843 = vpop.permute.xlu0 %10842
      %10844 = vrot.lane.b32.xlu0 %v9335, 125
      %v10845 = vpop.permute.xlu0 %10844
      %10846 = vrot.lane.b32.xlu0 %v9336, 125
      %v10847 = vpop.permute.xlu0 %10846
      %10848 = vrot.lane.b32.xlu0 %v9337, 125
      %v10849 = vpop.permute.xlu0 %10848
      %10850 = vrot.lane.b32.xlu0 %v9338, 125
      %v10851 = vpop.permute.xlu0 %10850
      %10852 = vrot.lane.b32.xlu0 %v9339, 125
      %v10853 = vpop.permute.xlu0 %10852
      %10854 = vrot.lane.b32.xlu0 %v9340, 125
      %v10855 = vpop.permute.xlu0 %10854
      %10856 = vrot.lane.b32.xlu0 %v9341, 125
      %v10857 = vpop.permute.xlu0 %10856
      %10858 = vrot.lane.b32.xlu0 %v9342, 125
      %v10859 = vpop.permute.xlu0 %10858
      %10860 = vrot.lane.b32.xlu0 %v9343, 125
      %v10861 = vpop.permute.xlu0 %10860
      %10862 = vrot.lane.b32.xlu0 %v9344, 125
      %v10863 = vpop.permute.xlu0 %10862
      %10864 = vrot.lane.b32.xlu0 %v9345, 125
      %v10865 = vpop.permute.xlu0 %10864
      %10866 = vrot.lane.b32.xlu0 %v9346, 125
      %v10867 = vpop.permute.xlu0 %10866
      %10868 = vrot.lane.b32.xlu0 %v9347, 125
      %v10869 = vpop.permute.xlu0 %10868
      %10870 = vrot.lane.b32.xlu0 %v9348, 125
      %v10871 = vpop.permute.xlu0 %10870
      %10872 = vrot.lane.b32.xlu0 %v9349, 125
      %v10873 = vpop.permute.xlu0 %10872
      %10874 = vrot.lane.b32.xlu0 %v9350, 125
      %v10875 = vpop.permute.xlu0 %10874
      %10876 = vrot.lane.b32.xlu0 %v9351, 125
      %v10877 = vpop.permute.xlu0 %10876
      %10878 = vrot.lane.b32.xlu0 %v9352, 125
      %v10879 = vpop.permute.xlu0 %10878
      %10880 = vrot.lane.b32.xlu0 %v9353, 125
      %v10881 = vpop.permute.xlu0 %10880
      %10882 = vrot.lane.b32.xlu0 %v9354, 125
      %v10883 = vpop.permute.xlu0 %10882
      %10884 = vrot.lane.b32.xlu0 %v9355, 125
      %v10885 = vpop.permute.xlu0 %10884
      %10886 = vrot.lane.b32.xlu0 %v9356, 125
      %v10887 = vpop.permute.xlu0 %10886
      %10888 = vrot.lane.b32.xlu0 %v9357, 125
      %v10889 = vpop.permute.xlu0 %10888
      %10890 = vrot.lane.b32.xlu0 %v9358, 125
      %v10891 = vpop.permute.xlu0 %10890
      %10892 = vrot.lane.b32.xlu0 %v9359, 125
      %v10893 = vpop.permute.xlu0 %10892
      %10894 = vrot.lane.b32.xlu0 %v9360, 125
      %v10895 = vpop.permute.xlu0 %10894
      %10896 = vrot.lane.b32.xlu0 %v9361, 125
      %v10897 = vpop.permute.xlu0 %10896
      %10962 = vrot.lane.b32.xlu0 %v9490, 7
      %v10963 = vpop.permute.xlu0 %10962
      %10964 = vrot.lane.b32.xlu0 %v9491, 7
      %v10965 = vpop.permute.xlu0 %10964
      %10966 = vrot.lane.b32.xlu0 %v9492, 7
      %v10967 = vpop.permute.xlu0 %10966
      %10968 = vrot.lane.b32.xlu0 %v9493, 7
      %v10969 = vpop.permute.xlu0 %10968
      %10970 = vrot.lane.b32.xlu0 %v9494, 7
      %v10971 = vpop.permute.xlu0 %10970
      %10972 = vrot.lane.b32.xlu0 %v9495, 7
      %v10973 = vpop.permute.xlu0 %10972
      %10974 = vrot.lane.b32.xlu0 %v9496, 7
      %v10975 = vpop.permute.xlu0 %10974
      %10976 = vrot.lane.b32.xlu0 %v9497, 7
      %v10977 = vpop.permute.xlu0 %10976
      %10978 = vrot.lane.b32.xlu0 %v9498, 7
      %v10979 = vpop.permute.xlu0 %10978
      %10980 = vrot.lane.b32.xlu0 %v9499, 7
      %v10981 = vpop.permute.xlu0 %10980
      %10982 = vrot.lane.b32.xlu0 %v9500, 7
      %v10983 = vpop.permute.xlu0 %10982
      %10984 = vrot.lane.b32.xlu0 %v9501, 7
      %v10985 = vpop.permute.xlu0 %10984
      %10986 = vrot.lane.b32.xlu0 %v9502, 7
      %v10987 = vpop.permute.xlu0 %10986
      %10988 = vrot.lane.b32.xlu0 %v9503, 7
      %v10989 = vpop.permute.xlu0 %10988
      %10990 = vrot.lane.b32.xlu0 %v9504, 7
      %v10991 = vpop.permute.xlu0 %10990
      %10992 = vrot.lane.b32.xlu0 %v9505, 7
      %v10993 = vpop.permute.xlu0 %10992
      %10994 = vrot.lane.b32.xlu0 %v9506, 7
      %v10995 = vpop.permute.xlu0 %10994
      %10996 = vrot.lane.b32.xlu0 %v9507, 7
      %v10997 = vpop.permute.xlu0 %10996
      %10998 = vrot.lane.b32.xlu0 %v9508, 7
      %v10999 = vpop.permute.xlu0 %10998
      %11000 = vrot.lane.b32.xlu0 %v9509, 7
      %v11001 = vpop.permute.xlu0 %11000
      %11002 = vrot.lane.b32.xlu0 %v9510, 7
      %v11003 = vpop.permute.xlu0 %11002
      %11004 = vrot.lane.b32.xlu0 %v9511, 7
      %v11005 = vpop.permute.xlu0 %11004
      %11006 = vrot.lane.b32.xlu0 %v9512, 7
      %v11007 = vpop.permute.xlu0 %11006
      %11008 = vrot.lane.b32.xlu0 %v9513, 7
      %v11009 = vpop.permute.xlu0 %11008
      %11010 = vrot.lane.b32.xlu0 %v9514, 7
      %v11011 = vpop.permute.xlu0 %11010
      %11012 = vrot.lane.b32.xlu0 %v9515, 7
      %v11013 = vpop.permute.xlu0 %11012
      %11014 = vrot.lane.b32.xlu0 %v9516, 7
      %v11015 = vpop.permute.xlu0 %11014
      %11016 = vrot.lane.b32.xlu0 %v9517, 7
      %v11017 = vpop.permute.xlu0 %11016
      %11018 = vrot.lane.b32.xlu0 %v9518, 7
      %v11019 = vpop.permute.xlu0 %11018
      %11020 = vrot.lane.b32.xlu0 %v9519, 7
      %v11021 = vpop.permute.xlu0 %11020
      %11022 = vrot.lane.b32.xlu0 %v9520, 7
      %v11023 = vpop.permute.xlu0 %11022
      %11024 = vrot.lane.b32.xlu0 %v9521, 7
      %v11025 = vpop.permute.xlu0 %11024
      %11090 = vrot.lane.b32.xlu0 %v9650, 17
      %v11091 = vpop.permute.xlu0 %11090
      %11092 = vrot.lane.b32.xlu0 %v9651, 17
      %v11093 = vpop.permute.xlu0 %11092
      %11094 = vrot.lane.b32.xlu0 %v9652, 17
      %v11095 = vpop.permute.xlu0 %11094
      %11096 = vrot.lane.b32.xlu0 %v9653, 17
      %v11097 = vpop.permute.xlu0 %11096
      %11098 = vrot.lane.b32.xlu0 %v9654, 17
      %v11099 = vpop.permute.xlu0 %11098
      %11100 = vrot.lane.b32.xlu0 %v9655, 17
      %v11101 = vpop.permute.xlu0 %11100
      %11102 = vrot.lane.b32.xlu0 %v9656, 17
      %v11103 = vpop.permute.xlu0 %11102
      %11104 = vrot.lane.b32.xlu0 %v9657, 17
      %v11105 = vpop.permute.xlu0 %11104
      %11106 = vrot.lane.b32.xlu0 %v9658, 17
      %v11107 = vpop.permute.xlu0 %11106
      %11108 = vrot.lane.b32.xlu0 %v9659, 17
      %v11109 = vpop.permute.xlu0 %11108
      %11110 = vrot.lane.b32.xlu0 %v9660, 17
      %v11111 = vpop.permute.xlu0 %11110
      %11112 = vrot.lane.b32.xlu0 %v9661, 17
      %v11113 = vpop.permute.xlu0 %11112
      %11114 = vrot.lane.b32.xlu0 %v9662, 17
      %v11115 = vpop.permute.xlu0 %11114
      %11116 = vrot.lane.b32.xlu0 %v9663, 17
      %v11117 = vpop.permute.xlu0 %11116
      %11118 = vrot.lane.b32.xlu0 %v9664, 17
      %v11119 = vpop.permute.xlu0 %11118
      %11120 = vrot.lane.b32.xlu0 %v9665, 17
      %v11121 = vpop.permute.xlu0 %11120
      %11122 = vrot.lane.b32.xlu0 %v9666, 17
      %v11123 = vpop.permute.xlu0 %11122
      %11124 = vrot.lane.b32.xlu0 %v9667, 17
      %v11125 = vpop.permute.xlu0 %11124
      %11126 = vrot.lane.b32.xlu0 %v9668, 17
      %v11127 = vpop.permute.xlu0 %11126
      %11128 = vrot.lane.b32.xlu0 %v9669, 17
      %v11129 = vpop.permute.xlu0 %11128
      %11130 = vrot.lane.b32.xlu0 %v9670, 17
      %v11131 = vpop.permute.xlu0 %11130
      %11132 = vrot.lane.b32.xlu0 %v9671, 17
      %v11133 = vpop.permute.xlu0 %11132
      %11134 = vrot.lane.b32.xlu0 %v9672, 17
      %v11135 = vpop.permute.xlu0 %11134
      %11136 = vrot.lane.b32.xlu0 %v9673, 17
      %v11137 = vpop.permute.xlu0 %11136
      %11138 = vrot.lane.b32.xlu0 %v9674, 17
      %v11139 = vpop.permute.xlu0 %11138
      %11140 = vrot.lane.b32.xlu0 %v9675, 17
      %v11141 = vpop.permute.xlu0 %11140
      %11142 = vrot.lane.b32.xlu0 %v9676, 17
      %v11143 = vpop.permute.xlu0 %11142
      %11144 = vrot.lane.b32.xlu0 %v9677, 17
      %v11145 = vpop.permute.xlu0 %11144
      %11146 = vrot.lane.b32.xlu0 %v9678, 17
      %v11147 = vpop.permute.xlu0 %11146
      %11148 = vrot.lane.b32.xlu0 %v9679, 17
      %v11149 = vpop.permute.xlu0 %11148
      %11150 = vrot.lane.b32.xlu0 %v9680, 17
      %v11151 = vpop.permute.xlu0 %11150
      %11152 = vrot.lane.b32.xlu0 %v9681, 17
      %v11153 = vpop.permute.xlu0 %11152
      %11218 = vrot.lane.b32.xlu0 %v9810, 27
      %v11219 = vpop.permute.xlu0 %11218
      %11220 = vrot.lane.b32.xlu0 %v9811, 27
      %v11221 = vpop.permute.xlu0 %11220
      %11222 = vrot.lane.b32.xlu0 %v9812, 27
      %v11223 = vpop.permute.xlu0 %11222
      %11224 = vrot.lane.b32.xlu0 %v9813, 27
      %v11225 = vpop.permute.xlu0 %11224
      %11226 = vrot.lane.b32.xlu0 %v9814, 27
      %v11227 = vpop.permute.xlu0 %11226
      %11228 = vrot.lane.b32.xlu0 %v9815, 27
      %v11229 = vpop.permute.xlu0 %11228
      %11230 = vrot.lane.b32.xlu0 %v9816, 27
      %v11231 = vpop.permute.xlu0 %11230
      %11232 = vrot.lane.b32.xlu0 %v9817, 27
      %v11233 = vpop.permute.xlu0 %11232
      %11234 = vrot.lane.b32.xlu0 %v9818, 27
      %v11235 = vpop.permute.xlu0 %11234
      %11236 = vrot.lane.b32.xlu0 %v9819, 27
      %v11237 = vpop.permute.xlu0 %11236
      %11238 = vrot.lane.b32.xlu0 %v9820, 27
      %v11239 = vpop.permute.xlu0 %11238
      %11240 = vrot.lane.b32.xlu0 %v9821, 27
      %v11241 = vpop.permute.xlu0 %11240
      %11242 = vrot.lane.b32.xlu0 %v9822, 27
      %v11243 = vpop.permute.xlu0 %11242
      %11244 = vrot.lane.b32.xlu0 %v9823, 27
      %v11245 = vpop.permute.xlu0 %11244
      %11246 = vrot.lane.b32.xlu0 %v9824, 27
      %v11247 = vpop.permute.xlu0 %11246
      %11248 = vrot.lane.b32.xlu0 %v9825, 27
      %v11249 = vpop.permute.xlu0 %11248
      %11250 = vrot.lane.b32.xlu0 %v9826, 27
      %v11251 = vpop.permute.xlu0 %11250
      %11252 = vrot.lane.b32.xlu0 %v9827, 27
      %v11253 = vpop.permute.xlu0 %11252
      %11254 = vrot.lane.b32.xlu0 %v9828, 27
      %v11255 = vpop.permute.xlu0 %11254
      %11256 = vrot.lane.b32.xlu0 %v9829, 27
      %v11257 = vpop.permute.xlu0 %11256
      %11258 = vrot.lane.b32.xlu0 %v9830, 27
      %v11259 = vpop.permute.xlu0 %11258
      %11260 = vrot.lane.b32.xlu0 %v9831, 27
      %v11261 = vpop.permute.xlu0 %11260
      %11262 = vrot.lane.b32.xlu0 %v9832, 27
      %v11263 = vpop.permute.xlu0 %11262
      %11264 = vrot.lane.b32.xlu0 %v9833, 27
      %v11265 = vpop.permute.xlu0 %11264
      %11266 = vrot.lane.b32.xlu0 %v9834, 27
      %v11267 = vpop.permute.xlu0 %11266
      %11268 = vrot.lane.b32.xlu0 %v9835, 27
      %v11269 = vpop.permute.xlu0 %11268
      %11270 = vrot.lane.b32.xlu0 %v9836, 27
      %v11271 = vpop.permute.xlu0 %11270
      %11272 = vrot.lane.b32.xlu0 %v9837, 27
      %v11273 = vpop.permute.xlu0 %11272
      %11274 = vrot.lane.b32.xlu0 %v9838, 27
      %v11275 = vpop.permute.xlu0 %11274
      %11276 = vrot.lane.b32.xlu0 %v9839, 27
      %v11277 = vpop.permute.xlu0 %11276
      %11278 = vrot.lane.b32.xlu0 %v9840, 27
      %v11279 = vpop.permute.xlu0 %11278
      %11280 = vrot.lane.b32.xlu0 %v9841, 27
      %v11281 = vpop.permute.xlu0 %11280
      %11346 = vrot.lane.b32.xlu0 %v9970, 37
      %v11347 = vpop.permute.xlu0 %11346
      %11348 = vrot.lane.b32.xlu0 %v9971, 37
      %v11349 = vpop.permute.xlu0 %11348
      %11350 = vrot.lane.b32.xlu0 %v9972, 37
      %v11351 = vpop.permute.xlu0 %11350
      %11352 = vrot.lane.b32.xlu0 %v9973, 37
      %v11353 = vpop.permute.xlu0 %11352
      %11354 = vrot.lane.b32.xlu0 %v9974, 37
      %v11355 = vpop.permute.xlu0 %11354
      %11356 = vrot.lane.b32.xlu0 %v9975, 37
      %v11357 = vpop.permute.xlu0 %11356
      %11358 = vrot.lane.b32.xlu0 %v9976, 37
      %v11359 = vpop.permute.xlu0 %11358
      %11360 = vrot.lane.b32.xlu0 %v9977, 37
      %v11361 = vpop.permute.xlu0 %11360
      %11362 = vrot.lane.b32.xlu0 %v9978, 37
      %v11363 = vpop.permute.xlu0 %11362
      %11364 = vrot.lane.b32.xlu0 %v9979, 37
      %v11365 = vpop.permute.xlu0 %11364
      %11366 = vrot.lane.b32.xlu0 %v9980, 37
      %v11367 = vpop.permute.xlu0 %11366
      %11368 = vrot.lane.b32.xlu0 %v9981, 37
      %v11369 = vpop.permute.xlu0 %11368
      %11370 = vrot.lane.b32.xlu0 %v9982, 37
      %v11371 = vpop.permute.xlu0 %11370
      %11372 = vrot.lane.b32.xlu0 %v9983, 37
      %v11373 = vpop.permute.xlu0 %11372
      %11374 = vrot.lane.b32.xlu0 %v9984, 37
      %v11375 = vpop.permute.xlu0 %11374
      %11376 = vrot.lane.b32.xlu0 %v9985, 37
      %v11377 = vpop.permute.xlu0 %11376
      %11378 = vrot.lane.b32.xlu0 %v9986, 37
      %v11379 = vpop.permute.xlu0 %11378
      %11380 = vrot.lane.b32.xlu0 %v9987, 37
      %v11381 = vpop.permute.xlu0 %11380
      %11382 = vrot.lane.b32.xlu0 %v9988, 37
      %v11383 = vpop.permute.xlu0 %11382
      %11384 = vrot.lane.b32.xlu0 %v9989, 37
      %v11385 = vpop.permute.xlu0 %11384
      %11386 = vrot.lane.b32.xlu0 %v9990, 37
      %v11387 = vpop.permute.xlu0 %11386
      %11388 = vrot.lane.b32.xlu0 %v9991, 37
      %v11389 = vpop.permute.xlu0 %11388
      %11390 = vrot.lane.b32.xlu0 %v9992, 37
      %v11391 = vpop.permute.xlu0 %11390
      %11392 = vrot.lane.b32.xlu0 %v9993, 37
      %v11393 = vpop.permute.xlu0 %11392
      %11394 = vrot.lane.b32.xlu0 %v9994, 37
      %v11395 = vpop.permute.xlu0 %11394
      %11396 = vrot.lane.b32.xlu0 %v9995, 37
      %v11397 = vpop.permute.xlu0 %11396
      %11398 = vrot.lane.b32.xlu0 %v9996, 37
      %v11399 = vpop.permute.xlu0 %11398
      %11400 = vrot.lane.b32.xlu0 %v9997, 37
      %v11401 = vpop.permute.xlu0 %11400
      %11402 = vrot.lane.b32.xlu0 %v9998, 37
      %v11403 = vpop.permute.xlu0 %11402
      %11404 = vrot.lane.b32.xlu0 %v9999, 37
      %v11405 = vpop.permute.xlu0 %11404
      %11406 = vrot.lane.b32.xlu0 %v10000, 37
      %v11407 = vpop.permute.xlu0 %11406
      %11408 = vrot.lane.b32.xlu0 %v10001, 37
      %v11409 = vpop.permute.xlu0 %11408
      %11474 = vrot.lane.b32.xlu0 %v10130, 47
      %v11475 = vpop.permute.xlu0 %11474
      %11476 = vrot.lane.b32.xlu0 %v10131, 47
      %v11477 = vpop.permute.xlu0 %11476
      %11478 = vrot.lane.b32.xlu0 %v10132, 47
      %v11479 = vpop.permute.xlu0 %11478
      %11480 = vrot.lane.b32.xlu0 %v10133, 47
      %v11481 = vpop.permute.xlu0 %11480
      %11482 = vrot.lane.b32.xlu0 %v10134, 47
      %v11483 = vpop.permute.xlu0 %11482
      %11484 = vrot.lane.b32.xlu0 %v10135, 47
      %v11485 = vpop.permute.xlu0 %11484
      %11486 = vrot.lane.b32.xlu0 %v10136, 47
      %v11487 = vpop.permute.xlu0 %11486
      %11488 = vrot.lane.b32.xlu0 %v10137, 47
      %v11489 = vpop.permute.xlu0 %11488
      %11490 = vrot.lane.b32.xlu0 %v10138, 47
      %v11491 = vpop.permute.xlu0 %11490
      %11492 = vrot.lane.b32.xlu0 %v10139, 47
      %v11493 = vpop.permute.xlu0 %11492
      %11494 = vrot.lane.b32.xlu0 %v10140, 47
      %v11495 = vpop.permute.xlu0 %11494
      %11496 = vrot.lane.b32.xlu0 %v10141, 47
      %v11497 = vpop.permute.xlu0 %11496
      %11498 = vrot.lane.b32.xlu0 %v10142, 47
      %v11499 = vpop.permute.xlu0 %11498
      %11500 = vrot.lane.b32.xlu0 %v10143, 47
      %v11501 = vpop.permute.xlu0 %11500
      %11502 = vrot.lane.b32.xlu0 %v10144, 47
      %v11503 = vpop.permute.xlu0 %11502
      %11504 = vrot.lane.b32.xlu0 %v10145, 47
      %v11505 = vpop.permute.xlu0 %11504
      %11506 = vrot.lane.b32.xlu0 %v10146, 47
      %v11507 = vpop.permute.xlu0 %11506
      %11508 = vrot.lane.b32.xlu0 %v10147, 47
      %v11509 = vpop.permute.xlu0 %11508
      %11510 = vrot.lane.b32.xlu0 %v10148, 47
      %v11511 = vpop.permute.xlu0 %11510
      %11512 = vrot.lane.b32.xlu0 %v10149, 47
      %v11513 = vpop.permute.xlu0 %11512
      %11514 = vrot.lane.b32.xlu0 %v10150, 47
      %v11515 = vpop.permute.xlu0 %11514
      %11516 = vrot.lane.b32.xlu0 %v10151, 47
      %v11517 = vpop.permute.xlu0 %11516
      %11518 = vrot.lane.b32.xlu0 %v10152, 47
      %v11519 = vpop.permute.xlu0 %11518
      %11520 = vrot.lane.b32.xlu0 %v10153, 47
      %v11521 = vpop.permute.xlu0 %11520
      %11522 = vrot.lane.b32.xlu0 %v10154, 47
      %v11523 = vpop.permute.xlu0 %11522
      %11524 = vrot.lane.b32.xlu0 %v10155, 47
      %v11525 = vpop.permute.xlu0 %11524
      %11526 = vrot.lane.b32.xlu0 %v10156, 47
      %v11527 = vpop.permute.xlu0 %11526
      %11528 = vrot.lane.b32.xlu0 %v10157, 47
      %v11529 = vpop.permute.xlu0 %11528
      %11530 = vrot.lane.b32.xlu0 %v10158, 47
      %v11531 = vpop.permute.xlu0 %11530
      %11532 = vrot.lane.b32.xlu0 %v10159, 47
      %v11533 = vpop.permute.xlu0 %11532
      %11534 = vrot.lane.b32.xlu0 %v10160, 47
      %v11535 = vpop.permute.xlu0 %11534
      %11536 = vrot.lane.b32.xlu0 %v10161, 47
      %v11537 = vpop.permute.xlu0 %11536
      %11602 = vrot.lane.b32.xlu0 %v10290, 57
      %v11603 = vpop.permute.xlu0 %11602
      %11604 = vrot.lane.b32.xlu0 %v10291, 57
      %v11605 = vpop.permute.xlu0 %11604
      %11606 = vrot.lane.b32.xlu0 %v10292, 57
      %v11607 = vpop.permute.xlu0 %11606
      %11608 = vrot.lane.b32.xlu0 %v10293, 57
      %v11609 = vpop.permute.xlu0 %11608
      %11610 = vrot.lane.b32.xlu0 %v10294, 57
      %v11611 = vpop.permute.xlu0 %11610
      %11612 = vrot.lane.b32.xlu0 %v10295, 57
      %v11613 = vpop.permute.xlu0 %11612
      %11614 = vrot.lane.b32.xlu0 %v10296, 57
      %v11615 = vpop.permute.xlu0 %11614
      %11616 = vrot.lane.b32.xlu0 %v10297, 57
      %v11617 = vpop.permute.xlu0 %11616
      %11618 = vrot.lane.b32.xlu0 %v10298, 57
      %v11619 = vpop.permute.xlu0 %11618
      %11620 = vrot.lane.b32.xlu0 %v10299, 57
      %v11621 = vpop.permute.xlu0 %11620
      %11622 = vrot.lane.b32.xlu0 %v10300, 57
      %v11623 = vpop.permute.xlu0 %11622
      %11624 = vrot.lane.b32.xlu0 %v10301, 57
      %v11625 = vpop.permute.xlu0 %11624
      %11626 = vrot.lane.b32.xlu0 %v10302, 57
      %v11627 = vpop.permute.xlu0 %11626
      %11628 = vrot.lane.b32.xlu0 %v10303, 57
      %v11629 = vpop.permute.xlu0 %11628
      %11630 = vrot.lane.b32.xlu0 %v10304, 57
      %v11631 = vpop.permute.xlu0 %11630
      %11632 = vrot.lane.b32.xlu0 %v10305, 57
      %v11633 = vpop.permute.xlu0 %11632
      %11634 = vrot.lane.b32.xlu0 %v10306, 57
      %v11635 = vpop.permute.xlu0 %11634
      %11636 = vrot.lane.b32.xlu0 %v10307, 57
      %v11637 = vpop.permute.xlu0 %11636
      %11638 = vrot.lane.b32.xlu0 %v10308, 57
      %v11639 = vpop.permute.xlu0 %11638
      %11640 = vrot.lane.b32.xlu0 %v10309, 57
      %v11641 = vpop.permute.xlu0 %11640
      %11642 = vrot.lane.b32.xlu0 %v10310, 57
      %v11643 = vpop.permute.xlu0 %11642
      %11644 = vrot.lane.b32.xlu0 %v10311, 57
      %v11645 = vpop.permute.xlu0 %11644
      %11646 = vrot.lane.b32.xlu0 %v10312, 57
      %v11647 = vpop.permute.xlu0 %11646
      %11648 = vrot.lane.b32.xlu0 %v10313, 57
      %v11649 = vpop.permute.xlu0 %11648
      %11650 = vrot.lane.b32.xlu0 %v10314, 57
      %v11651 = vpop.permute.xlu0 %11650
      %11652 = vrot.lane.b32.xlu0 %v10315, 57
      %v11653 = vpop.permute.xlu0 %11652
      %11654 = vrot.lane.b32.xlu0 %v10316, 57
      %v11655 = vpop.permute.xlu0 %11654
      %11656 = vrot.lane.b32.xlu0 %v10317, 57
      %v11657 = vpop.permute.xlu0 %11656
      %11658 = vrot.lane.b32.xlu0 %v10318, 57
      %v11659 = vpop.permute.xlu0 %11658
      %11660 = vrot.lane.b32.xlu0 %v10319, 57
      %v11661 = vpop.permute.xlu0 %11660
      %11662 = vrot.lane.b32.xlu0 %v10320, 57
      %v11663 = vpop.permute.xlu0 %11662
      %11664 = vrot.lane.b32.xlu0 %v10321, 57
      %v11665 = vpop.permute.xlu0 %11664
      %11730 = vrot.lane.b32.xlu0 %v10450, 67
      %v11731 = vpop.permute.xlu0 %11730
      %11732 = vrot.lane.b32.xlu0 %v10451, 67
      %v11733 = vpop.permute.xlu0 %11732
      %11734 = vrot.lane.b32.xlu0 %v10452, 67
      %v11735 = vpop.permute.xlu0 %11734
      %11736 = vrot.lane.b32.xlu0 %v10453, 67
      %v11737 = vpop.permute.xlu0 %11736
      %11738 = vrot.lane.b32.xlu0 %v10454, 67
      %v11739 = vpop.permute.xlu0 %11738
      %11740 = vrot.lane.b32.xlu0 %v10455, 67
      %v11741 = vpop.permute.xlu0 %11740
      %11742 = vrot.lane.b32.xlu0 %v10456, 67
      %v11743 = vpop.permute.xlu0 %11742
      %11744 = vrot.lane.b32.xlu0 %v10457, 67
      %v11745 = vpop.permute.xlu0 %11744
      %11746 = vrot.lane.b32.xlu0 %v10458, 67
      %v11747 = vpop.permute.xlu0 %11746
      %11748 = vrot.lane.b32.xlu0 %v10459, 67
      %v11749 = vpop.permute.xlu0 %11748
      %11750 = vrot.lane.b32.xlu0 %v10460, 67
      %v11751 = vpop.permute.xlu0 %11750
      %11752 = vrot.lane.b32.xlu0 %v10461, 67
      %v11753 = vpop.permute.xlu0 %11752
      %11754 = vrot.lane.b32.xlu0 %v10462, 67
      %v11755 = vpop.permute.xlu0 %11754
      %11756 = vrot.lane.b32.xlu0 %v10463, 67
      %v11757 = vpop.permute.xlu0 %11756
      %11758 = vrot.lane.b32.xlu0 %v10464, 67
      %v11759 = vpop.permute.xlu0 %11758
      %11760 = vrot.lane.b32.xlu0 %v10465, 67
      %v11761 = vpop.permute.xlu0 %11760
      %11762 = vrot.lane.b32.xlu0 %v10466, 67
      %v11763 = vpop.permute.xlu0 %11762
      %11764 = vrot.lane.b32.xlu0 %v10467, 67
      %v11765 = vpop.permute.xlu0 %11764
      %11766 = vrot.lane.b32.xlu0 %v10468, 67
      %v11767 = vpop.permute.xlu0 %11766
      %11768 = vrot.lane.b32.xlu0 %v10469, 67
      %v11769 = vpop.permute.xlu0 %11768
      %11770 = vrot.lane.b32.xlu0 %v10470, 67
      %v11771 = vpop.permute.xlu0 %11770
      %11772 = vrot.lane.b32.xlu0 %v10471, 67
      %v11773 = vpop.permute.xlu0 %11772
      %11774 = vrot.lane.b32.xlu0 %v10472, 67
      %v11775 = vpop.permute.xlu0 %11774
      %11776 = vrot.lane.b32.xlu0 %v10473, 67
      %v11777 = vpop.permute.xlu0 %11776
      %11778 = vrot.lane.b32.xlu0 %v10474, 67
      %v11779 = vpop.permute.xlu0 %11778
      %11780 = vrot.lane.b32.xlu0 %v10475, 67
      %v11781 = vpop.permute.xlu0 %11780
      %11782 = vrot.lane.b32.xlu0 %v10476, 67
      %v11783 = vpop.permute.xlu0 %11782
      %11784 = vrot.lane.b32.xlu0 %v10477, 67
      %v11785 = vpop.permute.xlu0 %11784
      %11786 = vrot.lane.b32.xlu0 %v10478, 67
      %v11787 = vpop.permute.xlu0 %11786
      %11788 = vrot.lane.b32.xlu0 %v10479, 67
      %v11789 = vpop.permute.xlu0 %11788
      %11790 = vrot.lane.b32.xlu0 %v10480, 67
      %v11791 = vpop.permute.xlu0 %11790
      %11792 = vrot.lane.b32.xlu0 %v10481, 67
      %v11793 = vpop.permute.xlu0 %11792
      %11858 = vrot.lane.b32.xlu0 %v10610, 77
      %v11859 = vpop.permute.xlu0 %11858
      %11860 = vrot.lane.b32.xlu0 %v10611, 77
      %v11861 = vpop.permute.xlu0 %11860
      %11862 = vrot.lane.b32.xlu0 %v10612, 77
      %v11863 = vpop.permute.xlu0 %11862
      %11864 = vrot.lane.b32.xlu0 %v10613, 77
      %v11865 = vpop.permute.xlu0 %11864
      %11866 = vrot.lane.b32.xlu0 %v10614, 77
      %v11867 = vpop.permute.xlu0 %11866
      %11868 = vrot.lane.b32.xlu0 %v10615, 77
      %v11869 = vpop.permute.xlu0 %11868
      %11870 = vrot.lane.b32.xlu0 %v10616, 77
      %v11871 = vpop.permute.xlu0 %11870
      %11872 = vrot.lane.b32.xlu0 %v10617, 77
      %v11873 = vpop.permute.xlu0 %11872
      %11874 = vrot.lane.b32.xlu0 %v10618, 77
      %v11875 = vpop.permute.xlu0 %11874
      %11876 = vrot.lane.b32.xlu0 %v10619, 77
      %v11877 = vpop.permute.xlu0 %11876
      %11878 = vrot.lane.b32.xlu0 %v10620, 77
      %v11879 = vpop.permute.xlu0 %11878
      %11880 = vrot.lane.b32.xlu0 %v10621, 77
      %v11881 = vpop.permute.xlu0 %11880
      %11882 = vrot.lane.b32.xlu0 %v10622, 77
      %v11883 = vpop.permute.xlu0 %11882
      %11884 = vrot.lane.b32.xlu0 %v10623, 77
      %v11885 = vpop.permute.xlu0 %11884
      %11886 = vrot.lane.b32.xlu0 %v10624, 77
      %v11887 = vpop.permute.xlu0 %11886
      %11888 = vrot.lane.b32.xlu0 %v10625, 77
      %v11889 = vpop.permute.xlu0 %11888
      %11890 = vrot.lane.b32.xlu0 %v10626, 77
      %v11891 = vpop.permute.xlu0 %11890
      %11892 = vrot.lane.b32.xlu0 %v10627, 77
      %v11893 = vpop.permute.xlu0 %11892
      %11894 = vrot.lane.b32.xlu0 %v10628, 77
      %v11895 = vpop.permute.xlu0 %11894
      %11896 = vrot.lane.b32.xlu0 %v10629, 77
      %v11897 = vpop.permute.xlu0 %11896
      %11898 = vrot.lane.b32.xlu0 %v10630, 77
      %v11899 = vpop.permute.xlu0 %11898
      %11900 = vrot.lane.b32.xlu0 %v10631, 77
      %v11901 = vpop.permute.xlu0 %11900
      %11902 = vrot.lane.b32.xlu0 %v10632, 77
      %v11903 = vpop.permute.xlu0 %11902
      %11904 = vrot.lane.b32.xlu0 %v10633, 77
      %v11905 = vpop.permute.xlu0 %11904
      %11906 = vrot.lane.b32.xlu0 %v10634, 77
      %v11907 = vpop.permute.xlu0 %11906
      %11908 = vrot.lane.b32.xlu0 %v10635, 77
      %v11909 = vpop.permute.xlu0 %11908
      %11910 = vrot.lane.b32.xlu0 %v10636, 77
      %v11911 = vpop.permute.xlu0 %11910
      %11912 = vrot.lane.b32.xlu0 %v10637, 77
      %v11913 = vpop.permute.xlu0 %11912
      %11914 = vrot.lane.b32.xlu0 %v10638, 77
      %v11915 = vpop.permute.xlu0 %11914
      %11916 = vrot.lane.b32.xlu0 %v10639, 77
      %v11917 = vpop.permute.xlu0 %11916
      %11918 = vrot.lane.b32.xlu0 %v10640, 77
      %v11919 = vpop.permute.xlu0 %11918
      %11920 = vrot.lane.b32.xlu0 %v10641, 77
      %v11921 = vpop.permute.xlu0 %11920
      %11986 = vrot.lane.b32.xlu0 %v10770, 87
      %v11987 = vpop.permute.xlu0 %11986
      %11988 = vrot.lane.b32.xlu0 %v10771, 87
      %v11989 = vpop.permute.xlu0 %11988
      %11990 = vrot.lane.b32.xlu0 %v10772, 87
      %v11991 = vpop.permute.xlu0 %11990
      %11992 = vrot.lane.b32.xlu0 %v10773, 87
      %v11993 = vpop.permute.xlu0 %11992
      %11994 = vrot.lane.b32.xlu0 %v10774, 87
      %v11995 = vpop.permute.xlu0 %11994
      %11996 = vrot.lane.b32.xlu0 %v10775, 87
      %v11997 = vpop.permute.xlu0 %11996
      %11998 = vrot.lane.b32.xlu0 %v10776, 87
      %v11999 = vpop.permute.xlu0 %11998
      %12000 = vrot.lane.b32.xlu0 %v10777, 87
      %v12001 = vpop.permute.xlu0 %12000
      %12002 = vrot.lane.b32.xlu0 %v10778, 87
      %v12003 = vpop.permute.xlu0 %12002
      %12004 = vrot.lane.b32.xlu0 %v10779, 87
      %v12005 = vpop.permute.xlu0 %12004
      %12006 = vrot.lane.b32.xlu0 %v10780, 87
      %v12007 = vpop.permute.xlu0 %12006
      %12008 = vrot.lane.b32.xlu0 %v10781, 87
      %v12009 = vpop.permute.xlu0 %12008
      %12010 = vrot.lane.b32.xlu0 %v10782, 87
      %v12011 = vpop.permute.xlu0 %12010
      %12012 = vrot.lane.b32.xlu0 %v10783, 87
      %v12013 = vpop.permute.xlu0 %12012
      %12014 = vrot.lane.b32.xlu0 %v10784, 87
      %v12015 = vpop.permute.xlu0 %12014
      %12016 = vrot.lane.b32.xlu0 %v10785, 87
      %v12017 = vpop.permute.xlu0 %12016
      %12018 = vrot.lane.b32.xlu0 %v10786, 87
      %v12019 = vpop.permute.xlu0 %12018
      %12020 = vrot.lane.b32.xlu0 %v10787, 87
      %v12021 = vpop.permute.xlu0 %12020
      %12022 = vrot.lane.b32.xlu0 %v10788, 87
      %v12023 = vpop.permute.xlu0 %12022
      %12024 = vrot.lane.b32.xlu0 %v10789, 87
      %v12025 = vpop.permute.xlu0 %12024
      %12026 = vrot.lane.b32.xlu0 %v10790, 87
      %v12027 = vpop.permute.xlu0 %12026
      %12028 = vrot.lane.b32.xlu0 %v10791, 87
      %v12029 = vpop.permute.xlu0 %12028
      %12030 = vrot.lane.b32.xlu0 %v10792, 87
      %v12031 = vpop.permute.xlu0 %12030
      %12032 = vrot.lane.b32.xlu0 %v10793, 87
      %v12033 = vpop.permute.xlu0 %12032
      %12034 = vrot.lane.b32.xlu0 %v10794, 87
      %v12035 = vpop.permute.xlu0 %12034
      %12036 = vrot.lane.b32.xlu0 %v10795, 87
      %v12037 = vpop.permute.xlu0 %12036
      %12038 = vrot.lane.b32.xlu0 %v10796, 87
      %v12039 = vpop.permute.xlu0 %12038
      %12040 = vrot.lane.b32.xlu0 %v10797, 87
      %v12041 = vpop.permute.xlu0 %12040
      %12042 = vrot.lane.b32.xlu0 %v10798, 87
      %v12043 = vpop.permute.xlu0 %12042
      %12044 = vrot.lane.b32.xlu0 %v10799, 87
      %v12045 = vpop.permute.xlu0 %12044
      %12046 = vrot.lane.b32.xlu0 %v10800, 87
      %v12047 = vpop.permute.xlu0 %12046
      %12048 = vrot.lane.b32.xlu0 %v10801, 87
      %v12049 = vpop.permute.xlu0 %12048
      %v12082 = vsel %vm1647, %v10835, %v10963
      %v12083 = vsel %vm1647, %v10837, %v10965
      %v12084 = vsel %vm1647, %v10839, %v10967
      %v12085 = vsel %vm1647, %v10841, %v10969
      %v12086 = vsel %vm1647, %v10843, %v10971
      %v12087 = vsel %vm1647, %v10845, %v10973
      %v12088 = vsel %vm1647, %v10847, %v10975
      %v12089 = vsel %vm1647, %v10849, %v10977
      %v12090 = vsel %vm1647, %v10851, %v10979
      %v12091 = vsel %vm1647, %v10853, %v10981
      %v12092 = vsel %vm1647, %v10855, %v10983
      %v12093 = vsel %vm1647, %v10857, %v10985
      %v12094 = vsel %vm1647, %v10859, %v10987
      %v12095 = vsel %vm1647, %v10861, %v10989
      %v12096 = vsel %vm1647, %v10863, %v10991
      %v12097 = vsel %vm1647, %v10865, %v10993
      %v12098 = vsel %vm1647, %v10867, %v10995
      %v12099 = vsel %vm1647, %v10869, %v10997
      %v12100 = vsel %vm1647, %v10871, %v10999
      %v12101 = vsel %vm1647, %v10873, %v11001
      %v12102 = vsel %vm1647, %v10875, %v11003
      %v12103 = vsel %vm1647, %v10877, %v11005
      %v12104 = vsel %vm1647, %v10879, %v11007
      %v12105 = vsel %vm1647, %v10881, %v11009
      %v12106 = vsel %vm1647, %v10883, %v11011
      %v12107 = vsel %vm1647, %v10885, %v11013
      %v12108 = vsel %vm1647, %v10887, %v11015
      %v12109 = vsel %vm1647, %v10889, %v11017
      %v12110 = vsel %vm1647, %v10891, %v11019
      %v12111 = vsel %vm1647, %v10893, %v11021
      %v12112 = vsel %vm1647, %v10895, %v11023
      %v12113 = vsel %vm1647, %v10897, %v11025
      %v12114 = vsel %vm1711, %v12082, %v11091
      %v12115 = vsel %vm1711, %v12083, %v11093
      %v12116 = vsel %vm1711, %v12084, %v11095
      %v12117 = vsel %vm1711, %v12085, %v11097
      %v12118 = vsel %vm1711, %v12086, %v11099
      %v12119 = vsel %vm1711, %v12087, %v11101
      %v12120 = vsel %vm1711, %v12088, %v11103
      %v12121 = vsel %vm1711, %v12089, %v11105
      %v12122 = vsel %vm1711, %v12090, %v11107
      %v12123 = vsel %vm1711, %v12091, %v11109
      %v12124 = vsel %vm1711, %v12092, %v11111
      %v12125 = vsel %vm1711, %v12093, %v11113
      %v12126 = vsel %vm1711, %v12094, %v11115
      %v12127 = vsel %vm1711, %v12095, %v11117
      %v12128 = vsel %vm1711, %v12096, %v11119
      %v12129 = vsel %vm1711, %v12097, %v11121
      %v12130 = vsel %vm1711, %v12098, %v11123
      %v12131 = vsel %vm1711, %v12099, %v11125
      %v12132 = vsel %vm1711, %v12100, %v11127
      %v12133 = vsel %vm1711, %v12101, %v11129
      %v12134 = vsel %vm1711, %v12102, %v11131
      %v12135 = vsel %vm1711, %v12103, %v11133
      %v12136 = vsel %vm1711, %v12104, %v11135
      %v12137 = vsel %vm1711, %v12105, %v11137
      %v12138 = vsel %vm1711, %v12106, %v11139
      %v12139 = vsel %vm1711, %v12107, %v11141
      %v12140 = vsel %vm1711, %v12108, %v11143
      %v12141 = vsel %vm1711, %v12109, %v11145
      %v12142 = vsel %vm1711, %v12110, %v11147
      %v12143 = vsel %vm1711, %v12111, %v11149
      %v12144 = vsel %vm1711, %v12112, %v11151
      %v12145 = vsel %vm1711, %v12113, %v11153
      %v12146 = vsel %vm1777, %v12114, %v11219
      %v12147 = vsel %vm1777, %v12115, %v11221
      %v12148 = vsel %vm1777, %v12116, %v11223
      %v12149 = vsel %vm1777, %v12117, %v11225
      %v12150 = vsel %vm1777, %v12118, %v11227
      %v12151 = vsel %vm1777, %v12119, %v11229
      %v12152 = vsel %vm1777, %v12120, %v11231
      %v12153 = vsel %vm1777, %v12121, %v11233
      %v12154 = vsel %vm1777, %v12122, %v11235
      %v12155 = vsel %vm1777, %v12123, %v11237
      %v12156 = vsel %vm1777, %v12124, %v11239
      %v12157 = vsel %vm1777, %v12125, %v11241
      %v12158 = vsel %vm1777, %v12126, %v11243
      %v12159 = vsel %vm1777, %v12127, %v11245
      %v12160 = vsel %vm1777, %v12128, %v11247
      %v12161 = vsel %vm1777, %v12129, %v11249
      %v12162 = vsel %vm1777, %v12130, %v11251
      %v12163 = vsel %vm1777, %v12131, %v11253
      %v12164 = vsel %vm1777, %v12132, %v11255
      %v12165 = vsel %vm1777, %v12133, %v11257
      %v12166 = vsel %vm1777, %v12134, %v11259
      %v12167 = vsel %vm1777, %v12135, %v11261
      %v12168 = vsel %vm1777, %v12136, %v11263
      %v12169 = vsel %vm1777, %v12137, %v11265
      %v12170 = vsel %vm1777, %v12138, %v11267
      %v12171 = vsel %vm1777, %v12139, %v11269
      %v12172 = vsel %vm1777, %v12140, %v11271
      %v12173 = vsel %vm1777, %v12141, %v11273
      %v12174 = vsel %vm1777, %v12142, %v11275
      %v12175 = vsel %vm1777, %v12143, %v11277
      %v12176 = vsel %vm1777, %v12144, %v11279
      %v12177 = vsel %vm1777, %v12145, %v11281
      %v12178 = vsel %vm1843, %v12146, %v11347
      %v12179 = vsel %vm1843, %v12147, %v11349
      %v12180 = vsel %vm1843, %v12148, %v11351
      %v12181 = vsel %vm1843, %v12149, %v11353
      %v12182 = vsel %vm1843, %v12150, %v11355
      %v12183 = vsel %vm1843, %v12151, %v11357
      %v12184 = vsel %vm1843, %v12152, %v11359
      %v12185 = vsel %vm1843, %v12153, %v11361
      %v12186 = vsel %vm1843, %v12154, %v11363
      %v12187 = vsel %vm1843, %v12155, %v11365
      %v12188 = vsel %vm1843, %v12156, %v11367
      %v12189 = vsel %vm1843, %v12157, %v11369
      %v12190 = vsel %vm1843, %v12158, %v11371
      %v12191 = vsel %vm1843, %v12159, %v11373
      %v12192 = vsel %vm1843, %v12160, %v11375
      %v12193 = vsel %vm1843, %v12161, %v11377
      %v12194 = vsel %vm1843, %v12162, %v11379
      %v12195 = vsel %vm1843, %v12163, %v11381
      %v12196 = vsel %vm1843, %v12164, %v11383
      %v12197 = vsel %vm1843, %v12165, %v11385
      %v12198 = vsel %vm1843, %v12166, %v11387
      %v12199 = vsel %vm1843, %v12167, %v11389
      %v12200 = vsel %vm1843, %v12168, %v11391
      %v12201 = vsel %vm1843, %v12169, %v11393
      %v12202 = vsel %vm1843, %v12170, %v11395
      %v12203 = vsel %vm1843, %v12171, %v11397
      %v12204 = vsel %vm1843, %v12172, %v11399
      %v12205 = vsel %vm1843, %v12173, %v11401
      %v12206 = vsel %vm1843, %v12174, %v11403
      %v12207 = vsel %vm1843, %v12175, %v11405
      %v12208 = vsel %vm1843, %v12176, %v11407
      %v12209 = vsel %vm1843, %v12177, %v11409
      %vm12210 = vcmask 408576
      %v12211 = vsel %vm12210, %v12178, %v11475
      %v12212 = vsel %vm12210, %v12179, %v11477
      %v12213 = vsel %vm12210, %v12180, %v11479
      %v12214 = vsel %vm12210, %v12181, %v11481
      %v12215 = vsel %vm12210, %v12182, %v11483
      %v12216 = vsel %vm12210, %v12183, %v11485
      %v12217 = vsel %vm12210, %v12184, %v11487
      %v12218 = vsel %vm12210, %v12185, %v11489
      %v12219 = vsel %vm12210, %v12186, %v11491
      %v12220 = vsel %vm12210, %v12187, %v11493
      %v12221 = vsel %vm12210, %v12188, %v11495
      %v12222 = vsel %vm12210, %v12189, %v11497
      %v12223 = vsel %vm12210, %v12190, %v11499
      %v12224 = vsel %vm12210, %v12191, %v11501
      %v12225 = vsel %vm12210, %v12192, %v11503
      %v12226 = vsel %vm12210, %v12193, %v11505
      %v12227 = vsel %vm12210, %v12194, %v11507
      %v12228 = vsel %vm12210, %v12195, %v11509
      %v12229 = vsel %vm12210, %v12196, %v11511
      %v12230 = vsel %vm12210, %v12197, %v11513
      %v12231 = vsel %vm12210, %v12198, %v11515
      %v12232 = vsel %vm12210, %v12199, %v11517
      %v12233 = vsel %vm12210, %v12200, %v11519
      %v12234 = vsel %vm12210, %v12201, %v11521
      %v12235 = vsel %vm12210, %v12202, %v11523
      %v12236 = vsel %vm12210, %v12203, %v11525
      %v12237 = vsel %vm12210, %v12204, %v11527
      %v12238 = vsel %vm12210, %v12205, %v11529
      %v12239 = vsel %vm12210, %v12206, %v11531
      %v12240 = vsel %vm12210, %v12207, %v11533
      %v12241 = vsel %vm12210, %v12208, %v11535
      %v12242 = vsel %vm12210, %v12209, %v11537
      %vm12243 = vcmask 490496
      %v12244 = vsel %vm12243, %v12211, %v11603
      %v12245 = vsel %vm12243, %v12212, %v11605
      %v12246 = vsel %vm12243, %v12213, %v11607
      %v12247 = vsel %vm12243, %v12214, %v11609
      %v12248 = vsel %vm12243, %v12215, %v11611
      %v12249 = vsel %vm12243, %v12216, %v11613
      %v12250 = vsel %vm12243, %v12217, %v11615
      %v12251 = vsel %vm12243, %v12218, %v11617
      %v12252 = vsel %vm12243, %v12219, %v11619
      %v12253 = vsel %vm12243, %v12220, %v11621
      %v12254 = vsel %vm12243, %v12221, %v11623
      %v12255 = vsel %vm12243, %v12222, %v11625
      %v12256 = vsel %vm12243, %v12223, %v11627
      %v12257 = vsel %vm12243, %v12224, %v11629
      %v12258 = vsel %vm12243, %v12225, %v11631
      %v12259 = vsel %vm12243, %v12226, %v11633
      %v12260 = vsel %vm12243, %v12227, %v11635
      %v12261 = vsel %vm12243, %v12228, %v11637
      %v12262 = vsel %vm12243, %v12229, %v11639
      %v12263 = vsel %vm12243, %v12230, %v11641
      %v12264 = vsel %vm12243, %v12231, %v11643
      %v12265 = vsel %vm12243, %v12232, %v11645
      %v12266 = vsel %vm12243, %v12233, %v11647
      %v12267 = vsel %vm12243, %v12234, %v11649
      %v12268 = vsel %vm12243, %v12235, %v11651
      %v12269 = vsel %vm12243, %v12236, %v11653
      %v12270 = vsel %vm12243, %v12237, %v11655
      %v12271 = vsel %vm12243, %v12238, %v11657
      %v12272 = vsel %vm12243, %v12239, %v11659
      %v12273 = vsel %vm12243, %v12240, %v11661
      %v12274 = vsel %vm12243, %v12241, %v11663
      %v12275 = vsel %vm12243, %v12242, %v11665
      %vm12276 = vcmask 572416
      %v12277 = vsel %vm12276, %v12244, %v11731
      %v12278 = vsel %vm12276, %v12245, %v11733
      %v12279 = vsel %vm12276, %v12246, %v11735
      %v12280 = vsel %vm12276, %v12247, %v11737
      %v12281 = vsel %vm12276, %v12248, %v11739
      %v12282 = vsel %vm12276, %v12249, %v11741
      %v12283 = vsel %vm12276, %v12250, %v11743
      %v12284 = vsel %vm12276, %v12251, %v11745
      %v12285 = vsel %vm12276, %v12252, %v11747
      %v12286 = vsel %vm12276, %v12253, %v11749
      %v12287 = vsel %vm12276, %v12254, %v11751
      %v12288 = vsel %vm12276, %v12255, %v11753
      %v12289 = vsel %vm12276, %v12256, %v11755
      %v12290 = vsel %vm12276, %v12257, %v11757
      %v12291 = vsel %vm12276, %v12258, %v11759
      %v12292 = vsel %vm12276, %v12259, %v11761
      %v12293 = vsel %vm12276, %v12260, %v11763
      %v12294 = vsel %vm12276, %v12261, %v11765
      %v12295 = vsel %vm12276, %v12262, %v11767
      %v12296 = vsel %vm12276, %v12263, %v11769
      %v12297 = vsel %vm12276, %v12264, %v11771
      %v12298 = vsel %vm12276, %v12265, %v11773
      %v12299 = vsel %vm12276, %v12266, %v11775
      %v12300 = vsel %vm12276, %v12267, %v11777
      %v12301 = vsel %vm12276, %v12268, %v11779
      %v12302 = vsel %vm12276, %v12269, %v11781
      %v12303 = vsel %vm12276, %v12270, %v11783
      %v12304 = vsel %vm12276, %v12271, %v11785
      %v12305 = vsel %vm12276, %v12272, %v11787
      %v12306 = vsel %vm12276, %v12273, %v11789
      %v12307 = vsel %vm12276, %v12274, %v11791
      %v12308 = vsel %vm12276, %v12275, %v11793
      %v12309 = vsel %vm5720, %v12277, %v11859
      %v12310 = vsel %vm5720, %v12278, %v11861
      %v12311 = vsel %vm5720, %v12279, %v11863
      %v12312 = vsel %vm5720, %v12280, %v11865
      %v12313 = vsel %vm5720, %v12281, %v11867
      %v12314 = vsel %vm5720, %v12282, %v11869
      %v12315 = vsel %vm5720, %v12283, %v11871
      %v12316 = vsel %vm5720, %v12284, %v11873
      %v12317 = vsel %vm5720, %v12285, %v11875
      %v12318 = vsel %vm5720, %v12286, %v11877
      %v12319 = vsel %vm5720, %v12287, %v11879
      %v12320 = vsel %vm5720, %v12288, %v11881
      %v12321 = vsel %vm5720, %v12289, %v11883
      %v12322 = vsel %vm5720, %v12290, %v11885
      %v12323 = vsel %vm5720, %v12291, %v11887
      %v12324 = vsel %vm5720, %v12292, %v11889
      %v12325 = vsel %vm5720, %v12293, %v11891
      %v12326 = vsel %vm5720, %v12294, %v11893
      %v12327 = vsel %vm5720, %v12295, %v11895
      %v12328 = vsel %vm5720, %v12296, %v11897
      %v12329 = vsel %vm5720, %v12297, %v11899
      %v12330 = vsel %vm5720, %v12298, %v11901
      %v12331 = vsel %vm5720, %v12299, %v11903
      %v12332 = vsel %vm5720, %v12300, %v11905
      %v12333 = vsel %vm5720, %v12301, %v11907
      %v12334 = vsel %vm5720, %v12302, %v11909
      %v12335 = vsel %vm5720, %v12303, %v11911
      %v12336 = vsel %vm5720, %v12304, %v11913
      %v12337 = vsel %vm5720, %v12305, %v11915
      %v12338 = vsel %vm5720, %v12306, %v11917
      %v12339 = vsel %vm5720, %v12307, %v11919
      %v12340 = vsel %vm5720, %v12308, %v11921
      %vm12341 = vcmask 736256
      %v12342 = vsel %vm12341, %v12309, %v11987
      %v12343 = vsel %vm12341, %v12310, %v11989
      %v12344 = vsel %vm12341, %v12311, %v11991
      %v12345 = vsel %vm12341, %v12312, %v11993
      %v12346 = vsel %vm12341, %v12313, %v11995
      %v12347 = vsel %vm12341, %v12314, %v11997
      %v12348 = vsel %vm12341, %v12315, %v11999
      %v12349 = vsel %vm12341, %v12316, %v12001
      %v12350 = vsel %vm12341, %v12317, %v12003
      %v12351 = vsel %vm12341, %v12318, %v12005
      %v12352 = vsel %vm12341, %v12319, %v12007
      %v12353 = vsel %vm12341, %v12320, %v12009
      %v12354 = vsel %vm12341, %v12321, %v12011
      %v12355 = vsel %vm12341, %v12322, %v12013
      %v12356 = vsel %vm12341, %v12323, %v12015
      %v12357 = vsel %vm12341, %v12324, %v12017
      %v12358 = vsel %vm12341, %v12325, %v12019
      %v12359 = vsel %vm12341, %v12326, %v12021
      %v12360 = vsel %vm12341, %v12327, %v12023
      %v12361 = vsel %vm12341, %v12328, %v12025
      %v12362 = vsel %vm12341, %v12329, %v12027
      %v12363 = vsel %vm12341, %v12330, %v12029
      %v12364 = vsel %vm12341, %v12331, %v12031
      %v12365 = vsel %vm12341, %v12332, %v12033
      %v12366 = vsel %vm12341, %v12333, %v12035
      %v12367 = vsel %vm12341, %v12334, %v12037
      %v12368 = vsel %vm12341, %v12335, %v12039
      %v12369 = vsel %vm12341, %v12336, %v12041
      %v12370 = vsel %vm12341, %v12337, %v12043
      %v12371 = vsel %vm12341, %v12338, %v12045
      %v12372 = vsel %vm12341, %v12339, %v12047
      %v12373 = vsel %vm12341, %v12340, %v12049
      %vm12374 = vcmask 818176
      %v12375 = vsel %vm12374, %v12342, -1e+30
      %v12376 = vsel %vm12374, %v12343, -1e+30
      %v12377 = vsel %vm12374, %v12344, -1e+30
      %v12378 = vsel %vm12374, %v12345, -1e+30
      %v12379 = vsel %vm12374, %v12346, -1e+30
      %v12380 = vsel %vm12374, %v12347, -1e+30
      %v12381 = vsel %vm12374, %v12348, -1e+30
      %v12382 = vsel %vm12374, %v12349, -1e+30
      %v12383 = vsel %vm12374, %v12350, -1e+30
      %v12384 = vsel %vm12374, %v12351, -1e+30
      %v12385 = vsel %vm12374, %v12352, -1e+30
      %v12386 = vsel %vm12374, %v12353, -1e+30
      %v12387 = vsel %vm12374, %v12354, -1e+30
      %v12388 = vsel %vm12374, %v12355, -1e+30
      %v12389 = vsel %vm12374, %v12356, -1e+30
      %v12390 = vsel %vm12374, %v12357, -1e+30
      %v12391 = vsel %vm12374, %v12358, -1e+30
      %v12392 = vsel %vm12374, %v12359, -1e+30
      %v12393 = vsel %vm12374, %v12360, -1e+30
      %v12394 = vsel %vm12374, %v12361, -1e+30
      %v12395 = vsel %vm12374, %v12362, -1e+30
      %v12396 = vsel %vm12374, %v12363, -1e+30
      %v12397 = vsel %vm12374, %v12364, -1e+30
      %v12398 = vsel %vm12374, %v12365, -1e+30
      %v12399 = vsel %vm12374, %v12366, -1e+30
      %v12400 = vsel %vm12374, %v12367, -1e+30
      %v12401 = vsel %vm12374, %v12368, -1e+30
      %v12402 = vsel %vm12374, %v12369, -1e+30
      %v12403 = vsel %vm12374, %v12370, -1e+30
      %v12404 = vsel %vm12374, %v12371, -1e+30
      %v12405 = vsel %vm12374, %v12372, -1e+30
      %v12406 = vsel %vm12374, %v12373, -1e+30
      %12407 = vmax.xlane.f32.xlu0 %v12375
      %v12408 = vpop.xlane.xlu0 %12407
      %12409 = vmax.xlane.f32.xlu0 %v12376
      %v12410 = vpop.xlane.xlu0 %12409
      %12411 = vmax.xlane.f32.xlu0 %v12377
      %v12412 = vpop.xlane.xlu0 %12411
      %12413 = vmax.xlane.f32.xlu0 %v12378
      %v12414 = vpop.xlane.xlu0 %12413
      %12415 = vmax.xlane.f32.xlu0 %v12379
      %v12416 = vpop.xlane.xlu0 %12415
      %12417 = vmax.xlane.f32.xlu0 %v12380
      %v12418 = vpop.xlane.xlu0 %12417
      %12419 = vmax.xlane.f32.xlu0 %v12381
      %v12420 = vpop.xlane.xlu0 %12419
      %12421 = vmax.xlane.f32.xlu0 %v12382
      %v12422 = vpop.xlane.xlu0 %12421
      %12423 = vmax.xlane.f32.xlu0 %v12383
      %v12424 = vpop.xlane.xlu0 %12423
      %12425 = vmax.xlane.f32.xlu0 %v12384
      %v12426 = vpop.xlane.xlu0 %12425
      %12427 = vmax.xlane.f32.xlu0 %v12385
      %v12428 = vpop.xlane.xlu0 %12427
      %12429 = vmax.xlane.f32.xlu0 %v12386
      %v12430 = vpop.xlane.xlu0 %12429
      %12431 = vmax.xlane.f32.xlu0 %v12387
      %v12432 = vpop.xlane.xlu0 %12431
      %12433 = vmax.xlane.f32.xlu0 %v12388
      %v12434 = vpop.xlane.xlu0 %12433
      %12435 = vmax.xlane.f32.xlu0 %v12389
      %v12436 = vpop.xlane.xlu0 %12435
      %12437 = vmax.xlane.f32.xlu0 %v12390
      %v12438 = vpop.xlane.xlu0 %12437
      %12439 = vmax.xlane.f32.xlu0 %v12391
      %v12440 = vpop.xlane.xlu0 %12439
      %12441 = vmax.xlane.f32.xlu0 %v12392
      %v12442 = vpop.xlane.xlu0 %12441
      %12443 = vmax.xlane.f32.xlu0 %v12393
      %v12444 = vpop.xlane.xlu0 %12443
      %12445 = vmax.xlane.f32.xlu0 %v12394
      %v12446 = vpop.xlane.xlu0 %12445
      %12447 = vmax.xlane.f32.xlu0 %v12395
      %v12448 = vpop.xlane.xlu0 %12447
      %12449 = vmax.xlane.f32.xlu0 %v12396
      %v12450 = vpop.xlane.xlu0 %12449
      %12451 = vmax.xlane.f32.xlu0 %v12397
      %v12452 = vpop.xlane.xlu0 %12451
      %12453 = vmax.xlane.f32.xlu0 %v12398
      %v12454 = vpop.xlane.xlu0 %12453
      %12455 = vmax.xlane.f32.xlu0 %v12399
      %v12456 = vpop.xlane.xlu0 %12455
      %12457 = vmax.xlane.f32.xlu0 %v12400
      %v12458 = vpop.xlane.xlu0 %12457
      %12459 = vmax.xlane.f32.xlu0 %v12401
      %v12460 = vpop.xlane.xlu0 %12459
      %12461 = vmax.xlane.f32.xlu0 %v12402
      %v12462 = vpop.xlane.xlu0 %12461
      %12463 = vmax.xlane.f32.xlu0 %v12403
      %v12464 = vpop.xlane.xlu0 %12463
      %12465 = vmax.xlane.f32.xlu0 %v12404
      %v12466 = vpop.xlane.xlu0 %12465
      %12467 = vmax.xlane.f32.xlu0 %v12405
      %v12468 = vpop.xlane.xlu0 %12467
      %12469 = vmax.xlane.f32.xlu0 %v12406
      %v12470 = vpop.xlane.xlu0 %12469
      %v12471 = vsub.f32 %v12375, %v12408
      %v12472 = vsub.f32 %v12376, %v12410
      %v12473 = vsub.f32 %v12377, %v12412
      %v12474 = vsub.f32 %v12378, %v12414
      %v12475 = vsub.f32 %v12379, %v12416
      %v12476 = vsub.f32 %v12380, %v12418
      %v12477 = vsub.f32 %v12381, %v12420
      %v12478 = vsub.f32 %v12382, %v12422
      %v12479 = vsub.f32 %v12383, %v12424
      %v12480 = vsub.f32 %v12384, %v12426
      %v12481 = vsub.f32 %v12385, %v12428
      %v12482 = vsub.f32 %v12386, %v12430
      %v12483 = vsub.f32 %v12387, %v12432
      %v12484 = vsub.f32 %v12388, %v12434
      %v12485 = vsub.f32 %v12389, %v12436
      %v12486 = vsub.f32 %v12390, %v12438
      %v12487 = vsub.f32 %v12391, %v12440
      %v12488 = vsub.f32 %v12392, %v12442
      %v12489 = vsub.f32 %v12393, %v12444
      %v12490 = vsub.f32 %v12394, %v12446
      %v12491 = vsub.f32 %v12395, %v12448
      %v12492 = vsub.f32 %v12396, %v12450
      %v12493 = vsub.f32 %v12397, %v12452
      %v12494 = vsub.f32 %v12398, %v12454
      %v12495 = vsub.f32 %v12399, %v12456
      %v12496 = vsub.f32 %v12400, %v12458
      %v12497 = vsub.f32 %v12401, %v12460
      %v12498 = vsub.f32 %v12402, %v12462
      %v12499 = vsub.f32 %v12403, %v12464
      %v12500 = vsub.f32 %v12404, %v12466
      %v12501 = vsub.f32 %v12405, %v12468
      %v12502 = vsub.f32 %v12406, %v12470
      %v12503 = vmul.f32 %v12471, 1.442695
      %v12504 = vpow.pop %v12503
      %v12505 = vmul.f32 %v12472, 1.442695
      %v12506 = vpow.pop %v12505
      %v12507 = vmul.f32 %v12473, 1.442695
      %v12508 = vpow.pop %v12507
      %v12509 = vmul.f32 %v12474, 1.442695
      %v12510 = vpow.pop %v12509
      %v12511 = vmul.f32 %v12475, 1.442695
      %v12512 = vpow.pop %v12511
      %v12513 = vmul.f32 %v12476, 1.442695
      %v12514 = vpow.pop %v12513
      %v12515 = vmul.f32 %v12477, 1.442695
      %v12516 = vpow.pop %v12515
      %v12517 = vmul.f32 %v12478, 1.442695
      %v12518 = vpow.pop %v12517
      %v12519 = vmul.f32 %v12479, 1.442695
      %v12520 = vpow.pop %v12519
      %v12521 = vmul.f32 %v12480, 1.442695
      %v12522 = vpow.pop %v12521
      %v12523 = vmul.f32 %v12481, 1.442695
      %v12524 = vpow.pop %v12523
      %v12525 = vmul.f32 %v12482, 1.442695
      %v12526 = vpow.pop %v12525
      %v12527 = vmul.f32 %v12483, 1.442695
      %v12528 = vpow.pop %v12527
      %v12529 = vmul.f32 %v12484, 1.442695
      %v12530 = vpow.pop %v12529
      %v12531 = vmul.f32 %v12485, 1.442695
      %v12532 = vpow.pop %v12531
      %v12533 = vmul.f32 %v12486, 1.442695
      %v12534 = vpow.pop %v12533
      %v12535 = vmul.f32 %v12487, 1.442695
      %v12536 = vpow.pop %v12535
      %v12537 = vmul.f32 %v12488, 1.442695
      %v12538 = vpow.pop %v12537
      %v12539 = vmul.f32 %v12489, 1.442695
      %v12540 = vpow.pop %v12539
      %v12541 = vmul.f32 %v12490, 1.442695
      %v12542 = vpow.pop %v12541
      %v12543 = vmul.f32 %v12491, 1.442695
      %v12544 = vpow.pop %v12543
      %v12545 = vmul.f32 %v12492, 1.442695
      %v12546 = vpow.pop %v12545
      %v12547 = vmul.f32 %v12493, 1.442695
      %v12548 = vpow.pop %v12547
      %v12549 = vmul.f32 %v12494, 1.442695
      %v12550 = vpow.pop %v12549
      %v12551 = vmul.f32 %v12495, 1.442695
      %v12552 = vpow.pop %v12551
      %v12553 = vmul.f32 %v12496, 1.442695
      %v12554 = vpow.pop %v12553
      %v12555 = vmul.f32 %v12497, 1.442695
      %v12556 = vpow.pop %v12555
      %v12557 = vmul.f32 %v12498, 1.442695
      %v12558 = vpow.pop %v12557
      %v12559 = vmul.f32 %v12499, 1.442695
      %v12560 = vpow.pop %v12559
      %v12561 = vmul.f32 %v12500, 1.442695
      %v12562 = vpow.pop %v12561
      %v12563 = vmul.f32 %v12501, 1.442695
      %v12564 = vpow.pop %v12563
      %v12565 = vmul.f32 %v12502, 1.442695
      %v12566 = vpow.pop %v12565
      %12567 = vadd.xlane.f32.xlu0 %v12504
      %v12568 = vpop.xlane.xlu0 %12567
      %12569 = vadd.xlane.f32.xlu0 %v12506
      %v12570 = vpop.xlane.xlu0 %12569
      %12571 = vadd.xlane.f32.xlu0 %v12508
      %v12572 = vpop.xlane.xlu0 %12571
      %12573 = vadd.xlane.f32.xlu0 %v12510
      %v12574 = vpop.xlane.xlu0 %12573
      %12575 = vadd.xlane.f32.xlu0 %v12512
      %v12576 = vpop.xlane.xlu0 %12575
      %12577 = vadd.xlane.f32.xlu0 %v12514
      %v12578 = vpop.xlane.xlu0 %12577
      %12579 = vadd.xlane.f32.xlu0 %v12516
      %v12580 = vpop.xlane.xlu0 %12579
      %12581 = vadd.xlane.f32.xlu0 %v12518
      %v12582 = vpop.xlane.xlu0 %12581
      %12583 = vadd.xlane.f32.xlu0 %v12520
      %v12584 = vpop.xlane.xlu0 %12583
      %12585 = vadd.xlane.f32.xlu0 %v12522
      %v12586 = vpop.xlane.xlu0 %12585
      %12587 = vadd.xlane.f32.xlu0 %v12524
      %v12588 = vpop.xlane.xlu0 %12587
      %12589 = vadd.xlane.f32.xlu0 %v12526
      %v12590 = vpop.xlane.xlu0 %12589
      %12591 = vadd.xlane.f32.xlu0 %v12528
      %v12592 = vpop.xlane.xlu0 %12591
      %12593 = vadd.xlane.f32.xlu0 %v12530
      %v12594 = vpop.xlane.xlu0 %12593
      %12595 = vadd.xlane.f32.xlu0 %v12532
      %v12596 = vpop.xlane.xlu0 %12595
      %12597 = vadd.xlane.f32.xlu0 %v12534
      %v12598 = vpop.xlane.xlu0 %12597
      %12599 = vadd.xlane.f32.xlu0 %v12536
      %v12600 = vpop.xlane.xlu0 %12599
      %12601 = vadd.xlane.f32.xlu0 %v12538
      %v12602 = vpop.xlane.xlu0 %12601
      %12603 = vadd.xlane.f32.xlu0 %v12540
      %v12604 = vpop.xlane.xlu0 %12603
      %12605 = vadd.xlane.f32.xlu0 %v12542
      %v12606 = vpop.xlane.xlu0 %12605
      %12607 = vadd.xlane.f32.xlu0 %v12544
      %v12608 = vpop.xlane.xlu0 %12607
      %12609 = vadd.xlane.f32.xlu0 %v12546
      %v12610 = vpop.xlane.xlu0 %12609
      %12611 = vadd.xlane.f32.xlu0 %v12548
      %v12612 = vpop.xlane.xlu0 %12611
      %12613 = vadd.xlane.f32.xlu0 %v12550
      %v12614 = vpop.xlane.xlu0 %12613
      %12615 = vadd.xlane.f32.xlu0 %v12552
      %v12616 = vpop.xlane.xlu0 %12615
      %12617 = vadd.xlane.f32.xlu0 %v12554
      %v12618 = vpop.xlane.xlu0 %12617
      %12619 = vadd.xlane.f32.xlu0 %v12556
      %v12620 = vpop.xlane.xlu0 %12619
      %12621 = vadd.xlane.f32.xlu0 %v12558
      %v12622 = vpop.xlane.xlu0 %12621
      %12623 = vadd.xlane.f32.xlu0 %v12560
      %v12624 = vpop.xlane.xlu0 %12623
      %12625 = vadd.xlane.f32.xlu0 %v12562
      %v12626 = vpop.xlane.xlu0 %12625
      %12627 = vadd.xlane.f32.xlu0 %v12564
      %v12628 = vpop.xlane.xlu0 %12627
      %12629 = vadd.xlane.f32.xlu0 %v12566
      %v12630 = vpop.xlane.xlu0 %12629
      %v12631 = vrcp.pop %v12568
      %v12632 = vrcp.pop %v12570
      %v12633 = vrcp.pop %v12572
      %v12634 = vrcp.pop %v12574
      %v12635 = vrcp.pop %v12576
      %v12636 = vrcp.pop %v12578
      %v12637 = vrcp.pop %v12580
      %v12638 = vrcp.pop %v12582
      %v12639 = vrcp.pop %v12584
      %v12640 = vrcp.pop %v12586
      %v12641 = vrcp.pop %v12588
      %v12642 = vrcp.pop %v12590
      %v12643 = vrcp.pop %v12592
      %v12644 = vrcp.pop %v12594
      %v12645 = vrcp.pop %v12596
      %v12646 = vrcp.pop %v12598
      %v12647 = vrcp.pop %v12600
      %v12648 = vrcp.pop %v12602
      %v12649 = vrcp.pop %v12604
      %v12650 = vrcp.pop %v12606
      %v12651 = vrcp.pop %v12608
      %v12652 = vrcp.pop %v12610
      %v12653 = vrcp.pop %v12612
      %v12654 = vrcp.pop %v12614
      %v12655 = vrcp.pop %v12616
      %v12656 = vrcp.pop %v12618
      %v12657 = vrcp.pop %v12620
      %v12658 = vrcp.pop %v12622
      %v12659 = vrcp.pop %v12624
      %v12660 = vrcp.pop %v12626
      %v12661 = vrcp.pop %v12628
      %v12662 = vrcp.pop %v12630
      %v12663 = vmul.f32 %v12504, %v12631
      %v12664 = vmul.f32 %v12506, %v12632
      %v12665 = vmul.f32 %v12508, %v12633
      %v12666 = vmul.f32 %v12510, %v12634
      %v12667 = vmul.f32 %v12512, %v12635
      %v12668 = vmul.f32 %v12514, %v12636
      %v12669 = vmul.f32 %v12516, %v12637
      %v12670 = vmul.f32 %v12518, %v12638
      %v12671 = vmul.f32 %v12520, %v12639
      %v12672 = vmul.f32 %v12522, %v12640
      %v12673 = vmul.f32 %v12524, %v12641
      %v12674 = vmul.f32 %v12526, %v12642
      %v12675 = vmul.f32 %v12528, %v12643
      %v12676 = vmul.f32 %v12530, %v12644
      %v12677 = vmul.f32 %v12532, %v12645
      %v12678 = vmul.f32 %v12534, %v12646
      %v12679 = vmul.f32 %v12536, %v12647
      %v12680 = vmul.f32 %v12538, %v12648
      %v12681 = vmul.f32 %v12540, %v12649
      %v12682 = vmul.f32 %v12542, %v12650
      %v12683 = vmul.f32 %v12544, %v12651
      %v12684 = vmul.f32 %v12546, %v12652
      %v12685 = vmul.f32 %v12548, %v12653
      %v12686 = vmul.f32 %v12550, %v12654
      %v12687 = vmul.f32 %v12552, %v12655
      %v12688 = vmul.f32 %v12554, %v12656
      %v12689 = vmul.f32 %v12556, %v12657
      %v12690 = vmul.f32 %v12558, %v12658
      %v12691 = vmul.f32 %v12560, %v12659
      %v12692 = vmul.f32 %v12562, %v12660
      %v12693 = vmul.f32 %v12564, %v12661
      %v12694 = vmul.f32 %v12566, %v12662
      %12695 = vst [vmem:[%s421] sm:$0xff] %v12663
      %12696 = vst [vmem:[%s421 + $0x8] sm:$0xff] %v12664
      %12697 = vst [vmem:[%s421 + $0x10] sm:$0xff] %v12665
      %12698 = vst [vmem:[%s421 + $0x18] sm:$0xff] %v12666
      %12699 = vst [vmem:[%s421 + $0x20] sm:$0xff] %v12667
      %12700 = vst [vmem:[%s421 + $0x28] sm:$0xff] %v12668
      %12701 = vst [vmem:[%s421 + $0x30] sm:$0xff] %v12669
      %12702 = vst [vmem:[%s421 + $0x38] sm:$0xff] %v12670
      %12703 = vst [vmem:[%s421 + $0x40] sm:$0xff] %v12671
      %12704 = vst [vmem:[%s421 + $0x48] sm:$0xff] %v12672
      %12705 = vst [vmem:[%s421 + $0x50] sm:$0xff] %v12673
      %12706 = vst [vmem:[%s421 + $0x58] sm:$0xff] %v12674
      %12707 = vst [vmem:[%s421 + $0x60] sm:$0xff] %v12675
      %12708 = vst [vmem:[%s421 + $0x68] sm:$0xff] %v12676
      %12709 = vst [vmem:[%s421 + $0x70] sm:$0xff] %v12677
      %12710 = vst [vmem:[%s421 + $0x78] sm:$0xff] %v12678
      %12711 = vst [vmem:[%s421 + $0x80] sm:$0xff] %v12679
      %12712 = vst [vmem:[%s421 + $0x88] sm:$0xff] %v12680
      %12713 = vst [vmem:[%s421 + $0x90] sm:$0xff] %v12681
      %12714 = vst [vmem:[%s421 + $0x98] sm:$0xff] %v12682
      %12715 = vst [vmem:[%s421 + $0xa0] sm:$0xff] %v12683
      %12716 = vst [vmem:[%s421 + $0xa8] sm:$0xff] %v12684
      %12717 = vst [vmem:[%s421 + $0xb0] sm:$0xff] %v12685
      %12718 = vst [vmem:[%s421 + $0xb8] sm:$0xff] %v12686
      %12719 = vst [vmem:[%s421 + $0xc0] sm:$0xff] %v12687
      %12720 = vst [vmem:[%s421 + $0xc8] sm:$0xff] %v12688
      %12721 = vst [vmem:[%s421 + $0xd0] sm:$0xff] %v12689
      %12722 = vst [vmem:[%s421 + $0xd8] sm:$0xff] %v12690
      %12723 = vst [vmem:[%s421 + $0xe0] sm:$0xff] %v12691
      %12724 = vst [vmem:[%s421 + $0xe8] sm:$0xff] %v12692
      %12725 = vst [vmem:[%s421 + $0xf0] sm:$0xff] %v12693
      %12726 = vst [vmem:[%s421 + $0xf8] sm:$0xff] %v12694
      %vm12727 = vcmask 23552
      %12728 = vst.msk [vmem:[%s426] sm:$0xff] %vm12727, %v9138
      %12729 = vst.msk [vmem:[%s426 + $0x8] sm:$0xff] %vm12727, %v9139
      %12730 = vst.msk [vmem:[%s426 + $0x10] sm:$0xff] %vm12727, %v9140
      %12731 = vst.msk [vmem:[%s426 + $0x18] sm:$0xff] %vm12727, %v9141
      %12732 = vst.msk [vmem:[%s426 + $0x20] sm:$0xff] %vm12727, %v9142
      %12733 = vst.msk [vmem:[%s426 + $0x28] sm:$0xff] %vm12727, %v9143
      %12734 = vst.msk [vmem:[%s426 + $0x30] sm:$0xff] %vm12727, %v9144
      %12735 = vst.msk [vmem:[%s426 + $0x38] sm:$0xff] %vm12727, %v9145
      %12736 = vst.msk [vmem:[%s426 + $0x40] sm:$0xff] %vm12727, %v9146
      %12737 = vst.msk [vmem:[%s426 + $0x48] sm:$0xff] %vm12727, %v9147
      %12738 = vst.msk [vmem:[%s426 + $0x50] sm:$0xff] %vm12727, %v9148
      %12739 = vst.msk [vmem:[%s426 + $0x58] sm:$0xff] %vm12727, %v9149
      %12740 = vst.msk [vmem:[%s426 + $0x60] sm:$0xff] %vm12727, %v9150
      %12741 = vst.msk [vmem:[%s426 + $0x68] sm:$0xff] %vm12727, %v9151
      %12742 = vst.msk [vmem:[%s426 + $0x70] sm:$0xff] %vm12727, %v9152
      %12743 = vst.msk [vmem:[%s426 + $0x78] sm:$0xff] %vm12727, %v9153
      %12744 = vst.msk [vmem:[%s426 + $0x80] sm:$0xff] %vm12727, %v9154
      %12745 = vst.msk [vmem:[%s426 + $0x88] sm:$0xff] %vm12727, %v9155
      %12746 = vst.msk [vmem:[%s426 + $0x90] sm:$0xff] %vm12727, %v9156
      %12747 = vst.msk [vmem:[%s426 + $0x98] sm:$0xff] %vm12727, %v9157
      %12748 = vst.msk [vmem:[%s426 + $0xa0] sm:$0xff] %vm12727, %v9158
      %12749 = vst.msk [vmem:[%s426 + $0xa8] sm:$0xff] %vm12727, %v9159
      %12750 = vst.msk [vmem:[%s426 + $0xb0] sm:$0xff] %vm12727, %v9160
      %12751 = vst.msk [vmem:[%s426 + $0xb8] sm:$0xff] %vm12727, %v9161
      %12752 = vst.msk [vmem:[%s426 + $0xc0] sm:$0xff] %vm12727, %v9162
      %12753 = vst.msk [vmem:[%s426 + $0xc8] sm:$0xff] %vm12727, %v9163
      %12754 = vst.msk [vmem:[%s426 + $0xd0] sm:$0xff] %vm12727, %v9164
      %12755 = vst.msk [vmem:[%s426 + $0xd8] sm:$0xff] %vm12727, %v9165
      %12756 = vst.msk [vmem:[%s426 + $0xe0] sm:$0xff] %vm12727, %v9166
      %12757 = vst.msk [vmem:[%s426 + $0xe8] sm:$0xff] %vm12727, %v9167
      %12758 = vst.msk [vmem:[%s426 + $0xf0] sm:$0xff] %vm12727, %v9168
      %12759 = vst.msk [vmem:[%s426 + $0xf8] sm:$0xff] %vm12727, %v9169
      %p12760 = scmp.lt.s32.totalorder %s24, 1
      %s12761 = scalar_select %p12760, %s24, 1
      %s12762 = smul.addr %s12761, 32
      %s12763 = smul.addr %s12762, 8
      %s12764 = scalar_lea.vmem %s11, %s12763
      %p12765 = scmp.lt.s32.totalorder %s24, 1
      %s12766 = scalar_select %p12765, %s24, 1
      %s12767 = smul.addr %s12766, 32
      %s12768 = smul.addr %s12767, 8
      %s12769 = scalar_lea.vmem %s12, %s12768
      // Predicated region
      $region65: #{spixel_cnn_forward.1} parent=63 // pred_check
        %p12770 = pneg %p278
      $region66: #{spixel_cnn_forward.1} parent=63 // pred_check_branch
        %12772 = sbr.rel (%p12770) target = $region68
      $region67: #{spixel_cnn_forward.1} parent=63 // pred_region
        _
      $region68: #{spixel_cnn_forward.1} parent=63 // pred_fallthru
        _
      // Predicated region
      $region69: #{spixel_cnn_forward.1} parent=63 // pred_check
        %p12773 = pneg %p304
      $region70: #{spixel_cnn_forward.1} parent=63 // pred_check_branch
        %12775 = sbr.rel (%p12773) target = $region72
      $region71: #{spixel_cnn_forward.1} parent=63 // pred_region
        _
      $region72: #{spixel_cnn_forward.1} parent=63 // pred_fallthru
        _
    $region64: #{spixel_cnn_forward.1} parent=5 // pred_fallthru
      _
    %p12776 = scmp.le.s32.totalorder 2, %s19
    // Predicated region
    $region73: #{spixel_cnn_forward.1} parent=5 // pred_check
      %p12777 = pneg %p12776
    $region74: #{spixel_cnn_forward.1} parent=5 // pred_check_branch
      %12779 = sbr.rel (%p12777) target = $region76
    $region75: #{spixel_cnn_forward.1} parent=5 // pred_region
      %s12780 = ssub.s32 %s19, 2
      // Predicated region
      $region77: #{spixel_cnn_forward.1} parent=75 // pred_check
        %p12781 = pneg %p284
      $region78: #{spixel_cnn_forward.1} parent=75 // pred_check_branch
        %12783 = sbr.rel (%p12781) target = $region80
      $region79: #{spixel_cnn_forward.1} parent=75 // pred_region
        %p12784 = scmp.lt.s32.totalorder %s25, 1
        %s12785 = scalar_select %p12784, %s25, 1
        %s12786 = smul.addr %s12785, 32
        %s12787 = smul.addr %s12786, 8
        %s12788 = scalar_lea.vmem %s11, %s12787
      $region80: #{spixel_cnn_forward.1} parent=75 // pred_fallthru
        _
      // Predicated region
      $region81: #{spixel_cnn_forward.1} parent=75 // pred_check
        %p12789 = pneg %p310
      $region82: #{spixel_cnn_forward.1} parent=75 // pred_check_branch
        %12791 = sbr.rel (%p12789) target = $region84
      $region83: #{spixel_cnn_forward.1} parent=75 // pred_region
        %p12792 = scmp.lt.s32.totalorder %s25, 1
        %s12793 = scalar_select %p12792, %s25, 1
        %s12794 = smul.addr %s12793, 32
        %s12795 = smul.addr %s12794, 8
        %s12796 = scalar_lea.vmem %s12, %s12795
      $region84: #{spixel_cnn_forward.1} parent=75 // pred_fallthru
        _
    $region76: #{spixel_cnn_forward.1} parent=5 // pred_fallthru
      _
  $region6: #{spixel_cnn_forward.1} parent=0 // loop_footer
    %s23 = sadd.s32 1, %s19
  $region7: #{spixel_cnn_forward.1} parent=0 // loop_footer_branch
    %18 = sbr.rel target = $region3
  $region8: #{spixel_cnn_forward.1} parent=0 // loop_exit
    _

</llo_original>
